<compile_context>
chip_gen: v5e
topology: v5e:2x2
jax: 0.10.0
libtpu: 0.0.40
codegen_flags: <defaults>
</compile_context>

<pallas_src>
import math
import functools

import jax
import jax.numpy as jnp
from jax import lax
from jax.experimental import pallas as pl
from jax.experimental.pallas import tpu as pltpu


# ------------------------------ small helpers ------------------------------

_VMEM_LIMIT = 48 * 1024 * 1024   # above 16/32 MiB default scoped caps, below v7x physical


def _cparams(sem):
    return pltpu.CompilerParams(dimension_semantics=sem,
                                vmem_limit_bytes=_VMEM_LIMIT)


def _row_tile(M, cap=512):
    """Row tile: multiple of 8 (sublane), <= cap, >=2 grid steps when possible.

    Ragged last blocks are handled by the pl.cdiv grid (boundary stores masked)."""
    if M > cap:
        return cap
    if M >= 16 and M % 16 == 0:
        return M // 2          # at least two steps so both v7x TensorCores get work
    return M


def _col_tile(N, cap=1024):
    """Lane-dense N tile (multiple of 128) for the generator; full N if small/odd."""
    for tn in (cap, 512, 256, 128):
        if tn <= cap and N % tn == 0 and N // tn >= 2:
            return tn
    return N


# ----------------------------- Pallas kernels -----------------------------

def _mha_ln_kernel(*refs, nhead, scale, eps, cross):
    """Fused: QKV proj -> per-head attention -> out proj -> residual -> LayerNorm.

    Blocks (one batch element per grid step):
      xq: (1,Sq,D)  [xkv: (1,Sk,D) if cross]  wqkv: (D,3D) bf16  bqkv: (1,3D)
      wo: (D,D) bf16  bo: (1,D)  amask: (Sq,Sk)  kpm: (1,1,Sk)  g/b: (1,D)
      out: (1,Sq,D)
    """
    if cross:
        (xq_ref, xkv_ref, wqkv_ref, bqkv_ref, wo_ref, bo_ref,
         amask_ref, kpm_ref, g_ref, b_ref, o_ref) = refs
    else:
        (xq_ref, wqkv_ref, bqkv_ref, wo_ref, bo_ref,
         amask_ref, kpm_ref, g_ref, b_ref, o_ref) = refs

    xq = xq_ref[0]                                  # (Sq, D) f32
    D = xq.shape[-1]
    dh = D // nhead
    wqkv = wqkv_ref[...]                            # (D, 3D) bf16
    bqkv = bqkv_ref[...]                            # (1, 3D) f32
    xq_b = xq.astype(jnp.bfloat16)

    if cross:
        xkv_b = xkv_ref[0].astype(jnp.bfloat16)     # (Sk, D) bf16
        q = jnp.dot(xq_b, wqkv[:, :D],
                    preferred_element_type=jnp.float32) + bqkv[:, :D]
        kv = jnp.dot(xkv_b, wqkv[:, D:],
                     preferred_element_type=jnp.float32) + bqkv[:, D:]
        k = kv[:, :D]
        v = kv[:, D:]
    else:
        # single fused QKV matmul (query == key == value)
        qkv = jnp.dot(xq_b, wqkv, preferred_element_type=jnp.float32) + bqkv
        q = qkv[:, :D]
        k = qkv[:, D:2 * D]
        v = qkv[:, 2 * D:]

    # additive mask built in VMEM: (Sq,Sk) attn mask + (1,Sk) key-padding mask
    mask = amask_ref[...] + kpm_ref[0]

    wo = wo_ref[...]                                # (D, D) bf16
    acc = None
    for h in range(nhead):
        sl = slice(h * dh, (h + 1) * dh)
        qh = q[:, sl].astype(jnp.bfloat16)
        kh = k[:, sl].astype(jnp.bfloat16)
        # contract the last axes directly -- no explicit k transpose (XLU-free)
        s = lax.dot_general(qh, kh, dimension_numbers=(((1,), (1,)), ((), ())),
                            preferred_element_type=jnp.float32) * scale + mask
        s = s - jnp.max(s, axis=-1, keepdims=True)
        p = jnp.exp(s)
        p = p * pl.reciprocal(jnp.sum(p, axis=-1, keepdims=True), approx=True)
        ctx_h = jnp.dot(p.astype(jnp.bfloat16), v[:, sl].astype(jnp.bfloat16),
                        preferred_element_type=jnp.float32)
        # accumulate the output projection per head (no lane-axis concatenate)
        contrib = jnp.dot(ctx_h.astype(jnp.bfloat16), wo[sl, :],
                          preferred_element_type=jnp.float32)
        acc = contrib if acc is None else acc + contrib

    attn = acc + bo_ref[...]

    # residual + LayerNorm (post-LN), f32 elementwise
    y = xq + attn
    mu = jnp.mean(y, axis=-1, keepdims=True)
    var = jnp.mean((y - mu) ** 2, axis=-1, keepdims=True)
    o_ref[0] = (y - mu) * lax.rsqrt(var + eps) * g_ref[...] + b_ref[...]


def _ffn_ln_kernel(x_ref, w1_ref, b1_ref, w2_ref, b2_ref, g_ref, bb_ref,
                   *rest, eps, extra_ln):
    """Fused: w1 + ReLU + w2 + residual + LayerNorm [+ optional fused final LN].

    dim_ff intermediate never leaves VMEM; matmul inputs bf16, accumulation f32."""
    if extra_ln:
        g2_ref, bb2_ref, o_ref = rest
    else:
        (o_ref,) = rest

    x = x_ref[...]                                               # (tm, D) f32
    h = jnp.dot(x.astype(jnp.bfloat16), w1_ref[...],
                preferred_element_type=jnp.float32) + b1_ref[...]
    h = jnp.maximum(h, 0.0)
    y = x + jnp.dot(h.astype(jnp.bfloat16), w2_ref[...],
                    preferred_element_type=jnp.float32) + b2_ref[...]

    def _ln(v, g, b):
        mu = jnp.mean(v, axis=-1, keepdims=True)
        var = jnp.mean((v - mu) ** 2, axis=-1, keepdims=True)
        return (v - mu) * lax.rsqrt(var + eps) * g + b

    y = _ln(y, g_ref[...], bb_ref[...])
    if extra_ln:                                                 # fused enc/dec final LN
        y = _ln(y, g2_ref[...], bb2_ref[...])
    o_ref[...] = y


def _linear_kernel(x_ref, w_ref, b_ref, o_ref):
    o_ref[...] = (jnp.dot(x_ref[...].astype(jnp.bfloat16), w_ref[...],
                          preferred_element_type=jnp.float32) + b_ref[...])


# --------------------------- pallas_call wrappers ---------------------------

def mha_ln_block(x_q, x_kv, p, attn_mask, kpm_add, gamma, beta, *, nhead,
                 cross, eps=1e-5):
    """x_q: (B,Sq,D); x_kv: (B,Sk,D). Returns LayerNorm(x_q + MHA(x_q, x_kv))."""
    B, Sq, D = x_q.shape
    Sk = x_kv.shape[1]
    dh = D // nhead
    scale = 1.0 / math.sqrt(dh)

    if attn_mask is None:
        attn_mask = jnp.zeros((Sq, Sk), jnp.float32)
    if kpm_add is None:
        kpm_add = jnp.zeros((B, 1, Sk), jnp.float32)
    else:
        kpm_add = kpm_add.reshape(B, 1, Sk)

    kernel = functools.partial(_mha_ln_kernel, nhead=nhead, scale=scale,
                               eps=eps, cross=cross)

    xq_spec = pl.BlockSpec((1, Sq, D), lambda b: (b, 0, 0))
    xkv_spec = pl.BlockSpec((1, Sk, D), lambda b: (b, 0, 0))
    w_specs = [
        pl.BlockSpec((D, 3 * D), lambda b: (0, 0)),     # wqkv (bf16)
        pl.BlockSpec((1, 3 * D), lambda b: (0, 0)),     # bqkv
        pl.BlockSpec((D, D), lambda b: (0, 0)),         # wo (bf16)
        pl.BlockSpec((1, D), lambda b: (0, 0)),         # bo
        pl.BlockSpec((Sq, Sk), lambda b: (0, 0)),       # attn mask
        pl.BlockSpec((1, 1, Sk), lambda b: (b, 0, 0)),  # key padding mask (additive)
        pl.BlockSpec((1, D), lambda b: (0, 0)),         # ln gamma
        pl.BlockSpec((1, D), lambda b: (0, 0)),         # ln beta
    ]

    shared_args = (p["wqkv"], p["bqkv"].reshape(1, 3 * D),
                   p["wo"], p["bo"].reshape(1, D),
                   attn_mask, kpm_add,
                   gamma.reshape(1, D), beta.reshape(1, D))
    if cross:
        in_specs = [xq_spec, xkv_spec] + w_specs
        args = (x_q, x_kv) + shared_args
    else:
        in_specs = [xq_spec] + w_specs
        args = (x_q,) + shared_args

    return pl.pallas_call(
        kernel,
        out_shape=jax.ShapeDtypeStruct((B, Sq, D), jnp.float32),
        grid=(B,),
        in_specs=in_specs,
        out_specs=pl.BlockSpec((1, Sq, D), lambda b: (b, 0, 0)),
        compiler_params=_cparams(("parallel",)),
    )(*args)


def ffn_ln(x3, p, gamma, beta, gamma2=None, beta2=None, eps=1e-5):
    """Fused FFN + residual + LayerNorm [+ optional fused final LN] over (B,S,D)."""
    B, S, D = x3.shape
    F = p["w1"].shape[1]
    M = B * S
    tm = _row_tile(M)
    extra = gamma2 is not None

    in_specs = [
        pl.BlockSpec((tm, D), lambda i: (i, 0)),
        pl.BlockSpec((D, F), lambda i: (0, 0)),
        pl.BlockSpec((1, F), lambda i: (0, 0)),
        pl.BlockSpec((F, D), lambda i: (0, 0)),
        pl.BlockSpec((1, D), lambda i: (0, 0)),
        pl.BlockSpec((1, D), lambda i: (0, 0)),
        pl.BlockSpec((1, D), lambda i: (0, 0)),
    ]
    args = [x3.reshape(M, D), p["w1"], p["b1"].reshape(1, F), p["w2"],
            p["b2"].reshape(1, D), gamma.reshape(1, D), beta.reshape(1, D)]
    if extra:
        in_specs += [pl.BlockSpec((1, D), lambda i: (0, 0)),
                     pl.BlockSpec((1, D), lambda i: (0, 0))]
        args += [gamma2.reshape(1, D), beta2.reshape(1, D)]

    out = pl.pallas_call(
        functools.partial(_ffn_ln_kernel, eps=eps, extra_ln=extra),
        out_shape=jax.ShapeDtypeStruct((M, D), jnp.float32),
        grid=(pl.cdiv(M, tm),),
        in_specs=in_specs,
        out_specs=pl.BlockSpec((tm, D), lambda i: (i, 0)),
        compiler_params=_cparams(("parallel",)),
    )(*args)
    return out.reshape(B, S, D)


def linear(x, w, b):
    """x: (M,K) f32, w: (K,N) bf16, b: (N,) f32 -> (M,N) f32. Row- and N-tiled."""
    M, K = x.shape
    N = w.shape[1]
    tm = _row_tile(M)
    tn = _col_tile(N)
    return pl.pallas_call(
        _linear_kernel,
        out_shape=jax.ShapeDtypeStruct((M, N), jnp.float32),
        grid=(pl.cdiv(M, tm), N // tn),
        in_specs=[pl.BlockSpec((tm, K), lambda i, j: (i, 0)),
                  pl.BlockSpec((K, tn), lambda i, j: (0, j)),
                  pl.BlockSpec((1, tn), lambda i, j: (0, j))],
        out_specs=pl.BlockSpec((tm, tn), lambda i, j: (i, j)),
        compiler_params=_cparams(("parallel", "parallel")),
    )(x, w, b.reshape(1, N))


# --------------------------- model building blocks -------------------------

def encoder_layer(x, p, src_mask, src_kpm_add, nhead, final_ln=None):
    x = mha_ln_block(x, x, p["self_attn"], src_mask, src_kpm_add,
                     p["norm1_g"], p["norm1_b"], nhead=nhead, cross=False)
    g2, b2 = final_ln if final_ln is not None else (None, None)
    x = ffn_ln(x, p, p["norm2_g"], p["norm2_b"], g2, b2)
    return x


def decoder_layer(x, p, memory, tgt_mask, tgt_kpm_add, mem_kpm_add, nhead,
                  final_ln=None):
    x = mha_ln_block(x, x, p["self_attn"], tgt_mask, tgt_kpm_add,
                     p["norm1_g"], p["norm1_b"], nhead=nhead, cross=False)
    x = mha_ln_block(x, memory, p["cross_attn"], None, mem_kpm_add,
                     p["norm2_g"], p["norm2_b"], nhead=nhead, cross=True)
    g2, b2 = final_ln if final_ln is not None else (None, None)
    x = ffn_ln(x, p, p["norm3_g"], p["norm3_b"], g2, b2)
    return x


def vanila_transformer_forward(params, src, tgt, src_mask, tgt_mask,
                               src_padding_mask, tgt_padding_mask,
                               memory_key_padding_mask, nhead):
    d_model = params["src_emb"].shape[1]
    scale = math.sqrt(d_model)

    # boolean key-padding masks -> additive float (True = ignore)
    def _to_add(m):
        return None if m is None else jnp.where(m, -1e9, 0.0).astype(jnp.float32)
    src_kpm_add = _to_add(src_padding_mask)
    tgt_kpm_add = _to_add(tgt_padding_mask)
    mem_kpm_add = _to_add(memory_key_padding_mask)

    # TokenEmbedding + PositionalEncoding (dropout = identity in eval mode)
    src_emb = jnp.take(params["src_emb"], src, axis=0) * scale           # (B,S,D)
    src_emb = src_emb + params["pe"][: src_emb.shape[0]]                 # pe[:B] -> (B,1,D)
    tgt_emb = jnp.take(params["tgt_emb"], tgt, axis=0) * scale
    tgt_emb = tgt_emb + params["pe"][: tgt_emb.shape[0]]

    # Encoder (final encoder LayerNorm fused into the last layer's FFN kernel)
    enc_layers = params["enc_layers"]
    x = src_emb
    for li, lp in enumerate(enc_layers):
        fl = ((params["enc_norm_g"], params["enc_norm_b"])
              if li == len(enc_layers) - 1 else None)
        x = encoder_layer(x, lp, src_mask, src_kpm_add, nhead, final_ln=fl)
    memory = x

    # Decoder (final decoder LayerNorm fused into the last layer's FFN kernel)
    dec_layers = params["dec_layers"]
    y = tgt_emb
    for li, lp in enumerate(dec_layers):
        fl = ((params["dec_norm_g"], params["dec_norm_b"])
              if li == len(dec_layers) - 1 else None)
        y = decoder_layer(y, lp, memory, tgt_mask, tgt_kpm_add, mem_kpm_add,
                          nhead, final_ln=fl)

    # Final generator linear (N-tiled over the vocab axis)
    B, St, D = y.shape
    logits = linear(y.reshape(B * St, D), params["w_out"], params["b_out"])
    return logits.reshape(B, St, -1)


# ------------------------------ parameter init ------------------------------

def _mha_params(key, d_model):
    k1, k2 = jax.random.split(key)
    return {
        "wqkv": (jax.random.normal(k1, (d_model, 3 * d_model), jnp.float32)
                 * 0.02).astype(jnp.bfloat16),
        "bqkv": jnp.zeros((3 * d_model,), jnp.float32),
        "wo": (jax.random.normal(k2, (d_model, d_model), jnp.float32)
               * 0.02).astype(jnp.bfloat16),
        "bo": jnp.zeros((d_model,), jnp.float32),
    }


def _ffn_ln_params(key, d_model, dim_ff, n_norms):
    k1, k2 = jax.random.split(key)
    p = {
        "w1": (jax.random.normal(k1, (d_model, dim_ff), jnp.float32)
               * 0.02).astype(jnp.bfloat16),
        "b1": jnp.zeros((dim_ff,), jnp.float32),
        "w2": (jax.random.normal(k2, (dim_ff, d_model), jnp.float32)
               * 0.02).astype(jnp.bfloat16),
        "b2": jnp.zeros((d_model,), jnp.float32),
    }
    for i in range(1, n_norms + 1):
        p[f"norm{i}_g"] = jnp.ones((d_model,), jnp.float32)
        p[f"norm{i}_b"] = jnp.zeros((d_model,), jnp.float32)
    return p


def init_params(key, num_encoder_layers, num_decoder_layers, d_model, nhead,
                src_vocab_size, tgt_vocab_size, dim_feedforward, maxlen=64):
    keys = jax.random.split(key, 4 + num_encoder_layers + num_decoder_layers)
    params = {}
    params["src_emb"] = jax.random.normal(keys[0], (src_vocab_size, d_model), jnp.float32) * 0.02
    params["tgt_emb"] = jax.random.normal(keys[1], (tgt_vocab_size, d_model), jnp.float32) * 0.02
    params["w_out"] = (jax.random.normal(keys[2], (d_model, tgt_vocab_size), jnp.float32)
                       * 0.02).astype(jnp.bfloat16)
    params["b_out"] = jnp.zeros((tgt_vocab_size,), jnp.float32)

    # Positional encoding table, shape (maxlen, 1, d_model) — same as the torch buffer.
    den = jnp.exp(-jnp.arange(0, d_model, 2, dtype=jnp.float32) * math.log(10000.0) / d_model)
    pos = jnp.arange(0, maxlen, dtype=jnp.float32)[:, None]
    pe = jnp.zeros((maxlen, d_model), jnp.float32)
    pe = pe.at[:, 0::2].set(jnp.sin(pos * den))
    pe = pe.at[:, 1::2].set(jnp.cos(pos * den))
    params["pe"] = pe[:, None, :]

    enc_layers = []
    for li in range(num_encoder_layers):
        ka, kb = jax.random.split(keys[4 + li])
        lp = {"self_attn": _mha_params(ka, d_model)}
        lp.update(_ffn_ln_params(kb, d_model, dim_feedforward, n_norms=2))
        enc_layers.append(lp)
    params["enc_layers"] = enc_layers
    params["enc_norm_g"] = jnp.ones((d_model,), jnp.float32)
    params["enc_norm_b"] = jnp.zeros((d_model,), jnp.float32)

    dec_layers = []
    for li in range(num_decoder_layers):
        ka, kb, kc = jax.random.split(keys[4 + num_encoder_layers + li], 3)
        lp = {"self_attn": _mha_params(ka, d_model),
              "cross_attn": _mha_params(kb, d_model)}
        lp.update(_ffn_ln_params(kc, d_model, dim_feedforward, n_norms=3))
        dec_layers.append(lp)
    params["dec_layers"] = dec_layers
    params["dec_norm_g"] = jnp.ones((d_model,), jnp.float32)
    params["dec_norm_b"] = jnp.zeros((d_model,), jnp.float32)
    return params


# ----------------------------------- main -----------------------------------

if __name__ == "__main__":
    # Small config
    num_encoder_layers = 2
    num_decoder_layers = 2
    d_model = 32
    nhead = 4
    dim_feedforward = 64
    src_vocab_size = 50
    tgt_vocab_size = 60
    B, S_src, S_tgt = 2, 8, 8

    root = jax.random.PRNGKey(0)
    k_param, k_src, k_tgt = jax.random.split(root, 3)

    params = init_params(k_param, num_encoder_layers, num_decoder_layers, d_model,
                         nhead, src_vocab_size, tgt_vocab_size, dim_feedforward)

    src = jax.random.randint(k_src, (B, S_src), 0, src_vocab_size, dtype=jnp.int32)
    tgt = jax.random.randint(k_tgt, (B, S_tgt), 0, tgt_vocab_size, dtype=jnp.int32)

    # src_mask: no masking; tgt_mask: causal (additive float, large-negative for masked)
    src_mask = jnp.zeros((S_src, S_src), jnp.float32)
    tgt_mask = jnp.where(jnp.triu(jnp.ones((S_tgt, S_tgt), bool), k=1),
                         -1e9, 0.0).astype(jnp.float32)

    # key padding masks (True = ignore). Pad the last src key position.
    src_padding_mask = jnp.zeros((B, S_src), bool).at[:, -1].set(True)
    tgt_padding_mask = jnp.zeros((B, S_tgt), bool)
    memory_key_padding_mask = src_padding_mask

    fwd = jax.jit(functools.partial(vanila_transformer_forward, nhead=nhead))
    out = fwd(params, src, tgt, src_mask, tgt_mask,
              src_padding_mask, tgt_padding_mask, memory_key_padding_mask)
    out = jax.block_until_ready(out)
    assert out.shape == (B, S_tgt, tgt_vocab_size)
    assert bool(jnp.all(jnp.isfinite(out)))
    print("KERNEL_OK")
</pallas_src>

<mosaic_0001>
module attributes {stable_mosaic.version = 11 : i64} {
  func.func @_ffn_ln_kernel(%arg0: i32, %arg1: memref<8x32xf32, #tpu.memory_space<vmem>>, %arg2: memref<32x64xbf16, #tpu.memory_space<vmem>>, %arg3: memref<1x64xf32, #tpu.memory_space<vmem>>, %arg4: memref<64x32xbf16, #tpu.memory_space<vmem>>, %arg5: memref<1x32xf32, #tpu.memory_space<vmem>>, %arg6: memref<1x32xf32, #tpu.memory_space<vmem>>, %arg7: memref<1x32xf32, #tpu.memory_space<vmem>>, %arg8: memref<8x32xf32, #tpu.memory_space<vmem>>) attributes {dimension_semantics = [#tpu.dimension_semantics<parallel>], iteration_bounds = array<i64: 2>, scalar_prefetch = 0 : i64, scratch_operands = 0 : i64, tpu.core_type = #tpu.core_type<tc>, window_params = [{transform_indices = @transform_0, window_bounds = array<i64: 8, 32>}, {pipeline_mode = #tpu.pipeline_mode<synchronous>, transform_indices = @transform_1, window_bounds = array<i64: 32, 64>}, {pipeline_mode = #tpu.pipeline_mode<synchronous>, transform_indices = @transform_2, window_bounds = array<i64: 1, 64>}, {pipeline_mode = #tpu.pipeline_mode<synchronous>, transform_indices = @transform_3, window_bounds = array<i64: 64, 32>}, {pipeline_mode = #tpu.pipeline_mode<synchronous>, transform_indices = @transform_4, window_bounds = array<i64: 1, 32>}, {pipeline_mode = #tpu.pipeline_mode<synchronous>, transform_indices = @transform_5, window_bounds = array<i64: 1, 32>}, {pipeline_mode = #tpu.pipeline_mode<synchronous>, transform_indices = @transform_6, window_bounds = array<i64: 1, 32>}, {transform_indices = @transform_7, window_bounds = array<i64: 8, 32>}]} {
    %c0 = arith.constant 0 : index
    %c0_0 = arith.constant 0 : index
    %0 = vector.load %arg1[%c0, %c0_0] : memref<8x32xf32, #tpu.memory_space<vmem>>, vector<8x32xf32>
    %1 = arith.truncf %0 : vector<8x32xf32> to vector<8x32xbf16>
    %c0_1 = arith.constant 0 : index
    %c0_2 = arith.constant 0 : index
    %2 = vector.load %arg2[%c0_1, %c0_2] : memref<32x64xbf16, #tpu.memory_space<vmem>>, vector<32x64xbf16>
    %cst = arith.constant dense<0.000000e+00> : vector<8x64xf32>
    %3 = tpu.matmul %1, %2, %cst {dimension_numbers = #tpu.dot_dimension_numbers<[1], [0], [0], [1], [0, 0, 1, 1], [], []>} : vector<8x32xbf16>, vector<32x64xbf16>, vector<8x64xf32> -> vector<8x64xf32>
    %c0_3 = arith.constant 0 : index
    %c0_4 = arith.constant 0 : index
    %4 = vector.load %arg3[%c0_3, %c0_4] : memref<1x64xf32, #tpu.memory_space<vmem>>, vector<1x64xf32>
    %5 = vector.broadcast %4 : vector<1x64xf32> to vector<8x64xf32>
    %6 = arith.addf %3, %5 : vector<8x64xf32>
    %cst_5 = arith.constant 0.000000e+00 : f32
    %7 = vector.broadcast %cst_5 : f32 to vector<8x64xf32>
    %8 = arith.maximumf %6, %7 : vector<8x64xf32>
    %9 = arith.truncf %8 : vector<8x64xf32> to vector<8x64xbf16>
    %c0_6 = arith.constant 0 : index
    %c0_7 = arith.constant 0 : index
    %10 = vector.load %arg4[%c0_6, %c0_7] : memref<64x32xbf16, #tpu.memory_space<vmem>>, vector<64x32xbf16>
    %cst_8 = arith.constant dense<0.000000e+00> : vector<8x32xf32>
    %11 = tpu.matmul %9, %10, %cst_8 {dimension_numbers = #tpu.dot_dimension_numbers<[1], [0], [0], [1], [0, 0, 1, 1], [], []>} : vector<8x64xbf16>, vector<64x32xbf16>, vector<8x32xf32> -> vector<8x32xf32>
    %12 = arith.addf %0, %11 : vector<8x32xf32>
    %c0_9 = arith.constant 0 : index
    %c0_10 = arith.constant 0 : index
    %13 = vector.load %arg5[%c0_9, %c0_10] : memref<1x32xf32, #tpu.memory_space<vmem>>, vector<1x32xf32>
    %14 = vector.broadcast %13 : vector<1x32xf32> to vector<8x32xf32>
    %15 = arith.addf %12, %14 : vector<8x32xf32>
    %c0_11 = arith.constant 0 : index
    %c0_12 = arith.constant 0 : index
    %16 = vector.load %arg6[%c0_11, %c0_12] : memref<1x32xf32, #tpu.memory_space<vmem>>, vector<1x32xf32>
    %c0_13 = arith.constant 0 : index
    %c0_14 = arith.constant 0 : index
    %17 = vector.load %arg7[%c0_13, %c0_14] : memref<1x32xf32, #tpu.memory_space<vmem>>, vector<1x32xf32>
    %cst_15 = arith.constant dense<0.000000e+00> : vector<8xf32>
    %18 = vector.multi_reduction <add>, %15, %cst_15 [1] : vector<8x32xf32> to vector<8xf32>
    %19 = vector.shape_cast %18 : vector<8xf32> to vector<8x1xf32>
    %cst_16 = arith.constant 3.200000e+01 : f32
    %20 = vector.broadcast %cst_16 : f32 to vector<8x1xf32>
    %21 = arith.divf %19, %20 : vector<8x1xf32>
    %22 = vector.broadcast %21 : vector<8x1xf32> to vector<8x32xf32>
    %23 = arith.subf %15, %22 : vector<8x32xf32>
    %24 = arith.mulf %23, %23 : vector<8x32xf32>
    %cst_17 = arith.constant dense<0.000000e+00> : vector<8xf32>
    %25 = vector.multi_reduction <add>, %24, %cst_17 [1] : vector<8x32xf32> to vector<8xf32>
    %26 = vector.shape_cast %25 : vector<8xf32> to vector<8x1xf32>
    %cst_18 = arith.constant 3.200000e+01 : f32
    %27 = vector.broadcast %cst_18 : f32 to vector<8x1xf32>
    %28 = arith.divf %26, %27 : vector<8x1xf32>
    %29 = vector.broadcast %21 : vector<8x1xf32> to vector<8x32xf32>
    %30 = arith.subf %15, %29 : vector<8x32xf32>
    %cst_19 = arith.constant 9.99999974E-6 : f32
    %31 = vector.broadcast %cst_19 : f32 to vector<8x1xf32>
    %32 = arith.addf %28, %31 : vector<8x1xf32>
    %33 = math.rsqrt %32 : vector<8x1xf32>
    %34 = vector.broadcast %33 : vector<8x1xf32> to vector<8x32xf32>
    %35 = arith.mulf %30, %34 : vector<8x32xf32>
    %36 = vector.broadcast %16 : vector<1x32xf32> to vector<8x32xf32>
    %37 = arith.mulf %35, %36 : vector<8x32xf32>
    %38 = vector.broadcast %17 : vector<1x32xf32> to vector<8x32xf32>
    %39 = arith.addf %37, %38 : vector<8x32xf32>
    %c0_20 = arith.constant 0 : index
    %c0_21 = arith.constant 0 : index
    %40 = vector.load %arg8[%c0_20, %c0_21] : memref<8x32xf32, #tpu.memory_space<vmem>>, vector<8x32xf32>
    tpu.vector_store %arg8[%c0_20, %c0_21], %39 {strides = array<i32>} : memref<8x32xf32, #tpu.memory_space<vmem>>, vector<8x32xf32>,
    return
  }
  func.func @transform_0(%arg0: i32) -> (i32, i32) {
    %c0_i32 = arith.constant 0 : i32
    %c0_i32_0 = arith.constant 0 : i32
    return %arg0, %c0_i32 : i32, i32
  }
  func.func @transform_1(%arg0: i32) -> (i32, i32) {
    %c0_i32 = arith.constant 0 : i32
    %c0_i32_0 = arith.constant 0 : i32
    %c0_i32_1 = arith.constant 0 : i32
    return %c0_i32, %c0_i32_0 : i32, i32
  }
  func.func @transform_2(%arg0: i32) -> (i32, i32) {
    %c0_i32 = arith.constant 0 : i32
    %c0_i32_0 = arith.constant 0 : i32
    %c0_i32_1 = arith.constant 0 : i32
    return %c0_i32, %c0_i32_0 : i32, i32
  }
  func.func @transform_3(%arg0: i32) -> (i32, i32) {
    %c0_i32 = arith.constant 0 : i32
    %c0_i32_0 = arith.constant 0 : i32
    %c0_i32_1 = arith.constant 0 : i32
    return %c0_i32, %c0_i32_0 : i32, i32
  }
  func.func @transform_4(%arg0: i32) -> (i32, i32) {
    %c0_i32 = arith.constant 0 : i32
    %c0_i32_0 = arith.constant 0 : i32
    %c0_i32_1 = arith.constant 0 : i32
    return %c0_i32, %c0_i32_0 : i32, i32
  }
  func.func @transform_5(%arg0: i32) -> (i32, i32) {
    %c0_i32 = arith.constant 0 : i32
    %c0_i32_0 = arith.constant 0 : i32
    %c0_i32_1 = arith.constant 0 : i32
    return %c0_i32, %c0_i32_0 : i32, i32
  }
  func.func @transform_6(%arg0: i32) -> (i32, i32) {
    %c0_i32 = arith.constant 0 : i32
    %c0_i32_0 = arith.constant 0 : i32
    %c0_i32_1 = arith.constant 0 : i32
    return %c0_i32, %c0_i32_0 : i32, i32
  }
  func.func @transform_7(%arg0: i32) -> (i32, i32) {
    %c0_i32 = arith.constant 0 : i32
    %c0_i32_0 = arith.constant 0 : i32
    return %arg0, %c0_i32 : i32, i32
  }
}

module attributes {stable_mosaic.version = 11 : i64} {
  func.func @_ffn_ln_kernel(%arg0: i32, %arg1: memref<8x32xf32, #tpu.memory_space<vmem>>, %arg2: memref<32x64xbf16, #tpu.memory_space<vmem>>, %arg3: memref<1x64xf32, #tpu.memory_space<vmem>>, %arg4: memref<64x32xbf16, #tpu.memory_space<vmem>>, %arg5: memref<1x32xf32, #tpu.memory_space<vmem>>, %arg6: memref<1x32xf32, #tpu.memory_space<vmem>>, %arg7: memref<1x32xf32, #tpu.memory_space<vmem>>, %arg8: memref<1x32xf32, #tpu.memory_space<vmem>>, %arg9: memref<1x32xf32, #tpu.memory_space<vmem>>, %arg10: memref<8x32xf32, #tpu.memory_space<vmem>>) attributes {dimension_semantics = [#tpu.dimension_semantics<parallel>], iteration_bounds = array<i64: 2>, scalar_prefetch = 0 : i64, scratch_operands = 0 : i64, tpu.core_type = #tpu.core_type<tc>, window_params = [{transform_indices = @transform_0, window_bounds = array<i64: 8, 32>}, {pipeline_mode = #tpu.pipeline_mode<synchronous>, transform_indices = @transform_1, window_bounds = array<i64: 32, 64>}, {pipeline_mode = #tpu.pipeline_mode<synchronous>, transform_indices = @transform_2, window_bounds = array<i64: 1, 64>}, {pipeline_mode = #tpu.pipeline_mode<synchronous>, transform_indices = @transform_3, window_bounds = array<i64: 64, 32>}, {pipeline_mode = #tpu.pipeline_mode<synchronous>, transform_indices = @transform_4, window_bounds = array<i64: 1, 32>}, {pipeline_mode = #tpu.pipeline_mode<synchronous>, transform_indices = @transform_5, window_bounds = array<i64: 1, 32>}, {pipeline_mode = #tpu.pipeline_mode<synchronous>, transform_indices = @transform_6, window_bounds = array<i64: 1, 32>}, {pipeline_mode = #tpu.pipeline_mode<synchronous>, transform_indices = @transform_7, window_bounds = array<i64: 1, 32>}, {pipeline_mode = #tpu.pipeline_mode<synchronous>, transform_indices = @transform_8, window_bounds = array<i64: 1, 32>}, {transform_indices = @transform_9, window_bounds = array<i64: 8, 32>}]} {
    %c0 = arith.constant 0 : index
    %c0_0 = arith.constant 0 : index
    %0 = vector.load %arg1[%c0, %c0_0] : memref<8x32xf32, #tpu.memory_space<vmem>>, vector<8x32xf32>
    %1 = arith.truncf %0 : vector<8x32xf32> to vector<8x32xbf16>
    %c0_1 = arith.constant 0 : index
    %c0_2 = arith.constant 0 : index
    %2 = vector.load %arg2[%c0_1, %c0_2] : memref<32x64xbf16, #tpu.memory_space<vmem>>, vector<32x64xbf16>
    %cst = arith.constant dense<0.000000e+00> : vector<8x64xf32>
    %3 = tpu.matmul %1, %2, %cst {dimension_numbers = #tpu.dot_dimension_numbers<[1], [0], [0], [1], [0, 0, 1, 1], [], []>} : vector<8x32xbf16>, vector<32x64xbf16>, vector<8x64xf32> -> vector<8x64xf32>
    %c0_3 = arith.constant 0 : index
    %c0_4 = arith.constant 0 : index
    %4 = vector.load %arg3[%c0_3, %c0_4] : memref<1x64xf32, #tpu.memory_space<vmem>>, vector<1x64xf32>
    %5 = vector.broadcast %4 : vector<1x64xf32> to vector<8x64xf32>
    %6 = arith.addf %3, %5 : vector<8x64xf32>
    %cst_5 = arith.constant 0.000000e+00 : f32
    %7 = vector.broadcast %cst_5 : f32 to vector<8x64xf32>
    %8 = arith.maximumf %6, %7 : vector<8x64xf32>
    %9 = arith.truncf %8 : vector<8x64xf32> to vector<8x64xbf16>
    %c0_6 = arith.constant 0 : index
    %c0_7 = arith.constant 0 : index
    %10 = vector.load %arg4[%c0_6, %c0_7] : memref<64x32xbf16, #tpu.memory_space<vmem>>, vector<64x32xbf16>
    %cst_8 = arith.constant dense<0.000000e+00> : vector<8x32xf32>
    %11 = tpu.matmul %9, %10, %cst_8 {dimension_numbers = #tpu.dot_dimension_numbers<[1], [0], [0], [1], [0, 0, 1, 1], [], []>} : vector<8x64xbf16>, vector<64x32xbf16>, vector<8x32xf32> -> vector<8x32xf32>
    %12 = arith.addf %0, %11 : vector<8x32xf32>
    %c0_9 = arith.constant 0 : index
    %c0_10 = arith.constant 0 : index
    %13 = vector.load %arg5[%c0_9, %c0_10] : memref<1x32xf32, #tpu.memory_space<vmem>>, vector<1x32xf32>
    %14 = vector.broadcast %13 : vector<1x32xf32> to vector<8x32xf32>
    %15 = arith.addf %12, %14 : vector<8x32xf32>
    %c0_11 = arith.constant 0 : index
    %c0_12 = arith.constant 0 : index
    %16 = vector.load %arg6[%c0_11, %c0_12] : memref<1x32xf32, #tpu.memory_space<vmem>>, vector<1x32xf32>
    %c0_13 = arith.constant 0 : index
    %c0_14 = arith.constant 0 : index
    %17 = vector.load %arg7[%c0_13, %c0_14] : memref<1x32xf32, #tpu.memory_space<vmem>>, vector<1x32xf32>
    %cst_15 = arith.constant dense<0.000000e+00> : vector<8xf32>
    %18 = vector.multi_reduction <add>, %15, %cst_15 [1] : vector<8x32xf32> to vector<8xf32>
    %19 = vector.shape_cast %18 : vector<8xf32> to vector<8x1xf32>
    %cst_16 = arith.constant 3.200000e+01 : f32
    %20 = vector.broadcast %cst_16 : f32 to vector<8x1xf32>
    %21 = arith.divf %19, %20 : vector<8x1xf32>
    %22 = vector.broadcast %21 : vector<8x1xf32> to vector<8x32xf32>
    %23 = arith.subf %15, %22 : vector<8x32xf32>
    %24 = arith.mulf %23, %23 : vector<8x32xf32>
    %cst_17 = arith.constant dense<0.000000e+00> : vector<8xf32>
    %25 = vector.multi_reduction <add>, %24, %cst_17 [1] : vector<8x32xf32> to vector<8xf32>
    %26 = vector.shape_cast %25 : vector<8xf32> to vector<8x1xf32>
    %cst_18 = arith.constant 3.200000e+01 : f32
    %27 = vector.broadcast %cst_18 : f32 to vector<8x1xf32>
    %28 = arith.divf %26, %27 : vector<8x1xf32>
    %29 = vector.broadcast %21 : vector<8x1xf32> to vector<8x32xf32>
    %30 = arith.subf %15, %29 : vector<8x32xf32>
    %cst_19 = arith.constant 9.99999974E-6 : f32
    %31 = vector.broadcast %cst_19 : f32 to vector<8x1xf32>
    %32 = arith.addf %28, %31 : vector<8x1xf32>
    %33 = math.rsqrt %32 : vector<8x1xf32>
    %34 = vector.broadcast %33 : vector<8x1xf32> to vector<8x32xf32>
    %35 = arith.mulf %30, %34 : vector<8x32xf32>
    %36 = vector.broadcast %16 : vector<1x32xf32> to vector<8x32xf32>
    %37 = arith.mulf %35, %36 : vector<8x32xf32>
    %38 = vector.broadcast %17 : vector<1x32xf32> to vector<8x32xf32>
    %39 = arith.addf %37, %38 : vector<8x32xf32>
    %c0_20 = arith.constant 0 : index
    %c0_21 = arith.constant 0 : index
    %40 = vector.load %arg8[%c0_20, %c0_21] : memref<1x32xf32, #tpu.memory_space<vmem>>, vector<1x32xf32>
    %c0_22 = arith.constant 0 : index
    %c0_23 = arith.constant 0 : index
    %41 = vector.load %arg9[%c0_22, %c0_23] : memref<1x32xf32, #tpu.memory_space<vmem>>, vector<1x32xf32>
    %cst_24 = arith.constant dense<0.000000e+00> : vector<8xf32>
    %42 = vector.multi_reduction <add>, %39, %cst_24 [1] : vector<8x32xf32> to vector<8xf32>
    %43 = vector.shape_cast %42 : vector<8xf32> to vector<8x1xf32>
    %cst_25 = arith.constant 3.200000e+01 : f32
    %44 = vector.broadcast %cst_25 : f32 to vector<8x1xf32>
    %45 = arith.divf %43, %44 : vector<8x1xf32>
    %46 = vector.broadcast %45 : vector<8x1xf32> to vector<8x32xf32>
    %47 = arith.subf %39, %46 : vector<8x32xf32>
    %48 = arith.mulf %47, %47 : vector<8x32xf32>
    %cst_26 = arith.constant dense<0.000000e+00> : vector<8xf32>
    %49 = vector.multi_reduction <add>, %48, %cst_26 [1] : vector<8x32xf32> to vector<8xf32>
    %50 = vector.shape_cast %49 : vector<8xf32> to vector<8x1xf32>
    %cst_27 = arith.constant 3.200000e+01 : f32
    %51 = vector.broadcast %cst_27 : f32 to vector<8x1xf32>
    %52 = arith.divf %50, %51 : vector<8x1xf32>
    %53 = vector.broadcast %45 : vector<8x1xf32> to vector<8x32xf32>
    %54 = arith.subf %39, %53 : vector<8x32xf32>
    %cst_28 = arith.constant 9.99999974E-6 : f32
    %55 = vector.broadcast %cst_28 : f32 to vector<8x1xf32>
    %56 = arith.addf %52, %55 : vector<8x1xf32>
    %57 = math.rsqrt %56 : vector<8x1xf32>
    %58 = vector.broadcast %57 : vector<8x1xf32> to vector<8x32xf32>
    %59 = arith.mulf %54, %58 : vector<8x32xf32>
    %60 = vector.broadcast %40 : vector<1x32xf32> to vector<8x32xf32>
    %61 = arith.mulf %59, %60 : vector<8x32xf32>
    %62 = vector.broadcast %41 : vector<1x32xf32> to vector<8x32xf32>
    %63 = arith.addf %61, %62 : vector<8x32xf32>
    %c0_29 = arith.constant 0 : index
    %c0_30 = arith.constant 0 : index
    %64 = vector.load %arg10[%c0_29, %c0_30] : memref<8x32xf32, #tpu.memory_space<vmem>>, vector<8x32xf32>
    tpu.vector_store %arg10[%c0_29, %c0_30], %63 {strides = array<i32>} : memref<8x32xf32, #tpu.memory_space<vmem>>, vector<8x32xf32>,
    return
  }
  func.func @transform_0(%arg0: i32) -> (i32, i32) {
    %c0_i32 = arith.constant 0 : i32
    %c0_i32_0 = arith.constant 0 : i32
    return %arg0, %c0_i32 : i32, i32
  }
  func.func @transform_1(%arg0: i32) -> (i32, i32) {
    %c0_i32 = arith.constant 0 : i32
    %c0_i32_0 = arith.constant 0 : i32
    %c0_i32_1 = arith.constant 0 : i32
    return %c0_i32, %c0_i32_0 : i32, i32
  }
  func.func @transform_2(%arg0: i32) -> (i32, i32) {
    %c0_i32 = arith.constant 0 : i32
    %c0_i32_0 = arith.constant 0 : i32
    %c0_i32_1 = arith.constant 0 : i32
    return %c0_i32, %c0_i32_0 : i32, i32
  }
  func.func @transform_3(%arg0: i32) -> (i32, i32) {
    %c0_i32 = arith.constant 0 : i32
    %c0_i32_0 = arith.constant 0 : i32
    %c0_i32_1 = arith.constant 0 : i32
    return %c0_i32, %c0_i32_0 : i32, i32
  }
  func.func @transform_4(%arg0: i32) -> (i32, i32) {
    %c0_i32 = arith.constant 0 : i32
    %c0_i32_0 = arith.constant 0 : i32
    %c0_i32_1 = arith.constant 0 : i32
    return %c0_i32, %c0_i32_0 : i32, i32
  }
  func.func @transform_5(%arg0: i32) -> (i32, i32) {
    %c0_i32 = arith.constant 0 : i32
    %c0_i32_0 = arith.constant 0 : i32
    %c0_i32_1 = arith.constant 0 : i32
    return %c0_i32, %c0_i32_0 : i32, i32
  }
  func.func @transform_6(%arg0: i32) -> (i32, i32) {
    %c0_i32 = arith.constant 0 : i32
    %c0_i32_0 = arith.constant 0 : i32
    %c0_i32_1 = arith.constant 0 : i32
    return %c0_i32, %c0_i32_0 : i32, i32
  }
  func.func @transform_7(%arg0: i32) -> (i32, i32) {
    %c0_i32 = arith.constant 0 : i32
    %c0_i32_0 = arith.constant 0 : i32
    %c0_i32_1 = arith.constant 0 : i32
    return %c0_i32, %c0_i32_0 : i32, i32
  }
  func.func @transform_8(%arg0: i32) -> (i32, i32) {
    %c0_i32 = arith.constant 0 : i32
    %c0_i32_0 = arith.constant 0 : i32
    %c0_i32_1 = arith.constant 0 : i32
    return %c0_i32, %c0_i32_0 : i32, i32
  }
  func.func @transform_9(%arg0: i32) -> (i32, i32) {
    %c0_i32 = arith.constant 0 : i32
    %c0_i32_0 = arith.constant 0 : i32
    return %arg0, %c0_i32 : i32, i32
  }
}

module attributes {stable_mosaic.version = 11 : i64} {
  func.func @_mha_ln_kernel(%arg0: i32, %arg1: memref<1x8x32xf32, #tpu.memory_space<vmem>>, %arg2: memref<32x96xbf16, #tpu.memory_space<vmem>>, %arg3: memref<1x96xf32, #tpu.memory_space<vmem>>, %arg4: memref<32x32xbf16, #tpu.memory_space<vmem>>, %arg5: memref<1x32xf32, #tpu.memory_space<vmem>>, %arg6: memref<8x8xf32, #tpu.memory_space<vmem>>, %arg7: memref<1x1x8xf32, #tpu.memory_space<vmem>>, %arg8: memref<1x32xf32, #tpu.memory_space<vmem>>, %arg9: memref<1x32xf32, #tpu.memory_space<vmem>>, %arg10: memref<1x8x32xf32, #tpu.memory_space<vmem>>) attributes {dimension_semantics = [#tpu.dimension_semantics<parallel>], iteration_bounds = array<i64: 2>, scalar_prefetch = 0 : i64, scratch_operands = 0 : i64, tpu.core_type = #tpu.core_type<tc>, window_params = [{transform_indices = @transform_0, window_bounds = array<i64: 1, 8, 32>}, {pipeline_mode = #tpu.pipeline_mode<synchronous>, transform_indices = @transform_1, window_bounds = array<i64: 32, 96>}, {pipeline_mode = #tpu.pipeline_mode<synchronous>, transform_indices = @transform_2, window_bounds = array<i64: 1, 96>}, {pipeline_mode = #tpu.pipeline_mode<synchronous>, transform_indices = @transform_3, window_bounds = array<i64: 32, 32>}, {pipeline_mode = #tpu.pipeline_mode<synchronous>, transform_indices = @transform_4, window_bounds = array<i64: 1, 32>}, {pipeline_mode = #tpu.pipeline_mode<synchronous>, transform_indices = @transform_5, window_bounds = array<i64: 8, 8>}, {transform_indices = @transform_6, window_bounds = array<i64: 1, 1, 8>}, {pipeline_mode = #tpu.pipeline_mode<synchronous>, transform_indices = @transform_7, window_bounds = array<i64: 1, 32>}, {pipeline_mode = #tpu.pipeline_mode<synchronous>, transform_indices = @transform_8, window_bounds = array<i64: 1, 32>}, {transform_indices = @transform_9, window_bounds = array<i64: 1, 8, 32>}]} {
    %c0 = arith.constant 0 : index
    %c0_0 = arith.constant 0 : index
    %c0_1 = arith.constant 0 : index
    %0 = vector.load %arg1[%c0, %c0_0, %c0_1] : memref<1x8x32xf32, #tpu.memory_space<vmem>>, vector<1x8x32xf32>
    %1 = vector.shape_cast %0 : vector<1x8x32xf32> to vector<8x32xf32>
    %c0_2 = arith.constant 0 : index
    %c0_3 = arith.constant 0 : index
    %2 = vector.load %arg2[%c0_2, %c0_3] : memref<32x96xbf16, #tpu.memory_space<vmem>>, vector<32x96xbf16>
    %c0_4 = arith.constant 0 : index
    %c0_5 = arith.constant 0 : index
    %3 = vector.load %arg3[%c0_4, %c0_5] : memref<1x96xf32, #tpu.memory_space<vmem>>, vector<1x96xf32>
    %4 = arith.truncf %1 : vector<8x32xf32> to vector<8x32xbf16>
    %cst = arith.constant dense<0.000000e+00> : vector<8x96xf32>
    %5 = tpu.matmul %4, %2, %cst {dimension_numbers = #tpu.dot_dimension_numbers<[1], [0], [0], [1], [0, 0, 1, 1], [], []>} : vector<8x32xbf16>, vector<32x96xbf16>, vector<8x96xf32> -> vector<8x96xf32>
    %6 = vector.broadcast %3 : vector<1x96xf32> to vector<8x96xf32>
    %7 = arith.addf %5, %6 : vector<8x96xf32>
    %8 = vector.extract_strided_slice %7 {offsets = [0, 0], sizes = [8, 32], strides = [1, 1]} : vector<8x96xf32> to vector<8x32xf32>
    %9 = vector.extract_strided_slice %7 {offsets = [0, 32], sizes = [8, 32], strides = [1, 1]} : vector<8x96xf32> to vector<8x32xf32>
    %10 = vector.extract_strided_slice %7 {offsets = [0, 64], sizes = [8, 32], strides = [1, 1]} : vector<8x96xf32> to vector<8x32xf32>
    %c0_6 = arith.constant 0 : index
    %c0_7 = arith.constant 0 : index
    %11 = vector.load %arg6[%c0_6, %c0_7] : memref<8x8xf32, #tpu.memory_space<vmem>>, vector<8x8xf32>
    %c0_8 = arith.constant 0 : index
    %c0_9 = arith.constant 0 : index
    %c0_10 = arith.constant 0 : index
    %12 = vector.load %arg7[%c0_8, %c0_9, %c0_10] : memref<1x1x8xf32, #tpu.memory_space<vmem>>, vector<1x1x8xf32>
    %13 = vector.shape_cast %12 : vector<1x1x8xf32> to vector<1x8xf32>
    %14 = vector.broadcast %13 : vector<1x8xf32> to vector<8x8xf32>
    %15 = arith.addf %11, %14 : vector<8x8xf32>
    %c0_11 = arith.constant 0 : index
    %c0_12 = arith.constant 0 : index
    %16 = vector.load %arg4[%c0_11, %c0_12] : memref<32x32xbf16, #tpu.memory_space<vmem>>, vector<32x32xbf16>
    %17 = vector.extract_strided_slice %8 {offsets = [0, 0], sizes = [8, 8], strides = [1, 1]} : vector<8x32xf32> to vector<8x8xf32>
    %18 = arith.truncf %17 : vector<8x8xf32> to vector<8x8xbf16>
    %19 = vector.extract_strided_slice %9 {offsets = [0, 0], sizes = [8, 8], strides = [1, 1]} : vector<8x32xf32> to vector<8x8xf32>
    %20 = arith.truncf %19 : vector<8x8xf32> to vector<8x8xbf16>
    %cst_13 = arith.constant dense<0.000000e+00> : vector<8x8xf32>
    %21 = tpu.matmul %18, %20, %cst_13 {dimension_numbers = #tpu.dot_dimension_numbers<[1], [1], [0], [0], [0, 0, 1, 0], [], []>} : vector<8x8xbf16>, vector<8x8xbf16>, vector<8x8xf32> -> vector<8x8xf32>
    %cst_14 = arith.constant 0.353553385 : f32
    %22 = vector.broadcast %cst_14 : f32 to vector<8x8xf32>
    %23 = arith.mulf %21, %22 : vector<8x8xf32>
    %24 = arith.addf %23, %15 : vector<8x8xf32>
    %cst_15 = arith.constant dense<0xFF800000> : vector<8xf32>
    %25 = vector.multi_reduction <maximumf>, %24, %cst_15 [1] : vector<8x8xf32> to vector<8xf32>
    %26 = vector.shape_cast %25 : vector<8xf32> to vector<8x1xf32>
    %27 = vector.broadcast %26 : vector<8x1xf32> to vector<8x8xf32>
    %28 = arith.subf %24, %27 : vector<8x8xf32>
    %29 = math.exp %28 : vector<8x8xf32>
    %cst_16 = arith.constant dense<0.000000e+00> : vector<8xf32>
    %30 = vector.multi_reduction <add>, %29, %cst_16 [1] : vector<8x8xf32> to vector<8xf32>
    %31 = vector.shape_cast %30 : vector<8xf32> to vector<8x1xf32>
    %32 = tpu.reciprocal %31 {approx = true} : vector<8x1xf32> -> vector<8x1xf32>
    %33 = vector.broadcast %32 : vector<8x1xf32> to vector<8x8xf32>
    %34 = arith.mulf %29, %33 : vector<8x8xf32>
    %35 = arith.truncf %34 : vector<8x8xf32> to vector<8x8xbf16>
    %36 = vector.extract_strided_slice %10 {offsets = [0, 0], sizes = [8, 8], strides = [1, 1]} : vector<8x32xf32> to vector<8x8xf32>
    %37 = arith.truncf %36 : vector<8x8xf32> to vector<8x8xbf16>
    %cst_17 = arith.constant dense<0.000000e+00> : vector<8x8xf32>
    %38 = tpu.matmul %35, %37, %cst_17 {dimension_numbers = #tpu.dot_dimension_numbers<[1], [0], [0], [1], [0, 0, 1, 1], [], []>} : vector<8x8xbf16>, vector<8x8xbf16>, vector<8x8xf32> -> vector<8x8xf32>
    %39 = arith.truncf %38 : vector<8x8xf32> to vector<8x8xbf16>
    %40 = vector.extract_strided_slice %16 {offsets = [0, 0], sizes = [8, 32], strides = [1, 1]} : vector<32x32xbf16> to vector<8x32xbf16>
    %cst_18 = arith.constant dense<0.000000e+00> : vector<8x32xf32>
    %41 = tpu.matmul %39, %40, %cst_18 {dimension_numbers = #tpu.dot_dimension_numbers<[1], [0], [0], [1], [0, 0, 1, 1], [], []>} : vector<8x8xbf16>, vector<8x32xbf16>, vector<8x32xf32> -> vector<8x32xf32>
    %42 = vector.extract_strided_slice %8 {offsets = [0, 8], sizes = [8, 8], strides = [1, 1]} : vector<8x32xf32> to vector<8x8xf32>
    %43 = arith.truncf %42 : vector<8x8xf32> to vector<8x8xbf16>
    %44 = vector.extract_strided_slice %9 {offsets = [0, 8], sizes = [8, 8], strides = [1, 1]} : vector<8x32xf32> to vector<8x8xf32>
    %45 = arith.truncf %44 : vector<8x8xf32> to vector<8x8xbf16>
    %cst_19 = arith.constant dense<0.000000e+00> : vector<8x8xf32>
    %46 = tpu.matmul %43, %45, %cst_19 {dimension_numbers = #tpu.dot_dimension_numbers<[1], [1], [0], [0], [0, 0, 1, 0], [], []>} : vector<8x8xbf16>, vector<8x8xbf16>, vector<8x8xf32> -> vector<8x8xf32>
    %cst_20 = arith.constant 0.353553385 : f32
    %47 = vector.broadcast %cst_20 : f32 to vector<8x8xf32>
    %48 = arith.mulf %46, %47 : vector<8x8xf32>
    %49 = arith.addf %48, %15 : vector<8x8xf32>
    %cst_21 = arith.constant dense<0xFF800000> : vector<8xf32>
    %50 = vector.multi_reduction <maximumf>, %49, %cst_21 [1] : vector<8x8xf32> to vector<8xf32>
    %51 = vector.shape_cast %50 : vector<8xf32> to vector<8x1xf32>
    %52 = vector.broadcast %51 : vector<8x1xf32> to vector<8x8xf32>
    %53 = arith.subf %49, %52 : vector<8x8xf32>
    %54 = math.exp %53 : vector<8x8xf32>
    %cst_22 = arith.constant dense<0.000000e+00> : vector<8xf32>
    %55 = vector.multi_reduction <add>, %54, %cst_22 [1] : vector<8x8xf32> to vector<8xf32>
    %56 = vector.shape_cast %55 : vector<8xf32> to vector<8x1xf32>
    %57 = tpu.reciprocal %56 {approx = true} : vector<8x1xf32> -> vector<8x1xf32>
    %58 = vector.broadcast %57 : vector<8x1xf32> to vector<8x8xf32>
    %59 = arith.mulf %54, %58 : vector<8x8xf32>
    %60 = arith.truncf %59 : vector<8x8xf32> to vector<8x8xbf16>
    %61 = vector.extract_strided_slice %10 {offsets = [0, 8], sizes = [8, 8], strides = [1, 1]} : vector<8x32xf32> to vector<8x8xf32>
    %62 = arith.truncf %61 : vector<8x8xf32> to vector<8x8xbf16>
    %cst_23 = arith.constant dense<0.000000e+00> : vector<8x8xf32>
    %63 = tpu.matmul %60, %62, %cst_23 {dimension_numbers = #tpu.dot_dimension_numbers<[1], [0], [0], [1], [0, 0, 1, 1], [], []>} : vector<8x8xbf16>, vector<8x8xbf16>, vector<8x8xf32> -> vector<8x8xf32>
    %64 = arith.truncf %63 : vector<8x8xf32> to vector<8x8xbf16>
    %65 = vector.extract_strided_slice %16 {offsets = [8, 0], sizes = [8, 32], strides = [1, 1]} : vector<32x32xbf16> to vector<8x32xbf16>
    %cst_24 = arith.constant dense<0.000000e+00> : vector<8x32xf32>
    %66 = tpu.matmul %64, %65, %cst_24 {dimension_numbers = #tpu.dot_dimension_numbers<[1], [0], [0], [1], [0, 0, 1, 1], [], []>} : vector<8x8xbf16>, vector<8x32xbf16>, vector<8x32xf32> -> vector<8x32xf32>
    %67 = arith.addf %41, %66 : vector<8x32xf32>
    %68 = vector.extract_strided_slice %8 {offsets = [0, 16], sizes = [8, 8], strides = [1, 1]} : vector<8x32xf32> to vector<8x8xf32>
    %69 = arith.truncf %68 : vector<8x8xf32> to vector<8x8xbf16>
    %70 = vector.extract_strided_slice %9 {offsets = [0, 16], sizes = [8, 8], strides = [1, 1]} : vector<8x32xf32> to vector<8x8xf32>
    %71 = arith.truncf %70 : vector<8x8xf32> to vector<8x8xbf16>
    %cst_25 = arith.constant dense<0.000000e+00> : vector<8x8xf32>
    %72 = tpu.matmul %69, %71, %cst_25 {dimension_numbers = #tpu.dot_dimension_numbers<[1], [1], [0], [0], [0, 0, 1, 0], [], []>} : vector<8x8xbf16>, vector<8x8xbf16>, vector<8x8xf32> -> vector<8x8xf32>
    %cst_26 = arith.constant 0.353553385 : f32
    %73 = vector.broadcast %cst_26 : f32 to vector<8x8xf32>
    %74 = arith.mulf %72, %73 : vector<8x8xf32>
    %75 = arith.addf %74, %15 : vector<8x8xf32>
    %cst_27 = arith.constant dense<0xFF800000> : vector<8xf32>
    %76 = vector.multi_reduction <maximumf>, %75, %cst_27 [1] : vector<8x8xf32> to vector<8xf32>
    %77 = vector.shape_cast %76 : vector<8xf32> to vector<8x1xf32>
    %78 = vector.broadcast %77 : vector<8x1xf32> to vector<8x8xf32>
    %79 = arith.subf %75, %78 : vector<8x8xf32>
    %80 = math.exp %79 : vector<8x8xf32>
    %cst_28 = arith.constant dense<0.000000e+00> : vector<8xf32>
    %81 = vector.multi_reduction <add>, %80, %cst_28 [1] : vector<8x8xf32> to vector<8xf32>
    %82 = vector.shape_cast %81 : vector<8xf32> to vector<8x1xf32>
    %83 = tpu.reciprocal %82 {approx = true} : vector<8x1xf32> -> vector<8x1xf32>
    %84 = vector.broadcast %83 : vector<8x1xf32> to vector<8x8xf32>
    %85 = arith.mulf %80, %84 : vector<8x8xf32>
    %86 = arith.truncf %85 : vector<8x8xf32> to vector<8x8xbf16>
    %87 = vector.extract_strided_slice %10 {offsets = [0, 16], sizes = [8, 8], strides = [1, 1]} : vector<8x32xf32> to vector<8x8xf32>
    %88 = arith.truncf %87 : vector<8x8xf32> to vector<8x8xbf16>
    %cst_29 = arith.constant dense<0.000000e+00> : vector<8x8xf32>
    %89 = tpu.matmul %86, %88, %cst_29 {dimension_numbers = #tpu.dot_dimension_numbers<[1], [0], [0], [1], [0, 0, 1, 1], [], []>} : vector<8x8xbf16>, vector<8x8xbf16>, vector<8x8xf32> -> vector<8x8xf32>
    %90 = arith.truncf %89 : vector<8x8xf32> to vector<8x8xbf16>
    %91 = vector.extract_strided_slice %16 {offsets = [16, 0], sizes = [8, 32], strides = [1, 1]} : vector<32x32xbf16> to vector<8x32xbf16>
    %cst_30 = arith.constant dense<0.000000e+00> : vector<8x32xf32>
    %92 = tpu.matmul %90, %91, %cst_30 {dimension_numbers = #tpu.dot_dimension_numbers<[1], [0], [0], [1], [0, 0, 1, 1], [], []>} : vector<8x8xbf16>, vector<8x32xbf16>, vector<8x32xf32> -> vector<8x32xf32>
    %93 = arith.addf %67, %92 : vector<8x32xf32>
    %94 = vector.extract_strided_slice %8 {offsets = [0, 24], sizes = [8, 8], strides = [1, 1]} : vector<8x32xf32> to vector<8x8xf32>
    %95 = arith.truncf %94 : vector<8x8xf32> to vector<8x8xbf16>
    %96 = vector.extract_strided_slice %9 {offsets = [0, 24], sizes = [8, 8], strides = [1, 1]} : vector<8x32xf32> to vector<8x8xf32>
    %97 = arith.truncf %96 : vector<8x8xf32> to vector<8x8xbf16>
    %cst_31 = arith.constant dense<0.000000e+00> : vector<8x8xf32>
    %98 = tpu.matmul %95, %97, %cst_31 {dimension_numbers = #tpu.dot_dimension_numbers<[1], [1], [0], [0], [0, 0, 1, 0], [], []>} : vector<8x8xbf16>, vector<8x8xbf16>, vector<8x8xf32> -> vector<8x8xf32>
    %cst_32 = arith.constant 0.353553385 : f32
    %99 = vector.broadcast %cst_32 : f32 to vector<8x8xf32>
    %100 = arith.mulf %98, %99 : vector<8x8xf32>
    %101 = arith.addf %100, %15 : vector<8x8xf32>
    %cst_33 = arith.constant dense<0xFF800000> : vector<8xf32>
    %102 = vector.multi_reduction <maximumf>, %101, %cst_33 [1] : vector<8x8xf32> to vector<8xf32>
    %103 = vector.shape_cast %102 : vector<8xf32> to vector<8x1xf32>
    %104 = vector.broadcast %103 : vector<8x1xf32> to vector<8x8xf32>
    %105 = arith.subf %101, %104 : vector<8x8xf32>
    %106 = math.exp %105 : vector<8x8xf32>
    %cst_34 = arith.constant dense<0.000000e+00> : vector<8xf32>
    %107 = vector.multi_reduction <add>, %106, %cst_34 [1] : vector<8x8xf32> to vector<8xf32>
    %108 = vector.shape_cast %107 : vector<8xf32> to vector<8x1xf32>
    %109 = tpu.reciprocal %108 {approx = true} : vector<8x1xf32> -> vector<8x1xf32>
    %110 = vector.broadcast %109 : vector<8x1xf32> to vector<8x8xf32>
    %111 = arith.mulf %106, %110 : vector<8x8xf32>
    %112 = arith.truncf %111 : vector<8x8xf32> to vector<8x8xbf16>
    %113 = vector.extract_strided_slice %10 {offsets = [0, 24], sizes = [8, 8], strides = [1, 1]} : vector<8x32xf32> to vector<8x8xf32>
    %114 = arith.truncf %113 : vector<8x8xf32> to vector<8x8xbf16>
    %cst_35 = arith.constant dense<0.000000e+00> : vector<8x8xf32>
    %115 = tpu.matmul %112, %114, %cst_35 {dimension_numbers = #tpu.dot_dimension_numbers<[1], [0], [0], [1], [0, 0, 1, 1], [], []>} : vector<8x8xbf16>, vector<8x8xbf16>, vector<8x8xf32> -> vector<8x8xf32>
    %116 = arith.truncf %115 : vector<8x8xf32> to vector<8x8xbf16>
    %117 = vector.extract_strided_slice %16 {offsets = [24, 0], sizes = [8, 32], strides = [1, 1]} : vector<32x32xbf16> to vector<8x32xbf16>
    %cst_36 = arith.constant dense<0.000000e+00> : vector<8x32xf32>
    %118 = tpu.matmul %116, %117, %cst_36 {dimension_numbers = #tpu.dot_dimension_numbers<[1], [0], [0], [1], [0, 0, 1, 1], [], []>} : vector<8x8xbf16>, vector<8x32xbf16>, vector<8x32xf32> -> vector<8x32xf32>
    %119 = arith.addf %93, %118 : vector<8x32xf32>
    %c0_37 = arith.constant 0 : index
    %c0_38 = arith.constant 0 : index
    %120 = vector.load %arg5[%c0_37, %c0_38] : memref<1x32xf32, #tpu.memory_space<vmem>>, vector<1x32xf32>
    %121 = vector.broadcast %120 : vector<1x32xf32> to vector<8x32xf32>
    %122 = arith.addf %119, %121 : vector<8x32xf32>
    %123 = arith.addf %1, %122 : vector<8x32xf32>
    %cst_39 = arith.constant dense<0.000000e+00> : vector<8xf32>
    %124 = vector.multi_reduction <add>, %123, %cst_39 [1] : vector<8x32xf32> to vector<8xf32>
    %125 = vector.shape_cast %124 : vector<8xf32> to vector<8x1xf32>
    %cst_40 = arith.constant 3.200000e+01 : f32
    %126 = vector.broadcast %cst_40 : f32 to vector<8x1xf32>
    %127 = arith.divf %125, %126 : vector<8x1xf32>
    %128 = vector.broadcast %127 : vector<8x1xf32> to vector<8x32xf32>
    %129 = arith.subf %123, %128 : vector<8x32xf32>
    %130 = arith.mulf %129, %129 : vector<8x32xf32>
    %cst_41 = arith.constant dense<0.000000e+00> : vector<8xf32>
    %131 = vector.multi_reduction <add>, %130, %cst_41 [1] : vector<8x32xf32> to vector<8xf32>
    %132 = vector.shape_cast %131 : vector<8xf32> to vector<8x1xf32>
    %cst_42 = arith.constant 3.200000e+01 : f32
    %133 = vector.broadcast %cst_42 : f32 to vector<8x1xf32>
    %134 = arith.divf %132, %133 : vector<8x1xf32>
    %135 = vector.broadcast %127 : vector<8x1xf32> to vector<8x32xf32>
    %136 = arith.subf %123, %135 : vector<8x32xf32>
    %cst_43 = arith.constant 9.99999974E-6 : f32
    %137 = vector.broadcast %cst_43 : f32 to vector<8x1xf32>
    %138 = arith.addf %134, %137 : vector<8x1xf32>
    %139 = math.rsqrt %138 : vector<8x1xf32>
    %140 = vector.broadcast %139 : vector<8x1xf32> to vector<8x32xf32>
    %141 = arith.mulf %136, %140 : vector<8x32xf32>
    %c0_44 = arith.constant 0 : index
    %c0_45 = arith.constant 0 : index
    %142 = vector.load %arg8[%c0_44, %c0_45] : memref<1x32xf32, #tpu.memory_space<vmem>>, vector<1x32xf32>
    %143 = vector.broadcast %142 : vector<1x32xf32> to vector<8x32xf32>
    %144 = arith.mulf %141, %143 : vector<8x32xf32>
    %c0_46 = arith.constant 0 : index
    %c0_47 = arith.constant 0 : index
    %145 = vector.load %arg9[%c0_46, %c0_47] : memref<1x32xf32, #tpu.memory_space<vmem>>, vector<1x32xf32>
    %146 = vector.broadcast %145 : vector<1x32xf32> to vector<8x32xf32>
    %147 = arith.addf %144, %146 : vector<8x32xf32>
    %c0_48 = arith.constant 0 : index
    %c0_49 = arith.constant 0 : index
    %c0_50 = arith.constant 0 : index
    %148 = vector.load %arg10[%c0_48, %c0_49, %c0_50] : memref<1x8x32xf32, #tpu.memory_space<vmem>>, vector<1x8x32xf32>
    %149 = vector.shape_cast %148 : vector<1x8x32xf32> to vector<8x32xf32>
    %150 = vector.shape_cast %147 : vector<8x32xf32> to vector<1x8x32xf32>
    tpu.vector_store %arg10[%c0_48, %c0_49, %c0_50], %150 {strides = array<i32>} : memref<1x8x32xf32, #tpu.memory_space<vmem>>, vector<1x8x32xf32>,
    return
  }
  func.func @transform_0(%arg0: i32) -> (i32, i32, i32) {
    %c0_i32 = arith.constant 0 : i32
    %c0_i32_0 = arith.constant 0 : i32
    %c0_i32_1 = arith.constant 0 : i32
    return %arg0, %c0_i32, %c0_i32_0 : i32, i32, i32
  }
  func.func @transform_1(%arg0: i32) -> (i32, i32) {
    %c0_i32 = arith.constant 0 : i32
    %c0_i32_0 = arith.constant 0 : i32
    %c0_i32_1 = arith.constant 0 : i32
    return %c0_i32, %c0_i32_0 : i32, i32
  }
  func.func @transform_2(%arg0: i32) -> (i32, i32) {
    %c0_i32 = arith.constant 0 : i32
    %c0_i32_0 = arith.constant 0 : i32
    %c0_i32_1 = arith.constant 0 : i32
    return %c0_i32, %c0_i32_0 : i32, i32
  }
  func.func @transform_3(%arg0: i32) -> (i32, i32) {
    %c0_i32 = arith.constant 0 : i32
    %c0_i32_0 = arith.constant 0 : i32
    %c0_i32_1 = arith.constant 0 : i32
    return %c0_i32, %c0_i32_0 : i32, i32
  }
  func.func @transform_4(%arg0: i32) -> (i32, i32) {
    %c0_i32 = arith.constant 0 : i32
    %c0_i32_0 = arith.constant 0 : i32
    %c0_i32_1 = arith.constant 0 : i32
    return %c0_i32, %c0_i32_0 : i32, i32
  }
  func.func @transform_5(%arg0: i32) -> (i32, i32) {
    %c0_i32 = arith.constant 0 : i32
    %c0_i32_0 = arith.constant 0 : i32
    %c0_i32_1 = arith.constant 0 : i32
    return %c0_i32, %c0_i32_0 : i32, i32
  }
  func.func @transform_6(%arg0: i32) -> (i32, i32, i32) {
    %c0_i32 = arith.constant 0 : i32
    %c0_i32_0 = arith.constant 0 : i32
    %c0_i32_1 = arith.constant 0 : i32
    return %arg0, %c0_i32, %c0_i32_0 : i32, i32, i32
  }
  func.func @transform_7(%arg0: i32) -> (i32, i32) {
    %c0_i32 = arith.constant 0 : i32
    %c0_i32_0 = arith.constant 0 : i32
    %c0_i32_1 = arith.constant 0 : i32
    return %c0_i32, %c0_i32_0 : i32, i32
  }
  func.func @transform_8(%arg0: i32) -> (i32, i32) {
    %c0_i32 = arith.constant 0 : i32
    %c0_i32_0 = arith.constant 0 : i32
    %c0_i32_1 = arith.constant 0 : i32
    return %c0_i32, %c0_i32_0 : i32, i32
  }
  func.func @transform_9(%arg0: i32) -> (i32, i32, i32) {
    %c0_i32 = arith.constant 0 : i32
    %c0_i32_0 = arith.constant 0 : i32
    %c0_i32_1 = arith.constant 0 : i32
    return %arg0, %c0_i32, %c0_i32_0 : i32, i32, i32
  }
}

module attributes {stable_mosaic.version = 11 : i64} {
  func.func @_mha_ln_kernel(%arg0: i32, %arg1: memref<1x8x32xf32, #tpu.memory_space<vmem>>, %arg2: memref<32x96xbf16, #tpu.memory_space<vmem>>, %arg3: memref<1x96xf32, #tpu.memory_space<vmem>>, %arg4: memref<32x32xbf16, #tpu.memory_space<vmem>>, %arg5: memref<1x32xf32, #tpu.memory_space<vmem>>, %arg6: memref<8x8xf32, #tpu.memory_space<vmem>>, %arg7: memref<1x1x8xf32, #tpu.memory_space<vmem>>, %arg8: memref<1x32xf32, #tpu.memory_space<vmem>>, %arg9: memref<1x32xf32, #tpu.memory_space<vmem>>, %arg10: memref<1x8x32xf32, #tpu.memory_space<vmem>>) attributes {dimension_semantics = [#tpu.dimension_semantics<parallel>], iteration_bounds = array<i64: 2>, scalar_prefetch = 0 : i64, scratch_operands = 0 : i64, tpu.core_type = #tpu.core_type<tc>, window_params = [{transform_indices = @transform_0, window_bounds = array<i64: 1, 8, 32>}, {pipeline_mode = #tpu.pipeline_mode<synchronous>, transform_indices = @transform_1, window_bounds = array<i64: 32, 96>}, {pipeline_mode = #tpu.pipeline_mode<synchronous>, transform_indices = @transform_2, window_bounds = array<i64: 1, 96>}, {pipeline_mode = #tpu.pipeline_mode<synchronous>, transform_indices = @transform_3, window_bounds = array<i64: 32, 32>}, {pipeline_mode = #tpu.pipeline_mode<synchronous>, transform_indices = @transform_4, window_bounds = array<i64: 1, 32>}, {pipeline_mode = #tpu.pipeline_mode<synchronous>, transform_indices = @transform_5, window_bounds = array<i64: 8, 8>}, {transform_indices = @transform_6, window_bounds = array<i64: 1, 1, 8>}, {pipeline_mode = #tpu.pipeline_mode<synchronous>, transform_indices = @transform_7, window_bounds = array<i64: 1, 32>}, {pipeline_mode = #tpu.pipeline_mode<synchronous>, transform_indices = @transform_8, window_bounds = array<i64: 1, 32>}, {transform_indices = @transform_9, window_bounds = array<i64: 1, 8, 32>}]} {
    %c0 = arith.constant 0 : index
    %c0_0 = arith.constant 0 : index
    %c0_1 = arith.constant 0 : index
    %0 = vector.load %arg1[%c0, %c0_0, %c0_1] : memref<1x8x32xf32, #tpu.memory_space<vmem>>, vector<1x8x32xf32>
    %1 = vector.shape_cast %0 : vector<1x8x32xf32> to vector<8x32xf32>
    %c0_2 = arith.constant 0 : index
    %c0_3 = arith.constant 0 : index
    %2 = vector.load %arg2[%c0_2, %c0_3] : memref<32x96xbf16, #tpu.memory_space<vmem>>, vector<32x96xbf16>
    %c0_4 = arith.constant 0 : index
    %c0_5 = arith.constant 0 : index
    %3 = vector.load %arg3[%c0_4, %c0_5] : memref<1x96xf32, #tpu.memory_space<vmem>>, vector<1x96xf32>
    %4 = arith.truncf %1 : vector<8x32xf32> to vector<8x32xbf16>
    %cst = arith.constant dense<0.000000e+00> : vector<8x96xf32>
    %5 = tpu.matmul %4, %2, %cst {dimension_numbers = #tpu.dot_dimension_numbers<[1], [0], [0], [1], [0, 0, 1, 1], [], []>} : vector<8x32xbf16>, vector<32x96xbf16>, vector<8x96xf32> -> vector<8x96xf32>
    %6 = vector.broadcast %3 : vector<1x96xf32> to vector<8x96xf32>
    %7 = arith.addf %5, %6 : vector<8x96xf32>
    %8 = vector.extract_strided_slice %7 {offsets = [0, 0], sizes = [8, 32], strides = [1, 1]} : vector<8x96xf32> to vector<8x32xf32>
    %9 = vector.extract_strided_slice %7 {offsets = [0, 32], sizes = [8, 32], strides = [1, 1]} : vector<8x96xf32> to vector<8x32xf32>
    %10 = vector.extract_strided_slice %7 {offsets = [0, 64], sizes = [8, 32], strides = [1, 1]} : vector<8x96xf32> to vector<8x32xf32>
    %c0_6 = arith.constant 0 : index
    %c0_7 = arith.constant 0 : index
    %11 = vector.load %arg6[%c0_6, %c0_7] : memref<8x8xf32, #tpu.memory_space<vmem>>, vector<8x8xf32>
    %c0_8 = arith.constant 0 : index
    %c0_9 = arith.constant 0 : index
    %c0_10 = arith.constant 0 : index
    %12 = vector.load %arg7[%c0_8, %c0_9, %c0_10] : memref<1x1x8xf32, #tpu.memory_space<vmem>>, vector<1x1x8xf32>
    %13 = vector.shape_cast %12 : vector<1x1x8xf32> to vector<1x8xf32>
    %14 = vector.broadcast %13 : vector<1x8xf32> to vector<8x8xf32>
    %15 = arith.addf %11, %14 : vector<8x8xf32>
    %c0_11 = arith.constant 0 : index
    %c0_12 = arith.constant 0 : index
    %16 = vector.load %arg4[%c0_11, %c0_12] : memref<32x32xbf16, #tpu.memory_space<vmem>>, vector<32x32xbf16>
    %17 = vector.extract_strided_slice %8 {offsets = [0, 0], sizes = [8, 8], strides = [1, 1]} : vector<8x32xf32> to vector<8x8xf32>
    %18 = arith.truncf %17 : vector<8x8xf32> to vector<8x8xbf16>
    %19 = vector.extract_strided_slice %9 {offsets = [0, 0], sizes = [8, 8], strides = [1, 1]} : vector<8x32xf32> to vector<8x8xf32>
    %20 = arith.truncf %19 : vector<8x8xf32> to vector<8x8xbf16>
    %cst_13 = arith.constant dense<0.000000e+00> : vector<8x8xf32>
    %21 = tpu.matmul %18, %20, %cst_13 {dimension_numbers = #tpu.dot_dimension_numbers<[1], [1], [0], [0], [0, 0, 1, 0], [], []>} : vector<8x8xbf16>, vector<8x8xbf16>, vector<8x8xf32> -> vector<8x8xf32>
    %cst_14 = arith.constant 0.353553385 : f32
    %22 = vector.broadcast %cst_14 : f32 to vector<8x8xf32>
    %23 = arith.mulf %21, %22 : vector<8x8xf32>
    %24 = arith.addf %23, %15 : vector<8x8xf32>
    %cst_15 = arith.constant dense<0xFF800000> : vector<8xf32>
    %25 = vector.multi_reduction <maximumf>, %24, %cst_15 [1] : vector<8x8xf32> to vector<8xf32>
    %26 = vector.shape_cast %25 : vector<8xf32> to vector<8x1xf32>
    %27 = vector.broadcast %26 : vector<8x1xf32> to vector<8x8xf32>
    %28 = arith.subf %24, %27 : vector<8x8xf32>
    %29 = math.exp %28 : vector<8x8xf32>
    %cst_16 = arith.constant dense<0.000000e+00> : vector<8xf32>
    %30 = vector.multi_reduction <add>, %29, %cst_16 [1] : vector<8x8xf32> to vector<8xf32>
    %31 = vector.shape_cast %30 : vector<8xf32> to vector<8x1xf32>
    %32 = tpu.reciprocal %31 {approx = true} : vector<8x1xf32> -> vector<8x1xf32>
    %33 = vector.broadcast %32 : vector<8x1xf32> to vector<8x8xf32>
    %34 = arith.mulf %29, %33 : vector<8x8xf32>
    %35 = arith.truncf %34 : vector<8x8xf32> to vector<8x8xbf16>
    %36 = vector.extract_strided_slice %10 {offsets = [0, 0], sizes = [8, 8], strides = [1, 1]} : vector<8x32xf32> to vector<8x8xf32>
    %37 = arith.truncf %36 : vector<8x8xf32> to vector<8x8xbf16>
    %cst_17 = arith.constant dense<0.000000e+00> : vector<8x8xf32>
    %38 = tpu.matmul %35, %37, %cst_17 {dimension_numbers = #tpu.dot_dimension_numbers<[1], [0], [0], [1], [0, 0, 1, 1], [], []>} : vector<8x8xbf16>, vector<8x8xbf16>, vector<8x8xf32> -> vector<8x8xf32>
    %39 = arith.truncf %38 : vector<8x8xf32> to vector<8x8xbf16>
    %40 = vector.extract_strided_slice %16 {offsets = [0, 0], sizes = [8, 32], strides = [1, 1]} : vector<32x32xbf16> to vector<8x32xbf16>
    %cst_18 = arith.constant dense<0.000000e+00> : vector<8x32xf32>
    %41 = tpu.matmul %39, %40, %cst_18 {dimension_numbers = #tpu.dot_dimension_numbers<[1], [0], [0], [1], [0, 0, 1, 1], [], []>} : vector<8x8xbf16>, vector<8x32xbf16>, vector<8x32xf32> -> vector<8x32xf32>
    %42 = vector.extract_strided_slice %8 {offsets = [0, 8], sizes = [8, 8], strides = [1, 1]} : vector<8x32xf32> to vector<8x8xf32>
    %43 = arith.truncf %42 : vector<8x8xf32> to vector<8x8xbf16>
    %44 = vector.extract_strided_slice %9 {offsets = [0, 8], sizes = [8, 8], strides = [1, 1]} : vector<8x32xf32> to vector<8x8xf32>
    %45 = arith.truncf %44 : vector<8x8xf32> to vector<8x8xbf16>
    %cst_19 = arith.constant dense<0.000000e+00> : vector<8x8xf32>
    %46 = tpu.matmul %43, %45, %cst_19 {dimension_numbers = #tpu.dot_dimension_numbers<[1], [1], [0], [0], [0, 0, 1, 0], [], []>} : vector<8x8xbf16>, vector<8x8xbf16>, vector<8x8xf32> -> vector<8x8xf32>
    %cst_20 = arith.constant 0.353553385 : f32
    %47 = vector.broadcast %cst_20 : f32 to vector<8x8xf32>
    %48 = arith.mulf %46, %47 : vector<8x8xf32>
    %49 = arith.addf %48, %15 : vector<8x8xf32>
    %cst_21 = arith.constant dense<0xFF800000> : vector<8xf32>
    %50 = vector.multi_reduction <maximumf>, %49, %cst_21 [1] : vector<8x8xf32> to vector<8xf32>
    %51 = vector.shape_cast %50 : vector<8xf32> to vector<8x1xf32>
    %52 = vector.broadcast %51 : vector<8x1xf32> to vector<8x8xf32>
    %53 = arith.subf %49, %52 : vector<8x8xf32>
    %54 = math.exp %53 : vector<8x8xf32>
    %cst_22 = arith.constant dense<0.000000e+00> : vector<8xf32>
    %55 = vector.multi_reduction <add>, %54, %cst_22 [1] : vector<8x8xf32> to vector<8xf32>
    %56 = vector.shape_cast %55 : vector<8xf32> to vector<8x1xf32>
    %57 = tpu.reciprocal %56 {approx = true} : vector<8x1xf32> -> vector<8x1xf32>
    %58 = vector.broadcast %57 : vector<8x1xf32> to vector<8x8xf32>
    %59 = arith.mulf %54, %58 : vector<8x8xf32>
    %60 = arith.truncf %59 : vector<8x8xf32> to vector<8x8xbf16>
    %61 = vector.extract_strided_slice %10 {offsets = [0, 8], sizes = [8, 8], strides = [1, 1]} : vector<8x32xf32> to vector<8x8xf32>
    %62 = arith.truncf %61 : vector<8x8xf32> to vector<8x8xbf16>
    %cst_23 = arith.constant dense<0.000000e+00> : vector<8x8xf32>
    %63 = tpu.matmul %60, %62, %cst_23 {dimension_numbers = #tpu.dot_dimension_numbers<[1], [0], [0], [1], [0, 0, 1, 1], [], []>} : vector<8x8xbf16>, vector<8x8xbf16>, vector<8x8xf32> -> vector<8x8xf32>
    %64 = arith.truncf %63 : vector<8x8xf32> to vector<8x8xbf16>
    %65 = vector.extract_strided_slice %16 {offsets = [8, 0], sizes = [8, 32], strides = [1, 1]} : vector<32x32xbf16> to vector<8x32xbf16>
    %cst_24 = arith.constant dense<0.000000e+00> : vector<8x32xf32>
    %66 = tpu.matmul %64, %65, %cst_24 {dimension_numbers = #tpu.dot_dimension_numbers<[1], [0], [0], [1], [0, 0, 1, 1], [], []>} : vector<8x8xbf16>, vector<8x32xbf16>, vector<8x32xf32> -> vector<8x32xf32>
    %67 = arith.addf %41, %66 : vector<8x32xf32>
    %68 = vector.extract_strided_slice %8 {offsets = [0, 16], sizes = [8, 8], strides = [1, 1]} : vector<8x32xf32> to vector<8x8xf32>
    %69 = arith.truncf %68 : vector<8x8xf32> to vector<8x8xbf16>
    %70 = vector.extract_strided_slice %9 {offsets = [0, 16], sizes = [8, 8], strides = [1, 1]} : vector<8x32xf32> to vector<8x8xf32>
    %71 = arith.truncf %70 : vector<8x8xf32> to vector<8x8xbf16>
    %cst_25 = arith.constant dense<0.000000e+00> : vector<8x8xf32>
    %72 = tpu.matmul %69, %71, %cst_25 {dimension_numbers = #tpu.dot_dimension_numbers<[1], [1], [0], [0], [0, 0, 1, 0], [], []>} : vector<8x8xbf16>, vector<8x8xbf16>, vector<8x8xf32> -> vector<8x8xf32>
    %cst_26 = arith.constant 0.353553385 : f32
    %73 = vector.broadcast %cst_26 : f32 to vector<8x8xf32>
    %74 = arith.mulf %72, %73 : vector<8x8xf32>
    %75 = arith.addf %74, %15 : vector<8x8xf32>
    %cst_27 = arith.constant dense<0xFF800000> : vector<8xf32>
    %76 = vector.multi_reduction <maximumf>, %75, %cst_27 [1] : vector<8x8xf32> to vector<8xf32>
    %77 = vector.shape_cast %76 : vector<8xf32> to vector<8x1xf32>
    %78 = vector.broadcast %77 : vector<8x1xf32> to vector<8x8xf32>
    %79 = arith.subf %75, %78 : vector<8x8xf32>
    %80 = math.exp %79 : vector<8x8xf32>
    %cst_28 = arith.constant dense<0.000000e+00> : vector<8xf32>
    %81 = vector.multi_reduction <add>, %80, %cst_28 [1] : vector<8x8xf32> to vector<8xf32>
    %82 = vector.shape_cast %81 : vector<8xf32> to vector<8x1xf32>
    %83 = tpu.reciprocal %82 {approx = true} : vector<8x1xf32> -> vector<8x1xf32>
    %84 = vector.broadcast %83 : vector<8x1xf32> to vector<8x8xf32>
    %85 = arith.mulf %80, %84 : vector<8x8xf32>
    %86 = arith.truncf %85 : vector<8x8xf32> to vector<8x8xbf16>
    %87 = vector.extract_strided_slice %10 {offsets = [0, 16], sizes = [8, 8], strides = [1, 1]} : vector<8x32xf32> to vector<8x8xf32>
    %88 = arith.truncf %87 : vector<8x8xf32> to vector<8x8xbf16>
    %cst_29 = arith.constant dense<0.000000e+00> : vector<8x8xf32>
    %89 = tpu.matmul %86, %88, %cst_29 {dimension_numbers = #tpu.dot_dimension_numbers<[1], [0], [0], [1], [0, 0, 1, 1], [], []>} : vector<8x8xbf16>, vector<8x8xbf16>, vector<8x8xf32> -> vector<8x8xf32>
    %90 = arith.truncf %89 : vector<8x8xf32> to vector<8x8xbf16>
    %91 = vector.extract_strided_slice %16 {offsets = [16, 0], sizes = [8, 32], strides = [1, 1]} : vector<32x32xbf16> to vector<8x32xbf16>
    %cst_30 = arith.constant dense<0.000000e+00> : vector<8x32xf32>
    %92 = tpu.matmul %90, %91, %cst_30 {dimension_numbers = #tpu.dot_dimension_numbers<[1], [0], [0], [1], [0, 0, 1, 1], [], []>} : vector<8x8xbf16>, vector<8x32xbf16>, vector<8x32xf32> -> vector<8x32xf32>
    %93 = arith.addf %67, %92 : vector<8x32xf32>
    %94 = vector.extract_strided_slice %8 {offsets = [0, 24], sizes = [8, 8], strides = [1, 1]} : vector<8x32xf32> to vector<8x8xf32>
    %95 = arith.truncf %94 : vector<8x8xf32> to vector<8x8xbf16>
    %96 = vector.extract_strided_slice %9 {offsets = [0, 24], sizes = [8, 8], strides = [1, 1]} : vector<8x32xf32> to vector<8x8xf32>
    %97 = arith.truncf %96 : vector<8x8xf32> to vector<8x8xbf16>
    %cst_31 = arith.constant dense<0.000000e+00> : vector<8x8xf32>
    %98 = tpu.matmul %95, %97, %cst_31 {dimension_numbers = #tpu.dot_dimension_numbers<[1], [1], [0], [0], [0, 0, 1, 0], [], []>} : vector<8x8xbf16>, vector<8x8xbf16>, vector<8x8xf32> -> vector<8x8xf32>
    %cst_32 = arith.constant 0.353553385 : f32
    %99 = vector.broadcast %cst_32 : f32 to vector<8x8xf32>
    %100 = arith.mulf %98, %99 : vector<8x8xf32>
    %101 = arith.addf %100, %15 : vector<8x8xf32>
    %cst_33 = arith.constant dense<0xFF800000> : vector<8xf32>
    %102 = vector.multi_reduction <maximumf>, %101, %cst_33 [1] : vector<8x8xf32> to vector<8xf32>
    %103 = vector.shape_cast %102 : vector<8xf32> to vector<8x1xf32>
    %104 = vector.broadcast %103 : vector<8x1xf32> to vector<8x8xf32>
    %105 = arith.subf %101, %104 : vector<8x8xf32>
    %106 = math.exp %105 : vector<8x8xf32>
    %cst_34 = arith.constant dense<0.000000e+00> : vector<8xf32>
    %107 = vector.multi_reduction <add>, %106, %cst_34 [1] : vector<8x8xf32> to vector<8xf32>
    %108 = vector.shape_cast %107 : vector<8xf32> to vector<8x1xf32>
    %109 = tpu.reciprocal %108 {approx = true} : vector<8x1xf32> -> vector<8x1xf32>
    %110 = vector.broadcast %109 : vector<8x1xf32> to vector<8x8xf32>
    %111 = arith.mulf %106, %110 : vector<8x8xf32>
    %112 = arith.truncf %111 : vector<8x8xf32> to vector<8x8xbf16>
    %113 = vector.extract_strided_slice %10 {offsets = [0, 24], sizes = [8, 8], strides = [1, 1]} : vector<8x32xf32> to vector<8x8xf32>
    %114 = arith.truncf %113 : vector<8x8xf32> to vector<8x8xbf16>
    %cst_35 = arith.constant dense<0.000000e+00> : vector<8x8xf32>
    %115 = tpu.matmul %112, %114, %cst_35 {dimension_numbers = #tpu.dot_dimension_numbers<[1], [0], [0], [1], [0, 0, 1, 1], [], []>} : vector<8x8xbf16>, vector<8x8xbf16>, vector<8x8xf32> -> vector<8x8xf32>
    %116 = arith.truncf %115 : vector<8x8xf32> to vector<8x8xbf16>
    %117 = vector.extract_strided_slice %16 {offsets = [24, 0], sizes = [8, 32], strides = [1, 1]} : vector<32x32xbf16> to vector<8x32xbf16>
    %cst_36 = arith.constant dense<0.000000e+00> : vector<8x32xf32>
    %118 = tpu.matmul %116, %117, %cst_36 {dimension_numbers = #tpu.dot_dimension_numbers<[1], [0], [0], [1], [0, 0, 1, 1], [], []>} : vector<8x8xbf16>, vector<8x32xbf16>, vector<8x32xf32> -> vector<8x32xf32>
    %119 = arith.addf %93, %118 : vector<8x32xf32>
    %c0_37 = arith.constant 0 : index
    %c0_38 = arith.constant 0 : index
    %120 = vector.load %arg5[%c0_37, %c0_38] : memref<1x32xf32, #tpu.memory_space<vmem>>, vector<1x32xf32>
    %121 = vector.broadcast %120 : vector<1x32xf32> to vector<8x32xf32>
    %122 = arith.addf %119, %121 : vector<8x32xf32>
    %123 = arith.addf %1, %122 : vector<8x32xf32>
    %cst_39 = arith.constant dense<0.000000e+00> : vector<8xf32>
    %124 = vector.multi_reduction <add>, %123, %cst_39 [1] : vector<8x32xf32> to vector<8xf32>
    %125 = vector.shape_cast %124 : vector<8xf32> to vector<8x1xf32>
    %cst_40 = arith.constant 3.200000e+01 : f32
    %126 = vector.broadcast %cst_40 : f32 to vector<8x1xf32>
    %127 = arith.divf %125, %126 : vector<8x1xf32>
    %128 = vector.broadcast %127 : vector<8x1xf32> to vector<8x32xf32>
    %129 = arith.subf %123, %128 : vector<8x32xf32>
    %130 = arith.mulf %129, %129 : vector<8x32xf32>
    %cst_41 = arith.constant dense<0.000000e+00> : vector<8xf32>
    %131 = vector.multi_reduction <add>, %130, %cst_41 [1] : vector<8x32xf32> to vector<8xf32>
    %132 = vector.shape_cast %131 : vector<8xf32> to vector<8x1xf32>
    %cst_42 = arith.constant 3.200000e+01 : f32
    %133 = vector.broadcast %cst_42 : f32 to vector<8x1xf32>
    %134 = arith.divf %132, %133 : vector<8x1xf32>
    %135 = vector.broadcast %127 : vector<8x1xf32> to vector<8x32xf32>
    %136 = arith.subf %123, %135 : vector<8x32xf32>
    %cst_43 = arith.constant 9.99999974E-6 : f32
    %137 = vector.broadcast %cst_43 : f32 to vector<8x1xf32>
    %138 = arith.addf %134, %137 : vector<8x1xf32>
    %139 = math.rsqrt %138 : vector<8x1xf32>
    %140 = vector.broadcast %139 : vector<8x1xf32> to vector<8x32xf32>
    %141 = arith.mulf %136, %140 : vector<8x32xf32>
    %c0_44 = arith.constant 0 : index
    %c0_45 = arith.constant 0 : index
    %142 = vector.load %arg8[%c0_44, %c0_45] : memref<1x32xf32, #tpu.memory_space<vmem>>, vector<1x32xf32>
    %143 = vector.broadcast %142 : vector<1x32xf32> to vector<8x32xf32>
    %144 = arith.mulf %141, %143 : vector<8x32xf32>
    %c0_46 = arith.constant 0 : index
    %c0_47 = arith.constant 0 : index
    %145 = vector.load %arg9[%c0_46, %c0_47] : memref<1x32xf32, #tpu.memory_space<vmem>>, vector<1x32xf32>
    %146 = vector.broadcast %145 : vector<1x32xf32> to vector<8x32xf32>
    %147 = arith.addf %144, %146 : vector<8x32xf32>
    %c0_48 = arith.constant 0 : index
    %c0_49 = arith.constant 0 : index
    %c0_50 = arith.constant 0 : index
    %148 = vector.load %arg10[%c0_48, %c0_49, %c0_50] : memref<1x8x32xf32, #tpu.memory_space<vmem>>, vector<1x8x32xf32>
    %149 = vector.shape_cast %148 : vector<1x8x32xf32> to vector<8x32xf32>
    %150 = vector.shape_cast %147 : vector<8x32xf32> to vector<1x8x32xf32>
    tpu.vector_store %arg10[%c0_48, %c0_49, %c0_50], %150 {strides = array<i32>} : memref<1x8x32xf32, #tpu.memory_space<vmem>>, vector<1x8x32xf32>,
    return
  }
  func.func @transform_0(%arg0: i32) -> (i32, i32, i32) {
    %c0_i32 = arith.constant 0 : i32
    %c0_i32_0 = arith.constant 0 : i32
    %c0_i32_1 = arith.constant 0 : i32
    return %arg0, %c0_i32, %c0_i32_0 : i32, i32, i32
  }
  func.func @transform_1(%arg0: i32) -> (i32, i32) {
    %c0_i32 = arith.constant 0 : i32
    %c0_i32_0 = arith.constant 0 : i32
    %c0_i32_1 = arith.constant 0 : i32
    return %c0_i32, %c0_i32_0 : i32, i32
  }
  func.func @transform_2(%arg0: i32) -> (i32, i32) {
    %c0_i32 = arith.constant 0 : i32
    %c0_i32_0 = arith.constant 0 : i32
    %c0_i32_1 = arith.constant 0 : i32
    return %c0_i32, %c0_i32_0 : i32, i32
  }
  func.func @transform_3(%arg0: i32) -> (i32, i32) {
    %c0_i32 = arith.constant 0 : i32
    %c0_i32_0 = arith.constant 0 : i32
    %c0_i32_1 = arith.constant 0 : i32
    return %c0_i32, %c0_i32_0 : i32, i32
  }
  func.func @transform_4(%arg0: i32) -> (i32, i32) {
    %c0_i32 = arith.constant 0 : i32
    %c0_i32_0 = arith.constant 0 : i32
    %c0_i32_1 = arith.constant 0 : i32
    return %c0_i32, %c0_i32_0 : i32, i32
  }
  func.func @transform_5(%arg0: i32) -> (i32, i32) {
    %c0_i32 = arith.constant 0 : i32
    %c0_i32_0 = arith.constant 0 : i32
    %c0_i32_1 = arith.constant 0 : i32
    return %c0_i32, %c0_i32_0 : i32, i32
  }
  func.func @transform_6(%arg0: i32) -> (i32, i32, i32) {
    %c0_i32 = arith.constant 0 : i32
    %c0_i32_0 = arith.constant 0 : i32
    %c0_i32_1 = arith.constant 0 : i32
    return %arg0, %c0_i32, %c0_i32_0 : i32, i32, i32
  }
  func.func @transform_7(%arg0: i32) -> (i32, i32) {
    %c0_i32 = arith.constant 0 : i32
    %c0_i32_0 = arith.constant 0 : i32
    %c0_i32_1 = arith.constant 0 : i32
    return %c0_i32, %c0_i32_0 : i32, i32
  }
  func.func @transform_8(%arg0: i32) -> (i32, i32) {
    %c0_i32 = arith.constant 0 : i32
    %c0_i32_0 = arith.constant 0 : i32
    %c0_i32_1 = arith.constant 0 : i32
    return %c0_i32, %c0_i32_0 : i32, i32
  }
  func.func @transform_9(%arg0: i32) -> (i32, i32, i32) {
    %c0_i32 = arith.constant 0 : i32
    %c0_i32_0 = arith.constant 0 : i32
    %c0_i32_1 = arith.constant 0 : i32
    return %arg0, %c0_i32, %c0_i32_0 : i32, i32, i32
  }
}

module attributes {stable_mosaic.version = 11 : i64} {
  func.func @_mha_ln_kernel(%arg0: i32, %arg1: memref<1x8x32xf32, #tpu.memory_space<vmem>>, %arg2: memref<1x8x32xf32, #tpu.memory_space<vmem>>, %arg3: memref<32x96xbf16, #tpu.memory_space<vmem>>, %arg4: memref<1x96xf32, #tpu.memory_space<vmem>>, %arg5: memref<32x32xbf16, #tpu.memory_space<vmem>>, %arg6: memref<1x32xf32, #tpu.memory_space<vmem>>, %arg7: memref<8x8xf32, #tpu.memory_space<vmem>>, %arg8: memref<1x1x8xf32, #tpu.memory_space<vmem>>, %arg9: memref<1x32xf32, #tpu.memory_space<vmem>>, %arg10: memref<1x32xf32, #tpu.memory_space<vmem>>, %arg11: memref<1x8x32xf32, #tpu.memory_space<vmem>>) attributes {dimension_semantics = [#tpu.dimension_semantics<parallel>], iteration_bounds = array<i64: 2>, scalar_prefetch = 0 : i64, scratch_operands = 0 : i64, tpu.core_type = #tpu.core_type<tc>, window_params = [{transform_indices = @transform_0, window_bounds = array<i64: 1, 8, 32>}, {transform_indices = @transform_1, window_bounds = array<i64: 1, 8, 32>}, {pipeline_mode = #tpu.pipeline_mode<synchronous>, transform_indices = @transform_2, window_bounds = array<i64: 32, 96>}, {pipeline_mode = #tpu.pipeline_mode<synchronous>, transform_indices = @transform_3, window_bounds = array<i64: 1, 96>}, {pipeline_mode = #tpu.pipeline_mode<synchronous>, transform_indices = @transform_4, window_bounds = array<i64: 32, 32>}, {pipeline_mode = #tpu.pipeline_mode<synchronous>, transform_indices = @transform_5, window_bounds = array<i64: 1, 32>}, {pipeline_mode = #tpu.pipeline_mode<synchronous>, transform_indices = @transform_6, window_bounds = array<i64: 8, 8>}, {transform_indices = @transform_7, window_bounds = array<i64: 1, 1, 8>}, {pipeline_mode = #tpu.pipeline_mode<synchronous>, transform_indices = @transform_8, window_bounds = array<i64: 1, 32>}, {pipeline_mode = #tpu.pipeline_mode<synchronous>, transform_indices = @transform_9, window_bounds = array<i64: 1, 32>}, {transform_indices = @transform_10, window_bounds = array<i64: 1, 8, 32>}]} {
    %c0 = arith.constant 0 : index
    %c0_0 = arith.constant 0 : index
    %c0_1 = arith.constant 0 : index
    %0 = vector.load %arg1[%c0, %c0_0, %c0_1] : memref<1x8x32xf32, #tpu.memory_space<vmem>>, vector<1x8x32xf32>
    %1 = vector.shape_cast %0 : vector<1x8x32xf32> to vector<8x32xf32>
    %c0_2 = arith.constant 0 : index
    %c0_3 = arith.constant 0 : index
    %2 = vector.load %arg3[%c0_2, %c0_3] : memref<32x96xbf16, #tpu.memory_space<vmem>>, vector<32x96xbf16>
    %c0_4 = arith.constant 0 : index
    %c0_5 = arith.constant 0 : index
    %3 = vector.load %arg4[%c0_4, %c0_5] : memref<1x96xf32, #tpu.memory_space<vmem>>, vector<1x96xf32>
    %4 = arith.truncf %1 : vector<8x32xf32> to vector<8x32xbf16>
    %c0_6 = arith.constant 0 : index
    %c0_7 = arith.constant 0 : index
    %c0_8 = arith.constant 0 : index
    %5 = vector.load %arg2[%c0_6, %c0_7, %c0_8] : memref<1x8x32xf32, #tpu.memory_space<vmem>>, vector<1x8x32xf32>
    %6 = vector.shape_cast %5 : vector<1x8x32xf32> to vector<8x32xf32>
    %7 = arith.truncf %6 : vector<8x32xf32> to vector<8x32xbf16>
    %8 = vector.extract_strided_slice %2 {offsets = [0, 0], sizes = [32, 32], strides = [1, 1]} : vector<32x96xbf16> to vector<32x32xbf16>
    %cst = arith.constant dense<0.000000e+00> : vector<8x32xf32>
    %9 = tpu.matmul %4, %8, %cst {dimension_numbers = #tpu.dot_dimension_numbers<[1], [0], [0], [1], [0, 0, 1, 1], [], []>} : vector<8x32xbf16>, vector<32x32xbf16>, vector<8x32xf32> -> vector<8x32xf32>
    %10 = vector.extract_strided_slice %3 {offsets = [0, 0], sizes = [1, 32], strides = [1, 1]} : vector<1x96xf32> to vector<1x32xf32>
    %11 = vector.broadcast %10 : vector<1x32xf32> to vector<8x32xf32>
    %12 = arith.addf %9, %11 : vector<8x32xf32>
    %13 = vector.extract_strided_slice %2 {offsets = [0, 32], sizes = [32, 64], strides = [1, 1]} : vector<32x96xbf16> to vector<32x64xbf16>
    %cst_9 = arith.constant dense<0.000000e+00> : vector<8x64xf32>
    %14 = tpu.matmul %7, %13, %cst_9 {dimension_numbers = #tpu.dot_dimension_numbers<[1], [0], [0], [1], [0, 0, 1, 1], [], []>} : vector<8x32xbf16>, vector<32x64xbf16>, vector<8x64xf32> -> vector<8x64xf32>
    %15 = vector.extract_strided_slice %3 {offsets = [0, 32], sizes = [1, 64], strides = [1, 1]} : vector<1x96xf32> to vector<1x64xf32>
    %16 = vector.broadcast %15 : vector<1x64xf32> to vector<8x64xf32>
    %17 = arith.addf %14, %16 : vector<8x64xf32>
    %18 = vector.extract_strided_slice %17 {offsets = [0, 0], sizes = [8, 32], strides = [1, 1]} : vector<8x64xf32> to vector<8x32xf32>
    %19 = vector.extract_strided_slice %17 {offsets = [0, 32], sizes = [8, 32], strides = [1, 1]} : vector<8x64xf32> to vector<8x32xf32>
    %c0_10 = arith.constant 0 : index
    %c0_11 = arith.constant 0 : index
    %20 = vector.load %arg7[%c0_10, %c0_11] : memref<8x8xf32, #tpu.memory_space<vmem>>, vector<8x8xf32>
    %c0_12 = arith.constant 0 : index
    %c0_13 = arith.constant 0 : index
    %c0_14 = arith.constant 0 : index
    %21 = vector.load %arg8[%c0_12, %c0_13, %c0_14] : memref<1x1x8xf32, #tpu.memory_space<vmem>>, vector<1x1x8xf32>
    %22 = vector.shape_cast %21 : vector<1x1x8xf32> to vector<1x8xf32>
    %23 = vector.broadcast %22 : vector<1x8xf32> to vector<8x8xf32>
    %24 = arith.addf %20, %23 : vector<8x8xf32>
    %c0_15 = arith.constant 0 : index
    %c0_16 = arith.constant 0 : index
    %25 = vector.load %arg5[%c0_15, %c0_16] : memref<32x32xbf16, #tpu.memory_space<vmem>>, vector<32x32xbf16>
    %26 = vector.extract_strided_slice %12 {offsets = [0, 0], sizes = [8, 8], strides = [1, 1]} : vector<8x32xf32> to vector<8x8xf32>
    %27 = arith.truncf %26 : vector<8x8xf32> to vector<8x8xbf16>
    %28 = vector.extract_strided_slice %18 {offsets = [0, 0], sizes = [8, 8], strides = [1, 1]} : vector<8x32xf32> to vector<8x8xf32>
    %29 = arith.truncf %28 : vector<8x8xf32> to vector<8x8xbf16>
    %cst_17 = arith.constant dense<0.000000e+00> : vector<8x8xf32>
    %30 = tpu.matmul %27, %29, %cst_17 {dimension_numbers = #tpu.dot_dimension_numbers<[1], [1], [0], [0], [0, 0, 1, 0], [], []>} : vector<8x8xbf16>, vector<8x8xbf16>, vector<8x8xf32> -> vector<8x8xf32>
    %cst_18 = arith.constant 0.353553385 : f32
    %31 = vector.broadcast %cst_18 : f32 to vector<8x8xf32>
    %32 = arith.mulf %30, %31 : vector<8x8xf32>
    %33 = arith.addf %32, %24 : vector<8x8xf32>
    %cst_19 = arith.constant dense<0xFF800000> : vector<8xf32>
    %34 = vector.multi_reduction <maximumf>, %33, %cst_19 [1] : vector<8x8xf32> to vector<8xf32>
    %35 = vector.shape_cast %34 : vector<8xf32> to vector<8x1xf32>
    %36 = vector.broadcast %35 : vector<8x1xf32> to vector<8x8xf32>
    %37 = arith.subf %33, %36 : vector<8x8xf32>
    %38 = math.exp %37 : vector<8x8xf32>
    %cst_20 = arith.constant dense<0.000000e+00> : vector<8xf32>
    %39 = vector.multi_reduction <add>, %38, %cst_20 [1] : vector<8x8xf32> to vector<8xf32>
    %40 = vector.shape_cast %39 : vector<8xf32> to vector<8x1xf32>
    %41 = tpu.reciprocal %40 {approx = true} : vector<8x1xf32> -> vector<8x1xf32>
    %42 = vector.broadcast %41 : vector<8x1xf32> to vector<8x8xf32>
    %43 = arith.mulf %38, %42 : vector<8x8xf32>
    %44 = arith.truncf %43 : vector<8x8xf32> to vector<8x8xbf16>
    %45 = vector.extract_strided_slice %19 {offsets = [0, 0], sizes = [8, 8], strides = [1, 1]} : vector<8x32xf32> to vector<8x8xf32>
    %46 = arith.truncf %45 : vector<8x8xf32> to vector<8x8xbf16>
    %cst_21 = arith.constant dense<0.000000e+00> : vector<8x8xf32>
    %47 = tpu.matmul %44, %46, %cst_21 {dimension_numbers = #tpu.dot_dimension_numbers<[1], [0], [0], [1], [0, 0, 1, 1], [], []>} : vector<8x8xbf16>, vector<8x8xbf16>, vector<8x8xf32> -> vector<8x8xf32>
    %48 = arith.truncf %47 : vector<8x8xf32> to vector<8x8xbf16>
    %49 = vector.extract_strided_slice %25 {offsets = [0, 0], sizes = [8, 32], strides = [1, 1]} : vector<32x32xbf16> to vector<8x32xbf16>
    %cst_22 = arith.constant dense<0.000000e+00> : vector<8x32xf32>
    %50 = tpu.matmul %48, %49, %cst_22 {dimension_numbers = #tpu.dot_dimension_numbers<[1], [0], [0], [1], [0, 0, 1, 1], [], []>} : vector<8x8xbf16>, vector<8x32xbf16>, vector<8x32xf32> -> vector<8x32xf32>
    %51 = vector.extract_strided_slice %12 {offsets = [0, 8], sizes = [8, 8], strides = [1, 1]} : vector<8x32xf32> to vector<8x8xf32>
    %52 = arith.truncf %51 : vector<8x8xf32> to vector<8x8xbf16>
    %53 = vector.extract_strided_slice %18 {offsets = [0, 8], sizes = [8, 8], strides = [1, 1]} : vector<8x32xf32> to vector<8x8xf32>
    %54 = arith.truncf %53 : vector<8x8xf32> to vector<8x8xbf16>
    %cst_23 = arith.constant dense<0.000000e+00> : vector<8x8xf32>
    %55 = tpu.matmul %52, %54, %cst_23 {dimension_numbers = #tpu.dot_dimension_numbers<[1], [1], [0], [0], [0, 0, 1, 0], [], []>} : vector<8x8xbf16>, vector<8x8xbf16>, vector<8x8xf32> -> vector<8x8xf32>
    %cst_24 = arith.constant 0.353553385 : f32
    %56 = vector.broadcast %cst_24 : f32 to vector<8x8xf32>
    %57 = arith.mulf %55, %56 : vector<8x8xf32>
    %58 = arith.addf %57, %24 : vector<8x8xf32>
    %cst_25 = arith.constant dense<0xFF800000> : vector<8xf32>
    %59 = vector.multi_reduction <maximumf>, %58, %cst_25 [1] : vector<8x8xf32> to vector<8xf32>
    %60 = vector.shape_cast %59 : vector<8xf32> to vector<8x1xf32>
    %61 = vector.broadcast %60 : vector<8x1xf32> to vector<8x8xf32>
    %62 = arith.subf %58, %61 : vector<8x8xf32>
    %63 = math.exp %62 : vector<8x8xf32>
    %cst_26 = arith.constant dense<0.000000e+00> : vector<8xf32>
    %64 = vector.multi_reduction <add>, %63, %cst_26 [1] : vector<8x8xf32> to vector<8xf32>
    %65 = vector.shape_cast %64 : vector<8xf32> to vector<8x1xf32>
    %66 = tpu.reciprocal %65 {approx = true} : vector<8x1xf32> -> vector<8x1xf32>
    %67 = vector.broadcast %66 : vector<8x1xf32> to vector<8x8xf32>
    %68 = arith.mulf %63, %67 : vector<8x8xf32>
    %69 = arith.truncf %68 : vector<8x8xf32> to vector<8x8xbf16>
    %70 = vector.extract_strided_slice %19 {offsets = [0, 8], sizes = [8, 8], strides = [1, 1]} : vector<8x32xf32> to vector<8x8xf32>
    %71 = arith.truncf %70 : vector<8x8xf32> to vector<8x8xbf16>
    %cst_27 = arith.constant dense<0.000000e+00> : vector<8x8xf32>
    %72 = tpu.matmul %69, %71, %cst_27 {dimension_numbers = #tpu.dot_dimension_numbers<[1], [0], [0], [1], [0, 0, 1, 1], [], []>} : vector<8x8xbf16>, vector<8x8xbf16>, vector<8x8xf32> -> vector<8x8xf32>
    %73 = arith.truncf %72 : vector<8x8xf32> to vector<8x8xbf16>
    %74 = vector.extract_strided_slice %25 {offsets = [8, 0], sizes = [8, 32], strides = [1, 1]} : vector<32x32xbf16> to vector<8x32xbf16>
    %cst_28 = arith.constant dense<0.000000e+00> : vector<8x32xf32>
    %75 = tpu.matmul %73, %74, %cst_28 {dimension_numbers = #tpu.dot_dimension_numbers<[1], [0], [0], [1], [0, 0, 1, 1], [], []>} : vector<8x8xbf16>, vector<8x32xbf16>, vector<8x32xf32> -> vector<8x32xf32>
    %76 = arith.addf %50, %75 : vector<8x32xf32>
    %77 = vector.extract_strided_slice %12 {offsets = [0, 16], sizes = [8, 8], strides = [1, 1]} : vector<8x32xf32> to vector<8x8xf32>
    %78 = arith.truncf %77 : vector<8x8xf32> to vector<8x8xbf16>
    %79 = vector.extract_strided_slice %18 {offsets = [0, 16], sizes = [8, 8], strides = [1, 1]} : vector<8x32xf32> to vector<8x8xf32>
    %80 = arith.truncf %79 : vector<8x8xf32> to vector<8x8xbf16>
    %cst_29 = arith.constant dense<0.000000e+00> : vector<8x8xf32>
    %81 = tpu.matmul %78, %80, %cst_29 {dimension_numbers = #tpu.dot_dimension_numbers<[1], [1], [0], [0], [0, 0, 1, 0], [], []>} : vector<8x8xbf16>, vector<8x8xbf16>, vector<8x8xf32> -> vector<8x8xf32>
    %cst_30 = arith.constant 0.353553385 : f32
    %82 = vector.broadcast %cst_30 : f32 to vector<8x8xf32>
    %83 = arith.mulf %81, %82 : vector<8x8xf32>
    %84 = arith.addf %83, %24 : vector<8x8xf32>
    %cst_31 = arith.constant dense<0xFF800000> : vector<8xf32>
    %85 = vector.multi_reduction <maximumf>, %84, %cst_31 [1] : vector<8x8xf32> to vector<8xf32>
    %86 = vector.shape_cast %85 : vector<8xf32> to vector<8x1xf32>
    %87 = vector.broadcast %86 : vector<8x1xf32> to vector<8x8xf32>
    %88 = arith.subf %84, %87 : vector<8x8xf32>
    %89 = math.exp %88 : vector<8x8xf32>
    %cst_32 = arith.constant dense<0.000000e+00> : vector<8xf32>
    %90 = vector.multi_reduction <add>, %89, %cst_32 [1] : vector<8x8xf32> to vector<8xf32>
    %91 = vector.shape_cast %90 : vector<8xf32> to vector<8x1xf32>
    %92 = tpu.reciprocal %91 {approx = true} : vector<8x1xf32> -> vector<8x1xf32>
    %93 = vector.broadcast %92 : vector<8x1xf32> to vector<8x8xf32>
    %94 = arith.mulf %89, %93 : vector<8x8xf32>
    %95 = arith.truncf %94 : vector<8x8xf32> to vector<8x8xbf16>
    %96 = vector.extract_strided_slice %19 {offsets = [0, 16], sizes = [8, 8], strides = [1, 1]} : vector<8x32xf32> to vector<8x8xf32>
    %97 = arith.truncf %96 : vector<8x8xf32> to vector<8x8xbf16>
    %cst_33 = arith.constant dense<0.000000e+00> : vector<8x8xf32>
    %98 = tpu.matmul %95, %97, %cst_33 {dimension_numbers = #tpu.dot_dimension_numbers<[1], [0], [0], [1], [0, 0, 1, 1], [], []>} : vector<8x8xbf16>, vector<8x8xbf16>, vector<8x8xf32> -> vector<8x8xf32>
    %99 = arith.truncf %98 : vector<8x8xf32> to vector<8x8xbf16>
    %100 = vector.extract_strided_slice %25 {offsets = [16, 0], sizes = [8, 32], strides = [1, 1]} : vector<32x32xbf16> to vector<8x32xbf16>
    %cst_34 = arith.constant dense<0.000000e+00> : vector<8x32xf32>
    %101 = tpu.matmul %99, %100, %cst_34 {dimension_numbers = #tpu.dot_dimension_numbers<[1], [0], [0], [1], [0, 0, 1, 1], [], []>} : vector<8x8xbf16>, vector<8x32xbf16>, vector<8x32xf32> -> vector<8x32xf32>
    %102 = arith.addf %76, %101 : vector<8x32xf32>
    %103 = vector.extract_strided_slice %12 {offsets = [0, 24], sizes = [8, 8], strides = [1, 1]} : vector<8x32xf32> to vector<8x8xf32>
    %104 = arith.truncf %103 : vector<8x8xf32> to vector<8x8xbf16>
    %105 = vector.extract_strided_slice %18 {offsets = [0, 24], sizes = [8, 8], strides = [1, 1]} : vector<8x32xf32> to vector<8x8xf32>
    %106 = arith.truncf %105 : vector<8x8xf32> to vector<8x8xbf16>
    %cst_35 = arith.constant dense<0.000000e+00> : vector<8x8xf32>
    %107 = tpu.matmul %104, %106, %cst_35 {dimension_numbers = #tpu.dot_dimension_numbers<[1], [1], [0], [0], [0, 0, 1, 0], [], []>} : vector<8x8xbf16>, vector<8x8xbf16>, vector<8x8xf32> -> vector<8x8xf32>
    %cst_36 = arith.constant 0.353553385 : f32
    %108 = vector.broadcast %cst_36 : f32 to vector<8x8xf32>
    %109 = arith.mulf %107, %108 : vector<8x8xf32>
    %110 = arith.addf %109, %24 : vector<8x8xf32>
    %cst_37 = arith.constant dense<0xFF800000> : vector<8xf32>
    %111 = vector.multi_reduction <maximumf>, %110, %cst_37 [1] : vector<8x8xf32> to vector<8xf32>
    %112 = vector.shape_cast %111 : vector<8xf32> to vector<8x1xf32>
    %113 = vector.broadcast %112 : vector<8x1xf32> to vector<8x8xf32>
    %114 = arith.subf %110, %113 : vector<8x8xf32>
    %115 = math.exp %114 : vector<8x8xf32>
    %cst_38 = arith.constant dense<0.000000e+00> : vector<8xf32>
    %116 = vector.multi_reduction <add>, %115, %cst_38 [1] : vector<8x8xf32> to vector<8xf32>
    %117 = vector.shape_cast %116 : vector<8xf32> to vector<8x1xf32>
    %118 = tpu.reciprocal %117 {approx = true} : vector<8x1xf32> -> vector<8x1xf32>
    %119 = vector.broadcast %118 : vector<8x1xf32> to vector<8x8xf32>
    %120 = arith.mulf %115, %119 : vector<8x8xf32>
    %121 = arith.truncf %120 : vector<8x8xf32> to vector<8x8xbf16>
    %122 = vector.extract_strided_slice %19 {offsets = [0, 24], sizes = [8, 8], strides = [1, 1]} : vector<8x32xf32> to vector<8x8xf32>
    %123 = arith.truncf %122 : vector<8x8xf32> to vector<8x8xbf16>
    %cst_39 = arith.constant dense<0.000000e+00> : vector<8x8xf32>
    %124 = tpu.matmul %121, %123, %cst_39 {dimension_numbers = #tpu.dot_dimension_numbers<[1], [0], [0], [1], [0, 0, 1, 1], [], []>} : vector<8x8xbf16>, vector<8x8xbf16>, vector<8x8xf32> -> vector<8x8xf32>
    %125 = arith.truncf %124 : vector<8x8xf32> to vector<8x8xbf16>
    %126 = vector.extract_strided_slice %25 {offsets = [24, 0], sizes = [8, 32], strides = [1, 1]} : vector<32x32xbf16> to vector<8x32xbf16>
    %cst_40 = arith.constant dense<0.000000e+00> : vector<8x32xf32>
    %127 = tpu.matmul %125, %126, %cst_40 {dimension_numbers = #tpu.dot_dimension_numbers<[1], [0], [0], [1], [0, 0, 1, 1], [], []>} : vector<8x8xbf16>, vector<8x32xbf16>, vector<8x32xf32> -> vector<8x32xf32>
    %128 = arith.addf %102, %127 : vector<8x32xf32>
    %c0_41 = arith.constant 0 : index
    %c0_42 = arith.constant 0 : index
    %129 = vector.load %arg6[%c0_41, %c0_42] : memref<1x32xf32, #tpu.memory_space<vmem>>, vector<1x32xf32>
    %130 = vector.broadcast %129 : vector<1x32xf32> to vector<8x32xf32>
    %131 = arith.addf %128, %130 : vector<8x32xf32>
    %132 = arith.addf %1, %131 : vector<8x32xf32>
    %cst_43 = arith.constant dense<0.000000e+00> : vector<8xf32>
    %133 = vector.multi_reduction <add>, %132, %cst_43 [1] : vector<8x32xf32> to vector<8xf32>
    %134 = vector.shape_cast %133 : vector<8xf32> to vector<8x1xf32>
    %cst_44 = arith.constant 3.200000e+01 : f32
    %135 = vector.broadcast %cst_44 : f32 to vector<8x1xf32>
    %136 = arith.divf %134, %135 : vector<8x1xf32>
    %137 = vector.broadcast %136 : vector<8x1xf32> to vector<8x32xf32>
    %138 = arith.subf %132, %137 : vector<8x32xf32>
    %139 = arith.mulf %138, %138 : vector<8x32xf32>
    %cst_45 = arith.constant dense<0.000000e+00> : vector<8xf32>
    %140 = vector.multi_reduction <add>, %139, %cst_45 [1] : vector<8x32xf32> to vector<8xf32>
    %141 = vector.shape_cast %140 : vector<8xf32> to vector<8x1xf32>
    %cst_46 = arith.constant 3.200000e+01 : f32
    %142 = vector.broadcast %cst_46 : f32 to vector<8x1xf32>
    %143 = arith.divf %141, %142 : vector<8x1xf32>
    %144 = vector.broadcast %136 : vector<8x1xf32> to vector<8x32xf32>
    %145 = arith.subf %132, %144 : vector<8x32xf32>
    %cst_47 = arith.constant 9.99999974E-6 : f32
    %146 = vector.broadcast %cst_47 : f32 to vector<8x1xf32>
    %147 = arith.addf %143, %146 : vector<8x1xf32>
    %148 = math.rsqrt %147 : vector<8x1xf32>
    %149 = vector.broadcast %148 : vector<8x1xf32> to vector<8x32xf32>
    %150 = arith.mulf %145, %149 : vector<8x32xf32>
    %c0_48 = arith.constant 0 : index
    %c0_49 = arith.constant 0 : index
    %151 = vector.load %arg9[%c0_48, %c0_49] : memref<1x32xf32, #tpu.memory_space<vmem>>, vector<1x32xf32>
    %152 = vector.broadcast %151 : vector<1x32xf32> to vector<8x32xf32>
    %153 = arith.mulf %150, %152 : vector<8x32xf32>
    %c0_50 = arith.constant 0 : index
    %c0_51 = arith.constant 0 : index
    %154 = vector.load %arg10[%c0_50, %c0_51] : memref<1x32xf32, #tpu.memory_space<vmem>>, vector<1x32xf32>
    %155 = vector.broadcast %154 : vector<1x32xf32> to vector<8x32xf32>
    %156 = arith.addf %153, %155 : vector<8x32xf32>
    %c0_52 = arith.constant 0 : index
    %c0_53 = arith.constant 0 : index
    %c0_54 = arith.constant 0 : index
    %157 = vector.load %arg11[%c0_52, %c0_53, %c0_54] : memref<1x8x32xf32, #tpu.memory_space<vmem>>, vector<1x8x32xf32>
    %158 = vector.shape_cast %157 : vector<1x8x32xf32> to vector<8x32xf32>
    %159 = vector.shape_cast %156 : vector<8x32xf32> to vector<1x8x32xf32>
    tpu.vector_store %arg11[%c0_52, %c0_53, %c0_54], %159 {strides = array<i32>} : memref<1x8x32xf32, #tpu.memory_space<vmem>>, vector<1x8x32xf32>,
    return
  }
  func.func @transform_0(%arg0: i32) -> (i32, i32, i32) {
    %c0_i32 = arith.constant 0 : i32
    %c0_i32_0 = arith.constant 0 : i32
    %c0_i32_1 = arith.constant 0 : i32
    return %arg0, %c0_i32, %c0_i32_0 : i32, i32, i32
  }
  func.func @transform_1(%arg0: i32) -> (i32, i32, i32) {
    %c0_i32 = arith.constant 0 : i32
    %c0_i32_0 = arith.constant 0 : i32
    %c0_i32_1 = arith.constant 0 : i32
    return %arg0, %c0_i32, %c0_i32_0 : i32, i32, i32
  }
  func.func @transform_2(%arg0: i32) -> (i32, i32) {
    %c0_i32 = arith.constant 0 : i32
    %c0_i32_0 = arith.constant 0 : i32
    %c0_i32_1 = arith.constant 0 : i32
    return %c0_i32, %c0_i32_0 : i32, i32
  }
  func.func @transform_3(%arg0: i32) -> (i32, i32) {
    %c0_i32 = arith.constant 0 : i32
    %c0_i32_0 = arith.constant 0 : i32
    %c0_i32_1 = arith.constant 0 : i32
    return %c0_i32, %c0_i32_0 : i32, i32
  }
  func.func @transform_4(%arg0: i32) -> (i32, i32) {
    %c0_i32 = arith.constant 0 : i32
    %c0_i32_0 = arith.constant 0 : i32
    %c0_i32_1 = arith.constant 0 : i32
    return %c0_i32, %c0_i32_0 : i32, i32
  }
  func.func @transform_5(%arg0: i32) -> (i32, i32) {
    %c0_i32 = arith.constant 0 : i32
    %c0_i32_0 = arith.constant 0 : i32
    %c0_i32_1 = arith.constant 0 : i32
    return %c0_i32, %c0_i32_0 : i32, i32
  }
  func.func @transform_6(%arg0: i32) -> (i32, i32) {
    %c0_i32 = arith.constant 0 : i32
    %c0_i32_0 = arith.constant 0 : i32
    %c0_i32_1 = arith.constant 0 : i32
    return %c0_i32, %c0_i32_0 : i32, i32
  }
  func.func @transform_7(%arg0: i32) -> (i32, i32, i32) {
    %c0_i32 = arith.constant 0 : i32
    %c0_i32_0 = arith.constant 0 : i32
    %c0_i32_1 = arith.constant 0 : i32
    return %arg0, %c0_i32, %c0_i32_0 : i32, i32, i32
  }
  func.func @transform_8(%arg0: i32) -> (i32, i32) {
    %c0_i32 = arith.constant 0 : i32
    %c0_i32_0 = arith.constant 0 : i32
    %c0_i32_1 = arith.constant 0 : i32
    return %c0_i32, %c0_i32_0 : i32, i32
  }
  func.func @transform_9(%arg0: i32) -> (i32, i32) {
    %c0_i32 = arith.constant 0 : i32
    %c0_i32_0 = arith.constant 0 : i32
    %c0_i32_1 = arith.constant 0 : i32
    return %c0_i32, %c0_i32_0 : i32, i32
  }
  func.func @transform_10(%arg0: i32) -> (i32, i32, i32) {
    %c0_i32 = arith.constant 0 : i32
    %c0_i32_0 = arith.constant 0 : i32
    %c0_i32_1 = arith.constant 0 : i32
    return %arg0, %c0_i32, %c0_i32_0 : i32, i32, i32
  }
}

module attributes {stable_mosaic.version = 11 : i64} {
  func.func @_ffn_ln_kernel(%arg0: i32, %arg1: memref<8x32xf32, #tpu.memory_space<vmem>>, %arg2: memref<32x64xbf16, #tpu.memory_space<vmem>>, %arg3: memref<1x64xf32, #tpu.memory_space<vmem>>, %arg4: memref<64x32xbf16, #tpu.memory_space<vmem>>, %arg5: memref<1x32xf32, #tpu.memory_space<vmem>>, %arg6: memref<1x32xf32, #tpu.memory_space<vmem>>, %arg7: memref<1x32xf32, #tpu.memory_space<vmem>>, %arg8: memref<8x32xf32, #tpu.memory_space<vmem>>) attributes {dimension_semantics = [#tpu.dimension_semantics<parallel>], iteration_bounds = array<i64: 2>, scalar_prefetch = 0 : i64, scratch_operands = 0 : i64, tpu.core_type = #tpu.core_type<tc>, window_params = [{transform_indices = @transform_0, window_bounds = array<i64: 8, 32>}, {pipeline_mode = #tpu.pipeline_mode<synchronous>, transform_indices = @transform_1, window_bounds = array<i64: 32, 64>}, {pipeline_mode = #tpu.pipeline_mode<synchronous>, transform_indices = @transform_2, window_bounds = array<i64: 1, 64>}, {pipeline_mode = #tpu.pipeline_mode<synchronous>, transform_indices = @transform_3, window_bounds = array<i64: 64, 32>}, {pipeline_mode = #tpu.pipeline_mode<synchronous>, transform_indices = @transform_4, window_bounds = array<i64: 1, 32>}, {pipeline_mode = #tpu.pipeline_mode<synchronous>, transform_indices = @transform_5, window_bounds = array<i64: 1, 32>}, {pipeline_mode = #tpu.pipeline_mode<synchronous>, transform_indices = @transform_6, window_bounds = array<i64: 1, 32>}, {transform_indices = @transform_7, window_bounds = array<i64: 8, 32>}]} {
    %c0 = arith.constant 0 : index
    %c0_0 = arith.constant 0 : index
    %0 = vector.load %arg1[%c0, %c0_0] : memref<8x32xf32, #tpu.memory_space<vmem>>, vector<8x32xf32>
    %1 = arith.truncf %0 : vector<8x32xf32> to vector<8x32xbf16>
    %c0_1 = arith.constant 0 : index
    %c0_2 = arith.constant 0 : index
    %2 = vector.load %arg2[%c0_1, %c0_2] : memref<32x64xbf16, #tpu.memory_space<vmem>>, vector<32x64xbf16>
    %cst = arith.constant dense<0.000000e+00> : vector<8x64xf32>
    %3 = tpu.matmul %1, %2, %cst {dimension_numbers = #tpu.dot_dimension_numbers<[1], [0], [0], [1], [0, 0, 1, 1], [], []>} : vector<8x32xbf16>, vector<32x64xbf16>, vector<8x64xf32> -> vector<8x64xf32>
    %c0_3 = arith.constant 0 : index
    %c0_4 = arith.constant 0 : index
    %4 = vector.load %arg3[%c0_3, %c0_4] : memref<1x64xf32, #tpu.memory_space<vmem>>, vector<1x64xf32>
    %5 = vector.broadcast %4 : vector<1x64xf32> to vector<8x64xf32>
    %6 = arith.addf %3, %5 : vector<8x64xf32>
    %cst_5 = arith.constant 0.000000e+00 : f32
    %7 = vector.broadcast %cst_5 : f32 to vector<8x64xf32>
    %8 = arith.maximumf %6, %7 : vector<8x64xf32>
    %9 = arith.truncf %8 : vector<8x64xf32> to vector<8x64xbf16>
    %c0_6 = arith.constant 0 : index
    %c0_7 = arith.constant 0 : index
    %10 = vector.load %arg4[%c0_6, %c0_7] : memref<64x32xbf16, #tpu.memory_space<vmem>>, vector<64x32xbf16>
    %cst_8 = arith.constant dense<0.000000e+00> : vector<8x32xf32>
    %11 = tpu.matmul %9, %10, %cst_8 {dimension_numbers = #tpu.dot_dimension_numbers<[1], [0], [0], [1], [0, 0, 1, 1], [], []>} : vector<8x64xbf16>, vector<64x32xbf16>, vector<8x32xf32> -> vector<8x32xf32>
    %12 = arith.addf %0, %11 : vector<8x32xf32>
    %c0_9 = arith.constant 0 : index
    %c0_10 = arith.constant 0 : index
    %13 = vector.load %arg5[%c0_9, %c0_10] : memref<1x32xf32, #tpu.memory_space<vmem>>, vector<1x32xf32>
    %14 = vector.broadcast %13 : vector<1x32xf32> to vector<8x32xf32>
    %15 = arith.addf %12, %14 : vector<8x32xf32>
    %c0_11 = arith.constant 0 : index
    %c0_12 = arith.constant 0 : index
    %16 = vector.load %arg6[%c0_11, %c0_12] : memref<1x32xf32, #tpu.memory_space<vmem>>, vector<1x32xf32>
    %c0_13 = arith.constant 0 : index
    %c0_14 = arith.constant 0 : index
    %17 = vector.load %arg7[%c0_13, %c0_14] : memref<1x32xf32, #tpu.memory_space<vmem>>, vector<1x32xf32>
    %cst_15 = arith.constant dense<0.000000e+00> : vector<8xf32>
    %18 = vector.multi_reduction <add>, %15, %cst_15 [1] : vector<8x32xf32> to vector<8xf32>
    %19 = vector.shape_cast %18 : vector<8xf32> to vector<8x1xf32>
    %cst_16 = arith.constant 3.200000e+01 : f32
    %20 = vector.broadcast %cst_16 : f32 to vector<8x1xf32>
    %21 = arith.divf %19, %20 : vector<8x1xf32>
    %22 = vector.broadcast %21 : vector<8x1xf32> to vector<8x32xf32>
    %23 = arith.subf %15, %22 : vector<8x32xf32>
    %24 = arith.mulf %23, %23 : vector<8x32xf32>
    %cst_17 = arith.constant dense<0.000000e+00> : vector<8xf32>
    %25 = vector.multi_reduction <add>, %24, %cst_17 [1] : vector<8x32xf32> to vector<8xf32>
    %26 = vector.shape_cast %25 : vector<8xf32> to vector<8x1xf32>
    %cst_18 = arith.constant 3.200000e+01 : f32
    %27 = vector.broadcast %cst_18 : f32 to vector<8x1xf32>
    %28 = arith.divf %26, %27 : vector<8x1xf32>
    %29 = vector.broadcast %21 : vector<8x1xf32> to vector<8x32xf32>
    %30 = arith.subf %15, %29 : vector<8x32xf32>
    %cst_19 = arith.constant 9.99999974E-6 : f32
    %31 = vector.broadcast %cst_19 : f32 to vector<8x1xf32>
    %32 = arith.addf %28, %31 : vector<8x1xf32>
    %33 = math.rsqrt %32 : vector<8x1xf32>
    %34 = vector.broadcast %33 : vector<8x1xf32> to vector<8x32xf32>
    %35 = arith.mulf %30, %34 : vector<8x32xf32>
    %36 = vector.broadcast %16 : vector<1x32xf32> to vector<8x32xf32>
    %37 = arith.mulf %35, %36 : vector<8x32xf32>
    %38 = vector.broadcast %17 : vector<1x32xf32> to vector<8x32xf32>
    %39 = arith.addf %37, %38 : vector<8x32xf32>
    %c0_20 = arith.constant 0 : index
    %c0_21 = arith.constant 0 : index
    %40 = vector.load %arg8[%c0_20, %c0_21] : memref<8x32xf32, #tpu.memory_space<vmem>>, vector<8x32xf32>
    tpu.vector_store %arg8[%c0_20, %c0_21], %39 {strides = array<i32>} : memref<8x32xf32, #tpu.memory_space<vmem>>, vector<8x32xf32>,
    return
  }
  func.func @transform_0(%arg0: i32) -> (i32, i32) {
    %c0_i32 = arith.constant 0 : i32
    %c0_i32_0 = arith.constant 0 : i32
    return %arg0, %c0_i32 : i32, i32
  }
  func.func @transform_1(%arg0: i32) -> (i32, i32) {
    %c0_i32 = arith.constant 0 : i32
    %c0_i32_0 = arith.constant 0 : i32
    %c0_i32_1 = arith.constant 0 : i32
    return %c0_i32, %c0_i32_0 : i32, i32
  }
  func.func @transform_2(%arg0: i32) -> (i32, i32) {
    %c0_i32 = arith.constant 0 : i32
    %c0_i32_0 = arith.constant 0 : i32
    %c0_i32_1 = arith.constant 0 : i32
    return %c0_i32, %c0_i32_0 : i32, i32
  }
  func.func @transform_3(%arg0: i32) -> (i32, i32) {
    %c0_i32 = arith.constant 0 : i32
    %c0_i32_0 = arith.constant 0 : i32
    %c0_i32_1 = arith.constant 0 : i32
    return %c0_i32, %c0_i32_0 : i32, i32
  }
  func.func @transform_4(%arg0: i32) -> (i32, i32) {
    %c0_i32 = arith.constant 0 : i32
    %c0_i32_0 = arith.constant 0 : i32
    %c0_i32_1 = arith.constant 0 : i32
    return %c0_i32, %c0_i32_0 : i32, i32
  }
  func.func @transform_5(%arg0: i32) -> (i32, i32) {
    %c0_i32 = arith.constant 0 : i32
    %c0_i32_0 = arith.constant 0 : i32
    %c0_i32_1 = arith.constant 0 : i32
    return %c0_i32, %c0_i32_0 : i32, i32
  }
  func.func @transform_6(%arg0: i32) -> (i32, i32) {
    %c0_i32 = arith.constant 0 : i32
    %c0_i32_0 = arith.constant 0 : i32
    %c0_i32_1 = arith.constant 0 : i32
    return %c0_i32, %c0_i32_0 : i32, i32
  }
  func.func @transform_7(%arg0: i32) -> (i32, i32) {
    %c0_i32 = arith.constant 0 : i32
    %c0_i32_0 = arith.constant 0 : i32
    return %arg0, %c0_i32 : i32, i32
  }
}

module attributes {stable_mosaic.version = 11 : i64} {
  func.func @_mha_ln_kernel(%arg0: i32, %arg1: memref<1x8x32xf32, #tpu.memory_space<vmem>>, %arg2: memref<32x96xbf16, #tpu.memory_space<vmem>>, %arg3: memref<1x96xf32, #tpu.memory_space<vmem>>, %arg4: memref<32x32xbf16, #tpu.memory_space<vmem>>, %arg5: memref<1x32xf32, #tpu.memory_space<vmem>>, %arg6: memref<8x8xf32, #tpu.memory_space<vmem>>, %arg7: memref<1x1x8xf32, #tpu.memory_space<vmem>>, %arg8: memref<1x32xf32, #tpu.memory_space<vmem>>, %arg9: memref<1x32xf32, #tpu.memory_space<vmem>>, %arg10: memref<1x8x32xf32, #tpu.memory_space<vmem>>) attributes {dimension_semantics = [#tpu.dimension_semantics<parallel>], iteration_bounds = array<i64: 2>, scalar_prefetch = 0 : i64, scratch_operands = 0 : i64, tpu.core_type = #tpu.core_type<tc>, window_params = [{transform_indices = @transform_0, window_bounds = array<i64: 1, 8, 32>}, {pipeline_mode = #tpu.pipeline_mode<synchronous>, transform_indices = @transform_1, window_bounds = array<i64: 32, 96>}, {pipeline_mode = #tpu.pipeline_mode<synchronous>, transform_indices = @transform_2, window_bounds = array<i64: 1, 96>}, {pipeline_mode = #tpu.pipeline_mode<synchronous>, transform_indices = @transform_3, window_bounds = array<i64: 32, 32>}, {pipeline_mode = #tpu.pipeline_mode<synchronous>, transform_indices = @transform_4, window_bounds = array<i64: 1, 32>}, {pipeline_mode = #tpu.pipeline_mode<synchronous>, transform_indices = @transform_5, window_bounds = array<i64: 8, 8>}, {transform_indices = @transform_6, window_bounds = array<i64: 1, 1, 8>}, {pipeline_mode = #tpu.pipeline_mode<synchronous>, transform_indices = @transform_7, window_bounds = array<i64: 1, 32>}, {pipeline_mode = #tpu.pipeline_mode<synchronous>, transform_indices = @transform_8, window_bounds = array<i64: 1, 32>}, {transform_indices = @transform_9, window_bounds = array<i64: 1, 8, 32>}]} {
    %c0 = arith.constant 0 : index
    %c0_0 = arith.constant 0 : index
    %c0_1 = arith.constant 0 : index
    %0 = vector.load %arg1[%c0, %c0_0, %c0_1] : memref<1x8x32xf32, #tpu.memory_space<vmem>>, vector<1x8x32xf32>
    %1 = vector.shape_cast %0 : vector<1x8x32xf32> to vector<8x32xf32>
    %c0_2 = arith.constant 0 : index
    %c0_3 = arith.constant 0 : index
    %2 = vector.load %arg2[%c0_2, %c0_3] : memref<32x96xbf16, #tpu.memory_space<vmem>>, vector<32x96xbf16>
    %c0_4 = arith.constant 0 : index
    %c0_5 = arith.constant 0 : index
    %3 = vector.load %arg3[%c0_4, %c0_5] : memref<1x96xf32, #tpu.memory_space<vmem>>, vector<1x96xf32>
    %4 = arith.truncf %1 : vector<8x32xf32> to vector<8x32xbf16>
    %cst = arith.constant dense<0.000000e+00> : vector<8x96xf32>
    %5 = tpu.matmul %4, %2, %cst {dimension_numbers = #tpu.dot_dimension_numbers<[1], [0], [0], [1], [0, 0, 1, 1], [], []>} : vector<8x32xbf16>, vector<32x96xbf16>, vector<8x96xf32> -> vector<8x96xf32>
    %6 = vector.broadcast %3 : vector<1x96xf32> to vector<8x96xf32>
    %7 = arith.addf %5, %6 : vector<8x96xf32>
    %8 = vector.extract_strided_slice %7 {offsets = [0, 0], sizes = [8, 32], strides = [1, 1]} : vector<8x96xf32> to vector<8x32xf32>
    %9 = vector.extract_strided_slice %7 {offsets = [0, 32], sizes = [8, 32], strides = [1, 1]} : vector<8x96xf32> to vector<8x32xf32>
    %10 = vector.extract_strided_slice %7 {offsets = [0, 64], sizes = [8, 32], strides = [1, 1]} : vector<8x96xf32> to vector<8x32xf32>
    %c0_6 = arith.constant 0 : index
    %c0_7 = arith.constant 0 : index
    %11 = vector.load %arg6[%c0_6, %c0_7] : memref<8x8xf32, #tpu.memory_space<vmem>>, vector<8x8xf32>
    %c0_8 = arith.constant 0 : index
    %c0_9 = arith.constant 0 : index
    %c0_10 = arith.constant 0 : index
    %12 = vector.load %arg7[%c0_8, %c0_9, %c0_10] : memref<1x1x8xf32, #tpu.memory_space<vmem>>, vector<1x1x8xf32>
    %13 = vector.shape_cast %12 : vector<1x1x8xf32> to vector<1x8xf32>
    %14 = vector.broadcast %13 : vector<1x8xf32> to vector<8x8xf32>
    %15 = arith.addf %11, %14 : vector<8x8xf32>
    %c0_11 = arith.constant 0 : index
    %c0_12 = arith.constant 0 : index
    %16 = vector.load %arg4[%c0_11, %c0_12] : memref<32x32xbf16, #tpu.memory_space<vmem>>, vector<32x32xbf16>
    %17 = vector.extract_strided_slice %8 {offsets = [0, 0], sizes = [8, 8], strides = [1, 1]} : vector<8x32xf32> to vector<8x8xf32>
    %18 = arith.truncf %17 : vector<8x8xf32> to vector<8x8xbf16>
    %19 = vector.extract_strided_slice %9 {offsets = [0, 0], sizes = [8, 8], strides = [1, 1]} : vector<8x32xf32> to vector<8x8xf32>
    %20 = arith.truncf %19 : vector<8x8xf32> to vector<8x8xbf16>
    %cst_13 = arith.constant dense<0.000000e+00> : vector<8x8xf32>
    %21 = tpu.matmul %18, %20, %cst_13 {dimension_numbers = #tpu.dot_dimension_numbers<[1], [1], [0], [0], [0, 0, 1, 0], [], []>} : vector<8x8xbf16>, vector<8x8xbf16>, vector<8x8xf32> -> vector<8x8xf32>
    %cst_14 = arith.constant 0.353553385 : f32
    %22 = vector.broadcast %cst_14 : f32 to vector<8x8xf32>
    %23 = arith.mulf %21, %22 : vector<8x8xf32>
    %24 = arith.addf %23, %15 : vector<8x8xf32>
    %cst_15 = arith.constant dense<0xFF800000> : vector<8xf32>
    %25 = vector.multi_reduction <maximumf>, %24, %cst_15 [1] : vector<8x8xf32> to vector<8xf32>
    %26 = vector.shape_cast %25 : vector<8xf32> to vector<8x1xf32>
    %27 = vector.broadcast %26 : vector<8x1xf32> to vector<8x8xf32>
    %28 = arith.subf %24, %27 : vector<8x8xf32>
    %29 = math.exp %28 : vector<8x8xf32>
    %cst_16 = arith.constant dense<0.000000e+00> : vector<8xf32>
    %30 = vector.multi_reduction <add>, %29, %cst_16 [1] : vector<8x8xf32> to vector<8xf32>
    %31 = vector.shape_cast %30 : vector<8xf32> to vector<8x1xf32>
    %32 = tpu.reciprocal %31 {approx = true} : vector<8x1xf32> -> vector<8x1xf32>
    %33 = vector.broadcast %32 : vector<8x1xf32> to vector<8x8xf32>
    %34 = arith.mulf %29, %33 : vector<8x8xf32>
    %35 = arith.truncf %34 : vector<8x8xf32> to vector<8x8xbf16>
    %36 = vector.extract_strided_slice %10 {offsets = [0, 0], sizes = [8, 8], strides = [1, 1]} : vector<8x32xf32> to vector<8x8xf32>
    %37 = arith.truncf %36 : vector<8x8xf32> to vector<8x8xbf16>
    %cst_17 = arith.constant dense<0.000000e+00> : vector<8x8xf32>
    %38 = tpu.matmul %35, %37, %cst_17 {dimension_numbers = #tpu.dot_dimension_numbers<[1], [0], [0], [1], [0, 0, 1, 1], [], []>} : vector<8x8xbf16>, vector<8x8xbf16>, vector<8x8xf32> -> vector<8x8xf32>
    %39 = arith.truncf %38 : vector<8x8xf32> to vector<8x8xbf16>
    %40 = vector.extract_strided_slice %16 {offsets = [0, 0], sizes = [8, 32], strides = [1, 1]} : vector<32x32xbf16> to vector<8x32xbf16>
    %cst_18 = arith.constant dense<0.000000e+00> : vector<8x32xf32>
    %41 = tpu.matmul %39, %40, %cst_18 {dimension_numbers = #tpu.dot_dimension_numbers<[1], [0], [0], [1], [0, 0, 1, 1], [], []>} : vector<8x8xbf16>, vector<8x32xbf16>, vector<8x32xf32> -> vector<8x32xf32>
    %42 = vector.extract_strided_slice %8 {offsets = [0, 8], sizes = [8, 8], strides = [1, 1]} : vector<8x32xf32> to vector<8x8xf32>
    %43 = arith.truncf %42 : vector<8x8xf32> to vector<8x8xbf16>
    %44 = vector.extract_strided_slice %9 {offsets = [0, 8], sizes = [8, 8], strides = [1, 1]} : vector<8x32xf32> to vector<8x8xf32>
    %45 = arith.truncf %44 : vector<8x8xf32> to vector<8x8xbf16>
    %cst_19 = arith.constant dense<0.000000e+00> : vector<8x8xf32>
    %46 = tpu.matmul %43, %45, %cst_19 {dimension_numbers = #tpu.dot_dimension_numbers<[1], [1], [0], [0], [0, 0, 1, 0], [], []>} : vector<8x8xbf16>, vector<8x8xbf16>, vector<8x8xf32> -> vector<8x8xf32>
    %cst_20 = arith.constant 0.353553385 : f32
    %47 = vector.broadcast %cst_20 : f32 to vector<8x8xf32>
    %48 = arith.mulf %46, %47 : vector<8x8xf32>
    %49 = arith.addf %48, %15 : vector<8x8xf32>
    %cst_21 = arith.constant dense<0xFF800000> : vector<8xf32>
    %50 = vector.multi_reduction <maximumf>, %49, %cst_21 [1] : vector<8x8xf32> to vector<8xf32>
    %51 = vector.shape_cast %50 : vector<8xf32> to vector<8x1xf32>
    %52 = vector.broadcast %51 : vector<8x1xf32> to vector<8x8xf32>
    %53 = arith.subf %49, %52 : vector<8x8xf32>
    %54 = math.exp %53 : vector<8x8xf32>
    %cst_22 = arith.constant dense<0.000000e+00> : vector<8xf32>
    %55 = vector.multi_reduction <add>, %54, %cst_22 [1] : vector<8x8xf32> to vector<8xf32>
    %56 = vector.shape_cast %55 : vector<8xf32> to vector<8x1xf32>
    %57 = tpu.reciprocal %56 {approx = true} : vector<8x1xf32> -> vector<8x1xf32>
    %58 = vector.broadcast %57 : vector<8x1xf32> to vector<8x8xf32>
    %59 = arith.mulf %54, %58 : vector<8x8xf32>
    %60 = arith.truncf %59 : vector<8x8xf32> to vector<8x8xbf16>
    %61 = vector.extract_strided_slice %10 {offsets = [0, 8], sizes = [8, 8], strides = [1, 1]} : vector<8x32xf32> to vector<8x8xf32>
    %62 = arith.truncf %61 : vector<8x8xf32> to vector<8x8xbf16>
    %cst_23 = arith.constant dense<0.000000e+00> : vector<8x8xf32>
    %63 = tpu.matmul %60, %62, %cst_23 {dimension_numbers = #tpu.dot_dimension_numbers<[1], [0], [0], [1], [0, 0, 1, 1], [], []>} : vector<8x8xbf16>, vector<8x8xbf16>, vector<8x8xf32> -> vector<8x8xf32>
    %64 = arith.truncf %63 : vector<8x8xf32> to vector<8x8xbf16>
    %65 = vector.extract_strided_slice %16 {offsets = [8, 0], sizes = [8, 32], strides = [1, 1]} : vector<32x32xbf16> to vector<8x32xbf16>
    %cst_24 = arith.constant dense<0.000000e+00> : vector<8x32xf32>
    %66 = tpu.matmul %64, %65, %cst_24 {dimension_numbers = #tpu.dot_dimension_numbers<[1], [0], [0], [1], [0, 0, 1, 1], [], []>} : vector<8x8xbf16>, vector<8x32xbf16>, vector<8x32xf32> -> vector<8x32xf32>
    %67 = arith.addf %41, %66 : vector<8x32xf32>
    %68 = vector.extract_strided_slice %8 {offsets = [0, 16], sizes = [8, 8], strides = [1, 1]} : vector<8x32xf32> to vector<8x8xf32>
    %69 = arith.truncf %68 : vector<8x8xf32> to vector<8x8xbf16>
    %70 = vector.extract_strided_slice %9 {offsets = [0, 16], sizes = [8, 8], strides = [1, 1]} : vector<8x32xf32> to vector<8x8xf32>
    %71 = arith.truncf %70 : vector<8x8xf32> to vector<8x8xbf16>
    %cst_25 = arith.constant dense<0.000000e+00> : vector<8x8xf32>
    %72 = tpu.matmul %69, %71, %cst_25 {dimension_numbers = #tpu.dot_dimension_numbers<[1], [1], [0], [0], [0, 0, 1, 0], [], []>} : vector<8x8xbf16>, vector<8x8xbf16>, vector<8x8xf32> -> vector<8x8xf32>
    %cst_26 = arith.constant 0.353553385 : f32
    %73 = vector.broadcast %cst_26 : f32 to vector<8x8xf32>
    %74 = arith.mulf %72, %73 : vector<8x8xf32>
    %75 = arith.addf %74, %15 : vector<8x8xf32>
    %cst_27 = arith.constant dense<0xFF800000> : vector<8xf32>
    %76 = vector.multi_reduction <maximumf>, %75, %cst_27 [1] : vector<8x8xf32> to vector<8xf32>
    %77 = vector.shape_cast %76 : vector<8xf32> to vector<8x1xf32>
    %78 = vector.broadcast %77 : vector<8x1xf32> to vector<8x8xf32>
    %79 = arith.subf %75, %78 : vector<8x8xf32>
    %80 = math.exp %79 : vector<8x8xf32>
    %cst_28 = arith.constant dense<0.000000e+00> : vector<8xf32>
    %81 = vector.multi_reduction <add>, %80, %cst_28 [1] : vector<8x8xf32> to vector<8xf32>
    %82 = vector.shape_cast %81 : vector<8xf32> to vector<8x1xf32>
    %83 = tpu.reciprocal %82 {approx = true} : vector<8x1xf32> -> vector<8x1xf32>
    %84 = vector.broadcast %83 : vector<8x1xf32> to vector<8x8xf32>
    %85 = arith.mulf %80, %84 : vector<8x8xf32>
    %86 = arith.truncf %85 : vector<8x8xf32> to vector<8x8xbf16>
    %87 = vector.extract_strided_slice %10 {offsets = [0, 16], sizes = [8, 8], strides = [1, 1]} : vector<8x32xf32> to vector<8x8xf32>
    %88 = arith.truncf %87 : vector<8x8xf32> to vector<8x8xbf16>
    %cst_29 = arith.constant dense<0.000000e+00> : vector<8x8xf32>
    %89 = tpu.matmul %86, %88, %cst_29 {dimension_numbers = #tpu.dot_dimension_numbers<[1], [0], [0], [1], [0, 0, 1, 1], [], []>} : vector<8x8xbf16>, vector<8x8xbf16>, vector<8x8xf32> -> vector<8x8xf32>
    %90 = arith.truncf %89 : vector<8x8xf32> to vector<8x8xbf16>
    %91 = vector.extract_strided_slice %16 {offsets = [16, 0], sizes = [8, 32], strides = [1, 1]} : vector<32x32xbf16> to vector<8x32xbf16>
    %cst_30 = arith.constant dense<0.000000e+00> : vector<8x32xf32>
    %92 = tpu.matmul %90, %91, %cst_30 {dimension_numbers = #tpu.dot_dimension_numbers<[1], [0], [0], [1], [0, 0, 1, 1], [], []>} : vector<8x8xbf16>, vector<8x32xbf16>, vector<8x32xf32> -> vector<8x32xf32>
    %93 = arith.addf %67, %92 : vector<8x32xf32>
    %94 = vector.extract_strided_slice %8 {offsets = [0, 24], sizes = [8, 8], strides = [1, 1]} : vector<8x32xf32> to vector<8x8xf32>
    %95 = arith.truncf %94 : vector<8x8xf32> to vector<8x8xbf16>
    %96 = vector.extract_strided_slice %9 {offsets = [0, 24], sizes = [8, 8], strides = [1, 1]} : vector<8x32xf32> to vector<8x8xf32>
    %97 = arith.truncf %96 : vector<8x8xf32> to vector<8x8xbf16>
    %cst_31 = arith.constant dense<0.000000e+00> : vector<8x8xf32>
    %98 = tpu.matmul %95, %97, %cst_31 {dimension_numbers = #tpu.dot_dimension_numbers<[1], [1], [0], [0], [0, 0, 1, 0], [], []>} : vector<8x8xbf16>, vector<8x8xbf16>, vector<8x8xf32> -> vector<8x8xf32>
    %cst_32 = arith.constant 0.353553385 : f32
    %99 = vector.broadcast %cst_32 : f32 to vector<8x8xf32>
    %100 = arith.mulf %98, %99 : vector<8x8xf32>
    %101 = arith.addf %100, %15 : vector<8x8xf32>
    %cst_33 = arith.constant dense<0xFF800000> : vector<8xf32>
    %102 = vector.multi_reduction <maximumf>, %101, %cst_33 [1] : vector<8x8xf32> to vector<8xf32>
    %103 = vector.shape_cast %102 : vector<8xf32> to vector<8x1xf32>
    %104 = vector.broadcast %103 : vector<8x1xf32> to vector<8x8xf32>
    %105 = arith.subf %101, %104 : vector<8x8xf32>
    %106 = math.exp %105 : vector<8x8xf32>
    %cst_34 = arith.constant dense<0.000000e+00> : vector<8xf32>
    %107 = vector.multi_reduction <add>, %106, %cst_34 [1] : vector<8x8xf32> to vector<8xf32>
    %108 = vector.shape_cast %107 : vector<8xf32> to vector<8x1xf32>
    %109 = tpu.reciprocal %108 {approx = true} : vector<8x1xf32> -> vector<8x1xf32>
    %110 = vector.broadcast %109 : vector<8x1xf32> to vector<8x8xf32>
    %111 = arith.mulf %106, %110 : vector<8x8xf32>
    %112 = arith.truncf %111 : vector<8x8xf32> to vector<8x8xbf16>
    %113 = vector.extract_strided_slice %10 {offsets = [0, 24], sizes = [8, 8], strides = [1, 1]} : vector<8x32xf32> to vector<8x8xf32>
    %114 = arith.truncf %113 : vector<8x8xf32> to vector<8x8xbf16>
    %cst_35 = arith.constant dense<0.000000e+00> : vector<8x8xf32>
    %115 = tpu.matmul %112, %114, %cst_35 {dimension_numbers = #tpu.dot_dimension_numbers<[1], [0], [0], [1], [0, 0, 1, 1], [], []>} : vector<8x8xbf16>, vector<8x8xbf16>, vector<8x8xf32> -> vector<8x8xf32>
    %116 = arith.truncf %115 : vector<8x8xf32> to vector<8x8xbf16>
    %117 = vector.extract_strided_slice %16 {offsets = [24, 0], sizes = [8, 32], strides = [1, 1]} : vector<32x32xbf16> to vector<8x32xbf16>
    %cst_36 = arith.constant dense<0.000000e+00> : vector<8x32xf32>
    %118 = tpu.matmul %116, %117, %cst_36 {dimension_numbers = #tpu.dot_dimension_numbers<[1], [0], [0], [1], [0, 0, 1, 1], [], []>} : vector<8x8xbf16>, vector<8x32xbf16>, vector<8x32xf32> -> vector<8x32xf32>
    %119 = arith.addf %93, %118 : vector<8x32xf32>
    %c0_37 = arith.constant 0 : index
    %c0_38 = arith.constant 0 : index
    %120 = vector.load %arg5[%c0_37, %c0_38] : memref<1x32xf32, #tpu.memory_space<vmem>>, vector<1x32xf32>
    %121 = vector.broadcast %120 : vector<1x32xf32> to vector<8x32xf32>
    %122 = arith.addf %119, %121 : vector<8x32xf32>
    %123 = arith.addf %1, %122 : vector<8x32xf32>
    %cst_39 = arith.constant dense<0.000000e+00> : vector<8xf32>
    %124 = vector.multi_reduction <add>, %123, %cst_39 [1] : vector<8x32xf32> to vector<8xf32>
    %125 = vector.shape_cast %124 : vector<8xf32> to vector<8x1xf32>
    %cst_40 = arith.constant 3.200000e+01 : f32
    %126 = vector.broadcast %cst_40 : f32 to vector<8x1xf32>
    %127 = arith.divf %125, %126 : vector<8x1xf32>
    %128 = vector.broadcast %127 : vector<8x1xf32> to vector<8x32xf32>
    %129 = arith.subf %123, %128 : vector<8x32xf32>
    %130 = arith.mulf %129, %129 : vector<8x32xf32>
    %cst_41 = arith.constant dense<0.000000e+00> : vector<8xf32>
    %131 = vector.multi_reduction <add>, %130, %cst_41 [1] : vector<8x32xf32> to vector<8xf32>
    %132 = vector.shape_cast %131 : vector<8xf32> to vector<8x1xf32>
    %cst_42 = arith.constant 3.200000e+01 : f32
    %133 = vector.broadcast %cst_42 : f32 to vector<8x1xf32>
    %134 = arith.divf %132, %133 : vector<8x1xf32>
    %135 = vector.broadcast %127 : vector<8x1xf32> to vector<8x32xf32>
    %136 = arith.subf %123, %135 : vector<8x32xf32>
    %cst_43 = arith.constant 9.99999974E-6 : f32
    %137 = vector.broadcast %cst_43 : f32 to vector<8x1xf32>
    %138 = arith.addf %134, %137 : vector<8x1xf32>
    %139 = math.rsqrt %138 : vector<8x1xf32>
    %140 = vector.broadcast %139 : vector<8x1xf32> to vector<8x32xf32>
    %141 = arith.mulf %136, %140 : vector<8x32xf32>
    %c0_44 = arith.constant 0 : index
    %c0_45 = arith.constant 0 : index
    %142 = vector.load %arg8[%c0_44, %c0_45] : memref<1x32xf32, #tpu.memory_space<vmem>>, vector<1x32xf32>
    %143 = vector.broadcast %142 : vector<1x32xf32> to vector<8x32xf32>
    %144 = arith.mulf %141, %143 : vector<8x32xf32>
    %c0_46 = arith.constant 0 : index
    %c0_47 = arith.constant 0 : index
    %145 = vector.load %arg9[%c0_46, %c0_47] : memref<1x32xf32, #tpu.memory_space<vmem>>, vector<1x32xf32>
    %146 = vector.broadcast %145 : vector<1x32xf32> to vector<8x32xf32>
    %147 = arith.addf %144, %146 : vector<8x32xf32>
    %c0_48 = arith.constant 0 : index
    %c0_49 = arith.constant 0 : index
    %c0_50 = arith.constant 0 : index
    %148 = vector.load %arg10[%c0_48, %c0_49, %c0_50] : memref<1x8x32xf32, #tpu.memory_space<vmem>>, vector<1x8x32xf32>
    %149 = vector.shape_cast %148 : vector<1x8x32xf32> to vector<8x32xf32>
    %150 = vector.shape_cast %147 : vector<8x32xf32> to vector<1x8x32xf32>
    tpu.vector_store %arg10[%c0_48, %c0_49, %c0_50], %150 {strides = array<i32>} : memref<1x8x32xf32, #tpu.memory_space<vmem>>, vector<1x8x32xf32>,
    return
  }
  func.func @transform_0(%arg0: i32) -> (i32, i32, i32) {
    %c0_i32 = arith.constant 0 : i32
    %c0_i32_0 = arith.constant 0 : i32
    %c0_i32_1 = arith.constant 0 : i32
    return %arg0, %c0_i32, %c0_i32_0 : i32, i32, i32
  }
  func.func @transform_1(%arg0: i32) -> (i32, i32) {
    %c0_i32 = arith.constant 0 : i32
    %c0_i32_0 = arith.constant 0 : i32
    %c0_i32_1 = arith.constant 0 : i32
    return %c0_i32, %c0_i32_0 : i32, i32
  }
  func.func @transform_2(%arg0: i32) -> (i32, i32) {
    %c0_i32 = arith.constant 0 : i32
    %c0_i32_0 = arith.constant 0 : i32
    %c0_i32_1 = arith.constant 0 : i32
    return %c0_i32, %c0_i32_0 : i32, i32
  }
  func.func @transform_3(%arg0: i32) -> (i32, i32) {
    %c0_i32 = arith.constant 0 : i32
    %c0_i32_0 = arith.constant 0 : i32
    %c0_i32_1 = arith.constant 0 : i32
    return %c0_i32, %c0_i32_0 : i32, i32
  }
  func.func @transform_4(%arg0: i32) -> (i32, i32) {
    %c0_i32 = arith.constant 0 : i32
    %c0_i32_0 = arith.constant 0 : i32
    %c0_i32_1 = arith.constant 0 : i32
    return %c0_i32, %c0_i32_0 : i32, i32
  }
  func.func @transform_5(%arg0: i32) -> (i32, i32) {
    %c0_i32 = arith.constant 0 : i32
    %c0_i32_0 = arith.constant 0 : i32
    %c0_i32_1 = arith.constant 0 : i32
    return %c0_i32, %c0_i32_0 : i32, i32
  }
  func.func @transform_6(%arg0: i32) -> (i32, i32, i32) {
    %c0_i32 = arith.constant 0 : i32
    %c0_i32_0 = arith.constant 0 : i32
    %c0_i32_1 = arith.constant 0 : i32
    return %arg0, %c0_i32, %c0_i32_0 : i32, i32, i32
  }
  func.func @transform_7(%arg0: i32) -> (i32, i32) {
    %c0_i32 = arith.constant 0 : i32
    %c0_i32_0 = arith.constant 0 : i32
    %c0_i32_1 = arith.constant 0 : i32
    return %c0_i32, %c0_i32_0 : i32, i32
  }
  func.func @transform_8(%arg0: i32) -> (i32, i32) {
    %c0_i32 = arith.constant 0 : i32
    %c0_i32_0 = arith.constant 0 : i32
    %c0_i32_1 = arith.constant 0 : i32
    return %c0_i32, %c0_i32_0 : i32, i32
  }
  func.func @transform_9(%arg0: i32) -> (i32, i32, i32) {
    %c0_i32 = arith.constant 0 : i32
    %c0_i32_0 = arith.constant 0 : i32
    %c0_i32_1 = arith.constant 0 : i32
    return %arg0, %c0_i32, %c0_i32_0 : i32, i32, i32
  }
}

module attributes {stable_mosaic.version = 11 : i64} {
  func.func @_mha_ln_kernel(%arg0: i32, %arg1: memref<1x8x32xf32, #tpu.memory_space<vmem>>, %arg2: memref<1x8x32xf32, #tpu.memory_space<vmem>>, %arg3: memref<32x96xbf16, #tpu.memory_space<vmem>>, %arg4: memref<1x96xf32, #tpu.memory_space<vmem>>, %arg5: memref<32x32xbf16, #tpu.memory_space<vmem>>, %arg6: memref<1x32xf32, #tpu.memory_space<vmem>>, %arg7: memref<8x8xf32, #tpu.memory_space<vmem>>, %arg8: memref<1x1x8xf32, #tpu.memory_space<vmem>>, %arg9: memref<1x32xf32, #tpu.memory_space<vmem>>, %arg10: memref<1x32xf32, #tpu.memory_space<vmem>>, %arg11: memref<1x8x32xf32, #tpu.memory_space<vmem>>) attributes {dimension_semantics = [#tpu.dimension_semantics<parallel>], iteration_bounds = array<i64: 2>, scalar_prefetch = 0 : i64, scratch_operands = 0 : i64, tpu.core_type = #tpu.core_type<tc>, window_params = [{transform_indices = @transform_0, window_bounds = array<i64: 1, 8, 32>}, {transform_indices = @transform_1, window_bounds = array<i64: 1, 8, 32>}, {pipeline_mode = #tpu.pipeline_mode<synchronous>, transform_indices = @transform_2, window_bounds = array<i64: 32, 96>}, {pipeline_mode = #tpu.pipeline_mode<synchronous>, transform_indices = @transform_3, window_bounds = array<i64: 1, 96>}, {pipeline_mode = #tpu.pipeline_mode<synchronous>, transform_indices = @transform_4, window_bounds = array<i64: 32, 32>}, {pipeline_mode = #tpu.pipeline_mode<synchronous>, transform_indices = @transform_5, window_bounds = array<i64: 1, 32>}, {pipeline_mode = #tpu.pipeline_mode<synchronous>, transform_indices = @transform_6, window_bounds = array<i64: 8, 8>}, {transform_indices = @transform_7, window_bounds = array<i64: 1, 1, 8>}, {pipeline_mode = #tpu.pipeline_mode<synchronous>, transform_indices = @transform_8, window_bounds = array<i64: 1, 32>}, {pipeline_mode = #tpu.pipeline_mode<synchronous>, transform_indices = @transform_9, window_bounds = array<i64: 1, 32>}, {transform_indices = @transform_10, window_bounds = array<i64: 1, 8, 32>}]} {
    %c0 = arith.constant 0 : index
    %c0_0 = arith.constant 0 : index
    %c0_1 = arith.constant 0 : index
    %0 = vector.load %arg1[%c0, %c0_0, %c0_1] : memref<1x8x32xf32, #tpu.memory_space<vmem>>, vector<1x8x32xf32>
    %1 = vector.shape_cast %0 : vector<1x8x32xf32> to vector<8x32xf32>
    %c0_2 = arith.constant 0 : index
    %c0_3 = arith.constant 0 : index
    %2 = vector.load %arg3[%c0_2, %c0_3] : memref<32x96xbf16, #tpu.memory_space<vmem>>, vector<32x96xbf16>
    %c0_4 = arith.constant 0 : index
    %c0_5 = arith.constant 0 : index
    %3 = vector.load %arg4[%c0_4, %c0_5] : memref<1x96xf32, #tpu.memory_space<vmem>>, vector<1x96xf32>
    %4 = arith.truncf %1 : vector<8x32xf32> to vector<8x32xbf16>
    %c0_6 = arith.constant 0 : index
    %c0_7 = arith.constant 0 : index
    %c0_8 = arith.constant 0 : index
    %5 = vector.load %arg2[%c0_6, %c0_7, %c0_8] : memref<1x8x32xf32, #tpu.memory_space<vmem>>, vector<1x8x32xf32>
    %6 = vector.shape_cast %5 : vector<1x8x32xf32> to vector<8x32xf32>
    %7 = arith.truncf %6 : vector<8x32xf32> to vector<8x32xbf16>
    %8 = vector.extract_strided_slice %2 {offsets = [0, 0], sizes = [32, 32], strides = [1, 1]} : vector<32x96xbf16> to vector<32x32xbf16>
    %cst = arith.constant dense<0.000000e+00> : vector<8x32xf32>
    %9 = tpu.matmul %4, %8, %cst {dimension_numbers = #tpu.dot_dimension_numbers<[1], [0], [0], [1], [0, 0, 1, 1], [], []>} : vector<8x32xbf16>, vector<32x32xbf16>, vector<8x32xf32> -> vector<8x32xf32>
    %10 = vector.extract_strided_slice %3 {offsets = [0, 0], sizes = [1, 32], strides = [1, 1]} : vector<1x96xf32> to vector<1x32xf32>
    %11 = vector.broadcast %10 : vector<1x32xf32> to vector<8x32xf32>
    %12 = arith.addf %9, %11 : vector<8x32xf32>
    %13 = vector.extract_strided_slice %2 {offsets = [0, 32], sizes = [32, 64], strides = [1, 1]} : vector<32x96xbf16> to vector<32x64xbf16>
    %cst_9 = arith.constant dense<0.000000e+00> : vector<8x64xf32>
    %14 = tpu.matmul %7, %13, %cst_9 {dimension_numbers = #tpu.dot_dimension_numbers<[1], [0], [0], [1], [0, 0, 1, 1], [], []>} : vector<8x32xbf16>, vector<32x64xbf16>, vector<8x64xf32> -> vector<8x64xf32>
    %15 = vector.extract_strided_slice %3 {offsets = [0, 32], sizes = [1, 64], strides = [1, 1]} : vector<1x96xf32> to vector<1x64xf32>
    %16 = vector.broadcast %15 : vector<1x64xf32> to vector<8x64xf32>
    %17 = arith.addf %14, %16 : vector<8x64xf32>
    %18 = vector.extract_strided_slice %17 {offsets = [0, 0], sizes = [8, 32], strides = [1, 1]} : vector<8x64xf32> to vector<8x32xf32>
    %19 = vector.extract_strided_slice %17 {offsets = [0, 32], sizes = [8, 32], strides = [1, 1]} : vector<8x64xf32> to vector<8x32xf32>
    %c0_10 = arith.constant 0 : index
    %c0_11 = arith.constant 0 : index
    %20 = vector.load %arg7[%c0_10, %c0_11] : memref<8x8xf32, #tpu.memory_space<vmem>>, vector<8x8xf32>
    %c0_12 = arith.constant 0 : index
    %c0_13 = arith.constant 0 : index
    %c0_14 = arith.constant 0 : index
    %21 = vector.load %arg8[%c0_12, %c0_13, %c0_14] : memref<1x1x8xf32, #tpu.memory_space<vmem>>, vector<1x1x8xf32>
    %22 = vector.shape_cast %21 : vector<1x1x8xf32> to vector<1x8xf32>
    %23 = vector.broadcast %22 : vector<1x8xf32> to vector<8x8xf32>
    %24 = arith.addf %20, %23 : vector<8x8xf32>
    %c0_15 = arith.constant 0 : index
    %c0_16 = arith.constant 0 : index
    %25 = vector.load %arg5[%c0_15, %c0_16] : memref<32x32xbf16, #tpu.memory_space<vmem>>, vector<32x32xbf16>
    %26 = vector.extract_strided_slice %12 {offsets = [0, 0], sizes = [8, 8], strides = [1, 1]} : vector<8x32xf32> to vector<8x8xf32>
    %27 = arith.truncf %26 : vector<8x8xf32> to vector<8x8xbf16>
    %28 = vector.extract_strided_slice %18 {offsets = [0, 0], sizes = [8, 8], strides = [1, 1]} : vector<8x32xf32> to vector<8x8xf32>
    %29 = arith.truncf %28 : vector<8x8xf32> to vector<8x8xbf16>
    %cst_17 = arith.constant dense<0.000000e+00> : vector<8x8xf32>
    %30 = tpu.matmul %27, %29, %cst_17 {dimension_numbers = #tpu.dot_dimension_numbers<[1], [1], [0], [0], [0, 0, 1, 0], [], []>} : vector<8x8xbf16>, vector<8x8xbf16>, vector<8x8xf32> -> vector<8x8xf32>
    %cst_18 = arith.constant 0.353553385 : f32
    %31 = vector.broadcast %cst_18 : f32 to vector<8x8xf32>
    %32 = arith.mulf %30, %31 : vector<8x8xf32>
    %33 = arith.addf %32, %24 : vector<8x8xf32>
    %cst_19 = arith.constant dense<0xFF800000> : vector<8xf32>
    %34 = vector.multi_reduction <maximumf>, %33, %cst_19 [1] : vector<8x8xf32> to vector<8xf32>
    %35 = vector.shape_cast %34 : vector<8xf32> to vector<8x1xf32>
    %36 = vector.broadcast %35 : vector<8x1xf32> to vector<8x8xf32>
    %37 = arith.subf %33, %36 : vector<8x8xf32>
    %38 = math.exp %37 : vector<8x8xf32>
    %cst_20 = arith.constant dense<0.000000e+00> : vector<8xf32>
    %39 = vector.multi_reduction <add>, %38, %cst_20 [1] : vector<8x8xf32> to vector<8xf32>
    %40 = vector.shape_cast %39 : vector<8xf32> to vector<8x1xf32>
    %41 = tpu.reciprocal %40 {approx = true} : vector<8x1xf32> -> vector<8x1xf32>
    %42 = vector.broadcast %41 : vector<8x1xf32> to vector<8x8xf32>
    %43 = arith.mulf %38, %42 : vector<8x8xf32>
    %44 = arith.truncf %43 : vector<8x8xf32> to vector<8x8xbf16>
    %45 = vector.extract_strided_slice %19 {offsets = [0, 0], sizes = [8, 8], strides = [1, 1]} : vector<8x32xf32> to vector<8x8xf32>
    %46 = arith.truncf %45 : vector<8x8xf32> to vector<8x8xbf16>
    %cst_21 = arith.constant dense<0.000000e+00> : vector<8x8xf32>
    %47 = tpu.matmul %44, %46, %cst_21 {dimension_numbers = #tpu.dot_dimension_numbers<[1], [0], [0], [1], [0, 0, 1, 1], [], []>} : vector<8x8xbf16>, vector<8x8xbf16>, vector<8x8xf32> -> vector<8x8xf32>
    %48 = arith.truncf %47 : vector<8x8xf32> to vector<8x8xbf16>
    %49 = vector.extract_strided_slice %25 {offsets = [0, 0], sizes = [8, 32], strides = [1, 1]} : vector<32x32xbf16> to vector<8x32xbf16>
    %cst_22 = arith.constant dense<0.000000e+00> : vector<8x32xf32>
    %50 = tpu.matmul %48, %49, %cst_22 {dimension_numbers = #tpu.dot_dimension_numbers<[1], [0], [0], [1], [0, 0, 1, 1], [], []>} : vector<8x8xbf16>, vector<8x32xbf16>, vector<8x32xf32> -> vector<8x32xf32>
    %51 = vector.extract_strided_slice %12 {offsets = [0, 8], sizes = [8, 8], strides = [1, 1]} : vector<8x32xf32> to vector<8x8xf32>
    %52 = arith.truncf %51 : vector<8x8xf32> to vector<8x8xbf16>
    %53 = vector.extract_strided_slice %18 {offsets = [0, 8], sizes = [8, 8], strides = [1, 1]} : vector<8x32xf32> to vector<8x8xf32>
    %54 = arith.truncf %53 : vector<8x8xf32> to vector<8x8xbf16>
    %cst_23 = arith.constant dense<0.000000e+00> : vector<8x8xf32>
    %55 = tpu.matmul %52, %54, %cst_23 {dimension_numbers = #tpu.dot_dimension_numbers<[1], [1], [0], [0], [0, 0, 1, 0], [], []>} : vector<8x8xbf16>, vector<8x8xbf16>, vector<8x8xf32> -> vector<8x8xf32>
    %cst_24 = arith.constant 0.353553385 : f32
    %56 = vector.broadcast %cst_24 : f32 to vector<8x8xf32>
    %57 = arith.mulf %55, %56 : vector<8x8xf32>
    %58 = arith.addf %57, %24 : vector<8x8xf32>
    %cst_25 = arith.constant dense<0xFF800000> : vector<8xf32>
    %59 = vector.multi_reduction <maximumf>, %58, %cst_25 [1] : vector<8x8xf32> to vector<8xf32>
    %60 = vector.shape_cast %59 : vector<8xf32> to vector<8x1xf32>
    %61 = vector.broadcast %60 : vector<8x1xf32> to vector<8x8xf32>
    %62 = arith.subf %58, %61 : vector<8x8xf32>
    %63 = math.exp %62 : vector<8x8xf32>
    %cst_26 = arith.constant dense<0.000000e+00> : vector<8xf32>
    %64 = vector.multi_reduction <add>, %63, %cst_26 [1] : vector<8x8xf32> to vector<8xf32>
    %65 = vector.shape_cast %64 : vector<8xf32> to vector<8x1xf32>
    %66 = tpu.reciprocal %65 {approx = true} : vector<8x1xf32> -> vector<8x1xf32>
    %67 = vector.broadcast %66 : vector<8x1xf32> to vector<8x8xf32>
    %68 = arith.mulf %63, %67 : vector<8x8xf32>
    %69 = arith.truncf %68 : vector<8x8xf32> to vector<8x8xbf16>
    %70 = vector.extract_strided_slice %19 {offsets = [0, 8], sizes = [8, 8], strides = [1, 1]} : vector<8x32xf32> to vector<8x8xf32>
    %71 = arith.truncf %70 : vector<8x8xf32> to vector<8x8xbf16>
    %cst_27 = arith.constant dense<0.000000e+00> : vector<8x8xf32>
    %72 = tpu.matmul %69, %71, %cst_27 {dimension_numbers = #tpu.dot_dimension_numbers<[1], [0], [0], [1], [0, 0, 1, 1], [], []>} : vector<8x8xbf16>, vector<8x8xbf16>, vector<8x8xf32> -> vector<8x8xf32>
    %73 = arith.truncf %72 : vector<8x8xf32> to vector<8x8xbf16>
    %74 = vector.extract_strided_slice %25 {offsets = [8, 0], sizes = [8, 32], strides = [1, 1]} : vector<32x32xbf16> to vector<8x32xbf16>
    %cst_28 = arith.constant dense<0.000000e+00> : vector<8x32xf32>
    %75 = tpu.matmul %73, %74, %cst_28 {dimension_numbers = #tpu.dot_dimension_numbers<[1], [0], [0], [1], [0, 0, 1, 1], [], []>} : vector<8x8xbf16>, vector<8x32xbf16>, vector<8x32xf32> -> vector<8x32xf32>
    %76 = arith.addf %50, %75 : vector<8x32xf32>
    %77 = vector.extract_strided_slice %12 {offsets = [0, 16], sizes = [8, 8], strides = [1, 1]} : vector<8x32xf32> to vector<8x8xf32>
    %78 = arith.truncf %77 : vector<8x8xf32> to vector<8x8xbf16>
    %79 = vector.extract_strided_slice %18 {offsets = [0, 16], sizes = [8, 8], strides = [1, 1]} : vector<8x32xf32> to vector<8x8xf32>
    %80 = arith.truncf %79 : vector<8x8xf32> to vector<8x8xbf16>
    %cst_29 = arith.constant dense<0.000000e+00> : vector<8x8xf32>
    %81 = tpu.matmul %78, %80, %cst_29 {dimension_numbers = #tpu.dot_dimension_numbers<[1], [1], [0], [0], [0, 0, 1, 0], [], []>} : vector<8x8xbf16>, vector<8x8xbf16>, vector<8x8xf32> -> vector<8x8xf32>
    %cst_30 = arith.constant 0.353553385 : f32
    %82 = vector.broadcast %cst_30 : f32 to vector<8x8xf32>
    %83 = arith.mulf %81, %82 : vector<8x8xf32>
    %84 = arith.addf %83, %24 : vector<8x8xf32>
    %cst_31 = arith.constant dense<0xFF800000> : vector<8xf32>
    %85 = vector.multi_reduction <maximumf>, %84, %cst_31 [1] : vector<8x8xf32> to vector<8xf32>
    %86 = vector.shape_cast %85 : vector<8xf32> to vector<8x1xf32>
    %87 = vector.broadcast %86 : vector<8x1xf32> to vector<8x8xf32>
    %88 = arith.subf %84, %87 : vector<8x8xf32>
    %89 = math.exp %88 : vector<8x8xf32>
    %cst_32 = arith.constant dense<0.000000e+00> : vector<8xf32>
    %90 = vector.multi_reduction <add>, %89, %cst_32 [1] : vector<8x8xf32> to vector<8xf32>
    %91 = vector.shape_cast %90 : vector<8xf32> to vector<8x1xf32>
    %92 = tpu.reciprocal %91 {approx = true} : vector<8x1xf32> -> vector<8x1xf32>
    %93 = vector.broadcast %92 : vector<8x1xf32> to vector<8x8xf32>
    %94 = arith.mulf %89, %93 : vector<8x8xf32>
    %95 = arith.truncf %94 : vector<8x8xf32> to vector<8x8xbf16>
    %96 = vector.extract_strided_slice %19 {offsets = [0, 16], sizes = [8, 8], strides = [1, 1]} : vector<8x32xf32> to vector<8x8xf32>
    %97 = arith.truncf %96 : vector<8x8xf32> to vector<8x8xbf16>
    %cst_33 = arith.constant dense<0.000000e+00> : vector<8x8xf32>
    %98 = tpu.matmul %95, %97, %cst_33 {dimension_numbers = #tpu.dot_dimension_numbers<[1], [0], [0], [1], [0, 0, 1, 1], [], []>} : vector<8x8xbf16>, vector<8x8xbf16>, vector<8x8xf32> -> vector<8x8xf32>
    %99 = arith.truncf %98 : vector<8x8xf32> to vector<8x8xbf16>
    %100 = vector.extract_strided_slice %25 {offsets = [16, 0], sizes = [8, 32], strides = [1, 1]} : vector<32x32xbf16> to vector<8x32xbf16>
    %cst_34 = arith.constant dense<0.000000e+00> : vector<8x32xf32>
    %101 = tpu.matmul %99, %100, %cst_34 {dimension_numbers = #tpu.dot_dimension_numbers<[1], [0], [0], [1], [0, 0, 1, 1], [], []>} : vector<8x8xbf16>, vector<8x32xbf16>, vector<8x32xf32> -> vector<8x32xf32>
    %102 = arith.addf %76, %101 : vector<8x32xf32>
    %103 = vector.extract_strided_slice %12 {offsets = [0, 24], sizes = [8, 8], strides = [1, 1]} : vector<8x32xf32> to vector<8x8xf32>
    %104 = arith.truncf %103 : vector<8x8xf32> to vector<8x8xbf16>
    %105 = vector.extract_strided_slice %18 {offsets = [0, 24], sizes = [8, 8], strides = [1, 1]} : vector<8x32xf32> to vector<8x8xf32>
    %106 = arith.truncf %105 : vector<8x8xf32> to vector<8x8xbf16>
    %cst_35 = arith.constant dense<0.000000e+00> : vector<8x8xf32>
    %107 = tpu.matmul %104, %106, %cst_35 {dimension_numbers = #tpu.dot_dimension_numbers<[1], [1], [0], [0], [0, 0, 1, 0], [], []>} : vector<8x8xbf16>, vector<8x8xbf16>, vector<8x8xf32> -> vector<8x8xf32>
    %cst_36 = arith.constant 0.353553385 : f32
    %108 = vector.broadcast %cst_36 : f32 to vector<8x8xf32>
    %109 = arith.mulf %107, %108 : vector<8x8xf32>
    %110 = arith.addf %109, %24 : vector<8x8xf32>
    %cst_37 = arith.constant dense<0xFF800000> : vector<8xf32>
    %111 = vector.multi_reduction <maximumf>, %110, %cst_37 [1] : vector<8x8xf32> to vector<8xf32>
    %112 = vector.shape_cast %111 : vector<8xf32> to vector<8x1xf32>
    %113 = vector.broadcast %112 : vector<8x1xf32> to vector<8x8xf32>
    %114 = arith.subf %110, %113 : vector<8x8xf32>
    %115 = math.exp %114 : vector<8x8xf32>
    %cst_38 = arith.constant dense<0.000000e+00> : vector<8xf32>
    %116 = vector.multi_reduction <add>, %115, %cst_38 [1] : vector<8x8xf32> to vector<8xf32>
    %117 = vector.shape_cast %116 : vector<8xf32> to vector<8x1xf32>
    %118 = tpu.reciprocal %117 {approx = true} : vector<8x1xf32> -> vector<8x1xf32>
    %119 = vector.broadcast %118 : vector<8x1xf32> to vector<8x8xf32>
    %120 = arith.mulf %115, %119 : vector<8x8xf32>
    %121 = arith.truncf %120 : vector<8x8xf32> to vector<8x8xbf16>
    %122 = vector.extract_strided_slice %19 {offsets = [0, 24], sizes = [8, 8], strides = [1, 1]} : vector<8x32xf32> to vector<8x8xf32>
    %123 = arith.truncf %122 : vector<8x8xf32> to vector<8x8xbf16>
    %cst_39 = arith.constant dense<0.000000e+00> : vector<8x8xf32>
    %124 = tpu.matmul %121, %123, %cst_39 {dimension_numbers = #tpu.dot_dimension_numbers<[1], [0], [0], [1], [0, 0, 1, 1], [], []>} : vector<8x8xbf16>, vector<8x8xbf16>, vector<8x8xf32> -> vector<8x8xf32>
    %125 = arith.truncf %124 : vector<8x8xf32> to vector<8x8xbf16>
    %126 = vector.extract_strided_slice %25 {offsets = [24, 0], sizes = [8, 32], strides = [1, 1]} : vector<32x32xbf16> to vector<8x32xbf16>
    %cst_40 = arith.constant dense<0.000000e+00> : vector<8x32xf32>
    %127 = tpu.matmul %125, %126, %cst_40 {dimension_numbers = #tpu.dot_dimension_numbers<[1], [0], [0], [1], [0, 0, 1, 1], [], []>} : vector<8x8xbf16>, vector<8x32xbf16>, vector<8x32xf32> -> vector<8x32xf32>
    %128 = arith.addf %102, %127 : vector<8x32xf32>
    %c0_41 = arith.constant 0 : index
    %c0_42 = arith.constant 0 : index
    %129 = vector.load %arg6[%c0_41, %c0_42] : memref<1x32xf32, #tpu.memory_space<vmem>>, vector<1x32xf32>
    %130 = vector.broadcast %129 : vector<1x32xf32> to vector<8x32xf32>
    %131 = arith.addf %128, %130 : vector<8x32xf32>
    %132 = arith.addf %1, %131 : vector<8x32xf32>
    %cst_43 = arith.constant dense<0.000000e+00> : vector<8xf32>
    %133 = vector.multi_reduction <add>, %132, %cst_43 [1] : vector<8x32xf32> to vector<8xf32>
    %134 = vector.shape_cast %133 : vector<8xf32> to vector<8x1xf32>
    %cst_44 = arith.constant 3.200000e+01 : f32
    %135 = vector.broadcast %cst_44 : f32 to vector<8x1xf32>
    %136 = arith.divf %134, %135 : vector<8x1xf32>
    %137 = vector.broadcast %136 : vector<8x1xf32> to vector<8x32xf32>
    %138 = arith.subf %132, %137 : vector<8x32xf32>
    %139 = arith.mulf %138, %138 : vector<8x32xf32>
    %cst_45 = arith.constant dense<0.000000e+00> : vector<8xf32>
    %140 = vector.multi_reduction <add>, %139, %cst_45 [1] : vector<8x32xf32> to vector<8xf32>
    %141 = vector.shape_cast %140 : vector<8xf32> to vector<8x1xf32>
    %cst_46 = arith.constant 3.200000e+01 : f32
    %142 = vector.broadcast %cst_46 : f32 to vector<8x1xf32>
    %143 = arith.divf %141, %142 : vector<8x1xf32>
    %144 = vector.broadcast %136 : vector<8x1xf32> to vector<8x32xf32>
    %145 = arith.subf %132, %144 : vector<8x32xf32>
    %cst_47 = arith.constant 9.99999974E-6 : f32
    %146 = vector.broadcast %cst_47 : f32 to vector<8x1xf32>
    %147 = arith.addf %143, %146 : vector<8x1xf32>
    %148 = math.rsqrt %147 : vector<8x1xf32>
    %149 = vector.broadcast %148 : vector<8x1xf32> to vector<8x32xf32>
    %150 = arith.mulf %145, %149 : vector<8x32xf32>
    %c0_48 = arith.constant 0 : index
    %c0_49 = arith.constant 0 : index
    %151 = vector.load %arg9[%c0_48, %c0_49] : memref<1x32xf32, #tpu.memory_space<vmem>>, vector<1x32xf32>
    %152 = vector.broadcast %151 : vector<1x32xf32> to vector<8x32xf32>
    %153 = arith.mulf %150, %152 : vector<8x32xf32>
    %c0_50 = arith.constant 0 : index
    %c0_51 = arith.constant 0 : index
    %154 = vector.load %arg10[%c0_50, %c0_51] : memref<1x32xf32, #tpu.memory_space<vmem>>, vector<1x32xf32>
    %155 = vector.broadcast %154 : vector<1x32xf32> to vector<8x32xf32>
    %156 = arith.addf %153, %155 : vector<8x32xf32>
    %c0_52 = arith.constant 0 : index
    %c0_53 = arith.constant 0 : index
    %c0_54 = arith.constant 0 : index
    %157 = vector.load %arg11[%c0_52, %c0_53, %c0_54] : memref<1x8x32xf32, #tpu.memory_space<vmem>>, vector<1x8x32xf32>
    %158 = vector.shape_cast %157 : vector<1x8x32xf32> to vector<8x32xf32>
    %159 = vector.shape_cast %156 : vector<8x32xf32> to vector<1x8x32xf32>
    tpu.vector_store %arg11[%c0_52, %c0_53, %c0_54], %159 {strides = array<i32>} : memref<1x8x32xf32, #tpu.memory_space<vmem>>, vector<1x8x32xf32>,
    return
  }
  func.func @transform_0(%arg0: i32) -> (i32, i32, i32) {
    %c0_i32 = arith.constant 0 : i32
    %c0_i32_0 = arith.constant 0 : i32
    %c0_i32_1 = arith.constant 0 : i32
    return %arg0, %c0_i32, %c0_i32_0 : i32, i32, i32
  }
  func.func @transform_1(%arg0: i32) -> (i32, i32, i32) {
    %c0_i32 = arith.constant 0 : i32
    %c0_i32_0 = arith.constant 0 : i32
    %c0_i32_1 = arith.constant 0 : i32
    return %arg0, %c0_i32, %c0_i32_0 : i32, i32, i32
  }
  func.func @transform_2(%arg0: i32) -> (i32, i32) {
    %c0_i32 = arith.constant 0 : i32
    %c0_i32_0 = arith.constant 0 : i32
    %c0_i32_1 = arith.constant 0 : i32
    return %c0_i32, %c0_i32_0 : i32, i32
  }
  func.func @transform_3(%arg0: i32) -> (i32, i32) {
    %c0_i32 = arith.constant 0 : i32
    %c0_i32_0 = arith.constant 0 : i32
    %c0_i32_1 = arith.constant 0 : i32
    return %c0_i32, %c0_i32_0 : i32, i32
  }
  func.func @transform_4(%arg0: i32) -> (i32, i32) {
    %c0_i32 = arith.constant 0 : i32
    %c0_i32_0 = arith.constant 0 : i32
    %c0_i32_1 = arith.constant 0 : i32
    return %c0_i32, %c0_i32_0 : i32, i32
  }
  func.func @transform_5(%arg0: i32) -> (i32, i32) {
    %c0_i32 = arith.constant 0 : i32
    %c0_i32_0 = arith.constant 0 : i32
    %c0_i32_1 = arith.constant 0 : i32
    return %c0_i32, %c0_i32_0 : i32, i32
  }
  func.func @transform_6(%arg0: i32) -> (i32, i32) {
    %c0_i32 = arith.constant 0 : i32
    %c0_i32_0 = arith.constant 0 : i32
    %c0_i32_1 = arith.constant 0 : i32
    return %c0_i32, %c0_i32_0 : i32, i32
  }
  func.func @transform_7(%arg0: i32) -> (i32, i32, i32) {
    %c0_i32 = arith.constant 0 : i32
    %c0_i32_0 = arith.constant 0 : i32
    %c0_i32_1 = arith.constant 0 : i32
    return %arg0, %c0_i32, %c0_i32_0 : i32, i32, i32
  }
  func.func @transform_8(%arg0: i32) -> (i32, i32) {
    %c0_i32 = arith.constant 0 : i32
    %c0_i32_0 = arith.constant 0 : i32
    %c0_i32_1 = arith.constant 0 : i32
    return %c0_i32, %c0_i32_0 : i32, i32
  }
  func.func @transform_9(%arg0: i32) -> (i32, i32) {
    %c0_i32 = arith.constant 0 : i32
    %c0_i32_0 = arith.constant 0 : i32
    %c0_i32_1 = arith.constant 0 : i32
    return %c0_i32, %c0_i32_0 : i32, i32
  }
  func.func @transform_10(%arg0: i32) -> (i32, i32, i32) {
    %c0_i32 = arith.constant 0 : i32
    %c0_i32_0 = arith.constant 0 : i32
    %c0_i32_1 = arith.constant 0 : i32
    return %arg0, %c0_i32, %c0_i32_0 : i32, i32, i32
  }
}

module attributes {stable_mosaic.version = 11 : i64} {
  func.func @_linear_kernel(%arg0: i32, %arg1: i32, %arg2: memref<8x32xf32, #tpu.memory_space<vmem>>, %arg3: memref<32x60xbf16, #tpu.memory_space<vmem>>, %arg4: memref<1x60xf32, #tpu.memory_space<vmem>>, %arg5: memref<8x60xf32, #tpu.memory_space<vmem>>) attributes {dimension_semantics = [#tpu.dimension_semantics<parallel>, #tpu.dimension_semantics<parallel>], iteration_bounds = array<i64: 2, 1>, scalar_prefetch = 0 : i64, scratch_operands = 0 : i64, tpu.core_type = #tpu.core_type<tc>, window_params = [{transform_indices = @transform_0, window_bounds = array<i64: 8, 32>}, {transform_indices = @transform_1, window_bounds = array<i64: 32, 60>}, {transform_indices = @transform_2, window_bounds = array<i64: 1, 60>}, {transform_indices = @transform_3, window_bounds = array<i64: 8, 60>}]} {
    %c0 = arith.constant 0 : index
    %c0_0 = arith.constant 0 : index
    %0 = vector.load %arg2[%c0, %c0_0] : memref<8x32xf32, #tpu.memory_space<vmem>>, vector<8x32xf32>
    %1 = arith.truncf %0 : vector<8x32xf32> to vector<8x32xbf16>
    %c0_1 = arith.constant 0 : index
    %c0_2 = arith.constant 0 : index
    %2 = vector.load %arg3[%c0_1, %c0_2] : memref<32x60xbf16, #tpu.memory_space<vmem>>, vector<32x60xbf16>
    %cst = arith.constant dense<0.000000e+00> : vector<8x60xf32>
    %3 = tpu.matmul %1, %2, %cst {dimension_numbers = #tpu.dot_dimension_numbers<[1], [0], [0], [1], [0, 0, 1, 1], [], []>} : vector<8x32xbf16>, vector<32x60xbf16>, vector<8x60xf32> -> vector<8x60xf32>
    %c0_3 = arith.constant 0 : index
    %c0_4 = arith.constant 0 : index
    %4 = vector.load %arg4[%c0_3, %c0_4] : memref<1x60xf32, #tpu.memory_space<vmem>>, vector<1x60xf32>
    %5 = vector.broadcast %4 : vector<1x60xf32> to vector<8x60xf32>
    %6 = arith.addf %3, %5 : vector<8x60xf32>
    %c0_5 = arith.constant 0 : index
    %c0_6 = arith.constant 0 : index
    %7 = vector.load %arg5[%c0_5, %c0_6] : memref<8x60xf32, #tpu.memory_space<vmem>>, vector<8x60xf32>
    tpu.vector_store %arg5[%c0_5, %c0_6], %6 {strides = array<i32>} : memref<8x60xf32, #tpu.memory_space<vmem>>, vector<8x60xf32>,
    return
  }
  func.func @transform_0(%arg0: i32, %arg1: i32) -> (i32, i32) {
    %c0_i32 = arith.constant 0 : i32
    %c0_i32_0 = arith.constant 0 : i32
    return %arg0, %c0_i32 : i32, i32
  }
  func.func @transform_1(%arg0: i32, %arg1: i32) -> (i32, i32) {
    %c0_i32 = arith.constant 0 : i32
    %c0_i32_0 = arith.constant 0 : i32
    return %c0_i32, %arg1 : i32, i32
  }
  func.func @transform_2(%arg0: i32, %arg1: i32) -> (i32, i32) {
    %c0_i32 = arith.constant 0 : i32
    %c0_i32_0 = arith.constant 0 : i32
    return %c0_i32, %arg1 : i32, i32
  }
  func.func @transform_3(%arg0: i32, %arg1: i32) -> (i32, i32) {
    %c0_i32 = arith.constant 0 : i32
    return %arg0, %arg1 : i32, i32
  }
}

</mosaic_0001>

<llo_original>
// kernel: vanila_transformer_forward.12
$region0: #{vanila_transformer_forward.12}
  #allocation0 [shape = 'u32[]', space=smem, size = 0x4, offset = 0x4, fixed_abs, tag = 'smem constant byte address 0x4 - core index']
  #allocation1 [shape = 'u32[72,128]{1,0:T(1,128)}', space=vmem, size = 0x9000, scoped, tag = 'internal scratch']
  %s0 = inlined_call_operand.vmem [shape: f32[16,32], index: 0, kind: input, shape index: {}]
  %s1 = inlined_call_operand.vmem [shape: bf16[32,64], index: 1, kind: input, shape index: {}]
  %s2 = inlined_call_operand.vmem [shape: f32[1,64], index: 2, kind: input, shape index: {}]
  %s3 = inlined_call_operand.vmem [shape: bf16[64,32], index: 3, kind: input, shape index: {}]
  %s4 = inlined_call_operand.vmem [shape: f32[1,32], index: 4, kind: input, shape index: {}]
  %s5 = inlined_call_operand.vmem [shape: f32[1,32], index: 5, kind: input, shape index: {}]
  %s6 = inlined_call_operand.vmem [shape: f32[1,32], index: 6, kind: input, shape index: {}]
  %s7 = inlined_call_operand.vmem [shape: f32[16,32], index: 7, kind: output, shape index: {}]
  %s8 = sld [smem:[#allocation0]]
  $region61: #{vanila_transformer_forward.12} parent=0
    _
  %s10 = ssub.s32 1, %s8
  %s11 = scalar_select 0, %s10, %s8
  loop: start=0, step=1, limit=4
  $region2: #{vanila_transformer_forward.12} parent=0 // loop_pre_header
    _
  $region3: #{vanila_transformer_forward.12} parent=0 // loop_header
    %s13 = sphi 0, %s17
    %p14 = scmp.ge.s32.totalorder %s13, 4
    %s23 = sphi 0, %s25
    %s26 = sphi 0, %s23
    %s27 = sphi 0, %s26
    %s43 = sphi 0, %s27
    %s47 = sphi 0, %s47
    %s49 = sphi 0, %s47
    %s50 = sphi 0, %s49
    %s64 = sphi 0, %s50
    %s68 = sphi 0, %s68
    %s70 = sphi 0, %s68
    %s71 = sphi 0, %s70
    %s85 = sphi 0, %s71
    %s89 = sphi 0, %s89
    %s91 = sphi 0, %s89
    %s92 = sphi 0, %s91
    %s106 = sphi 0, %s92
    %s110 = sphi 0, %s110
    %s112 = sphi 0, %s110
    %s113 = sphi 0, %s112
    %s127 = sphi 0, %s113
    %s131 = sphi 0, %s131
    %s133 = sphi 0, %s131
    %s134 = sphi 0, %s133
    %s148 = sphi 0, %s134
    %s152 = sphi 0, %s152
    %s154 = sphi 0, %s152
    %s155 = sphi 0, %s154
    %s169 = sphi 0, %s155
    %s175 = sphi 0, %s177
    %s178 = sphi 0, %s175
    %s179 = sphi 0, %s178
    %s195 = sphi 0, %s179
  $region4: #{vanila_transformer_forward.12} parent=0 // loop_header_branch
    %16 = sbr.rel (%p14) target = $region8
  $region5: #{vanila_transformer_forward.12} parent=0 // loop_body
    %s18 = ssub.s32 %s13, 1
    %s19 = ssub.s32 %s13, 2
    %s20 = sadd.s32 %s13, 1
    %s21 = ssub.s32 %s13, %s20
    %p22 = scmp.eq.s32.totalorder %s21, 0
    %s24 = sadd.s32 %s23, 1
    %s25 = scalar_select %p22, %s23, %s24
    %p28 = pneg %p22
    %p29 = scmp.eq.s32.totalorder %s13, 1
    %p30 = por %p28, %p29
    %p31 = scmp.ne.s32.totalorder %s23, %s26
    %p32 = scmp.eq.s32.totalorder %s13, 0
    %p33 = por %p31, %p32
    %p34 = scmp.ne.s32.totalorder %s23, %s26
    %p35 = scmp.eq.s32.totalorder %s18, 1
    %p36 = por %p34, %p35
    %p37 = scmp.ne.s32.totalorder %s26, %s27
    %p38 = scmp.eq.s32.totalorder %s18, 0
    %p39 = por %p37, %p38
    %p40 = scmp.ne.s32.totalorder %s26, %s27
    %p41 = scmp.eq.s32.totalorder %s19, 1
    %p42 = por %p40, %p41
    %p44 = scmp.ne.s32.totalorder %s27, %s43
    %p45 = scmp.eq.s32.totalorder %s19, 0
    %p46 = por %p44, %p45
    %s48 = sadd.s32 %s47, 1
    %p51 = scmp.eq.s32.totalorder %s13, 1
    %p52 = scmp.ne.s32.totalorder %s47, %s49
    %p53 = scmp.eq.s32.totalorder %s13, 0
    %p54 = por %p52, %p53
    %p55 = scmp.ne.s32.totalorder %s47, %s49
    %p56 = scmp.eq.s32.totalorder %s18, 1
    %p57 = por %p55, %p56
    %p58 = scmp.ne.s32.totalorder %s49, %s50
    %p59 = scmp.eq.s32.totalorder %s18, 0
    %p60 = por %p58, %p59
    %p61 = scmp.ne.s32.totalorder %s49, %s50
    %p62 = scmp.eq.s32.totalorder %s19, 1
    %p63 = por %p61, %p62
    %p65 = scmp.ne.s32.totalorder %s50, %s64
    %p66 = scmp.eq.s32.totalorder %s19, 0
    %p67 = por %p65, %p66
    %s69 = sadd.s32 %s68, 1
    %p72 = scmp.eq.s32.totalorder %s13, 1
    %p73 = scmp.ne.s32.totalorder %s68, %s70
    %p74 = scmp.eq.s32.totalorder %s13, 0
    %p75 = por %p73, %p74
    %p76 = scmp.ne.s32.totalorder %s68, %s70
    %p77 = scmp.eq.s32.totalorder %s18, 1
    %p78 = por %p76, %p77
    %p79 = scmp.ne.s32.totalorder %s70, %s71
    %p80 = scmp.eq.s32.totalorder %s18, 0
    %p81 = por %p79, %p80
    %p82 = scmp.ne.s32.totalorder %s70, %s71
    %p83 = scmp.eq.s32.totalorder %s19, 1
    %p84 = por %p82, %p83
    %p86 = scmp.ne.s32.totalorder %s71, %s85
    %p87 = scmp.eq.s32.totalorder %s19, 0
    %p88 = por %p86, %p87
    %s90 = sadd.s32 %s89, 1
    %p93 = scmp.eq.s32.totalorder %s13, 1
    %p94 = scmp.ne.s32.totalorder %s89, %s91
    %p95 = scmp.eq.s32.totalorder %s13, 0
    %p96 = por %p94, %p95
    %p97 = scmp.ne.s32.totalorder %s89, %s91
    %p98 = scmp.eq.s32.totalorder %s18, 1
    %p99 = por %p97, %p98
    %p100 = scmp.ne.s32.totalorder %s91, %s92
    %p101 = scmp.eq.s32.totalorder %s18, 0
    %p102 = por %p100, %p101
    %p103 = scmp.ne.s32.totalorder %s91, %s92
    %p104 = scmp.eq.s32.totalorder %s19, 1
    %p105 = por %p103, %p104
    %p107 = scmp.ne.s32.totalorder %s92, %s106
    %p108 = scmp.eq.s32.totalorder %s19, 0
    %p109 = por %p107, %p108
    %s111 = sadd.s32 %s110, 1
    %p114 = scmp.eq.s32.totalorder %s13, 1
    %p115 = scmp.ne.s32.totalorder %s110, %s112
    %p116 = scmp.eq.s32.totalorder %s13, 0
    %p117 = por %p115, %p116
    %p118 = scmp.ne.s32.totalorder %s110, %s112
    %p119 = scmp.eq.s32.totalorder %s18, 1
    %p120 = por %p118, %p119
    %p121 = scmp.ne.s32.totalorder %s112, %s113
    %p122 = scmp.eq.s32.totalorder %s18, 0
    %p123 = por %p121, %p122
    %p124 = scmp.ne.s32.totalorder %s112, %s113
    %p125 = scmp.eq.s32.totalorder %s19, 1
    %p126 = por %p124, %p125
    %p128 = scmp.ne.s32.totalorder %s113, %s127
    %p129 = scmp.eq.s32.totalorder %s19, 0
    %p130 = por %p128, %p129
    %s132 = sadd.s32 %s131, 1
    %p135 = scmp.eq.s32.totalorder %s13, 1
    %p136 = scmp.ne.s32.totalorder %s131, %s133
    %p137 = scmp.eq.s32.totalorder %s13, 0
    %p138 = por %p136, %p137
    %p139 = scmp.ne.s32.totalorder %s131, %s133
    %p140 = scmp.eq.s32.totalorder %s18, 1
    %p141 = por %p139, %p140
    %p142 = scmp.ne.s32.totalorder %s133, %s134
    %p143 = scmp.eq.s32.totalorder %s18, 0
    %p144 = por %p142, %p143
    %p145 = scmp.ne.s32.totalorder %s133, %s134
    %p146 = scmp.eq.s32.totalorder %s19, 1
    %p147 = por %p145, %p146
    %p149 = scmp.ne.s32.totalorder %s134, %s148
    %p150 = scmp.eq.s32.totalorder %s19, 0
    %p151 = por %p149, %p150
    %s153 = sadd.s32 %s152, 1
    %p156 = scmp.eq.s32.totalorder %s13, 1
    %p157 = scmp.ne.s32.totalorder %s152, %s154
    %p158 = scmp.eq.s32.totalorder %s13, 0
    %p159 = por %p157, %p158
    %p160 = scmp.ne.s32.totalorder %s152, %s154
    %p161 = scmp.eq.s32.totalorder %s18, 1
    %p162 = por %p160, %p161
    %p163 = scmp.ne.s32.totalorder %s154, %s155
    %p164 = scmp.eq.s32.totalorder %s18, 0
    %p165 = por %p163, %p164
    %p166 = scmp.ne.s32.totalorder %s154, %s155
    %p167 = scmp.eq.s32.totalorder %s19, 1
    %p168 = por %p166, %p167
    %p170 = scmp.ne.s32.totalorder %s155, %s169
    %p171 = scmp.eq.s32.totalorder %s19, 0
    %p172 = por %p170, %p171
    %s173 = ssub.s32 %s13, %s20
    %p174 = scmp.eq.s32.totalorder %s173, 0
    %s176 = sadd.s32 %s175, 1
    %s177 = scalar_select %p174, %s175, %s176
    %p180 = pneg %p174
    %p181 = scmp.eq.s32.totalorder %s13, 1
    %p182 = por %p180, %p181
    %p183 = scmp.ne.s32.totalorder %s175, %s178
    %p184 = scmp.eq.s32.totalorder %s13, 0
    %p185 = por %p183, %p184
    %p186 = scmp.ne.s32.totalorder %s175, %s178
    %p187 = scmp.eq.s32.totalorder %s18, 1
    %p188 = por %p186, %p187
    %p189 = scmp.ne.s32.totalorder %s178, %s179
    %p190 = scmp.eq.s32.totalorder %s18, 0
    %p191 = por %p189, %p190
    %p192 = scmp.ne.s32.totalorder %s178, %s179
    %p193 = scmp.eq.s32.totalorder %s19, 1
    %p194 = por %p192, %p193
    %p196 = scmp.ne.s32.totalorder %s179, %s195
    %p197 = scmp.eq.s32.totalorder %s19, 0
    %p198 = por %p196, %p197
    %p199 = scmp.le.s32.totalorder 1, %s13
    %p200 = scmp.lt.s32.totalorder %s13, 3
    %p201 = pnand %p199, %p200
    %p202 = pneg %p201
    // Predicated region
    $region9: #{vanila_transformer_forward.12} parent=5 // pred_check
      _
    $region10: #{vanila_transformer_forward.12} parent=5 // pred_check_branch
      %204 = sbr.rel (%p201) target = $region12
    $region11: #{vanila_transformer_forward.12} parent=5 // pred_region
      %s205 = ssub.s32 %s13, 1
      // Predicated region
      $region13: #{vanila_transformer_forward.12} parent=11 // pred_check
        %p206 = pneg %p60
      $region14: #{vanila_transformer_forward.12} parent=11 // pred_check_branch
        %208 = sbr.rel (%p206) target = $region16
      $region15: #{vanila_transformer_forward.12} parent=11 // pred_region
        _
      $region16: #{vanila_transformer_forward.12} parent=11 // pred_fallthru
        _
      // Predicated region
      $region17: #{vanila_transformer_forward.12} parent=11 // pred_check
        %p209 = pneg %p81
      $region18: #{vanila_transformer_forward.12} parent=11 // pred_check_branch
        %211 = sbr.rel (%p209) target = $region20
      $region19: #{vanila_transformer_forward.12} parent=11 // pred_region
        _
      $region20: #{vanila_transformer_forward.12} parent=11 // pred_fallthru
        _
      // Predicated region
      $region21: #{vanila_transformer_forward.12} parent=11 // pred_check
        %p212 = pneg %p102
      $region22: #{vanila_transformer_forward.12} parent=11 // pred_check_branch
        %214 = sbr.rel (%p212) target = $region24
      $region23: #{vanila_transformer_forward.12} parent=11 // pred_region
        _
      $region24: #{vanila_transformer_forward.12} parent=11 // pred_fallthru
        _
      // Predicated region
      $region25: #{vanila_transformer_forward.12} parent=11 // pred_check
        %p215 = pneg %p123
      $region26: #{vanila_transformer_forward.12} parent=11 // pred_check_branch
        %217 = sbr.rel (%p215) target = $region28
      $region27: #{vanila_transformer_forward.12} parent=11 // pred_region
        _
      $region28: #{vanila_transformer_forward.12} parent=11 // pred_fallthru
        _
      // Predicated region
      $region29: #{vanila_transformer_forward.12} parent=11 // pred_check
        %p218 = pneg %p144
      $region30: #{vanila_transformer_forward.12} parent=11 // pred_check_branch
        %220 = sbr.rel (%p218) target = $region32
      $region31: #{vanila_transformer_forward.12} parent=11 // pred_region
        _
      $region32: #{vanila_transformer_forward.12} parent=11 // pred_fallthru
        _
      // Predicated region
      $region33: #{vanila_transformer_forward.12} parent=11 // pred_check
        %p221 = pneg %p165
      $region34: #{vanila_transformer_forward.12} parent=11 // pred_check_branch
        %223 = sbr.rel (%p221) target = $region36
      $region35: #{vanila_transformer_forward.12} parent=11 // pred_region
        _
      $region36: #{vanila_transformer_forward.12} parent=11 // pred_fallthru
        _
    $region12: #{vanila_transformer_forward.12} parent=5 // pred_fallthru
      _
    %p224 = scmp.lt.s32.totalorder %s13, 2
    // Predicated region
    $region37: #{vanila_transformer_forward.12} parent=5 // pred_check
      %p225 = pneg %p224
    $region38: #{vanila_transformer_forward.12} parent=5 // pred_check_branch
      %227 = sbr.rel (%p225) target = $region40
    $region39: #{vanila_transformer_forward.12} parent=5 // pred_region
      // Predicated region
      $region41: #{vanila_transformer_forward.12} parent=39 // pred_check
        %p228 = pneg %p33
      $region42: #{vanila_transformer_forward.12} parent=39 // pred_check_branch
        %230 = sbr.rel (%p228) target = $region44
      $region43: #{vanila_transformer_forward.12} parent=39 // pred_region
        %p231 = scmp.lt.s32.totalorder %s13, 1
        %s232 = scalar_select %p231, %s13, 1
        %s233 = smul.addr %s232, 8
        %s234 = scalar_lea.vmem %s0, %s233
      $region44: #{vanila_transformer_forward.12} parent=39 // pred_fallthru
        _
    $region40: #{vanila_transformer_forward.12} parent=5 // pred_fallthru
      _
    %p235 = scmp.le.s32.totalorder 1, %s13
    %p236 = scmp.lt.s32.totalorder %s13, 3
    %p237 = pnand %p235, %p236
    %p238 = pneg %p237
    // Predicated region
    $region45: #{vanila_transformer_forward.12} parent=5 // pred_check
      _
    $region46: #{vanila_transformer_forward.12} parent=5 // pred_check_branch
      %240 = sbr.rel (%p237) target = $region48
    $region47: #{vanila_transformer_forward.12} parent=5 // pred_region
      %s241 = ssub.s32 %s13, 1
      %p242 = scmp.lt.s32.totalorder %s18, 1
      %s243 = scalar_select %p242, %s18, 1
      %s244 = smul.addr %s243, 8
      %s245 = scalar_lea.vmem %s0, %s244
      %p246 = pneg %p39
      %p247 = pneg %p36
      %p248 = pneg %p60
      %p249 = pneg %p57
      %p250 = pneg %p81
      %p251 = pneg %p78
      %p252 = pneg %p102
      %p253 = pneg %p99
      %p254 = pneg %p123
      %p255 = pneg %p120
      %p256 = pneg %p144
      %p257 = pneg %p141
      %p258 = pneg %p165
      %p259 = pneg %p162
      %p260 = pneg %p191
      %p261 = pneg %p188
      %p262 = scmp.lt.s32.totalorder %s18, 1
      %s263 = scalar_select %p262, %s18, 1
      %s264 = smul.addr %s263, 8
      %s265 = scalar_lea.vmem %s7, %s264
      %p266 = scmp.lt.s32.totalorder %s18, 1
      %s267 = scalar_select %p266, %s18, 1
      %s268 = smul.addr %s267, 8
      %s269 = scalar_lea.vmem %s0, %s268
      %p270 = scmp.lt.s32.totalorder %s18, 1
      %s271 = scalar_select %p270, %s18, 1
      %s272 = smul.addr %s271, 8
      %s273 = scalar_lea.vmem %s7, %s272
      %v275 = vld [vmem:[%s269] sm:$0xff]
      %v276 = vpack.c.bf16 %v275, %v275
      %v277 = vld [vmem:[%s1] sm:$0xf]
      %v278 = vld [vmem:[%s1 + $0x4] sm:$0xf]
      %v279 = vld [vmem:[%s1 + $0x8] sm:$0xf]
      %v280 = vld [vmem:[%s1 + $0xc] sm:$0xf]
      %v281 = vld [vmem:[%s2] sm:$0x1]
      %v283 = vperm.slane %v281, 0
      %v289 = vunpack.c.l.b16 %v277
      %v290 = vunpack.c.l.b16 %v278
      %v291 = vunpack.c.l.b16 %v279
      %v292 = vunpack.c.l.b16 %v280
      %v293 = vpack.c.b16 %v290, %v289
      %v294 = vpack.c.b16 %v292, %v291
      %vm297 = vcmask 261120
      %v299 = vsel %vm297, %v276, 0
      %301 = vmatpush.bf16.msra.mxu0 0
      %302 = vmatpush.bf16.msra.mxu0 0
      %303 = vmatpush.bf16.msra.mxu0 0
      %304 = vmatpush.bf16.msra.mxu0 0
      %305 = vmatpush.bf16.msra.mxu0 0
      %306 = vmatpush.bf16.msra.mxu0 0
      %307 = vmatpush.bf16.msra.mxu0 %v294
      %308 = vmatpush.bf16.msra.mxu0 %v293
      %309 = vmatmul.bf16.gmra.mxu0 %v299
      %v310 = vpop.f32.mrf.mxu0
      %v311 = vadd.f32 %v283, %v310
      %v312 = vpop.f32.mrf.mxu0
      %313 = vdwg.mxu0
      %v314 = vmax.f32 %v311, 0.0
      %v315 = vpack.c.bf16 %v314, %v314
      %v316 = vld [vmem:[%s3] sm:$0xf]
      %v317 = vld [vmem:[%s3 + $0x4] sm:$0xf]
      %v318 = vld [vmem:[%s3 + $0x8] sm:$0xf]
      %v319 = vld [vmem:[%s3 + $0xc] sm:$0xf]
      %v320 = vld [vmem:[%s3 + $0x10] sm:$0xf]
      %v321 = vld [vmem:[%s3 + $0x14] sm:$0xf]
      %v322 = vld [vmem:[%s3 + $0x18] sm:$0xf]
      %v323 = vld [vmem:[%s3 + $0x1c] sm:$0xf]
      %v332 = vunpack.c.l.b16 %v316
      %v333 = vunpack.c.l.b16 %v317
      %v334 = vunpack.c.l.b16 %v318
      %v335 = vunpack.c.l.b16 %v319
      %v336 = vunpack.c.l.b16 %v320
      %v337 = vunpack.c.l.b16 %v321
      %v338 = vunpack.c.l.b16 %v322
      %v339 = vunpack.c.l.b16 %v323
      %v340 = vpack.c.b16 %v333, %v332
      %v341 = vpack.c.b16 %v335, %v334
      %v342 = vpack.c.b16 %v337, %v336
      %v343 = vpack.c.b16 %v339, %v338
      %vm348 = vcmask 523264
      %v350 = vsel %vm348, %v315, 0
      %352 = vmatpush.bf16.msra.mxu0 0
      %353 = vmatpush.bf16.msra.mxu0 0
      %354 = vmatpush.bf16.msra.mxu0 0
      %355 = vmatpush.bf16.msra.mxu0 0
      %356 = vmatpush.bf16.msra.mxu0 %v343
      %357 = vmatpush.bf16.msra.mxu0 %v342
      %358 = vmatpush.bf16.msra.mxu0 %v341
      %359 = vmatpush.bf16.msra.mxu0 %v340
      %360 = vmatmul.bf16.gmra.mxu0 %v350
      %v361 = vpop.f32.mrf.mxu0
      %v362 = vadd.f32 0.0, %v361
      %v363 = vpop.f32.mrf.mxu0
      %364 = vdwg.mxu0
      %v365 = vadd.f32 %v275, %v362
      %v366 = vld [vmem:[%s4] sm:$0x1]
      %v368 = vperm.slane %v366, 0
      %v370 = vadd.f32 %v365, %v368
      %v371 = vld [vmem:[%s5] sm:$0x1]
      %v372 = vld [vmem:[%s6] sm:$0x1]
      %v373 = vsel %vm297, %v370, 0.0
      %374 = vadd.xlane.f32.xlu0 %v373
      %v375 = vpop.xlane.xlu0 %374
      %v376 = vrcp.pop 32.0
      %v377 = vmul.f32 32.0, %v376
      %v378 = vsub.f32 1.0, %v377
      %v379 = vmul.f32 %v376, %v378
      %v380 = vadd.f32 %v376, %v379
      %vm381 = vweird.f32 %v376
      %v382 = vsel %vm381, %v376, %v380
      %v383 = vmul.f32 %v375, %v382
      %v384 = vsub.f32 %v370, %v383
      %v385 = vmul.f32 %v384, %v384
      %v386 = vsel %vm297, %v385, 0.0
      %387 = vadd.xlane.f32.xlu0 %v386
      %v388 = vpop.xlane.xlu0 %387
      %v389 = vmul.f32 %v388, %v382
      %v390 = vadd.f32 %v389, 1e-05
      %v391 = vrsqrt.pop %v390
      %v392 = vmul.f32 %v391, %v390
      %v393 = vmul.f32 %v392, %v391
      %v394 = vmul.f32 0.5, %v393
      %v395 = vsub.f32 1.5, %v394
      %v396 = vmul.f32 %v391, %v395
      %vm397 = vweird.f32 %v390
      %vm398 = vweird.f32 %v391
      %vm399 = vmor %vm397, %vm398
      %v400 = vsel %vm399, %v391, %v396
      %v401 = vmul.f32 %v384, %v400
      %v403 = vperm.slane %v371, 0
      %v405 = vmul.f32 %v401, %v403
      %v407 = vperm.slane %v372, 0
      %v409 = vadd.f32 %v405, %v407
      %410 = vst.msk [vmem:[%s273] sm:$0xff] %vm297, %v409
      %p411 = scmp.lt.s32.totalorder %s18, 1
      %s412 = scalar_select %p411, %s18, 1
      %s413 = smul.addr %s412, 8
      %s414 = scalar_lea.vmem %s7, %s413
      // Predicated region
      $region49: #{vanila_transformer_forward.12} parent=47 // pred_check
        %p415 = pneg %p188
      $region50: #{vanila_transformer_forward.12} parent=47 // pred_check_branch
        %417 = sbr.rel (%p415) target = $region52
      $region51: #{vanila_transformer_forward.12} parent=47 // pred_region
        _
      $region52: #{vanila_transformer_forward.12} parent=47 // pred_fallthru
        _
    $region48: #{vanila_transformer_forward.12} parent=5 // pred_fallthru
      _
    %p418 = scmp.le.s32.totalorder 2, %s13
    // Predicated region
    $region53: #{vanila_transformer_forward.12} parent=5 // pred_check
      %p419 = pneg %p418
    $region54: #{vanila_transformer_forward.12} parent=5 // pred_check_branch
      %421 = sbr.rel (%p419) target = $region56
    $region55: #{vanila_transformer_forward.12} parent=5 // pred_region
      %s422 = ssub.s32 %s13, 2
      // Predicated region
      $region57: #{vanila_transformer_forward.12} parent=55 // pred_check
        %p423 = pneg %p194
      $region58: #{vanila_transformer_forward.12} parent=55 // pred_check_branch
        %425 = sbr.rel (%p423) target = $region60
      $region59: #{vanila_transformer_forward.12} parent=55 // pred_region
        %p426 = scmp.lt.s32.totalorder %s19, 1
        %s427 = scalar_select %p426, %s19, 1
        %s428 = smul.addr %s427, 8
        %s429 = scalar_lea.vmem %s7, %s428
      $region60: #{vanila_transformer_forward.12} parent=55 // pred_fallthru
        _
    $region56: #{vanila_transformer_forward.12} parent=5 // pred_fallthru
      _
  $region6: #{vanila_transformer_forward.12} parent=0 // loop_footer
    %s17 = sadd.s32 1, %s13
  $region7: #{vanila_transformer_forward.12} parent=0 // loop_footer_branch
    %12 = sbr.rel target = $region3
  $region8: #{vanila_transformer_forward.12} parent=0 // loop_exit
    _

// kernel: vanila_transformer_forward.14
$region0: #{vanila_transformer_forward.14}
  #allocation0 [shape = 'u32[]', space=smem, size = 0x4, offset = 0x4, fixed_abs, tag = 'smem constant byte address 0x4 - core index']
  #allocation1 [shape = 'u32[72,128]{1,0:T(1,128)}', space=vmem, size = 0x9000, scoped, tag = 'internal scratch']
  %s0 = inlined_call_operand.vmem [shape: f32[16,32], index: 0, kind: input, shape index: {}]
  %s1 = inlined_call_operand.vmem [shape: bf16[32,64], index: 1, kind: input, shape index: {}]
  %s2 = inlined_call_operand.vmem [shape: f32[1,64], index: 2, kind: input, shape index: {}]
  %s3 = inlined_call_operand.vmem [shape: bf16[64,32], index: 3, kind: input, shape index: {}]
  %s4 = inlined_call_operand.vmem [shape: f32[1,32], index: 4, kind: input, shape index: {}]
  %s5 = inlined_call_operand.vmem [shape: f32[1,32], index: 5, kind: input, shape index: {}]
  %s6 = inlined_call_operand.vmem [shape: f32[1,32], index: 6, kind: input, shape index: {}]
  %s7 = inlined_call_operand.vmem [shape: f32[1,32], index: 7, kind: input, shape index: {}]
  %s8 = inlined_call_operand.vmem [shape: f32[1,32], index: 8, kind: input, shape index: {}]
  %s9 = inlined_call_operand.vmem [shape: f32[16,32], index: 9, kind: output, shape index: {}]
  %s10 = sld [smem:[#allocation0]]
  $region69: #{vanila_transformer_forward.14} parent=0
    _
  %s12 = ssub.s32 1, %s10
  %s13 = scalar_select 0, %s12, %s10
  loop: start=0, step=1, limit=4
  $region2: #{vanila_transformer_forward.14} parent=0 // loop_pre_header
    _
  $region3: #{vanila_transformer_forward.14} parent=0 // loop_header
    %s15 = sphi 0, %s19
    %p16 = scmp.ge.s32.totalorder %s15, 4
    %s25 = sphi 0, %s27
    %s28 = sphi 0, %s25
    %s29 = sphi 0, %s28
    %s45 = sphi 0, %s29
    %s49 = sphi 0, %s49
    %s51 = sphi 0, %s49
    %s52 = sphi 0, %s51
    %s66 = sphi 0, %s52
    %s70 = sphi 0, %s70
    %s72 = sphi 0, %s70
    %s73 = sphi 0, %s72
    %s87 = sphi 0, %s73
    %s91 = sphi 0, %s91
    %s93 = sphi 0, %s91
    %s94 = sphi 0, %s93
    %s108 = sphi 0, %s94
    %s112 = sphi 0, %s112
    %s114 = sphi 0, %s112
    %s115 = sphi 0, %s114
    %s129 = sphi 0, %s115
    %s133 = sphi 0, %s133
    %s135 = sphi 0, %s133
    %s136 = sphi 0, %s135
    %s150 = sphi 0, %s136
    %s154 = sphi 0, %s154
    %s156 = sphi 0, %s154
    %s157 = sphi 0, %s156
    %s171 = sphi 0, %s157
    %s175 = sphi 0, %s175
    %s177 = sphi 0, %s175
    %s178 = sphi 0, %s177
    %s192 = sphi 0, %s178
    %s196 = sphi 0, %s196
    %s198 = sphi 0, %s196
    %s199 = sphi 0, %s198
    %s213 = sphi 0, %s199
    %s219 = sphi 0, %s221
    %s222 = sphi 0, %s219
    %s223 = sphi 0, %s222
    %s239 = sphi 0, %s223
  $region4: #{vanila_transformer_forward.14} parent=0 // loop_header_branch
    %18 = sbr.rel (%p16) target = $region8
  $region5: #{vanila_transformer_forward.14} parent=0 // loop_body
    %s20 = ssub.s32 %s15, 1
    %s21 = ssub.s32 %s15, 2
    %s22 = sadd.s32 %s15, 1
    %s23 = ssub.s32 %s15, %s22
    %p24 = scmp.eq.s32.totalorder %s23, 0
    %s26 = sadd.s32 %s25, 1
    %s27 = scalar_select %p24, %s25, %s26
    %p30 = pneg %p24
    %p31 = scmp.eq.s32.totalorder %s15, 1
    %p32 = por %p30, %p31
    %p33 = scmp.ne.s32.totalorder %s25, %s28
    %p34 = scmp.eq.s32.totalorder %s15, 0
    %p35 = por %p33, %p34
    %p36 = scmp.ne.s32.totalorder %s25, %s28
    %p37 = scmp.eq.s32.totalorder %s20, 1
    %p38 = por %p36, %p37
    %p39 = scmp.ne.s32.totalorder %s28, %s29
    %p40 = scmp.eq.s32.totalorder %s20, 0
    %p41 = por %p39, %p40
    %p42 = scmp.ne.s32.totalorder %s28, %s29
    %p43 = scmp.eq.s32.totalorder %s21, 1
    %p44 = por %p42, %p43
    %p46 = scmp.ne.s32.totalorder %s29, %s45
    %p47 = scmp.eq.s32.totalorder %s21, 0
    %p48 = por %p46, %p47
    %s50 = sadd.s32 %s49, 1
    %p53 = scmp.eq.s32.totalorder %s15, 1
    %p54 = scmp.ne.s32.totalorder %s49, %s51
    %p55 = scmp.eq.s32.totalorder %s15, 0
    %p56 = por %p54, %p55
    %p57 = scmp.ne.s32.totalorder %s49, %s51
    %p58 = scmp.eq.s32.totalorder %s20, 1
    %p59 = por %p57, %p58
    %p60 = scmp.ne.s32.totalorder %s51, %s52
    %p61 = scmp.eq.s32.totalorder %s20, 0
    %p62 = por %p60, %p61
    %p63 = scmp.ne.s32.totalorder %s51, %s52
    %p64 = scmp.eq.s32.totalorder %s21, 1
    %p65 = por %p63, %p64
    %p67 = scmp.ne.s32.totalorder %s52, %s66
    %p68 = scmp.eq.s32.totalorder %s21, 0
    %p69 = por %p67, %p68
    %s71 = sadd.s32 %s70, 1
    %p74 = scmp.eq.s32.totalorder %s15, 1
    %p75 = scmp.ne.s32.totalorder %s70, %s72
    %p76 = scmp.eq.s32.totalorder %s15, 0
    %p77 = por %p75, %p76
    %p78 = scmp.ne.s32.totalorder %s70, %s72
    %p79 = scmp.eq.s32.totalorder %s20, 1
    %p80 = por %p78, %p79
    %p81 = scmp.ne.s32.totalorder %s72, %s73
    %p82 = scmp.eq.s32.totalorder %s20, 0
    %p83 = por %p81, %p82
    %p84 = scmp.ne.s32.totalorder %s72, %s73
    %p85 = scmp.eq.s32.totalorder %s21, 1
    %p86 = por %p84, %p85
    %p88 = scmp.ne.s32.totalorder %s73, %s87
    %p89 = scmp.eq.s32.totalorder %s21, 0
    %p90 = por %p88, %p89
    %s92 = sadd.s32 %s91, 1
    %p95 = scmp.eq.s32.totalorder %s15, 1
    %p96 = scmp.ne.s32.totalorder %s91, %s93
    %p97 = scmp.eq.s32.totalorder %s15, 0
    %p98 = por %p96, %p97
    %p99 = scmp.ne.s32.totalorder %s91, %s93
    %p100 = scmp.eq.s32.totalorder %s20, 1
    %p101 = por %p99, %p100
    %p102 = scmp.ne.s32.totalorder %s93, %s94
    %p103 = scmp.eq.s32.totalorder %s20, 0
    %p104 = por %p102, %p103
    %p105 = scmp.ne.s32.totalorder %s93, %s94
    %p106 = scmp.eq.s32.totalorder %s21, 1
    %p107 = por %p105, %p106
    %p109 = scmp.ne.s32.totalorder %s94, %s108
    %p110 = scmp.eq.s32.totalorder %s21, 0
    %p111 = por %p109, %p110
    %s113 = sadd.s32 %s112, 1
    %p116 = scmp.eq.s32.totalorder %s15, 1
    %p117 = scmp.ne.s32.totalorder %s112, %s114
    %p118 = scmp.eq.s32.totalorder %s15, 0
    %p119 = por %p117, %p118
    %p120 = scmp.ne.s32.totalorder %s112, %s114
    %p121 = scmp.eq.s32.totalorder %s20, 1
    %p122 = por %p120, %p121
    %p123 = scmp.ne.s32.totalorder %s114, %s115
    %p124 = scmp.eq.s32.totalorder %s20, 0
    %p125 = por %p123, %p124
    %p126 = scmp.ne.s32.totalorder %s114, %s115
    %p127 = scmp.eq.s32.totalorder %s21, 1
    %p128 = por %p126, %p127
    %p130 = scmp.ne.s32.totalorder %s115, %s129
    %p131 = scmp.eq.s32.totalorder %s21, 0
    %p132 = por %p130, %p131
    %s134 = sadd.s32 %s133, 1
    %p137 = scmp.eq.s32.totalorder %s15, 1
    %p138 = scmp.ne.s32.totalorder %s133, %s135
    %p139 = scmp.eq.s32.totalorder %s15, 0
    %p140 = por %p138, %p139
    %p141 = scmp.ne.s32.totalorder %s133, %s135
    %p142 = scmp.eq.s32.totalorder %s20, 1
    %p143 = por %p141, %p142
    %p144 = scmp.ne.s32.totalorder %s135, %s136
    %p145 = scmp.eq.s32.totalorder %s20, 0
    %p146 = por %p144, %p145
    %p147 = scmp.ne.s32.totalorder %s135, %s136
    %p148 = scmp.eq.s32.totalorder %s21, 1
    %p149 = por %p147, %p148
    %p151 = scmp.ne.s32.totalorder %s136, %s150
    %p152 = scmp.eq.s32.totalorder %s21, 0
    %p153 = por %p151, %p152
    %s155 = sadd.s32 %s154, 1
    %p158 = scmp.eq.s32.totalorder %s15, 1
    %p159 = scmp.ne.s32.totalorder %s154, %s156
    %p160 = scmp.eq.s32.totalorder %s15, 0
    %p161 = por %p159, %p160
    %p162 = scmp.ne.s32.totalorder %s154, %s156
    %p163 = scmp.eq.s32.totalorder %s20, 1
    %p164 = por %p162, %p163
    %p165 = scmp.ne.s32.totalorder %s156, %s157
    %p166 = scmp.eq.s32.totalorder %s20, 0
    %p167 = por %p165, %p166
    %p168 = scmp.ne.s32.totalorder %s156, %s157
    %p169 = scmp.eq.s32.totalorder %s21, 1
    %p170 = por %p168, %p169
    %p172 = scmp.ne.s32.totalorder %s157, %s171
    %p173 = scmp.eq.s32.totalorder %s21, 0
    %p174 = por %p172, %p173
    %s176 = sadd.s32 %s175, 1
    %p179 = scmp.eq.s32.totalorder %s15, 1
    %p180 = scmp.ne.s32.totalorder %s175, %s177
    %p181 = scmp.eq.s32.totalorder %s15, 0
    %p182 = por %p180, %p181
    %p183 = scmp.ne.s32.totalorder %s175, %s177
    %p184 = scmp.eq.s32.totalorder %s20, 1
    %p185 = por %p183, %p184
    %p186 = scmp.ne.s32.totalorder %s177, %s178
    %p187 = scmp.eq.s32.totalorder %s20, 0
    %p188 = por %p186, %p187
    %p189 = scmp.ne.s32.totalorder %s177, %s178
    %p190 = scmp.eq.s32.totalorder %s21, 1
    %p191 = por %p189, %p190
    %p193 = scmp.ne.s32.totalorder %s178, %s192
    %p194 = scmp.eq.s32.totalorder %s21, 0
    %p195 = por %p193, %p194
    %s197 = sadd.s32 %s196, 1
    %p200 = scmp.eq.s32.totalorder %s15, 1
    %p201 = scmp.ne.s32.totalorder %s196, %s198
    %p202 = scmp.eq.s32.totalorder %s15, 0
    %p203 = por %p201, %p202
    %p204 = scmp.ne.s32.totalorder %s196, %s198
    %p205 = scmp.eq.s32.totalorder %s20, 1
    %p206 = por %p204, %p205
    %p207 = scmp.ne.s32.totalorder %s198, %s199
    %p208 = scmp.eq.s32.totalorder %s20, 0
    %p209 = por %p207, %p208
    %p210 = scmp.ne.s32.totalorder %s198, %s199
    %p211 = scmp.eq.s32.totalorder %s21, 1
    %p212 = por %p210, %p211
    %p214 = scmp.ne.s32.totalorder %s199, %s213
    %p215 = scmp.eq.s32.totalorder %s21, 0
    %p216 = por %p214, %p215
    %s217 = ssub.s32 %s15, %s22
    %p218 = scmp.eq.s32.totalorder %s217, 0
    %s220 = sadd.s32 %s219, 1
    %s221 = scalar_select %p218, %s219, %s220
    %p224 = pneg %p218
    %p225 = scmp.eq.s32.totalorder %s15, 1
    %p226 = por %p224, %p225
    %p227 = scmp.ne.s32.totalorder %s219, %s222
    %p228 = scmp.eq.s32.totalorder %s15, 0
    %p229 = por %p227, %p228
    %p230 = scmp.ne.s32.totalorder %s219, %s222
    %p231 = scmp.eq.s32.totalorder %s20, 1
    %p232 = por %p230, %p231
    %p233 = scmp.ne.s32.totalorder %s222, %s223
    %p234 = scmp.eq.s32.totalorder %s20, 0
    %p235 = por %p233, %p234
    %p236 = scmp.ne.s32.totalorder %s222, %s223
    %p237 = scmp.eq.s32.totalorder %s21, 1
    %p238 = por %p236, %p237
    %p240 = scmp.ne.s32.totalorder %s223, %s239
    %p241 = scmp.eq.s32.totalorder %s21, 0
    %p242 = por %p240, %p241
    %p243 = scmp.le.s32.totalorder 1, %s15
    %p244 = scmp.lt.s32.totalorder %s15, 3
    %p245 = pnand %p243, %p244
    %p246 = pneg %p245
    // Predicated region
    $region9: #{vanila_transformer_forward.14} parent=5 // pred_check
      _
    $region10: #{vanila_transformer_forward.14} parent=5 // pred_check_branch
      %248 = sbr.rel (%p245) target = $region12
    $region11: #{vanila_transformer_forward.14} parent=5 // pred_region
      %s249 = ssub.s32 %s15, 1
      // Predicated region
      $region13: #{vanila_transformer_forward.14} parent=11 // pred_check
        %p250 = pneg %p62
      $region14: #{vanila_transformer_forward.14} parent=11 // pred_check_branch
        %252 = sbr.rel (%p250) target = $region16
      $region15: #{vanila_transformer_forward.14} parent=11 // pred_region
        _
      $region16: #{vanila_transformer_forward.14} parent=11 // pred_fallthru
        _
      // Predicated region
      $region17: #{vanila_transformer_forward.14} parent=11 // pred_check
        %p253 = pneg %p83
      $region18: #{vanila_transformer_forward.14} parent=11 // pred_check_branch
        %255 = sbr.rel (%p253) target = $region20
      $region19: #{vanila_transformer_forward.14} parent=11 // pred_region
        _
      $region20: #{vanila_transformer_forward.14} parent=11 // pred_fallthru
        _
      // Predicated region
      $region21: #{vanila_transformer_forward.14} parent=11 // pred_check
        %p256 = pneg %p104
      $region22: #{vanila_transformer_forward.14} parent=11 // pred_check_branch
        %258 = sbr.rel (%p256) target = $region24
      $region23: #{vanila_transformer_forward.14} parent=11 // pred_region
        _
      $region24: #{vanila_transformer_forward.14} parent=11 // pred_fallthru
        _
      // Predicated region
      $region25: #{vanila_transformer_forward.14} parent=11 // pred_check
        %p259 = pneg %p125
      $region26: #{vanila_transformer_forward.14} parent=11 // pred_check_branch
        %261 = sbr.rel (%p259) target = $region28
      $region27: #{vanila_transformer_forward.14} parent=11 // pred_region
        _
      $region28: #{vanila_transformer_forward.14} parent=11 // pred_fallthru
        _
      // Predicated region
      $region29: #{vanila_transformer_forward.14} parent=11 // pred_check
        %p262 = pneg %p146
      $region30: #{vanila_transformer_forward.14} parent=11 // pred_check_branch
        %264 = sbr.rel (%p262) target = $region32
      $region31: #{vanila_transformer_forward.14} parent=11 // pred_region
        _
      $region32: #{vanila_transformer_forward.14} parent=11 // pred_fallthru
        _
      // Predicated region
      $region33: #{vanila_transformer_forward.14} parent=11 // pred_check
        %p265 = pneg %p167
      $region34: #{vanila_transformer_forward.14} parent=11 // pred_check_branch
        %267 = sbr.rel (%p265) target = $region36
      $region35: #{vanila_transformer_forward.14} parent=11 // pred_region
        _
      $region36: #{vanila_transformer_forward.14} parent=11 // pred_fallthru
        _
      // Predicated region
      $region37: #{vanila_transformer_forward.14} parent=11 // pred_check
        %p268 = pneg %p188
      $region38: #{vanila_transformer_forward.14} parent=11 // pred_check_branch
        %270 = sbr.rel (%p268) target = $region40
      $region39: #{vanila_transformer_forward.14} parent=11 // pred_region
        _
      $region40: #{vanila_transformer_forward.14} parent=11 // pred_fallthru
        _
      // Predicated region
      $region41: #{vanila_transformer_forward.14} parent=11 // pred_check
        %p271 = pneg %p209
      $region42: #{vanila_transformer_forward.14} parent=11 // pred_check_branch
        %273 = sbr.rel (%p271) target = $region44
      $region43: #{vanila_transformer_forward.14} parent=11 // pred_region
        _
      $region44: #{vanila_transformer_forward.14} parent=11 // pred_fallthru
        _
    $region12: #{vanila_transformer_forward.14} parent=5 // pred_fallthru
      _
    %p274 = scmp.lt.s32.totalorder %s15, 2
    // Predicated region
    $region45: #{vanila_transformer_forward.14} parent=5 // pred_check
      %p275 = pneg %p274
    $region46: #{vanila_transformer_forward.14} parent=5 // pred_check_branch
      %277 = sbr.rel (%p275) target = $region48
    $region47: #{vanila_transformer_forward.14} parent=5 // pred_region
      // Predicated region
      $region49: #{vanila_transformer_forward.14} parent=47 // pred_check
        %p278 = pneg %p35
      $region50: #{vanila_transformer_forward.14} parent=47 // pred_check_branch
        %280 = sbr.rel (%p278) target = $region52
      $region51: #{vanila_transformer_forward.14} parent=47 // pred_region
        %p281 = scmp.lt.s32.totalorder %s15, 1
        %s282 = scalar_select %p281, %s15, 1
        %s283 = smul.addr %s282, 8
        %s284 = scalar_lea.vmem %s0, %s283
      $region52: #{vanila_transformer_forward.14} parent=47 // pred_fallthru
        _
    $region48: #{vanila_transformer_forward.14} parent=5 // pred_fallthru
      _
    %p285 = scmp.le.s32.totalorder 1, %s15
    %p286 = scmp.lt.s32.totalorder %s15, 3
    %p287 = pnand %p285, %p286
    %p288 = pneg %p287
    // Predicated region
    $region53: #{vanila_transformer_forward.14} parent=5 // pred_check
      _
    $region54: #{vanila_transformer_forward.14} parent=5 // pred_check_branch
      %290 = sbr.rel (%p287) target = $region56
    $region55: #{vanila_transformer_forward.14} parent=5 // pred_region
      %s291 = ssub.s32 %s15, 1
      %p292 = scmp.lt.s32.totalorder %s20, 1
      %s293 = scalar_select %p292, %s20, 1
      %s294 = smul.addr %s293, 8
      %s295 = scalar_lea.vmem %s0, %s294
      %p296 = pneg %p41
      %p297 = pneg %p38
      %p298 = pneg %p62
      %p299 = pneg %p59
      %p300 = pneg %p83
      %p301 = pneg %p80
      %p302 = pneg %p104
      %p303 = pneg %p101
      %p304 = pneg %p125
      %p305 = pneg %p122
      %p306 = pneg %p146
      %p307 = pneg %p143
      %p308 = pneg %p167
      %p309 = pneg %p164
      %p310 = pneg %p188
      %p311 = pneg %p185
      %p312 = pneg %p209
      %p313 = pneg %p206
      %p314 = pneg %p235
      %p315 = pneg %p232
      %p316 = scmp.lt.s32.totalorder %s20, 1
      %s317 = scalar_select %p316, %s20, 1
      %s318 = smul.addr %s317, 8
      %s319 = scalar_lea.vmem %s9, %s318
      %p320 = scmp.lt.s32.totalorder %s20, 1
      %s321 = scalar_select %p320, %s20, 1
      %s322 = smul.addr %s321, 8
      %s323 = scalar_lea.vmem %s0, %s322
      %p324 = scmp.lt.s32.totalorder %s20, 1
      %s325 = scalar_select %p324, %s20, 1
      %s326 = smul.addr %s325, 8
      %s327 = scalar_lea.vmem %s9, %s326
      %v329 = vld [vmem:[%s323] sm:$0xff]
      %v330 = vpack.c.bf16 %v329, %v329
      %v331 = vld [vmem:[%s1] sm:$0xf]
      %v332 = vld [vmem:[%s1 + $0x4] sm:$0xf]
      %v333 = vld [vmem:[%s1 + $0x8] sm:$0xf]
      %v334 = vld [vmem:[%s1 + $0xc] sm:$0xf]
      %v335 = vld [vmem:[%s2] sm:$0x1]
      %v337 = vperm.slane %v335, 0
      %v343 = vunpack.c.l.b16 %v331
      %v344 = vunpack.c.l.b16 %v332
      %v345 = vunpack.c.l.b16 %v333
      %v346 = vunpack.c.l.b16 %v334
      %v347 = vpack.c.b16 %v344, %v343
      %v348 = vpack.c.b16 %v346, %v345
      %vm351 = vcmask 261120
      %v353 = vsel %vm351, %v330, 0
      %355 = vmatpush.bf16.msra.mxu0 0
      %356 = vmatpush.bf16.msra.mxu0 0
      %357 = vmatpush.bf16.msra.mxu0 0
      %358 = vmatpush.bf16.msra.mxu0 0
      %359 = vmatpush.bf16.msra.mxu0 0
      %360 = vmatpush.bf16.msra.mxu0 0
      %361 = vmatpush.bf16.msra.mxu0 %v348
      %362 = vmatpush.bf16.msra.mxu0 %v347
      %363 = vmatmul.bf16.gmra.mxu0 %v353
      %v364 = vpop.f32.mrf.mxu0
      %v365 = vadd.f32 %v337, %v364
      %v366 = vpop.f32.mrf.mxu0
      %367 = vdwg.mxu0
      %v368 = vmax.f32 %v365, 0.0
      %v369 = vpack.c.bf16 %v368, %v368
      %v370 = vld [vmem:[%s3] sm:$0xf]
      %v371 = vld [vmem:[%s3 + $0x4] sm:$0xf]
      %v372 = vld [vmem:[%s3 + $0x8] sm:$0xf]
      %v373 = vld [vmem:[%s3 + $0xc] sm:$0xf]
      %v374 = vld [vmem:[%s3 + $0x10] sm:$0xf]
      %v375 = vld [vmem:[%s3 + $0x14] sm:$0xf]
      %v376 = vld [vmem:[%s3 + $0x18] sm:$0xf]
      %v377 = vld [vmem:[%s3 + $0x1c] sm:$0xf]
      %v386 = vunpack.c.l.b16 %v370
      %v387 = vunpack.c.l.b16 %v371
      %v388 = vunpack.c.l.b16 %v372
      %v389 = vunpack.c.l.b16 %v373
      %v390 = vunpack.c.l.b16 %v374
      %v391 = vunpack.c.l.b16 %v375
      %v392 = vunpack.c.l.b16 %v376
      %v393 = vunpack.c.l.b16 %v377
      %v394 = vpack.c.b16 %v387, %v386
      %v395 = vpack.c.b16 %v389, %v388
      %v396 = vpack.c.b16 %v391, %v390
      %v397 = vpack.c.b16 %v393, %v392
      %vm402 = vcmask 523264
      %v404 = vsel %vm402, %v369, 0
      %406 = vmatpush.bf16.msra.mxu0 0
      %407 = vmatpush.bf16.msra.mxu0 0
      %408 = vmatpush.bf16.msra.mxu0 0
      %409 = vmatpush.bf16.msra.mxu0 0
      %410 = vmatpush.bf16.msra.mxu0 %v397
      %411 = vmatpush.bf16.msra.mxu0 %v396
      %412 = vmatpush.bf16.msra.mxu0 %v395
      %413 = vmatpush.bf16.msra.mxu0 %v394
      %414 = vmatmul.bf16.gmra.mxu0 %v404
      %v415 = vpop.f32.mrf.mxu0
      %v416 = vadd.f32 0.0, %v415
      %v417 = vpop.f32.mrf.mxu0
      %418 = vdwg.mxu0
      %v419 = vadd.f32 %v329, %v416
      %v420 = vld [vmem:[%s4] sm:$0x1]
      %v422 = vperm.slane %v420, 0
      %v424 = vadd.f32 %v419, %v422
      %v425 = vld [vmem:[%s5] sm:$0x1]
      %v426 = vld [vmem:[%s6] sm:$0x1]
      %v427 = vsel %vm351, %v424, 0.0
      %428 = vadd.xlane.f32.xlu0 %v427
      %v429 = vpop.xlane.xlu0 %428
      %v430 = vrcp.pop 32.0
      %v431 = vmul.f32 32.0, %v430
      %v432 = vsub.f32 1.0, %v431
      %v433 = vmul.f32 %v430, %v432
      %v434 = vadd.f32 %v430, %v433
      %vm435 = vweird.f32 %v430
      %v436 = vsel %vm435, %v430, %v434
      %v437 = vmul.f32 %v429, %v436
      %v438 = vsub.f32 %v424, %v437
      %v439 = vmul.f32 %v438, %v438
      %v440 = vsel %vm351, %v439, 0.0
      %441 = vadd.xlane.f32.xlu0 %v440
      %v442 = vpop.xlane.xlu0 %441
      %v443 = vmul.f32 %v442, %v436
      %v444 = vadd.f32 %v443, 1e-05
      %v445 = vrsqrt.pop %v444
      %v446 = vmul.f32 %v445, %v444
      %v447 = vmul.f32 %v446, %v445
      %v448 = vmul.f32 0.5, %v447
      %v449 = vsub.f32 1.5, %v448
      %v450 = vmul.f32 %v445, %v449
      %vm451 = vweird.f32 %v444
      %vm452 = vweird.f32 %v445
      %vm453 = vmor %vm451, %vm452
      %v454 = vsel %vm453, %v445, %v450
      %v455 = vmul.f32 %v438, %v454
      %v457 = vperm.slane %v425, 0
      %v459 = vmul.f32 %v455, %v457
      %v461 = vperm.slane %v426, 0
      %v463 = vadd.f32 %v459, %v461
      %v464 = vld [vmem:[%s7] sm:$0x1]
      %v465 = vld [vmem:[%s8] sm:$0x1]
      %v466 = vsel %vm351, %v463, 0.0
      %467 = vadd.xlane.f32.xlu0 %v466
      %v468 = vpop.xlane.xlu0 %467
      %v469 = vmul.f32 %v468, %v436
      %v470 = vsub.f32 %v463, %v469
      %v471 = vmul.f32 %v470, %v470
      %v472 = vsel %vm351, %v471, 0.0
      %473 = vadd.xlane.f32.xlu0 %v472
      %v474 = vpop.xlane.xlu0 %473
      %v475 = vmul.f32 %v474, %v436
      %v476 = vadd.f32 %v475, 1e-05
      %v477 = vrsqrt.pop %v476
      %v478 = vmul.f32 %v477, %v476
      %v479 = vmul.f32 %v478, %v477
      %v480 = vmul.f32 0.5, %v479
      %v481 = vsub.f32 1.5, %v480
      %v482 = vmul.f32 %v477, %v481
      %vm483 = vweird.f32 %v476
      %vm484 = vweird.f32 %v477
      %vm485 = vmor %vm483, %vm484
      %v486 = vsel %vm485, %v477, %v482
      %v487 = vmul.f32 %v470, %v486
      %v489 = vperm.slane %v464, 0
      %v491 = vmul.f32 %v487, %v489
      %v493 = vperm.slane %v465, 0
      %v495 = vadd.f32 %v491, %v493
      %496 = vst.msk [vmem:[%s327] sm:$0xff] %vm351, %v495
      %p497 = scmp.lt.s32.totalorder %s20, 1
      %s498 = scalar_select %p497, %s20, 1
      %s499 = smul.addr %s498, 8
      %s500 = scalar_lea.vmem %s9, %s499
      // Predicated region
      $region57: #{vanila_transformer_forward.14} parent=55 // pred_check
        %p501 = pneg %p232
      $region58: #{vanila_transformer_forward.14} parent=55 // pred_check_branch
        %503 = sbr.rel (%p501) target = $region60
      $region59: #{vanila_transformer_forward.14} parent=55 // pred_region
        _
      $region60: #{vanila_transformer_forward.14} parent=55 // pred_fallthru
        _
    $region56: #{vanila_transformer_forward.14} parent=5 // pred_fallthru
      _
    %p504 = scmp.le.s32.totalorder 2, %s15
    // Predicated region
    $region61: #{vanila_transformer_forward.14} parent=5 // pred_check
      %p505 = pneg %p504
    $region62: #{vanila_transformer_forward.14} parent=5 // pred_check_branch
      %507 = sbr.rel (%p505) target = $region64
    $region63: #{vanila_transformer_forward.14} parent=5 // pred_region
      %s508 = ssub.s32 %s15, 2
      // Predicated region
      $region65: #{vanila_transformer_forward.14} parent=63 // pred_check
        %p509 = pneg %p238
      $region66: #{vanila_transformer_forward.14} parent=63 // pred_check_branch
        %511 = sbr.rel (%p509) target = $region68
      $region67: #{vanila_transformer_forward.14} parent=63 // pred_region
        %p512 = scmp.lt.s32.totalorder %s21, 1
        %s513 = scalar_select %p512, %s21, 1
        %s514 = smul.addr %s513, 8
        %s515 = scalar_lea.vmem %s9, %s514
      $region68: #{vanila_transformer_forward.14} parent=63 // pred_fallthru
        _
    $region64: #{vanila_transformer_forward.14} parent=5 // pred_fallthru
      _
  $region6: #{vanila_transformer_forward.14} parent=0 // loop_footer
    %s19 = sadd.s32 1, %s15
  $region7: #{vanila_transformer_forward.14} parent=0 // loop_footer_branch
    %14 = sbr.rel target = $region3
  $region8: #{vanila_transformer_forward.14} parent=0 // loop_exit
    _

// kernel: vanila_transformer_forward.15
$region0: #{vanila_transformer_forward.15}
  #allocation0 [shape = 'u32[]', space=smem, size = 0x4, offset = 0x4, fixed_abs, tag = 'smem constant byte address 0x4 - core index']
  #allocation1 [shape = 'u32[72,128]{1,0:T(1,128)}', space=vmem, size = 0x9000, scoped, tag = 'internal scratch']
  %s0 = inlined_call_operand.vmem [shape: f32[2,8,32], index: 0, kind: input, shape index: {}]
  %s1 = inlined_call_operand.vmem [shape: bf16[32,96], index: 1, kind: input, shape index: {}]
  %s2 = inlined_call_operand.vmem [shape: f32[1,96], index: 2, kind: input, shape index: {}]
  %s3 = inlined_call_operand.vmem [shape: bf16[32,32], index: 3, kind: input, shape index: {}]
  %s4 = inlined_call_operand.hbm [shape: f32[1,32], index: 4, kind: input, shape index: {}]
  %s5 = inlined_call_operand.vmem [shape: f32[8,8], index: 5, kind: input, shape index: {}]
  %s6 = inlined_call_operand.vmem [shape: f32[2,1,8], index: 6, kind: input, shape index: {}]
  %s7 = inlined_call_operand.hbm [shape: f32[1,32], index: 7, kind: input, shape index: {}]
  %s8 = inlined_call_operand.hbm [shape: f32[1,32], index: 8, kind: input, shape index: {}]
  %s9 = inlined_call_operand.vmem [shape: f32[2,8,32], index: 9, kind: output, shape index: {}]
  %s10 = sld [smem:[#allocation0]]
  $region81: #{vanila_transformer_forward.15} parent=0
    _
  %s12 = ssub.s32 1, %s10
  %s13 = scalar_select 0, %s12, %s10
  $region1: #{vanila_transformer_forward.15} parent=0
    #allocation2 [shape = 'u8[512]{0}', space=vmem, size = 0x400, scoped, tag = 'input window, operand 4, single buffered']
    #allocation3 [shape = 's32[2]{0}', space=sflag, size = 0x8, scoped, tag = 'scoped memory for vanila_transformer_forward.15']
    #allocation4 [shape = 'u8[512]{0}', space=vmem, size = 0x400, scoped, tag = 'input window, operand 7, single buffered']
    #allocation5 [shape = 's32[1]{0}', space=sflag, size = 0x4, scoped, tag = 'scoped memory for vanila_transformer_forward.15']
    #allocation6 [shape = 'u8[512]{0}', space=vmem, size = 0x400, scoped, tag = 'input window, operand 8, single buffered']
    %14 = vsyncpa [#allocation3], 0
    %15 = vsyncpa [#allocation5], 0
    loop: start=0, step=1, limit=4
    $region2: #{vanila_transformer_forward.15} parent=1 // loop_pre_header
      _
    $region3: #{vanila_transformer_forward.15} parent=1 // loop_header
      %s17 = sphi 0, %s21
      %p18 = scmp.ge.s32.totalorder %s17, 4
      %s27 = sphi 0, %s29
      %s30 = sphi 0, %s27
      %s31 = sphi 0, %s30
      %s47 = sphi 0, %s31
      %s51 = sphi 0, %s51
      %s53 = sphi 0, %s51
      %s54 = sphi 0, %s53
      %s68 = sphi 0, %s54
      %s72 = sphi 0, %s72
      %s74 = sphi 0, %s72
      %s75 = sphi 0, %s74
      %s89 = sphi 0, %s75
      %s93 = sphi 0, %s93
      %s95 = sphi 0, %s93
      %s96 = sphi 0, %s95
      %s110 = sphi 0, %s96
      %s114 = sphi 0, %s114
      %s116 = sphi 0, %s114
      %s117 = sphi 0, %s116
      %s131 = sphi 0, %s117
      %s135 = sphi 0, %s135
      %s137 = sphi 0, %s135
      %s138 = sphi 0, %s137
      %s152 = sphi 0, %s138
      %s158 = sphi 0, %s160
      %s161 = sphi 0, %s158
      %s162 = sphi 0, %s161
      %s178 = sphi 0, %s162
      %s182 = sphi 0, %s182
      %s184 = sphi 0, %s182
      %s185 = sphi 0, %s184
      %s199 = sphi 0, %s185
      %s203 = sphi 0, %s203
      %s205 = sphi 0, %s203
      %s206 = sphi 0, %s205
      %s220 = sphi 0, %s206
      %s226 = sphi 0, %s228
      %s229 = sphi 0, %s226
      %s230 = sphi 0, %s229
      %s246 = sphi 0, %s230
    $region4: #{vanila_transformer_forward.15} parent=1 // loop_header_branch
      %20 = sbr.rel (%p18) target = $region8
    $region5: #{vanila_transformer_forward.15} parent=1 // loop_body
      %s22 = ssub.s32 %s17, 1
      %s23 = ssub.s32 %s17, 2
      %s24 = sadd.s32 %s17, 1
      %s25 = ssub.s32 %s17, %s24
      %p26 = scmp.eq.s32.totalorder %s25, 0
      %s28 = sadd.s32 %s27, 1
      %s29 = scalar_select %p26, %s27, %s28
      %p32 = pneg %p26
      %p33 = scmp.eq.s32.totalorder %s17, 1
      %p34 = por %p32, %p33
      %p35 = scmp.ne.s32.totalorder %s27, %s30
      %p36 = scmp.eq.s32.totalorder %s17, 0
      %p37 = por %p35, %p36
      %p38 = scmp.ne.s32.totalorder %s27, %s30
      %p39 = scmp.eq.s32.totalorder %s22, 1
      %p40 = por %p38, %p39
      %p41 = scmp.ne.s32.totalorder %s30, %s31
      %p42 = scmp.eq.s32.totalorder %s22, 0
      %p43 = por %p41, %p42
      %p44 = scmp.ne.s32.totalorder %s30, %s31
      %p45 = scmp.eq.s32.totalorder %s23, 1
      %p46 = por %p44, %p45
      %p48 = scmp.ne.s32.totalorder %s31, %s47
      %p49 = scmp.eq.s32.totalorder %s23, 0
      %p50 = por %p48, %p49
      %s52 = sadd.s32 %s51, 1
      %p55 = scmp.eq.s32.totalorder %s17, 1
      %p56 = scmp.ne.s32.totalorder %s51, %s53
      %p57 = scmp.eq.s32.totalorder %s17, 0
      %p58 = por %p56, %p57
      %p59 = scmp.ne.s32.totalorder %s51, %s53
      %p60 = scmp.eq.s32.totalorder %s22, 1
      %p61 = por %p59, %p60
      %p62 = scmp.ne.s32.totalorder %s53, %s54
      %p63 = scmp.eq.s32.totalorder %s22, 0
      %p64 = por %p62, %p63
      %p65 = scmp.ne.s32.totalorder %s53, %s54
      %p66 = scmp.eq.s32.totalorder %s23, 1
      %p67 = por %p65, %p66
      %p69 = scmp.ne.s32.totalorder %s54, %s68
      %p70 = scmp.eq.s32.totalorder %s23, 0
      %p71 = por %p69, %p70
      %s73 = sadd.s32 %s72, 1
      %p76 = scmp.eq.s32.totalorder %s17, 1
      %p77 = scmp.ne.s32.totalorder %s72, %s74
      %p78 = scmp.eq.s32.totalorder %s17, 0
      %p79 = por %p77, %p78
      %p80 = scmp.ne.s32.totalorder %s72, %s74
      %p81 = scmp.eq.s32.totalorder %s22, 1
      %p82 = por %p80, %p81
      %p83 = scmp.ne.s32.totalorder %s74, %s75
      %p84 = scmp.eq.s32.totalorder %s22, 0
      %p85 = por %p83, %p84
      %p86 = scmp.ne.s32.totalorder %s74, %s75
      %p87 = scmp.eq.s32.totalorder %s23, 1
      %p88 = por %p86, %p87
      %p90 = scmp.ne.s32.totalorder %s75, %s89
      %p91 = scmp.eq.s32.totalorder %s23, 0
      %p92 = por %p90, %p91
      %s94 = sadd.s32 %s93, 1
      %p97 = scmp.eq.s32.totalorder %s17, 1
      %p98 = scmp.ne.s32.totalorder %s93, %s95
      %p99 = scmp.eq.s32.totalorder %s17, 0
      %p100 = por %p98, %p99
      %p101 = scmp.ne.s32.totalorder %s93, %s95
      %p102 = scmp.eq.s32.totalorder %s22, 1
      %p103 = por %p101, %p102
      %p104 = scmp.ne.s32.totalorder %s95, %s96
      %p105 = scmp.eq.s32.totalorder %s22, 0
      %p106 = por %p104, %p105
      %p107 = scmp.ne.s32.totalorder %s95, %s96
      %p108 = scmp.eq.s32.totalorder %s23, 1
      %p109 = por %p107, %p108
      %p111 = scmp.ne.s32.totalorder %s96, %s110
      %p112 = scmp.eq.s32.totalorder %s23, 0
      %p113 = por %p111, %p112
      %s115 = sadd.s32 %s114, 1
      %p118 = scmp.eq.s32.totalorder %s17, 1
      %p119 = scmp.ne.s32.totalorder %s114, %s116
      %p120 = scmp.eq.s32.totalorder %s17, 0
      %p121 = por %p119, %p120
      %p122 = scmp.ne.s32.totalorder %s114, %s116
      %p123 = scmp.eq.s32.totalorder %s22, 1
      %p124 = por %p122, %p123
      %p125 = scmp.ne.s32.totalorder %s116, %s117
      %p126 = scmp.eq.s32.totalorder %s22, 0
      %p127 = por %p125, %p126
      %p128 = scmp.ne.s32.totalorder %s116, %s117
      %p129 = scmp.eq.s32.totalorder %s23, 1
      %p130 = por %p128, %p129
      %p132 = scmp.ne.s32.totalorder %s117, %s131
      %p133 = scmp.eq.s32.totalorder %s23, 0
      %p134 = por %p132, %p133
      %s136 = sadd.s32 %s135, 1
      %p139 = scmp.eq.s32.totalorder %s17, 1
      %p140 = scmp.ne.s32.totalorder %s135, %s137
      %p141 = scmp.eq.s32.totalorder %s17, 0
      %p142 = por %p140, %p141
      %p143 = scmp.ne.s32.totalorder %s135, %s137
      %p144 = scmp.eq.s32.totalorder %s22, 1
      %p145 = por %p143, %p144
      %p146 = scmp.ne.s32.totalorder %s137, %s138
      %p147 = scmp.eq.s32.totalorder %s22, 0
      %p148 = por %p146, %p147
      %p149 = scmp.ne.s32.totalorder %s137, %s138
      %p150 = scmp.eq.s32.totalorder %s23, 1
      %p151 = por %p149, %p150
      %p153 = scmp.ne.s32.totalorder %s138, %s152
      %p154 = scmp.eq.s32.totalorder %s23, 0
      %p155 = por %p153, %p154
      %s156 = ssub.s32 %s17, %s24
      %p157 = scmp.eq.s32.totalorder %s156, 0
      %s159 = sadd.s32 %s158, 1
      %s160 = scalar_select %p157, %s158, %s159
      %p163 = pneg %p157
      %p164 = scmp.eq.s32.totalorder %s17, 1
      %p165 = por %p163, %p164
      %p166 = scmp.ne.s32.totalorder %s158, %s161
      %p167 = scmp.eq.s32.totalorder %s17, 0
      %p168 = por %p166, %p167
      %p169 = scmp.ne.s32.totalorder %s158, %s161
      %p170 = scmp.eq.s32.totalorder %s22, 1
      %p171 = por %p169, %p170
      %p172 = scmp.ne.s32.totalorder %s161, %s162
      %p173 = scmp.eq.s32.totalorder %s22, 0
      %p174 = por %p172, %p173
      %p175 = scmp.ne.s32.totalorder %s161, %s162
      %p176 = scmp.eq.s32.totalorder %s23, 1
      %p177 = por %p175, %p176
      %p179 = scmp.ne.s32.totalorder %s162, %s178
      %p180 = scmp.eq.s32.totalorder %s23, 0
      %p181 = por %p179, %p180
      %s183 = sadd.s32 %s182, 1
      %p186 = scmp.eq.s32.totalorder %s17, 1
      %p187 = scmp.ne.s32.totalorder %s182, %s184
      %p188 = scmp.eq.s32.totalorder %s17, 0
      %p189 = por %p187, %p188
      %p190 = scmp.ne.s32.totalorder %s182, %s184
      %p191 = scmp.eq.s32.totalorder %s22, 1
      %p192 = por %p190, %p191
      %p193 = scmp.ne.s32.totalorder %s184, %s185
      %p194 = scmp.eq.s32.totalorder %s22, 0
      %p195 = por %p193, %p194
      %p196 = scmp.ne.s32.totalorder %s184, %s185
      %p197 = scmp.eq.s32.totalorder %s23, 1
      %p198 = por %p196, %p197
      %p200 = scmp.ne.s32.totalorder %s185, %s199
      %p201 = scmp.eq.s32.totalorder %s23, 0
      %p202 = por %p200, %p201
      %s204 = sadd.s32 %s203, 1
      %p207 = scmp.eq.s32.totalorder %s17, 1
      %p208 = scmp.ne.s32.totalorder %s203, %s205
      %p209 = scmp.eq.s32.totalorder %s17, 0
      %p210 = por %p208, %p209
      %p211 = scmp.ne.s32.totalorder %s203, %s205
      %p212 = scmp.eq.s32.totalorder %s22, 1
      %p213 = por %p211, %p212
      %p214 = scmp.ne.s32.totalorder %s205, %s206
      %p215 = scmp.eq.s32.totalorder %s22, 0
      %p216 = por %p214, %p215
      %p217 = scmp.ne.s32.totalorder %s205, %s206
      %p218 = scmp.eq.s32.totalorder %s23, 1
      %p219 = por %p217, %p218
      %p221 = scmp.ne.s32.totalorder %s206, %s220
      %p222 = scmp.eq.s32.totalorder %s23, 0
      %p223 = por %p221, %p222
      %s224 = ssub.s32 %s17, %s24
      %p225 = scmp.eq.s32.totalorder %s224, 0
      %s227 = sadd.s32 %s226, 1
      %s228 = scalar_select %p225, %s226, %s227
      %p231 = pneg %p225
      %p232 = scmp.eq.s32.totalorder %s17, 1
      %p233 = por %p231, %p232
      %p234 = scmp.ne.s32.totalorder %s226, %s229
      %p235 = scmp.eq.s32.totalorder %s17, 0
      %p236 = por %p234, %p235
      %p237 = scmp.ne.s32.totalorder %s226, %s229
      %p238 = scmp.eq.s32.totalorder %s22, 1
      %p239 = por %p237, %p238
      %p240 = scmp.ne.s32.totalorder %s229, %s230
      %p241 = scmp.eq.s32.totalorder %s22, 0
      %p242 = por %p240, %p241
      %p243 = scmp.ne.s32.totalorder %s229, %s230
      %p244 = scmp.eq.s32.totalorder %s23, 1
      %p245 = por %p243, %p244
      %p247 = scmp.ne.s32.totalorder %s230, %s246
      %p248 = scmp.eq.s32.totalorder %s23, 0
      %p249 = por %p247, %p248
      %p250 = scmp.le.s32.totalorder 1, %s17
      %p251 = scmp.lt.s32.totalorder %s17, 3
      %p252 = pnand %p250, %p251
      %p253 = pneg %p252
      // Predicated region
      $region9: #{vanila_transformer_forward.15} parent=5 // pred_check
        _
      $region10: #{vanila_transformer_forward.15} parent=5 // pred_check_branch
        %255 = sbr.rel (%p252) target = $region12
      $region11: #{vanila_transformer_forward.15} parent=5 // pred_region
        %s256 = ssub.s32 %s17, 1
        // Predicated region
        $region13: #{vanila_transformer_forward.15} parent=11 // pred_check
          %p257 = pneg %p64
        $region14: #{vanila_transformer_forward.15} parent=11 // pred_check_branch
          %259 = sbr.rel (%p257) target = $region16
        $region15: #{vanila_transformer_forward.15} parent=11 // pred_region
          _
        $region16: #{vanila_transformer_forward.15} parent=11 // pred_fallthru
          _
        // Predicated region
        $region17: #{vanila_transformer_forward.15} parent=11 // pred_check
          %p260 = pneg %p85
        $region18: #{vanila_transformer_forward.15} parent=11 // pred_check_branch
          %262 = sbr.rel (%p260) target = $region20
        $region19: #{vanila_transformer_forward.15} parent=11 // pred_region
          _
        $region20: #{vanila_transformer_forward.15} parent=11 // pred_fallthru
          _
        // Predicated region
        $region21: #{vanila_transformer_forward.15} parent=11 // pred_check
          %p263 = pneg %p106
        $region22: #{vanila_transformer_forward.15} parent=11 // pred_check_branch
          %265 = sbr.rel (%p263) target = $region24
        $region23: #{vanila_transformer_forward.15} parent=11 // pred_region
          _
        $region24: #{vanila_transformer_forward.15} parent=11 // pred_fallthru
          _
        // Predicated region
        $region25: #{vanila_transformer_forward.15} parent=11 // pred_check
          %p266 = pneg %p127
        $region26: #{vanila_transformer_forward.15} parent=11 // pred_check_branch
          %268 = sbr.rel (%p266) target = $region28
        $region27: #{vanila_transformer_forward.15} parent=11 // pred_region
          %270 = vsyncadd [#allocation3], 0
          %s272 = sshll.u32 %s4, 4
          %s273 = int_to_ptr.hbm [resolvable:$true] %s272
          %s274 = sshll.u32 [#allocation2], 4
          %s275 = int_to_ptr.vmem [resolvable:$true] %s274
          %277 = dma.hbm_to_vmem [thread:$0]  %s273, 16, %s275, [#allocation3]
        $region28: #{vanila_transformer_forward.15} parent=11 // pred_fallthru
          _
        // Predicated region
        $region29: #{vanila_transformer_forward.15} parent=11 // pred_check
          %p278 = pneg %p148
        $region30: #{vanila_transformer_forward.15} parent=11 // pred_check_branch
          %280 = sbr.rel (%p278) target = $region32
        $region31: #{vanila_transformer_forward.15} parent=11 // pred_region
          _
        $region32: #{vanila_transformer_forward.15} parent=11 // pred_fallthru
          _
        // Predicated region
        $region33: #{vanila_transformer_forward.15} parent=11 // pred_check
          %p281 = pneg %p195
        $region34: #{vanila_transformer_forward.15} parent=11 // pred_check_branch
          %283 = sbr.rel (%p281) target = $region36
        $region35: #{vanila_transformer_forward.15} parent=11 // pred_region
          %285 = vsyncadd [#allocation5], 0
          %s287 = sshll.u32 %s7, 4
          %s288 = int_to_ptr.hbm [resolvable:$true] %s287
          %s289 = sshll.u32 [#allocation4], 4
          %s290 = int_to_ptr.vmem [resolvable:$true] %s289
          %292 = dma.hbm_to_vmem [thread:$0]  %s288, 16, %s290, [#allocation5]
        $region36: #{vanila_transformer_forward.15} parent=11 // pred_fallthru
          _
        // Predicated region
        $region37: #{vanila_transformer_forward.15} parent=11 // pred_check
          %p293 = pneg %p216
        $region38: #{vanila_transformer_forward.15} parent=11 // pred_check_branch
          %295 = sbr.rel (%p293) target = $region40
        $region39: #{vanila_transformer_forward.15} parent=11 // pred_region
          %297 = vsyncadd [#allocation5], 0
          %s299 = sshll.u32 %s8, 4
          %s300 = int_to_ptr.hbm [resolvable:$true] %s299
          %s301 = sshll.u32 [#allocation6], 4
          %s302 = int_to_ptr.vmem [resolvable:$true] %s301
          %304 = dma.hbm_to_vmem [thread:$0]  %s300, 16, %s302, [#allocation5]
        $region40: #{vanila_transformer_forward.15} parent=11 // pred_fallthru
          _
      $region12: #{vanila_transformer_forward.15} parent=5 // pred_fallthru
        _
      %p305 = scmp.lt.s32.totalorder %s17, 2
      // Predicated region
      $region41: #{vanila_transformer_forward.15} parent=5 // pred_check
        %p306 = pneg %p305
      $region42: #{vanila_transformer_forward.15} parent=5 // pred_check_branch
        %308 = sbr.rel (%p306) target = $region44
      $region43: #{vanila_transformer_forward.15} parent=5 // pred_region
        // Predicated region
        $region45: #{vanila_transformer_forward.15} parent=43 // pred_check
          %p309 = pneg %p37
        $region46: #{vanila_transformer_forward.15} parent=43 // pred_check_branch
          %311 = sbr.rel (%p309) target = $region48
        $region47: #{vanila_transformer_forward.15} parent=43 // pred_region
          %p312 = scmp.lt.s32.totalorder %s17, 1
          %s313 = scalar_select %p312, %s17, 1
          %s314 = smul.addr %s313, 8
          %s315 = scalar_lea.vmem %s0, %s314
        $region48: #{vanila_transformer_forward.15} parent=43 // pred_fallthru
          _
        // Predicated region
        $region49: #{vanila_transformer_forward.15} parent=43 // pred_check
          %p316 = pneg %p168
        $region50: #{vanila_transformer_forward.15} parent=43 // pred_check_branch
          %318 = sbr.rel (%p316) target = $region52
        $region51: #{vanila_transformer_forward.15} parent=43 // pred_region
          %p319 = scmp.lt.s32.totalorder %s17, 1
          %s320 = scalar_select %p319, %s17, 1
          %s321 = scalar_lea.vmem %s6, %s320
        $region52: #{vanila_transformer_forward.15} parent=43 // pred_fallthru
          _
      $region44: #{vanila_transformer_forward.15} parent=5 // pred_fallthru
        _
      %p322 = scmp.le.s32.totalorder 1, %s17
      %p323 = scmp.lt.s32.totalorder %s17, 3
      %p324 = pnand %p322, %p323
      %p325 = pneg %p324
      // Predicated region
      $region53: #{vanila_transformer_forward.15} parent=5 // pred_check
        _
      $region54: #{vanila_transformer_forward.15} parent=5 // pred_check_branch
        %327 = sbr.rel (%p324) target = $region56
      $region55: #{vanila_transformer_forward.15} parent=5 // pred_region
        %s328 = ssub.s32 %s17, 1
        // Predicated region
        $region57: #{vanila_transformer_forward.15} parent=55 // pred_check
          %p329 = pneg %p127
        $region58: #{vanila_transformer_forward.15} parent=55 // pred_check_branch
          %331 = sbr.rel (%p329) target = $region60
        $region59: #{vanila_transformer_forward.15} parent=55 // pred_region
          %333 = dma.done [#allocation3], 16
        $region60: #{vanila_transformer_forward.15} parent=55 // pred_fallthru
          _
        // Predicated region
        $region61: #{vanila_transformer_forward.15} parent=55 // pred_check
          %p334 = pneg %p195
        $region62: #{vanila_transformer_forward.15} parent=55 // pred_check_branch
          %336 = sbr.rel (%p334) target = $region64
        $region63: #{vanila_transformer_forward.15} parent=55 // pred_region
          %338 = dma.done [#allocation5], 16
        $region64: #{vanila_transformer_forward.15} parent=55 // pred_fallthru
          _
        // Predicated region
        $region65: #{vanila_transformer_forward.15} parent=55 // pred_check
          %p339 = pneg %p216
        $region66: #{vanila_transformer_forward.15} parent=55 // pred_check_branch
          %341 = sbr.rel (%p339) target = $region68
        $region67: #{vanila_transformer_forward.15} parent=55 // pred_region
          %343 = dma.done [#allocation5], 16
        $region68: #{vanila_transformer_forward.15} parent=55 // pred_fallthru
          _
        %p344 = scmp.lt.s32.totalorder %s22, 1
        %s345 = scalar_select %p344, %s22, 1
        %s346 = smul.addr %s345, 8
        %s347 = scalar_lea.vmem %s0, %s346
        %p348 = pneg %p43
        %p349 = pneg %p40
        %p350 = pneg %p64
        %p351 = pneg %p61
        %p352 = pneg %p85
        %p353 = pneg %p82
        %p354 = pneg %p106
        %p355 = pneg %p103
        %p356 = pneg %p127
        %p357 = pneg %p124
        %p358 = pneg %p148
        %p359 = pneg %p145
        %p360 = scmp.lt.s32.totalorder %s22, 1
        %s361 = scalar_select %p360, %s22, 1
        %s362 = scalar_lea.vmem %s6, %s361
        %p363 = pneg %p174
        %p364 = pneg %p171
        %p365 = pneg %p195
        %p366 = pneg %p192
        %p367 = pneg %p216
        %p368 = pneg %p213
        %p369 = pneg %p242
        %p370 = pneg %p239
        %p371 = scmp.lt.s32.totalorder %s22, 1
        %s372 = scalar_select %p371, %s22, 1
        %s373 = smul.addr %s372, 8
        %s374 = scalar_lea.vmem %s9, %s373
        %p375 = scmp.lt.s32.totalorder %s22, 1
        %s376 = scalar_select %p375, %s22, 1
        %s377 = smul.addr %s376, 8
        %s378 = scalar_lea.vmem %s0, %s377
        %p379 = scmp.lt.s32.totalorder %s22, 1
        %s380 = scalar_select %p379, %s22, 1
        %s381 = scalar_lea.vmem %s6, %s380
        %p382 = scmp.lt.s32.totalorder %s22, 1
        %s383 = scalar_select %p382, %s22, 1
        %s384 = smul.addr %s383, 8
        %s385 = scalar_lea.vmem %s9, %s384
        %v387 = vld [vmem:[%s378] sm:$0xff]
        %v388 = vld [vmem:[%s1] sm:$0xf]
        %v389 = vld [vmem:[%s1 + $0x4] sm:$0xf]
        %v390 = vld [vmem:[%s1 + $0x8] sm:$0xf]
        %v391 = vld [vmem:[%s1 + $0xc] sm:$0xf]
        %v392 = vld [vmem:[%s2] sm:$0x1]
        %v393 = vpack.c.bf16 %v387, %v387
        %v395 = vperm.slane %v392, 0
        %v401 = vunpack.c.l.b16 %v388
        %v402 = vunpack.c.l.b16 %v389
        %v403 = vunpack.c.l.b16 %v390
        %v404 = vunpack.c.l.b16 %v391
        %v405 = vpack.c.b16 %v402, %v401
        %v406 = vpack.c.b16 %v404, %v403
        %vm409 = vcmask 261120
        %v411 = vsel %vm409, %v393, 0
        %413 = vmatpush.bf16.msra.mxu0 0
        %414 = vmatpush.bf16.msra.mxu0 0
        %415 = vmatpush.bf16.msra.mxu0 0
        %416 = vmatpush.bf16.msra.mxu0 0
        %417 = vmatpush.bf16.msra.mxu0 0
        %418 = vmatpush.bf16.msra.mxu0 0
        %419 = vmatpush.bf16.msra.mxu0 %v406
        %420 = vmatpush.bf16.msra.mxu0 %v405
        %421 = vmatmul.bf16.gmra.mxu0 %v411
        %v422 = vpop.f32.mrf.mxu0
        %v423 = vadd.f32 %v395, %v422
        %v424 = vpop.f32.mrf.mxu0
        %425 = vdwg.mxu0
        %v426 = vld [vmem:[%s5] sm:$0xff]
        %v427 = vld [vmem:[%s381] sm:$0x1]
        %v429 = vperm.slane %v427, 0
        %v431 = vadd.f32 %v426, %v429
        %v432 = vld [vmem:[%s3] sm:$0xf]
        %v433 = vld [vmem:[%s3 + $0x4] sm:$0xf]
        %v434 = vld [vmem:[%s3 + $0x8] sm:$0xf]
        %v435 = vld [vmem:[%s3 + $0xc] sm:$0xf]
        %v436 = vpack.c.bf16 %v423, %v423
        %438 = vrot.lane.b32.xlu0 %v436, 96
        %v439 = vpop.permute.xlu0 %438
        %vm440 = vcmask 64512
        %v442 = vsel %vm440, %v436, 0
        %v445 = vsel %vm440, %v439, 0
        %447 = vmatpush.bf16.xpose.msra.mxu0 0
        %448 = vmatpush.bf16.xpose.msra.mxu0 0
        %449 = vmatpush.bf16.xpose.msra.mxu0 0
        %450 = vmatpush.bf16.xpose.msra.mxu0 0
        %451 = vmatpush.bf16.xpose.msra.mxu0 0
        %452 = vmatpush.bf16.xpose.msra.mxu0 0
        %453 = vmatpush.bf16.xpose.msra.mxu0 0
        %454 = vmatpush.bf16.xpose.msra.mxu0 %v445
        %455 = vmatmul.bf16.gmra.mxu0 %v442
        %v456 = vpop.f32.mrf.mxu0
        %v457 = vadd.f32 0.0, %v456
        %v458 = vpop.f32.mrf.mxu0
        %459 = vdwg.mxu0
        %v460 = vmul.f32 %v457, 0.35355338
        %v461 = vadd.f32 %v460, %v431
        %v462 = vsel %vm440, %v461, -inf
        %463 = vmax.xlane.f32.xlu0 %v462
        %v464 = vpop.xlane.xlu0 %463
        %v465 = vsub.f32 %v461, %v464
        %v466 = vmul.f32 %v465, 1.442695
        %v467 = vpow.pop %v466
        %v468 = vsel %vm440, %v467, 0.0
        %469 = vadd.xlane.f32.xlu0 %v468
        %v470 = vpop.xlane.xlu0 %469
        %v471 = vrcp.pop %v470
        %v472 = vmul.f32 %v467, %v471
        %v473 = vpack.c.bf16 %v472, %v472
        %474 = vrot.lane.b32.xlu0 %v436, 64
        %v475 = vpop.permute.xlu0 %474
        %v477 = vsel %vm440, %v473, 0
        %vm479 = vcmask 1043456
        %v481 = vsel %vm479, %v475, 0
        %483 = vmatpush.bf16.msra.mxu0 0
        %484 = vmatpush.bf16.msra.mxu0 0
        %485 = vmatpush.bf16.msra.mxu0 0
        %486 = vmatpush.bf16.msra.mxu0 0
        %487 = vmatpush.bf16.msra.mxu0 0
        %488 = vmatpush.bf16.msra.mxu0 0
        %489 = vmatpush.bf16.msra.mxu0 0
        %490 = vmatpush.bf16.msra.mxu0 %v481
        %491 = vmatmul.bf16.gmra.mxu0 %v477
        %v492 = vpop.f32.mrf.mxu0
        %v493 = vadd.f32 0.0, %v492
        %v494 = vpop.f32.mrf.mxu0
        %495 = vdwg.mxu0
        %v496 = vpack.c.bf16 %v493, %v493
        %497 = vrot.lane.b32.xlu0 %v436, 120
        %v498 = vpop.permute.xlu0 %497
        %499 = vrot.lane.b32.xlu0 %v436, 88
        %v500 = vpop.permute.xlu0 %499
        %v502 = vsel %vm440, %v498, 0
        %v505 = vsel %vm440, %v500, 0
        %507 = vmatpush.bf16.xpose.msra.mxu0 0
        %508 = vmatpush.bf16.xpose.msra.mxu0 0
        %509 = vmatpush.bf16.xpose.msra.mxu0 0
        %510 = vmatpush.bf16.xpose.msra.mxu0 0
        %511 = vmatpush.bf16.xpose.msra.mxu0 0
        %512 = vmatpush.bf16.xpose.msra.mxu0 0
        %513 = vmatpush.bf16.xpose.msra.mxu0 0
        %514 = vmatpush.bf16.xpose.msra.mxu0 %v505
        %515 = vmatmul.bf16.gmra.mxu0 %v502
        %v516 = vpop.f32.mrf.mxu0
        %v517 = vadd.f32 0.0, %v516
        %v518 = vpop.f32.mrf.mxu0
        %519 = vdwg.mxu0
        %v520 = vmul.f32 %v517, 0.35355338
        %v521 = vadd.f32 %v520, %v431
        %v522 = vsel %vm440, %v521, -inf
        %523 = vmax.xlane.f32.xlu0 %v522
        %v524 = vpop.xlane.xlu0 %523
        %v525 = vsub.f32 %v521, %v524
        %v526 = vmul.f32 %v525, 1.442695
        %v527 = vpow.pop %v526
        %v528 = vsel %vm440, %v527, 0.0
        %529 = vadd.xlane.f32.xlu0 %v528
        %v530 = vpop.xlane.xlu0 %529
        %v531 = vrcp.pop %v530
        %v532 = vmul.f32 %v527, %v531
        %v533 = vpack.c.bf16 %v532, %v532
        %534 = vrot.lane.b32.xlu0 %v436, 56
        %v535 = vpop.permute.xlu0 %534
        %v537 = vsel %vm440, %v533, 0
        %v540 = vsel %vm479, %v535, 0
        %542 = vmatpush.bf16.msra.mxu0 0
        %543 = vmatpush.bf16.msra.mxu0 0
        %544 = vmatpush.bf16.msra.mxu0 0
        %545 = vmatpush.bf16.msra.mxu0 0
        %546 = vmatpush.bf16.msra.mxu0 0
        %547 = vmatpush.bf16.msra.mxu0 0
        %548 = vmatpush.bf16.msra.mxu0 0
        %549 = vmatpush.bf16.msra.mxu0 %v540
        %550 = vmatmul.bf16.gmra.mxu0 %v537
        %v551 = vpop.f32.mrf.mxu0
        %v552 = vadd.f32 0.0, %v551
        %v553 = vpop.f32.mrf.mxu0
        %554 = vdwg.mxu0
        %v555 = vpack.c.bf16 %v552, %v552
        %v557 = vsel %vm440, %v555, 0
        %v560 = vsel %vm479, %v433, 0
        %562 = vmatpush.bf16.msra.mxu0 0
        %563 = vmatpush.bf16.msra.mxu0 0
        %564 = vmatpush.bf16.msra.mxu0 0
        %565 = vmatpush.bf16.msra.mxu0 0
        %566 = vmatpush.bf16.msra.mxu0 0
        %567 = vmatpush.bf16.msra.mxu0 0
        %568 = vmatpush.bf16.msra.mxu0 0
        %569 = vmatpush.bf16.msra.mxu0 %v560
        %570 = vmatmul.bf16.gmra.mxu0 %v557
        %v571 = vpop.f32.mrf.mxu0
        %v572 = vadd.f32 0.0, %v571
        %v573 = vpop.f32.mrf.mxu0
        %574 = vdwg.mxu0
        %v576 = vsel %vm440, %v496, 0
        %v579 = vsel %vm479, %v432, 0
        %581 = vmatpush.bf16.msra.mxu0 0
        %582 = vmatpush.bf16.msra.mxu0 0
        %583 = vmatpush.bf16.msra.mxu0 0
        %584 = vmatpush.bf16.msra.mxu0 0
        %585 = vmatpush.bf16.msra.mxu0 0
        %586 = vmatpush.bf16.msra.mxu0 0
        %587 = vmatpush.bf16.msra.mxu0 0
        %588 = vmatpush.bf16.msra.mxu0 %v579
        %589 = vmatmul.bf16.gmra.mxu0 %v576
        %v590 = vpop.f32.mrf.mxu0
        %v591 = vadd.f32 %v572, %v590
        %v592 = vpop.f32.mrf.mxu0
        %593 = vdwg.mxu0
        %594 = vrot.lane.b32.xlu0 %v436, 112
        %v595 = vpop.permute.xlu0 %594
        %596 = vrot.lane.b32.xlu0 %v436, 80
        %v597 = vpop.permute.xlu0 %596
        %v599 = vsel %vm440, %v595, 0
        %v602 = vsel %vm440, %v597, 0
        %604 = vmatpush.bf16.xpose.msra.mxu0 0
        %605 = vmatpush.bf16.xpose.msra.mxu0 0
        %606 = vmatpush.bf16.xpose.msra.mxu0 0
        %607 = vmatpush.bf16.xpose.msra.mxu0 0
        %608 = vmatpush.bf16.xpose.msra.mxu0 0
        %609 = vmatpush.bf16.xpose.msra.mxu0 0
        %610 = vmatpush.bf16.xpose.msra.mxu0 0
        %611 = vmatpush.bf16.xpose.msra.mxu0 %v602
        %612 = vmatmul.bf16.gmra.mxu0 %v599
        %v613 = vpop.f32.mrf.mxu0
        %v614 = vadd.f32 0.0, %v613
        %v615 = vpop.f32.mrf.mxu0
        %616 = vdwg.mxu0
        %v617 = vmul.f32 %v614, 0.35355338
        %v618 = vadd.f32 %v617, %v431
        %v619 = vsel %vm440, %v618, -inf
        %620 = vmax.xlane.f32.xlu0 %v619
        %v621 = vpop.xlane.xlu0 %620
        %v622 = vsub.f32 %v618, %v621
        %v623 = vmul.f32 %v622, 1.442695
        %v624 = vpow.pop %v623
        %v625 = vsel %vm440, %v624, 0.0
        %626 = vadd.xlane.f32.xlu0 %v625
        %v627 = vpop.xlane.xlu0 %626
        %v628 = vrcp.pop %v627
        %v629 = vmul.f32 %v624, %v628
        %v630 = vpack.c.bf16 %v629, %v629
        %631 = vrot.lane.b32.xlu0 %v436, 48
        %v632 = vpop.permute.xlu0 %631
        %v634 = vsel %vm440, %v630, 0
        %v637 = vsel %vm479, %v632, 0
        %639 = vmatpush.bf16.msra.mxu0 0
        %640 = vmatpush.bf16.msra.mxu0 0
        %641 = vmatpush.bf16.msra.mxu0 0
        %642 = vmatpush.bf16.msra.mxu0 0
        %643 = vmatpush.bf16.msra.mxu0 0
        %644 = vmatpush.bf16.msra.mxu0 0
        %645 = vmatpush.bf16.msra.mxu0 0
        %646 = vmatpush.bf16.msra.mxu0 %v637
        %647 = vmatmul.bf16.gmra.mxu0 %v634
        %v648 = vpop.f32.mrf.mxu0
        %v649 = vadd.f32 0.0, %v648
        %v650 = vpop.f32.mrf.mxu0
        %651 = vdwg.mxu0
        %v652 = vpack.c.bf16 %v649, %v649
        %v654 = vsel %vm440, %v652, 0
        %v657 = vsel %vm479, %v434, 0
        %659 = vmatpush.bf16.msra.mxu0 0
        %660 = vmatpush.bf16.msra.mxu0 0
        %661 = vmatpush.bf16.msra.mxu0 0
        %662 = vmatpush.bf16.msra.mxu0 0
        %663 = vmatpush.bf16.msra.mxu0 0
        %664 = vmatpush.bf16.msra.mxu0 0
        %665 = vmatpush.bf16.msra.mxu0 0
        %666 = vmatpush.bf16.msra.mxu0 %v657
        %667 = vmatmul.bf16.gmra.mxu0 %v654
        %v668 = vpop.f32.mrf.mxu0
        %v669 = vadd.f32 0.0, %v668
        %v670 = vpop.f32.mrf.mxu0
        %671 = vdwg.mxu0
        %v672 = vadd.f32 %v591, %v669
        %673 = vrot.lane.b32.xlu0 %v436, 104
        %v674 = vpop.permute.xlu0 %673
        %675 = vrot.lane.b32.xlu0 %v436, 72
        %v676 = vpop.permute.xlu0 %675
        %v678 = vsel %vm440, %v674, 0
        %v681 = vsel %vm440, %v676, 0
        %683 = vmatpush.bf16.xpose.msra.mxu0 0
        %684 = vmatpush.bf16.xpose.msra.mxu0 0
        %685 = vmatpush.bf16.xpose.msra.mxu0 0
        %686 = vmatpush.bf16.xpose.msra.mxu0 0
        %687 = vmatpush.bf16.xpose.msra.mxu0 0
        %688 = vmatpush.bf16.xpose.msra.mxu0 0
        %689 = vmatpush.bf16.xpose.msra.mxu0 0
        %690 = vmatpush.bf16.xpose.msra.mxu0 %v681
        %691 = vmatmul.bf16.gmra.mxu0 %v678
        %v692 = vpop.f32.mrf.mxu0
        %v693 = vadd.f32 0.0, %v692
        %v694 = vpop.f32.mrf.mxu0
        %695 = vdwg.mxu0
        %v696 = vmul.f32 %v693, 0.35355338
        %v697 = vadd.f32 %v696, %v431
        %v698 = vsel %vm440, %v697, -inf
        %699 = vmax.xlane.f32.xlu0 %v698
        %v700 = vpop.xlane.xlu0 %699
        %v701 = vsub.f32 %v697, %v700
        %v702 = vmul.f32 %v701, 1.442695
        %v703 = vpow.pop %v702
        %v704 = vsel %vm440, %v703, 0.0
        %705 = vadd.xlane.f32.xlu0 %v704
        %v706 = vpop.xlane.xlu0 %705
        %v707 = vrcp.pop %v706
        %v708 = vmul.f32 %v703, %v707
        %v709 = vpack.c.bf16 %v708, %v708
        %710 = vrot.lane.b32.xlu0 %v436, 40
        %v711 = vpop.permute.xlu0 %710
        %v713 = vsel %vm440, %v709, 0
        %v716 = vsel %vm479, %v711, 0
        %718 = vmatpush.bf16.msra.mxu0 0
        %719 = vmatpush.bf16.msra.mxu0 0
        %720 = vmatpush.bf16.msra.mxu0 0
        %721 = vmatpush.bf16.msra.mxu0 0
        %722 = vmatpush.bf16.msra.mxu0 0
        %723 = vmatpush.bf16.msra.mxu0 0
        %724 = vmatpush.bf16.msra.mxu0 0
        %725 = vmatpush.bf16.msra.mxu0 %v716
        %726 = vmatmul.bf16.gmra.mxu0 %v713
        %v727 = vpop.f32.mrf.mxu0
        %v728 = vadd.f32 0.0, %v727
        %v729 = vpop.f32.mrf.mxu0
        %730 = vdwg.mxu0
        %v731 = vpack.c.bf16 %v728, %v728
        %v733 = vsel %vm440, %v731, 0
        %v736 = vsel %vm479, %v435, 0
        %738 = vmatpush.bf16.msra.mxu0 0
        %739 = vmatpush.bf16.msra.mxu0 0
        %740 = vmatpush.bf16.msra.mxu0 0
        %741 = vmatpush.bf16.msra.mxu0 0
        %742 = vmatpush.bf16.msra.mxu0 0
        %743 = vmatpush.bf16.msra.mxu0 0
        %744 = vmatpush.bf16.msra.mxu0 0
        %745 = vmatpush.bf16.msra.mxu0 %v736
        %746 = vmatmul.bf16.gmra.mxu0 %v733
        %v747 = vpop.f32.mrf.mxu0
        %v748 = vadd.f32 0.0, %v747
        %v749 = vpop.f32.mrf.mxu0
        %750 = vdwg.mxu0
        %v751 = vadd.f32 %v672, %v748
        %v752 = vld [vmem:[#allocation2] sm:$0x1]
        %v754 = vperm.slane %v752, 0
        %v756 = vadd.f32 %v751, %v754
        %v757 = vadd.f32 %v387, %v756
        %v758 = vsel %vm409, %v757, 0.0
        %759 = vadd.xlane.f32.xlu0 %v758
        %v760 = vpop.xlane.xlu0 %759
        %v761 = vrcp.pop 32.0
        %v762 = vmul.f32 32.0, %v761
        %v763 = vsub.f32 1.0, %v762
        %v764 = vmul.f32 %v761, %v763
        %v765 = vadd.f32 %v761, %v764
        %vm766 = vweird.f32 %v761
        %v767 = vsel %vm766, %v761, %v765
        %v768 = vmul.f32 %v760, %v767
        %v769 = vsub.f32 %v757, %v768
        %v770 = vmul.f32 %v769, %v769
        %v771 = vsel %vm409, %v770, 0.0
        %772 = vadd.xlane.f32.xlu0 %v771
        %v773 = vpop.xlane.xlu0 %772
        %v774 = vmul.f32 %v773, %v767
        %v775 = vadd.f32 %v774, 1e-05
        %v776 = vrsqrt.pop %v775
        %v777 = vmul.f32 %v776, %v775
        %v778 = vmul.f32 %v777, %v776
        %v779 = vmul.f32 0.5, %v778
        %v780 = vsub.f32 1.5, %v779
        %v781 = vmul.f32 %v776, %v780
        %vm782 = vweird.f32 %v775
        %vm783 = vweird.f32 %v776
        %vm784 = vmor %vm782, %vm783
        %v785 = vsel %vm784, %v776, %v781
        %v786 = vmul.f32 %v769, %v785
        %v787 = vld [vmem:[#allocation4] sm:$0x1]
        %v789 = vperm.slane %v787, 0
        %v791 = vmul.f32 %v786, %v789
        %v792 = vld [vmem:[#allocation6] sm:$0x1]
        %v794 = vperm.slane %v792, 0
        %v796 = vadd.f32 %v791, %v794
        %797 = vst.msk [vmem:[%s385] sm:$0xff] %vm409, %v796
        %p798 = scmp.lt.s32.totalorder %s22, 1
        %s799 = scalar_select %p798, %s22, 1
        %s800 = smul.addr %s799, 8
        %s801 = scalar_lea.vmem %s9, %s800
        // Predicated region
        $region69: #{vanila_transformer_forward.15} parent=55 // pred_check
          %p802 = pneg %p239
        $region70: #{vanila_transformer_forward.15} parent=55 // pred_check_branch
          %804 = sbr.rel (%p802) target = $region72
        $region71: #{vanila_transformer_forward.15} parent=55 // pred_region
          _
        $region72: #{vanila_transformer_forward.15} parent=55 // pred_fallthru
          _
      $region56: #{vanila_transformer_forward.15} parent=5 // pred_fallthru
        _
      %p805 = scmp.le.s32.totalorder 2, %s17
      // Predicated region
      $region73: #{vanila_transformer_forward.15} parent=5 // pred_check
        %p806 = pneg %p805
      $region74: #{vanila_transformer_forward.15} parent=5 // pred_check_branch
        %808 = sbr.rel (%p806) target = $region76
      $region75: #{vanila_transformer_forward.15} parent=5 // pred_region
        %s809 = ssub.s32 %s17, 2
        // Predicated region
        $region77: #{vanila_transformer_forward.15} parent=75 // pred_check
          %p810 = pneg %p245
        $region78: #{vanila_transformer_forward.15} parent=75 // pred_check_branch
          %812 = sbr.rel (%p810) target = $region80
        $region79: #{vanila_transformer_forward.15} parent=75 // pred_region
          %p813 = scmp.lt.s32.totalorder %s23, 1
          %s814 = scalar_select %p813, %s23, 1
          %s815 = smul.addr %s814, 8
          %s816 = scalar_lea.vmem %s9, %s815
        $region80: #{vanila_transformer_forward.15} parent=75 // pred_fallthru
          _
      $region76: #{vanila_transformer_forward.15} parent=5 // pred_fallthru
        _
    $region6: #{vanila_transformer_forward.15} parent=1 // loop_footer
      %s21 = sadd.s32 1, %s17
    $region7: #{vanila_transformer_forward.15} parent=1 // loop_footer_branch
      %16 = sbr.rel target = $region3
    $region8: #{vanila_transformer_forward.15} parent=1 // loop_exit
      _
    %817 = vsyncpa [#allocation3], 1
    %s818 = scalar_lea.sflag [#allocation3], 1
    %819 = vsyncpa %s818, 1
    %820 = vsyncpa [#allocation5], 1

// kernel: vanila_transformer_forward.11
$region0: #{vanila_transformer_forward.11}
  #allocation0 [shape = 'u32[]', space=smem, size = 0x4, offset = 0x4, fixed_abs, tag = 'smem constant byte address 0x4 - core index']
  #allocation1 [shape = 'u32[72,128]{1,0:T(1,128)}', space=vmem, size = 0x9000, scoped, tag = 'internal scratch']
  %s0 = inlined_call_operand.vmem [shape: f32[2,8,32], index: 0, kind: input, shape index: {}]
  %s1 = inlined_call_operand.vmem [shape: bf16[32,96], index: 1, kind: input, shape index: {}]
  %s2 = inlined_call_operand.vmem [shape: f32[1,96], index: 2, kind: input, shape index: {}]
  %s3 = inlined_call_operand.vmem [shape: bf16[32,32], index: 3, kind: input, shape index: {}]
  %s4 = inlined_call_operand.vmem [shape: f32[1,32], index: 4, kind: input, shape index: {}]
  %s5 = inlined_call_operand.vmem [shape: f32[8,8], index: 5, kind: input, shape index: {}]
  %s6 = inlined_call_operand.vmem [shape: f32[2,1,8], index: 6, kind: input, shape index: {}]
  %s7 = inlined_call_operand.vmem [shape: f32[1,32], index: 7, kind: input, shape index: {}]
  %s8 = inlined_call_operand.vmem [shape: f32[1,32], index: 8, kind: input, shape index: {}]
  %s9 = inlined_call_operand.vmem [shape: f32[2,8,32], index: 9, kind: output, shape index: {}]
  %s10 = sld [smem:[#allocation0]]
  $region69: #{vanila_transformer_forward.11} parent=0
    _
  %s12 = ssub.s32 1, %s10
  %s13 = scalar_select 0, %s12, %s10
  loop: start=0, step=1, limit=4
  $region2: #{vanila_transformer_forward.11} parent=0 // loop_pre_header
    _
  $region3: #{vanila_transformer_forward.11} parent=0 // loop_header
    %s15 = sphi 0, %s19
    %p16 = scmp.ge.s32.totalorder %s15, 4
    %s25 = sphi 0, %s27
    %s28 = sphi 0, %s25
    %s29 = sphi 0, %s28
    %s45 = sphi 0, %s29
    %s49 = sphi 0, %s49
    %s51 = sphi 0, %s49
    %s52 = sphi 0, %s51
    %s66 = sphi 0, %s52
    %s70 = sphi 0, %s70
    %s72 = sphi 0, %s70
    %s73 = sphi 0, %s72
    %s87 = sphi 0, %s73
    %s91 = sphi 0, %s91
    %s93 = sphi 0, %s91
    %s94 = sphi 0, %s93
    %s108 = sphi 0, %s94
    %s112 = sphi 0, %s112
    %s114 = sphi 0, %s112
    %s115 = sphi 0, %s114
    %s129 = sphi 0, %s115
    %s133 = sphi 0, %s133
    %s135 = sphi 0, %s133
    %s136 = sphi 0, %s135
    %s150 = sphi 0, %s136
    %s156 = sphi 0, %s158
    %s159 = sphi 0, %s156
    %s160 = sphi 0, %s159
    %s176 = sphi 0, %s160
    %s180 = sphi 0, %s180
    %s182 = sphi 0, %s180
    %s183 = sphi 0, %s182
    %s197 = sphi 0, %s183
    %s201 = sphi 0, %s201
    %s203 = sphi 0, %s201
    %s204 = sphi 0, %s203
    %s218 = sphi 0, %s204
    %s224 = sphi 0, %s226
    %s227 = sphi 0, %s224
    %s228 = sphi 0, %s227
    %s244 = sphi 0, %s228
  $region4: #{vanila_transformer_forward.11} parent=0 // loop_header_branch
    %18 = sbr.rel (%p16) target = $region8
  $region5: #{vanila_transformer_forward.11} parent=0 // loop_body
    %s20 = ssub.s32 %s15, 1
    %s21 = ssub.s32 %s15, 2
    %s22 = sadd.s32 %s15, 1
    %s23 = ssub.s32 %s15, %s22
    %p24 = scmp.eq.s32.totalorder %s23, 0
    %s26 = sadd.s32 %s25, 1
    %s27 = scalar_select %p24, %s25, %s26
    %p30 = pneg %p24
    %p31 = scmp.eq.s32.totalorder %s15, 1
    %p32 = por %p30, %p31
    %p33 = scmp.ne.s32.totalorder %s25, %s28
    %p34 = scmp.eq.s32.totalorder %s15, 0
    %p35 = por %p33, %p34
    %p36 = scmp.ne.s32.totalorder %s25, %s28
    %p37 = scmp.eq.s32.totalorder %s20, 1
    %p38 = por %p36, %p37
    %p39 = scmp.ne.s32.totalorder %s28, %s29
    %p40 = scmp.eq.s32.totalorder %s20, 0
    %p41 = por %p39, %p40
    %p42 = scmp.ne.s32.totalorder %s28, %s29
    %p43 = scmp.eq.s32.totalorder %s21, 1
    %p44 = por %p42, %p43
    %p46 = scmp.ne.s32.totalorder %s29, %s45
    %p47 = scmp.eq.s32.totalorder %s21, 0
    %p48 = por %p46, %p47
    %s50 = sadd.s32 %s49, 1
    %p53 = scmp.eq.s32.totalorder %s15, 1
    %p54 = scmp.ne.s32.totalorder %s49, %s51
    %p55 = scmp.eq.s32.totalorder %s15, 0
    %p56 = por %p54, %p55
    %p57 = scmp.ne.s32.totalorder %s49, %s51
    %p58 = scmp.eq.s32.totalorder %s20, 1
    %p59 = por %p57, %p58
    %p60 = scmp.ne.s32.totalorder %s51, %s52
    %p61 = scmp.eq.s32.totalorder %s20, 0
    %p62 = por %p60, %p61
    %p63 = scmp.ne.s32.totalorder %s51, %s52
    %p64 = scmp.eq.s32.totalorder %s21, 1
    %p65 = por %p63, %p64
    %p67 = scmp.ne.s32.totalorder %s52, %s66
    %p68 = scmp.eq.s32.totalorder %s21, 0
    %p69 = por %p67, %p68
    %s71 = sadd.s32 %s70, 1
    %p74 = scmp.eq.s32.totalorder %s15, 1
    %p75 = scmp.ne.s32.totalorder %s70, %s72
    %p76 = scmp.eq.s32.totalorder %s15, 0
    %p77 = por %p75, %p76
    %p78 = scmp.ne.s32.totalorder %s70, %s72
    %p79 = scmp.eq.s32.totalorder %s20, 1
    %p80 = por %p78, %p79
    %p81 = scmp.ne.s32.totalorder %s72, %s73
    %p82 = scmp.eq.s32.totalorder %s20, 0
    %p83 = por %p81, %p82
    %p84 = scmp.ne.s32.totalorder %s72, %s73
    %p85 = scmp.eq.s32.totalorder %s21, 1
    %p86 = por %p84, %p85
    %p88 = scmp.ne.s32.totalorder %s73, %s87
    %p89 = scmp.eq.s32.totalorder %s21, 0
    %p90 = por %p88, %p89
    %s92 = sadd.s32 %s91, 1
    %p95 = scmp.eq.s32.totalorder %s15, 1
    %p96 = scmp.ne.s32.totalorder %s91, %s93
    %p97 = scmp.eq.s32.totalorder %s15, 0
    %p98 = por %p96, %p97
    %p99 = scmp.ne.s32.totalorder %s91, %s93
    %p100 = scmp.eq.s32.totalorder %s20, 1
    %p101 = por %p99, %p100
    %p102 = scmp.ne.s32.totalorder %s93, %s94
    %p103 = scmp.eq.s32.totalorder %s20, 0
    %p104 = por %p102, %p103
    %p105 = scmp.ne.s32.totalorder %s93, %s94
    %p106 = scmp.eq.s32.totalorder %s21, 1
    %p107 = por %p105, %p106
    %p109 = scmp.ne.s32.totalorder %s94, %s108
    %p110 = scmp.eq.s32.totalorder %s21, 0
    %p111 = por %p109, %p110
    %s113 = sadd.s32 %s112, 1
    %p116 = scmp.eq.s32.totalorder %s15, 1
    %p117 = scmp.ne.s32.totalorder %s112, %s114
    %p118 = scmp.eq.s32.totalorder %s15, 0
    %p119 = por %p117, %p118
    %p120 = scmp.ne.s32.totalorder %s112, %s114
    %p121 = scmp.eq.s32.totalorder %s20, 1
    %p122 = por %p120, %p121
    %p123 = scmp.ne.s32.totalorder %s114, %s115
    %p124 = scmp.eq.s32.totalorder %s20, 0
    %p125 = por %p123, %p124
    %p126 = scmp.ne.s32.totalorder %s114, %s115
    %p127 = scmp.eq.s32.totalorder %s21, 1
    %p128 = por %p126, %p127
    %p130 = scmp.ne.s32.totalorder %s115, %s129
    %p131 = scmp.eq.s32.totalorder %s21, 0
    %p132 = por %p130, %p131
    %s134 = sadd.s32 %s133, 1
    %p137 = scmp.eq.s32.totalorder %s15, 1
    %p138 = scmp.ne.s32.totalorder %s133, %s135
    %p139 = scmp.eq.s32.totalorder %s15, 0
    %p140 = por %p138, %p139
    %p141 = scmp.ne.s32.totalorder %s133, %s135
    %p142 = scmp.eq.s32.totalorder %s20, 1
    %p143 = por %p141, %p142
    %p144 = scmp.ne.s32.totalorder %s135, %s136
    %p145 = scmp.eq.s32.totalorder %s20, 0
    %p146 = por %p144, %p145
    %p147 = scmp.ne.s32.totalorder %s135, %s136
    %p148 = scmp.eq.s32.totalorder %s21, 1
    %p149 = por %p147, %p148
    %p151 = scmp.ne.s32.totalorder %s136, %s150
    %p152 = scmp.eq.s32.totalorder %s21, 0
    %p153 = por %p151, %p152
    %s154 = ssub.s32 %s15, %s22
    %p155 = scmp.eq.s32.totalorder %s154, 0
    %s157 = sadd.s32 %s156, 1
    %s158 = scalar_select %p155, %s156, %s157
    %p161 = pneg %p155
    %p162 = scmp.eq.s32.totalorder %s15, 1
    %p163 = por %p161, %p162
    %p164 = scmp.ne.s32.totalorder %s156, %s159
    %p165 = scmp.eq.s32.totalorder %s15, 0
    %p166 = por %p164, %p165
    %p167 = scmp.ne.s32.totalorder %s156, %s159
    %p168 = scmp.eq.s32.totalorder %s20, 1
    %p169 = por %p167, %p168
    %p170 = scmp.ne.s32.totalorder %s159, %s160
    %p171 = scmp.eq.s32.totalorder %s20, 0
    %p172 = por %p170, %p171
    %p173 = scmp.ne.s32.totalorder %s159, %s160
    %p174 = scmp.eq.s32.totalorder %s21, 1
    %p175 = por %p173, %p174
    %p177 = scmp.ne.s32.totalorder %s160, %s176
    %p178 = scmp.eq.s32.totalorder %s21, 0
    %p179 = por %p177, %p178
    %s181 = sadd.s32 %s180, 1
    %p184 = scmp.eq.s32.totalorder %s15, 1
    %p185 = scmp.ne.s32.totalorder %s180, %s182
    %p186 = scmp.eq.s32.totalorder %s15, 0
    %p187 = por %p185, %p186
    %p188 = scmp.ne.s32.totalorder %s180, %s182
    %p189 = scmp.eq.s32.totalorder %s20, 1
    %p190 = por %p188, %p189
    %p191 = scmp.ne.s32.totalorder %s182, %s183
    %p192 = scmp.eq.s32.totalorder %s20, 0
    %p193 = por %p191, %p192
    %p194 = scmp.ne.s32.totalorder %s182, %s183
    %p195 = scmp.eq.s32.totalorder %s21, 1
    %p196 = por %p194, %p195
    %p198 = scmp.ne.s32.totalorder %s183, %s197
    %p199 = scmp.eq.s32.totalorder %s21, 0
    %p200 = por %p198, %p199
    %s202 = sadd.s32 %s201, 1
    %p205 = scmp.eq.s32.totalorder %s15, 1
    %p206 = scmp.ne.s32.totalorder %s201, %s203
    %p207 = scmp.eq.s32.totalorder %s15, 0
    %p208 = por %p206, %p207
    %p209 = scmp.ne.s32.totalorder %s201, %s203
    %p210 = scmp.eq.s32.totalorder %s20, 1
    %p211 = por %p209, %p210
    %p212 = scmp.ne.s32.totalorder %s203, %s204
    %p213 = scmp.eq.s32.totalorder %s20, 0
    %p214 = por %p212, %p213
    %p215 = scmp.ne.s32.totalorder %s203, %s204
    %p216 = scmp.eq.s32.totalorder %s21, 1
    %p217 = por %p215, %p216
    %p219 = scmp.ne.s32.totalorder %s204, %s218
    %p220 = scmp.eq.s32.totalorder %s21, 0
    %p221 = por %p219, %p220
    %s222 = ssub.s32 %s15, %s22
    %p223 = scmp.eq.s32.totalorder %s222, 0
    %s225 = sadd.s32 %s224, 1
    %s226 = scalar_select %p223, %s224, %s225
    %p229 = pneg %p223
    %p230 = scmp.eq.s32.totalorder %s15, 1
    %p231 = por %p229, %p230
    %p232 = scmp.ne.s32.totalorder %s224, %s227
    %p233 = scmp.eq.s32.totalorder %s15, 0
    %p234 = por %p232, %p233
    %p235 = scmp.ne.s32.totalorder %s224, %s227
    %p236 = scmp.eq.s32.totalorder %s20, 1
    %p237 = por %p235, %p236
    %p238 = scmp.ne.s32.totalorder %s227, %s228
    %p239 = scmp.eq.s32.totalorder %s20, 0
    %p240 = por %p238, %p239
    %p241 = scmp.ne.s32.totalorder %s227, %s228
    %p242 = scmp.eq.s32.totalorder %s21, 1
    %p243 = por %p241, %p242
    %p245 = scmp.ne.s32.totalorder %s228, %s244
    %p246 = scmp.eq.s32.totalorder %s21, 0
    %p247 = por %p245, %p246
    %p248 = scmp.le.s32.totalorder 1, %s15
    %p249 = scmp.lt.s32.totalorder %s15, 3
    %p250 = pnand %p248, %p249
    %p251 = pneg %p250
    // Predicated region
    $region9: #{vanila_transformer_forward.11} parent=5 // pred_check
      _
    $region10: #{vanila_transformer_forward.11} parent=5 // pred_check_branch
      %253 = sbr.rel (%p250) target = $region12
    $region11: #{vanila_transformer_forward.11} parent=5 // pred_region
      %s254 = ssub.s32 %s15, 1
      // Predicated region
      $region13: #{vanila_transformer_forward.11} parent=11 // pred_check
        %p255 = pneg %p62
      $region14: #{vanila_transformer_forward.11} parent=11 // pred_check_branch
        %257 = sbr.rel (%p255) target = $region16
      $region15: #{vanila_transformer_forward.11} parent=11 // pred_region
        _
      $region16: #{vanila_transformer_forward.11} parent=11 // pred_fallthru
        _
      // Predicated region
      $region17: #{vanila_transformer_forward.11} parent=11 // pred_check
        %p258 = pneg %p83
      $region18: #{vanila_transformer_forward.11} parent=11 // pred_check_branch
        %260 = sbr.rel (%p258) target = $region20
      $region19: #{vanila_transformer_forward.11} parent=11 // pred_region
        _
      $region20: #{vanila_transformer_forward.11} parent=11 // pred_fallthru
        _
      // Predicated region
      $region21: #{vanila_transformer_forward.11} parent=11 // pred_check
        %p261 = pneg %p104
      $region22: #{vanila_transformer_forward.11} parent=11 // pred_check_branch
        %263 = sbr.rel (%p261) target = $region24
      $region23: #{vanila_transformer_forward.11} parent=11 // pred_region
        _
      $region24: #{vanila_transformer_forward.11} parent=11 // pred_fallthru
        _
      // Predicated region
      $region25: #{vanila_transformer_forward.11} parent=11 // pred_check
        %p264 = pneg %p125
      $region26: #{vanila_transformer_forward.11} parent=11 // pred_check_branch
        %266 = sbr.rel (%p264) target = $region28
      $region27: #{vanila_transformer_forward.11} parent=11 // pred_region
        _
      $region28: #{vanila_transformer_forward.11} parent=11 // pred_fallthru
        _
      // Predicated region
      $region29: #{vanila_transformer_forward.11} parent=11 // pred_check
        %p267 = pneg %p146
      $region30: #{vanila_transformer_forward.11} parent=11 // pred_check_branch
        %269 = sbr.rel (%p267) target = $region32
      $region31: #{vanila_transformer_forward.11} parent=11 // pred_region
        _
      $region32: #{vanila_transformer_forward.11} parent=11 // pred_fallthru
        _
      // Predicated region
      $region33: #{vanila_transformer_forward.11} parent=11 // pred_check
        %p270 = pneg %p193
      $region34: #{vanila_transformer_forward.11} parent=11 // pred_check_branch
        %272 = sbr.rel (%p270) target = $region36
      $region35: #{vanila_transformer_forward.11} parent=11 // pred_region
        _
      $region36: #{vanila_transformer_forward.11} parent=11 // pred_fallthru
        _
      // Predicated region
      $region37: #{vanila_transformer_forward.11} parent=11 // pred_check
        %p273 = pneg %p214
      $region38: #{vanila_transformer_forward.11} parent=11 // pred_check_branch
        %275 = sbr.rel (%p273) target = $region40
      $region39: #{vanila_transformer_forward.11} parent=11 // pred_region
        _
      $region40: #{vanila_transformer_forward.11} parent=11 // pred_fallthru
        _
    $region12: #{vanila_transformer_forward.11} parent=5 // pred_fallthru
      _
    %p276 = scmp.lt.s32.totalorder %s15, 2
    // Predicated region
    $region41: #{vanila_transformer_forward.11} parent=5 // pred_check
      %p277 = pneg %p276
    $region42: #{vanila_transformer_forward.11} parent=5 // pred_check_branch
      %279 = sbr.rel (%p277) target = $region44
    $region43: #{vanila_transformer_forward.11} parent=5 // pred_region
      // Predicated region
      $region45: #{vanila_transformer_forward.11} parent=43 // pred_check
        %p280 = pneg %p35
      $region46: #{vanila_transformer_forward.11} parent=43 // pred_check_branch
        %282 = sbr.rel (%p280) target = $region48
      $region47: #{vanila_transformer_forward.11} parent=43 // pred_region
        %p283 = scmp.lt.s32.totalorder %s15, 1
        %s284 = scalar_select %p283, %s15, 1
        %s285 = smul.addr %s284, 8
        %s286 = scalar_lea.vmem %s0, %s285
      $region48: #{vanila_transformer_forward.11} parent=43 // pred_fallthru
        _
      // Predicated region
      $region49: #{vanila_transformer_forward.11} parent=43 // pred_check
        %p287 = pneg %p166
      $region50: #{vanila_transformer_forward.11} parent=43 // pred_check_branch
        %289 = sbr.rel (%p287) target = $region52
      $region51: #{vanila_transformer_forward.11} parent=43 // pred_region
        %p290 = scmp.lt.s32.totalorder %s15, 1
        %s291 = scalar_select %p290, %s15, 1
        %s292 = scalar_lea.vmem %s6, %s291
      $region52: #{vanila_transformer_forward.11} parent=43 // pred_fallthru
        _
    $region44: #{vanila_transformer_forward.11} parent=5 // pred_fallthru
      _
    %p293 = scmp.le.s32.totalorder 1, %s15
    %p294 = scmp.lt.s32.totalorder %s15, 3
    %p295 = pnand %p293, %p294
    %p296 = pneg %p295
    // Predicated region
    $region53: #{vanila_transformer_forward.11} parent=5 // pred_check
      _
    $region54: #{vanila_transformer_forward.11} parent=5 // pred_check_branch
      %298 = sbr.rel (%p295) target = $region56
    $region55: #{vanila_transformer_forward.11} parent=5 // pred_region
      %s299 = ssub.s32 %s15, 1
      %p300 = scmp.lt.s32.totalorder %s20, 1
      %s301 = scalar_select %p300, %s20, 1
      %s302 = smul.addr %s301, 8
      %s303 = scalar_lea.vmem %s0, %s302
      %p304 = pneg %p41
      %p305 = pneg %p38
      %p306 = pneg %p62
      %p307 = pneg %p59
      %p308 = pneg %p83
      %p309 = pneg %p80
      %p310 = pneg %p104
      %p311 = pneg %p101
      %p312 = pneg %p125
      %p313 = pneg %p122
      %p314 = pneg %p146
      %p315 = pneg %p143
      %p316 = scmp.lt.s32.totalorder %s20, 1
      %s317 = scalar_select %p316, %s20, 1
      %s318 = scalar_lea.vmem %s6, %s317
      %p319 = pneg %p172
      %p320 = pneg %p169
      %p321 = pneg %p193
      %p322 = pneg %p190
      %p323 = pneg %p214
      %p324 = pneg %p211
      %p325 = pneg %p240
      %p326 = pneg %p237
      %p327 = scmp.lt.s32.totalorder %s20, 1
      %s328 = scalar_select %p327, %s20, 1
      %s329 = smul.addr %s328, 8
      %s330 = scalar_lea.vmem %s9, %s329
      %p331 = scmp.lt.s32.totalorder %s20, 1
      %s332 = scalar_select %p331, %s20, 1
      %s333 = smul.addr %s332, 8
      %s334 = scalar_lea.vmem %s0, %s333
      %p335 = scmp.lt.s32.totalorder %s20, 1
      %s336 = scalar_select %p335, %s20, 1
      %s337 = scalar_lea.vmem %s6, %s336
      %p338 = scmp.lt.s32.totalorder %s20, 1
      %s339 = scalar_select %p338, %s20, 1
      %s340 = smul.addr %s339, 8
      %s341 = scalar_lea.vmem %s9, %s340
      %v343 = vld [vmem:[%s334] sm:$0xff]
      %v344 = vld [vmem:[%s1] sm:$0xf]
      %v345 = vld [vmem:[%s1 + $0x4] sm:$0xf]
      %v346 = vld [vmem:[%s1 + $0x8] sm:$0xf]
      %v347 = vld [vmem:[%s1 + $0xc] sm:$0xf]
      %v348 = vld [vmem:[%s2] sm:$0x1]
      %v349 = vpack.c.bf16 %v343, %v343
      %v351 = vperm.slane %v348, 0
      %v357 = vunpack.c.l.b16 %v344
      %v358 = vunpack.c.l.b16 %v345
      %v359 = vunpack.c.l.b16 %v346
      %v360 = vunpack.c.l.b16 %v347
      %v361 = vpack.c.b16 %v358, %v357
      %v362 = vpack.c.b16 %v360, %v359
      %vm365 = vcmask 261120
      %v367 = vsel %vm365, %v349, 0
      %369 = vmatpush.bf16.msra.mxu0 0
      %370 = vmatpush.bf16.msra.mxu0 0
      %371 = vmatpush.bf16.msra.mxu0 0
      %372 = vmatpush.bf16.msra.mxu0 0
      %373 = vmatpush.bf16.msra.mxu0 0
      %374 = vmatpush.bf16.msra.mxu0 0
      %375 = vmatpush.bf16.msra.mxu0 %v362
      %376 = vmatpush.bf16.msra.mxu0 %v361
      %377 = vmatmul.bf16.gmra.mxu0 %v367
      %v378 = vpop.f32.mrf.mxu0
      %v379 = vadd.f32 %v351, %v378
      %v380 = vpop.f32.mrf.mxu0
      %381 = vdwg.mxu0
      %v382 = vld [vmem:[%s5] sm:$0xff]
      %v383 = vld [vmem:[%s337] sm:$0x1]
      %v385 = vperm.slane %v383, 0
      %v387 = vadd.f32 %v382, %v385
      %v388 = vld [vmem:[%s3] sm:$0xf]
      %v389 = vld [vmem:[%s3 + $0x4] sm:$0xf]
      %v390 = vld [vmem:[%s3 + $0x8] sm:$0xf]
      %v391 = vld [vmem:[%s3 + $0xc] sm:$0xf]
      %v392 = vpack.c.bf16 %v379, %v379
      %394 = vrot.lane.b32.xlu0 %v392, 96
      %v395 = vpop.permute.xlu0 %394
      %vm396 = vcmask 64512
      %v398 = vsel %vm396, %v392, 0
      %v401 = vsel %vm396, %v395, 0
      %403 = vmatpush.bf16.xpose.msra.mxu0 0
      %404 = vmatpush.bf16.xpose.msra.mxu0 0
      %405 = vmatpush.bf16.xpose.msra.mxu0 0
      %406 = vmatpush.bf16.xpose.msra.mxu0 0
      %407 = vmatpush.bf16.xpose.msra.mxu0 0
      %408 = vmatpush.bf16.xpose.msra.mxu0 0
      %409 = vmatpush.bf16.xpose.msra.mxu0 0
      %410 = vmatpush.bf16.xpose.msra.mxu0 %v401
      %411 = vmatmul.bf16.gmra.mxu0 %v398
      %v412 = vpop.f32.mrf.mxu0
      %v413 = vadd.f32 0.0, %v412
      %v414 = vpop.f32.mrf.mxu0
      %415 = vdwg.mxu0
      %v416 = vmul.f32 %v413, 0.35355338
      %v417 = vadd.f32 %v416, %v387
      %v418 = vsel %vm396, %v417, -inf
      %419 = vmax.xlane.f32.xlu0 %v418
      %v420 = vpop.xlane.xlu0 %419
      %v421 = vsub.f32 %v417, %v420
      %v422 = vmul.f32 %v421, 1.442695
      %v423 = vpow.pop %v422
      %v424 = vsel %vm396, %v423, 0.0
      %425 = vadd.xlane.f32.xlu0 %v424
      %v426 = vpop.xlane.xlu0 %425
      %v427 = vrcp.pop %v426
      %v428 = vmul.f32 %v423, %v427
      %v429 = vpack.c.bf16 %v428, %v428
      %430 = vrot.lane.b32.xlu0 %v392, 64
      %v431 = vpop.permute.xlu0 %430
      %v433 = vsel %vm396, %v429, 0
      %vm435 = vcmask 1043456
      %v437 = vsel %vm435, %v431, 0
      %439 = vmatpush.bf16.msra.mxu0 0
      %440 = vmatpush.bf16.msra.mxu0 0
      %441 = vmatpush.bf16.msra.mxu0 0
      %442 = vmatpush.bf16.msra.mxu0 0
      %443 = vmatpush.bf16.msra.mxu0 0
      %444 = vmatpush.bf16.msra.mxu0 0
      %445 = vmatpush.bf16.msra.mxu0 0
      %446 = vmatpush.bf16.msra.mxu0 %v437
      %447 = vmatmul.bf16.gmra.mxu0 %v433
      %v448 = vpop.f32.mrf.mxu0
      %v449 = vadd.f32 0.0, %v448
      %v450 = vpop.f32.mrf.mxu0
      %451 = vdwg.mxu0
      %v452 = vpack.c.bf16 %v449, %v449
      %453 = vrot.lane.b32.xlu0 %v392, 120
      %v454 = vpop.permute.xlu0 %453
      %455 = vrot.lane.b32.xlu0 %v392, 88
      %v456 = vpop.permute.xlu0 %455
      %v458 = vsel %vm396, %v454, 0
      %v461 = vsel %vm396, %v456, 0
      %463 = vmatpush.bf16.xpose.msra.mxu0 0
      %464 = vmatpush.bf16.xpose.msra.mxu0 0
      %465 = vmatpush.bf16.xpose.msra.mxu0 0
      %466 = vmatpush.bf16.xpose.msra.mxu0 0
      %467 = vmatpush.bf16.xpose.msra.mxu0 0
      %468 = vmatpush.bf16.xpose.msra.mxu0 0
      %469 = vmatpush.bf16.xpose.msra.mxu0 0
      %470 = vmatpush.bf16.xpose.msra.mxu0 %v461
      %471 = vmatmul.bf16.gmra.mxu0 %v458
      %v472 = vpop.f32.mrf.mxu0
      %v473 = vadd.f32 0.0, %v472
      %v474 = vpop.f32.mrf.mxu0
      %475 = vdwg.mxu0
      %v476 = vmul.f32 %v473, 0.35355338
      %v477 = vadd.f32 %v476, %v387
      %v478 = vsel %vm396, %v477, -inf
      %479 = vmax.xlane.f32.xlu0 %v478
      %v480 = vpop.xlane.xlu0 %479
      %v481 = vsub.f32 %v477, %v480
      %v482 = vmul.f32 %v481, 1.442695
      %v483 = vpow.pop %v482
      %v484 = vsel %vm396, %v483, 0.0
      %485 = vadd.xlane.f32.xlu0 %v484
      %v486 = vpop.xlane.xlu0 %485
      %v487 = vrcp.pop %v486
      %v488 = vmul.f32 %v483, %v487
      %v489 = vpack.c.bf16 %v488, %v488
      %490 = vrot.lane.b32.xlu0 %v392, 56
      %v491 = vpop.permute.xlu0 %490
      %v493 = vsel %vm396, %v489, 0
      %v496 = vsel %vm435, %v491, 0
      %498 = vmatpush.bf16.msra.mxu0 0
      %499 = vmatpush.bf16.msra.mxu0 0
      %500 = vmatpush.bf16.msra.mxu0 0
      %501 = vmatpush.bf16.msra.mxu0 0
      %502 = vmatpush.bf16.msra.mxu0 0
      %503 = vmatpush.bf16.msra.mxu0 0
      %504 = vmatpush.bf16.msra.mxu0 0
      %505 = vmatpush.bf16.msra.mxu0 %v496
      %506 = vmatmul.bf16.gmra.mxu0 %v493
      %v507 = vpop.f32.mrf.mxu0
      %v508 = vadd.f32 0.0, %v507
      %v509 = vpop.f32.mrf.mxu0
      %510 = vdwg.mxu0
      %v511 = vpack.c.bf16 %v508, %v508
      %v513 = vsel %vm396, %v511, 0
      %v516 = vsel %vm435, %v389, 0
      %518 = vmatpush.bf16.msra.mxu0 0
      %519 = vmatpush.bf16.msra.mxu0 0
      %520 = vmatpush.bf16.msra.mxu0 0
      %521 = vmatpush.bf16.msra.mxu0 0
      %522 = vmatpush.bf16.msra.mxu0 0
      %523 = vmatpush.bf16.msra.mxu0 0
      %524 = vmatpush.bf16.msra.mxu0 0
      %525 = vmatpush.bf16.msra.mxu0 %v516
      %526 = vmatmul.bf16.gmra.mxu0 %v513
      %v527 = vpop.f32.mrf.mxu0
      %v528 = vadd.f32 0.0, %v527
      %v529 = vpop.f32.mrf.mxu0
      %530 = vdwg.mxu0
      %v532 = vsel %vm396, %v452, 0
      %v535 = vsel %vm435, %v388, 0
      %537 = vmatpush.bf16.msra.mxu0 0
      %538 = vmatpush.bf16.msra.mxu0 0
      %539 = vmatpush.bf16.msra.mxu0 0
      %540 = vmatpush.bf16.msra.mxu0 0
      %541 = vmatpush.bf16.msra.mxu0 0
      %542 = vmatpush.bf16.msra.mxu0 0
      %543 = vmatpush.bf16.msra.mxu0 0
      %544 = vmatpush.bf16.msra.mxu0 %v535
      %545 = vmatmul.bf16.gmra.mxu0 %v532
      %v546 = vpop.f32.mrf.mxu0
      %v547 = vadd.f32 %v528, %v546
      %v548 = vpop.f32.mrf.mxu0
      %549 = vdwg.mxu0
      %550 = vrot.lane.b32.xlu0 %v392, 112
      %v551 = vpop.permute.xlu0 %550
      %552 = vrot.lane.b32.xlu0 %v392, 80
      %v553 = vpop.permute.xlu0 %552
      %v555 = vsel %vm396, %v551, 0
      %v558 = vsel %vm396, %v553, 0
      %560 = vmatpush.bf16.xpose.msra.mxu0 0
      %561 = vmatpush.bf16.xpose.msra.mxu0 0
      %562 = vmatpush.bf16.xpose.msra.mxu0 0
      %563 = vmatpush.bf16.xpose.msra.mxu0 0
      %564 = vmatpush.bf16.xpose.msra.mxu0 0
      %565 = vmatpush.bf16.xpose.msra.mxu0 0
      %566 = vmatpush.bf16.xpose.msra.mxu0 0
      %567 = vmatpush.bf16.xpose.msra.mxu0 %v558
      %568 = vmatmul.bf16.gmra.mxu0 %v555
      %v569 = vpop.f32.mrf.mxu0
      %v570 = vadd.f32 0.0, %v569
      %v571 = vpop.f32.mrf.mxu0
      %572 = vdwg.mxu0
      %v573 = vmul.f32 %v570, 0.35355338
      %v574 = vadd.f32 %v573, %v387
      %v575 = vsel %vm396, %v574, -inf
      %576 = vmax.xlane.f32.xlu0 %v575
      %v577 = vpop.xlane.xlu0 %576
      %v578 = vsub.f32 %v574, %v577
      %v579 = vmul.f32 %v578, 1.442695
      %v580 = vpow.pop %v579
      %v581 = vsel %vm396, %v580, 0.0
      %582 = vadd.xlane.f32.xlu0 %v581
      %v583 = vpop.xlane.xlu0 %582
      %v584 = vrcp.pop %v583
      %v585 = vmul.f32 %v580, %v584
      %v586 = vpack.c.bf16 %v585, %v585
      %587 = vrot.lane.b32.xlu0 %v392, 48
      %v588 = vpop.permute.xlu0 %587
      %v590 = vsel %vm396, %v586, 0
      %v593 = vsel %vm435, %v588, 0
      %595 = vmatpush.bf16.msra.mxu0 0
      %596 = vmatpush.bf16.msra.mxu0 0
      %597 = vmatpush.bf16.msra.mxu0 0
      %598 = vmatpush.bf16.msra.mxu0 0
      %599 = vmatpush.bf16.msra.mxu0 0
      %600 = vmatpush.bf16.msra.mxu0 0
      %601 = vmatpush.bf16.msra.mxu0 0
      %602 = vmatpush.bf16.msra.mxu0 %v593
      %603 = vmatmul.bf16.gmra.mxu0 %v590
      %v604 = vpop.f32.mrf.mxu0
      %v605 = vadd.f32 0.0, %v604
      %v606 = vpop.f32.mrf.mxu0
      %607 = vdwg.mxu0
      %v608 = vpack.c.bf16 %v605, %v605
      %v610 = vsel %vm396, %v608, 0
      %v613 = vsel %vm435, %v390, 0
      %615 = vmatpush.bf16.msra.mxu0 0
      %616 = vmatpush.bf16.msra.mxu0 0
      %617 = vmatpush.bf16.msra.mxu0 0
      %618 = vmatpush.bf16.msra.mxu0 0
      %619 = vmatpush.bf16.msra.mxu0 0
      %620 = vmatpush.bf16.msra.mxu0 0
      %621 = vmatpush.bf16.msra.mxu0 0
      %622 = vmatpush.bf16.msra.mxu0 %v613
      %623 = vmatmul.bf16.gmra.mxu0 %v610
      %v624 = vpop.f32.mrf.mxu0
      %v625 = vadd.f32 0.0, %v624
      %v626 = vpop.f32.mrf.mxu0
      %627 = vdwg.mxu0
      %v628 = vadd.f32 %v547, %v625
      %629 = vrot.lane.b32.xlu0 %v392, 104
      %v630 = vpop.permute.xlu0 %629
      %631 = vrot.lane.b32.xlu0 %v392, 72
      %v632 = vpop.permute.xlu0 %631
      %v634 = vsel %vm396, %v630, 0
      %v637 = vsel %vm396, %v632, 0
      %639 = vmatpush.bf16.xpose.msra.mxu0 0
      %640 = vmatpush.bf16.xpose.msra.mxu0 0
      %641 = vmatpush.bf16.xpose.msra.mxu0 0
      %642 = vmatpush.bf16.xpose.msra.mxu0 0
      %643 = vmatpush.bf16.xpose.msra.mxu0 0
      %644 = vmatpush.bf16.xpose.msra.mxu0 0
      %645 = vmatpush.bf16.xpose.msra.mxu0 0
      %646 = vmatpush.bf16.xpose.msra.mxu0 %v637
      %647 = vmatmul.bf16.gmra.mxu0 %v634
      %v648 = vpop.f32.mrf.mxu0
      %v649 = vadd.f32 0.0, %v648
      %v650 = vpop.f32.mrf.mxu0
      %651 = vdwg.mxu0
      %v652 = vmul.f32 %v649, 0.35355338
      %v653 = vadd.f32 %v652, %v387
      %v654 = vsel %vm396, %v653, -inf
      %655 = vmax.xlane.f32.xlu0 %v654
      %v656 = vpop.xlane.xlu0 %655
      %v657 = vsub.f32 %v653, %v656
      %v658 = vmul.f32 %v657, 1.442695
      %v659 = vpow.pop %v658
      %v660 = vsel %vm396, %v659, 0.0
      %661 = vadd.xlane.f32.xlu0 %v660
      %v662 = vpop.xlane.xlu0 %661
      %v663 = vrcp.pop %v662
      %v664 = vmul.f32 %v659, %v663
      %v665 = vpack.c.bf16 %v664, %v664
      %666 = vrot.lane.b32.xlu0 %v392, 40
      %v667 = vpop.permute.xlu0 %666
      %v669 = vsel %vm396, %v665, 0
      %v672 = vsel %vm435, %v667, 0
      %674 = vmatpush.bf16.msra.mxu0 0
      %675 = vmatpush.bf16.msra.mxu0 0
      %676 = vmatpush.bf16.msra.mxu0 0
      %677 = vmatpush.bf16.msra.mxu0 0
      %678 = vmatpush.bf16.msra.mxu0 0
      %679 = vmatpush.bf16.msra.mxu0 0
      %680 = vmatpush.bf16.msra.mxu0 0
      %681 = vmatpush.bf16.msra.mxu0 %v672
      %682 = vmatmul.bf16.gmra.mxu0 %v669
      %v683 = vpop.f32.mrf.mxu0
      %v684 = vadd.f32 0.0, %v683
      %v685 = vpop.f32.mrf.mxu0
      %686 = vdwg.mxu0
      %v687 = vpack.c.bf16 %v684, %v684
      %v689 = vsel %vm396, %v687, 0
      %v692 = vsel %vm435, %v391, 0
      %694 = vmatpush.bf16.msra.mxu0 0
      %695 = vmatpush.bf16.msra.mxu0 0
      %696 = vmatpush.bf16.msra.mxu0 0
      %697 = vmatpush.bf16.msra.mxu0 0
      %698 = vmatpush.bf16.msra.mxu0 0
      %699 = vmatpush.bf16.msra.mxu0 0
      %700 = vmatpush.bf16.msra.mxu0 0
      %701 = vmatpush.bf16.msra.mxu0 %v692
      %702 = vmatmul.bf16.gmra.mxu0 %v689
      %v703 = vpop.f32.mrf.mxu0
      %v704 = vadd.f32 0.0, %v703
      %v705 = vpop.f32.mrf.mxu0
      %706 = vdwg.mxu0
      %v707 = vadd.f32 %v628, %v704
      %v708 = vld [vmem:[%s4] sm:$0x1]
      %v710 = vperm.slane %v708, 0
      %v712 = vadd.f32 %v707, %v710
      %v713 = vadd.f32 %v343, %v712
      %v714 = vsel %vm365, %v713, 0.0
      %715 = vadd.xlane.f32.xlu0 %v714
      %v716 = vpop.xlane.xlu0 %715
      %v717 = vrcp.pop 32.0
      %v718 = vmul.f32 32.0, %v717
      %v719 = vsub.f32 1.0, %v718
      %v720 = vmul.f32 %v717, %v719
      %v721 = vadd.f32 %v717, %v720
      %vm722 = vweird.f32 %v717
      %v723 = vsel %vm722, %v717, %v721
      %v724 = vmul.f32 %v716, %v723
      %v725 = vsub.f32 %v713, %v724
      %v726 = vmul.f32 %v725, %v725
      %v727 = vsel %vm365, %v726, 0.0
      %728 = vadd.xlane.f32.xlu0 %v727
      %v729 = vpop.xlane.xlu0 %728
      %v730 = vmul.f32 %v729, %v723
      %v731 = vadd.f32 %v730, 1e-05
      %v732 = vrsqrt.pop %v731
      %v733 = vmul.f32 %v732, %v731
      %v734 = vmul.f32 %v733, %v732
      %v735 = vmul.f32 0.5, %v734
      %v736 = vsub.f32 1.5, %v735
      %v737 = vmul.f32 %v732, %v736
      %vm738 = vweird.f32 %v731
      %vm739 = vweird.f32 %v732
      %vm740 = vmor %vm738, %vm739
      %v741 = vsel %vm740, %v732, %v737
      %v742 = vmul.f32 %v725, %v741
      %v743 = vld [vmem:[%s7] sm:$0x1]
      %v745 = vperm.slane %v743, 0
      %v747 = vmul.f32 %v742, %v745
      %v748 = vld [vmem:[%s8] sm:$0x1]
      %v750 = vperm.slane %v748, 0
      %v752 = vadd.f32 %v747, %v750
      %753 = vst.msk [vmem:[%s341] sm:$0xff] %vm365, %v752
      %p754 = scmp.lt.s32.totalorder %s20, 1
      %s755 = scalar_select %p754, %s20, 1
      %s756 = smul.addr %s755, 8
      %s757 = scalar_lea.vmem %s9, %s756
      // Predicated region
      $region57: #{vanila_transformer_forward.11} parent=55 // pred_check
        %p758 = pneg %p237
      $region58: #{vanila_transformer_forward.11} parent=55 // pred_check_branch
        %760 = sbr.rel (%p758) target = $region60
      $region59: #{vanila_transformer_forward.11} parent=55 // pred_region
        _
      $region60: #{vanila_transformer_forward.11} parent=55 // pred_fallthru
        _
    $region56: #{vanila_transformer_forward.11} parent=5 // pred_fallthru
      _
    %p761 = scmp.le.s32.totalorder 2, %s15
    // Predicated region
    $region61: #{vanila_transformer_forward.11} parent=5 // pred_check
      %p762 = pneg %p761
    $region62: #{vanila_transformer_forward.11} parent=5 // pred_check_branch
      %764 = sbr.rel (%p762) target = $region64
    $region63: #{vanila_transformer_forward.11} parent=5 // pred_region
      %s765 = ssub.s32 %s15, 2
      // Predicated region
      $region65: #{vanila_transformer_forward.11} parent=63 // pred_check
        %p766 = pneg %p243
      $region66: #{vanila_transformer_forward.11} parent=63 // pred_check_branch
        %768 = sbr.rel (%p766) target = $region68
      $region67: #{vanila_transformer_forward.11} parent=63 // pred_region
        %p769 = scmp.lt.s32.totalorder %s21, 1
        %s770 = scalar_select %p769, %s21, 1
        %s771 = smul.addr %s770, 8
        %s772 = scalar_lea.vmem %s9, %s771
      $region68: #{vanila_transformer_forward.11} parent=63 // pred_fallthru
        _
    $region64: #{vanila_transformer_forward.11} parent=5 // pred_fallthru
      _
  $region6: #{vanila_transformer_forward.11} parent=0 // loop_footer
    %s19 = sadd.s32 1, %s15
  $region7: #{vanila_transformer_forward.11} parent=0 // loop_footer_branch
    %14 = sbr.rel target = $region3
  $region8: #{vanila_transformer_forward.11} parent=0 // loop_exit
    _

// kernel: vanila_transformer_forward.17
$region0: #{vanila_transformer_forward.17}
  #allocation0 [shape = 'u32[]', space=smem, size = 0x4, offset = 0x4, fixed_abs, tag = 'smem constant byte address 0x4 - core index']
  #allocation1 [shape = 'u32[72,128]{1,0:T(1,128)}', space=vmem, size = 0x9000, scoped, tag = 'internal scratch']
  %s0 = inlined_call_operand.vmem [shape: f32[16,32], index: 0, kind: input, shape index: {}]
  %s1 = inlined_call_operand.vmem [shape: bf16[32,64], index: 1, kind: input, shape index: {}]
  %s2 = inlined_call_operand.vmem [shape: f32[1,64], index: 2, kind: input, shape index: {}]
  %s3 = inlined_call_operand.vmem [shape: bf16[64,32], index: 3, kind: input, shape index: {}]
  %s4 = inlined_call_operand.vmem [shape: f32[1,32], index: 4, kind: input, shape index: {}]
  %s5 = inlined_call_operand.hbm [shape: f32[1,32], index: 5, kind: input, shape index: {}]
  %s6 = inlined_call_operand.hbm [shape: f32[1,32], index: 6, kind: input, shape index: {}]
  %s7 = inlined_call_operand.vmem [shape: f32[16,32], index: 7, kind: output, shape index: {}]
  %s8 = sld [smem:[#allocation0]]
  $region69: #{vanila_transformer_forward.17} parent=0
    _
  %s10 = ssub.s32 1, %s8
  %s11 = scalar_select 0, %s10, %s8
  $region1: #{vanila_transformer_forward.17} parent=0
    #allocation2 [shape = 'u8[512]{0}', space=vmem, size = 0x400, scoped, tag = 'input window, operand 5, single buffered']
    #allocation3 [shape = 's32[2]{0}', space=sflag, size = 0x8, scoped, tag = 'scoped memory for vanila_transformer_forward.17']
    #allocation4 [shape = 'u8[512]{0}', space=vmem, size = 0x400, scoped, tag = 'input window, operand 6, single buffered']
    #allocation5 [shape = 's32[1]{0}', space=sflag, size = 0x4, scoped, tag = 'scoped memory for vanila_transformer_forward.17']
    %12 = vsyncpa [#allocation3], 0
    %13 = vsyncpa [#allocation5], 0
    loop: start=0, step=1, limit=4
    $region2: #{vanila_transformer_forward.17} parent=1 // loop_pre_header
      _
    $region3: #{vanila_transformer_forward.17} parent=1 // loop_header
      %s15 = sphi 0, %s19
      %p16 = scmp.ge.s32.totalorder %s15, 4
      %s25 = sphi 0, %s27
      %s28 = sphi 0, %s25
      %s29 = sphi 0, %s28
      %s45 = sphi 0, %s29
      %s49 = sphi 0, %s49
      %s51 = sphi 0, %s49
      %s52 = sphi 0, %s51
      %s66 = sphi 0, %s52
      %s70 = sphi 0, %s70
      %s72 = sphi 0, %s70
      %s73 = sphi 0, %s72
      %s87 = sphi 0, %s73
      %s91 = sphi 0, %s91
      %s93 = sphi 0, %s91
      %s94 = sphi 0, %s93
      %s108 = sphi 0, %s94
      %s112 = sphi 0, %s112
      %s114 = sphi 0, %s112
      %s115 = sphi 0, %s114
      %s129 = sphi 0, %s115
      %s133 = sphi 0, %s133
      %s135 = sphi 0, %s133
      %s136 = sphi 0, %s135
      %s150 = sphi 0, %s136
      %s154 = sphi 0, %s154
      %s156 = sphi 0, %s154
      %s157 = sphi 0, %s156
      %s171 = sphi 0, %s157
      %s177 = sphi 0, %s179
      %s180 = sphi 0, %s177
      %s181 = sphi 0, %s180
      %s197 = sphi 0, %s181
    $region4: #{vanila_transformer_forward.17} parent=1 // loop_header_branch
      %18 = sbr.rel (%p16) target = $region8
    $region5: #{vanila_transformer_forward.17} parent=1 // loop_body
      %s20 = ssub.s32 %s15, 1
      %s21 = ssub.s32 %s15, 2
      %s22 = sadd.s32 %s15, 1
      %s23 = ssub.s32 %s15, %s22
      %p24 = scmp.eq.s32.totalorder %s23, 0
      %s26 = sadd.s32 %s25, 1
      %s27 = scalar_select %p24, %s25, %s26
      %p30 = pneg %p24
      %p31 = scmp.eq.s32.totalorder %s15, 1
      %p32 = por %p30, %p31
      %p33 = scmp.ne.s32.totalorder %s25, %s28
      %p34 = scmp.eq.s32.totalorder %s15, 0
      %p35 = por %p33, %p34
      %p36 = scmp.ne.s32.totalorder %s25, %s28
      %p37 = scmp.eq.s32.totalorder %s20, 1
      %p38 = por %p36, %p37
      %p39 = scmp.ne.s32.totalorder %s28, %s29
      %p40 = scmp.eq.s32.totalorder %s20, 0
      %p41 = por %p39, %p40
      %p42 = scmp.ne.s32.totalorder %s28, %s29
      %p43 = scmp.eq.s32.totalorder %s21, 1
      %p44 = por %p42, %p43
      %p46 = scmp.ne.s32.totalorder %s29, %s45
      %p47 = scmp.eq.s32.totalorder %s21, 0
      %p48 = por %p46, %p47
      %s50 = sadd.s32 %s49, 1
      %p53 = scmp.eq.s32.totalorder %s15, 1
      %p54 = scmp.ne.s32.totalorder %s49, %s51
      %p55 = scmp.eq.s32.totalorder %s15, 0
      %p56 = por %p54, %p55
      %p57 = scmp.ne.s32.totalorder %s49, %s51
      %p58 = scmp.eq.s32.totalorder %s20, 1
      %p59 = por %p57, %p58
      %p60 = scmp.ne.s32.totalorder %s51, %s52
      %p61 = scmp.eq.s32.totalorder %s20, 0
      %p62 = por %p60, %p61
      %p63 = scmp.ne.s32.totalorder %s51, %s52
      %p64 = scmp.eq.s32.totalorder %s21, 1
      %p65 = por %p63, %p64
      %p67 = scmp.ne.s32.totalorder %s52, %s66
      %p68 = scmp.eq.s32.totalorder %s21, 0
      %p69 = por %p67, %p68
      %s71 = sadd.s32 %s70, 1
      %p74 = scmp.eq.s32.totalorder %s15, 1
      %p75 = scmp.ne.s32.totalorder %s70, %s72
      %p76 = scmp.eq.s32.totalorder %s15, 0
      %p77 = por %p75, %p76
      %p78 = scmp.ne.s32.totalorder %s70, %s72
      %p79 = scmp.eq.s32.totalorder %s20, 1
      %p80 = por %p78, %p79
      %p81 = scmp.ne.s32.totalorder %s72, %s73
      %p82 = scmp.eq.s32.totalorder %s20, 0
      %p83 = por %p81, %p82
      %p84 = scmp.ne.s32.totalorder %s72, %s73
      %p85 = scmp.eq.s32.totalorder %s21, 1
      %p86 = por %p84, %p85
      %p88 = scmp.ne.s32.totalorder %s73, %s87
      %p89 = scmp.eq.s32.totalorder %s21, 0
      %p90 = por %p88, %p89
      %s92 = sadd.s32 %s91, 1
      %p95 = scmp.eq.s32.totalorder %s15, 1
      %p96 = scmp.ne.s32.totalorder %s91, %s93
      %p97 = scmp.eq.s32.totalorder %s15, 0
      %p98 = por %p96, %p97
      %p99 = scmp.ne.s32.totalorder %s91, %s93
      %p100 = scmp.eq.s32.totalorder %s20, 1
      %p101 = por %p99, %p100
      %p102 = scmp.ne.s32.totalorder %s93, %s94
      %p103 = scmp.eq.s32.totalorder %s20, 0
      %p104 = por %p102, %p103
      %p105 = scmp.ne.s32.totalorder %s93, %s94
      %p106 = scmp.eq.s32.totalorder %s21, 1
      %p107 = por %p105, %p106
      %p109 = scmp.ne.s32.totalorder %s94, %s108
      %p110 = scmp.eq.s32.totalorder %s21, 0
      %p111 = por %p109, %p110
      %s113 = sadd.s32 %s112, 1
      %p116 = scmp.eq.s32.totalorder %s15, 1
      %p117 = scmp.ne.s32.totalorder %s112, %s114
      %p118 = scmp.eq.s32.totalorder %s15, 0
      %p119 = por %p117, %p118
      %p120 = scmp.ne.s32.totalorder %s112, %s114
      %p121 = scmp.eq.s32.totalorder %s20, 1
      %p122 = por %p120, %p121
      %p123 = scmp.ne.s32.totalorder %s114, %s115
      %p124 = scmp.eq.s32.totalorder %s20, 0
      %p125 = por %p123, %p124
      %p126 = scmp.ne.s32.totalorder %s114, %s115
      %p127 = scmp.eq.s32.totalorder %s21, 1
      %p128 = por %p126, %p127
      %p130 = scmp.ne.s32.totalorder %s115, %s129
      %p131 = scmp.eq.s32.totalorder %s21, 0
      %p132 = por %p130, %p131
      %s134 = sadd.s32 %s133, 1
      %p137 = scmp.eq.s32.totalorder %s15, 1
      %p138 = scmp.ne.s32.totalorder %s133, %s135
      %p139 = scmp.eq.s32.totalorder %s15, 0
      %p140 = por %p138, %p139
      %p141 = scmp.ne.s32.totalorder %s133, %s135
      %p142 = scmp.eq.s32.totalorder %s20, 1
      %p143 = por %p141, %p142
      %p144 = scmp.ne.s32.totalorder %s135, %s136
      %p145 = scmp.eq.s32.totalorder %s20, 0
      %p146 = por %p144, %p145
      %p147 = scmp.ne.s32.totalorder %s135, %s136
      %p148 = scmp.eq.s32.totalorder %s21, 1
      %p149 = por %p147, %p148
      %p151 = scmp.ne.s32.totalorder %s136, %s150
      %p152 = scmp.eq.s32.totalorder %s21, 0
      %p153 = por %p151, %p152
      %s155 = sadd.s32 %s154, 1
      %p158 = scmp.eq.s32.totalorder %s15, 1
      %p159 = scmp.ne.s32.totalorder %s154, %s156
      %p160 = scmp.eq.s32.totalorder %s15, 0
      %p161 = por %p159, %p160
      %p162 = scmp.ne.s32.totalorder %s154, %s156
      %p163 = scmp.eq.s32.totalorder %s20, 1
      %p164 = por %p162, %p163
      %p165 = scmp.ne.s32.totalorder %s156, %s157
      %p166 = scmp.eq.s32.totalorder %s20, 0
      %p167 = por %p165, %p166
      %p168 = scmp.ne.s32.totalorder %s156, %s157
      %p169 = scmp.eq.s32.totalorder %s21, 1
      %p170 = por %p168, %p169
      %p172 = scmp.ne.s32.totalorder %s157, %s171
      %p173 = scmp.eq.s32.totalorder %s21, 0
      %p174 = por %p172, %p173
      %s175 = ssub.s32 %s15, %s22
      %p176 = scmp.eq.s32.totalorder %s175, 0
      %s178 = sadd.s32 %s177, 1
      %s179 = scalar_select %p176, %s177, %s178
      %p182 = pneg %p176
      %p183 = scmp.eq.s32.totalorder %s15, 1
      %p184 = por %p182, %p183
      %p185 = scmp.ne.s32.totalorder %s177, %s180
      %p186 = scmp.eq.s32.totalorder %s15, 0
      %p187 = por %p185, %p186
      %p188 = scmp.ne.s32.totalorder %s177, %s180
      %p189 = scmp.eq.s32.totalorder %s20, 1
      %p190 = por %p188, %p189
      %p191 = scmp.ne.s32.totalorder %s180, %s181
      %p192 = scmp.eq.s32.totalorder %s20, 0
      %p193 = por %p191, %p192
      %p194 = scmp.ne.s32.totalorder %s180, %s181
      %p195 = scmp.eq.s32.totalorder %s21, 1
      %p196 = por %p194, %p195
      %p198 = scmp.ne.s32.totalorder %s181, %s197
      %p199 = scmp.eq.s32.totalorder %s21, 0
      %p200 = por %p198, %p199
      %p201 = scmp.le.s32.totalorder 1, %s15
      %p202 = scmp.lt.s32.totalorder %s15, 3
      %p203 = pnand %p201, %p202
      %p204 = pneg %p203
      // Predicated region
      $region9: #{vanila_transformer_forward.17} parent=5 // pred_check
        _
      $region10: #{vanila_transformer_forward.17} parent=5 // pred_check_branch
        %206 = sbr.rel (%p203) target = $region12
      $region11: #{vanila_transformer_forward.17} parent=5 // pred_region
        %s207 = ssub.s32 %s15, 1
        // Predicated region
        $region13: #{vanila_transformer_forward.17} parent=11 // pred_check
          %p208 = pneg %p62
        $region14: #{vanila_transformer_forward.17} parent=11 // pred_check_branch
          %210 = sbr.rel (%p208) target = $region16
        $region15: #{vanila_transformer_forward.17} parent=11 // pred_region
          _
        $region16: #{vanila_transformer_forward.17} parent=11 // pred_fallthru
          _
        // Predicated region
        $region17: #{vanila_transformer_forward.17} parent=11 // pred_check
          %p211 = pneg %p83
        $region18: #{vanila_transformer_forward.17} parent=11 // pred_check_branch
          %213 = sbr.rel (%p211) target = $region20
        $region19: #{vanila_transformer_forward.17} parent=11 // pred_region
          _
        $region20: #{vanila_transformer_forward.17} parent=11 // pred_fallthru
          _
        // Predicated region
        $region21: #{vanila_transformer_forward.17} parent=11 // pred_check
          %p214 = pneg %p104
        $region22: #{vanila_transformer_forward.17} parent=11 // pred_check_branch
          %216 = sbr.rel (%p214) target = $region24
        $region23: #{vanila_transformer_forward.17} parent=11 // pred_region
          _
        $region24: #{vanila_transformer_forward.17} parent=11 // pred_fallthru
          _
        // Predicated region
        $region25: #{vanila_transformer_forward.17} parent=11 // pred_check
          %p217 = pneg %p125
        $region26: #{vanila_transformer_forward.17} parent=11 // pred_check_branch
          %219 = sbr.rel (%p217) target = $region28
        $region27: #{vanila_transformer_forward.17} parent=11 // pred_region
          _
        $region28: #{vanila_transformer_forward.17} parent=11 // pred_fallthru
          _
        // Predicated region
        $region29: #{vanila_transformer_forward.17} parent=11 // pred_check
          %p220 = pneg %p146
        $region30: #{vanila_transformer_forward.17} parent=11 // pred_check_branch
          %222 = sbr.rel (%p220) target = $region32
        $region31: #{vanila_transformer_forward.17} parent=11 // pred_region
          %224 = vsyncadd [#allocation3], 0
          %s226 = sshll.u32 %s5, 4
          %s227 = int_to_ptr.hbm [resolvable:$true] %s226
          %s228 = sshll.u32 [#allocation2], 4
          %s229 = int_to_ptr.vmem [resolvable:$true] %s228
          %231 = dma.hbm_to_vmem [thread:$0]  %s227, 16, %s229, [#allocation3]
        $region32: #{vanila_transformer_forward.17} parent=11 // pred_fallthru
          _
        // Predicated region
        $region33: #{vanila_transformer_forward.17} parent=11 // pred_check
          %p232 = pneg %p167
        $region34: #{vanila_transformer_forward.17} parent=11 // pred_check_branch
          %234 = sbr.rel (%p232) target = $region36
        $region35: #{vanila_transformer_forward.17} parent=11 // pred_region
          %236 = vsyncadd [#allocation5], 0
          %s238 = sshll.u32 %s6, 4
          %s239 = int_to_ptr.hbm [resolvable:$true] %s238
          %s240 = sshll.u32 [#allocation4], 4
          %s241 = int_to_ptr.vmem [resolvable:$true] %s240
          %243 = dma.hbm_to_vmem [thread:$0]  %s239, 16, %s241, [#allocation5]
        $region36: #{vanila_transformer_forward.17} parent=11 // pred_fallthru
          _
      $region12: #{vanila_transformer_forward.17} parent=5 // pred_fallthru
        _
      %p244 = scmp.lt.s32.totalorder %s15, 2
      // Predicated region
      $region37: #{vanila_transformer_forward.17} parent=5 // pred_check
        %p245 = pneg %p244
      $region38: #{vanila_transformer_forward.17} parent=5 // pred_check_branch
        %247 = sbr.rel (%p245) target = $region40
      $region39: #{vanila_transformer_forward.17} parent=5 // pred_region
        // Predicated region
        $region41: #{vanila_transformer_forward.17} parent=39 // pred_check
          %p248 = pneg %p35
        $region42: #{vanila_transformer_forward.17} parent=39 // pred_check_branch
          %250 = sbr.rel (%p248) target = $region44
        $region43: #{vanila_transformer_forward.17} parent=39 // pred_region
          %p251 = scmp.lt.s32.totalorder %s15, 1
          %s252 = scalar_select %p251, %s15, 1
          %s253 = smul.addr %s252, 8
          %s254 = scalar_lea.vmem %s0, %s253
        $region44: #{vanila_transformer_forward.17} parent=39 // pred_fallthru
          _
      $region40: #{vanila_transformer_forward.17} parent=5 // pred_fallthru
        _
      %p255 = scmp.le.s32.totalorder 1, %s15
      %p256 = scmp.lt.s32.totalorder %s15, 3
      %p257 = pnand %p255, %p256
      %p258 = pneg %p257
      // Predicated region
      $region45: #{vanila_transformer_forward.17} parent=5 // pred_check
        _
      $region46: #{vanila_transformer_forward.17} parent=5 // pred_check_branch
        %260 = sbr.rel (%p257) target = $region48
      $region47: #{vanila_transformer_forward.17} parent=5 // pred_region
        %s261 = ssub.s32 %s15, 1
        // Predicated region
        $region49: #{vanila_transformer_forward.17} parent=47 // pred_check
          %p262 = pneg %p146
        $region50: #{vanila_transformer_forward.17} parent=47 // pred_check_branch
          %264 = sbr.rel (%p262) target = $region52
        $region51: #{vanila_transformer_forward.17} parent=47 // pred_region
          %266 = dma.done [#allocation3], 16
        $region52: #{vanila_transformer_forward.17} parent=47 // pred_fallthru
          _
        // Predicated region
        $region53: #{vanila_transformer_forward.17} parent=47 // pred_check
          %p267 = pneg %p167
        $region54: #{vanila_transformer_forward.17} parent=47 // pred_check_branch
          %269 = sbr.rel (%p267) target = $region56
        $region55: #{vanila_transformer_forward.17} parent=47 // pred_region
          %271 = dma.done [#allocation5], 16
        $region56: #{vanila_transformer_forward.17} parent=47 // pred_fallthru
          _
        %p272 = scmp.lt.s32.totalorder %s20, 1
        %s273 = scalar_select %p272, %s20, 1
        %s274 = smul.addr %s273, 8
        %s275 = scalar_lea.vmem %s0, %s274
        %p276 = pneg %p41
        %p277 = pneg %p38
        %p278 = pneg %p62
        %p279 = pneg %p59
        %p280 = pneg %p83
        %p281 = pneg %p80
        %p282 = pneg %p104
        %p283 = pneg %p101
        %p284 = pneg %p125
        %p285 = pneg %p122
        %p286 = pneg %p146
        %p287 = pneg %p143
        %p288 = pneg %p167
        %p289 = pneg %p164
        %p290 = pneg %p193
        %p291 = pneg %p190
        %p292 = scmp.lt.s32.totalorder %s20, 1
        %s293 = scalar_select %p292, %s20, 1
        %s294 = smul.addr %s293, 8
        %s295 = scalar_lea.vmem %s7, %s294
        %p296 = scmp.lt.s32.totalorder %s20, 1
        %s297 = scalar_select %p296, %s20, 1
        %s298 = smul.addr %s297, 8
        %s299 = scalar_lea.vmem %s0, %s298
        %p300 = scmp.lt.s32.totalorder %s20, 1
        %s301 = scalar_select %p300, %s20, 1
        %s302 = smul.addr %s301, 8
        %s303 = scalar_lea.vmem %s7, %s302
        %v305 = vld [vmem:[%s299] sm:$0xff]
        %v306 = vpack.c.bf16 %v305, %v305
        %v307 = vld [vmem:[%s1] sm:$0xf]
        %v308 = vld [vmem:[%s1 + $0x4] sm:$0xf]
        %v309 = vld [vmem:[%s1 + $0x8] sm:$0xf]
        %v310 = vld [vmem:[%s1 + $0xc] sm:$0xf]
        %v311 = vld [vmem:[%s2] sm:$0x1]
        %v313 = vperm.slane %v311, 0
        %v319 = vunpack.c.l.b16 %v307
        %v320 = vunpack.c.l.b16 %v308
        %v321 = vunpack.c.l.b16 %v309
        %v322 = vunpack.c.l.b16 %v310
        %v323 = vpack.c.b16 %v320, %v319
        %v324 = vpack.c.b16 %v322, %v321
        %vm327 = vcmask 261120
        %v329 = vsel %vm327, %v306, 0
        %331 = vmatpush.bf16.msra.mxu0 0
        %332 = vmatpush.bf16.msra.mxu0 0
        %333 = vmatpush.bf16.msra.mxu0 0
        %334 = vmatpush.bf16.msra.mxu0 0
        %335 = vmatpush.bf16.msra.mxu0 0
        %336 = vmatpush.bf16.msra.mxu0 0
        %337 = vmatpush.bf16.msra.mxu0 %v324
        %338 = vmatpush.bf16.msra.mxu0 %v323
        %339 = vmatmul.bf16.gmra.mxu0 %v329
        %v340 = vpop.f32.mrf.mxu0
        %v341 = vadd.f32 %v313, %v340
        %v342 = vpop.f32.mrf.mxu0
        %343 = vdwg.mxu0
        %v344 = vmax.f32 %v341, 0.0
        %v345 = vpack.c.bf16 %v344, %v344
        %v346 = vld [vmem:[%s3] sm:$0xf]
        %v347 = vld [vmem:[%s3 + $0x4] sm:$0xf]
        %v348 = vld [vmem:[%s3 + $0x8] sm:$0xf]
        %v349 = vld [vmem:[%s3 + $0xc] sm:$0xf]
        %v350 = vld [vmem:[%s3 + $0x10] sm:$0xf]
        %v351 = vld [vmem:[%s3 + $0x14] sm:$0xf]
        %v352 = vld [vmem:[%s3 + $0x18] sm:$0xf]
        %v353 = vld [vmem:[%s3 + $0x1c] sm:$0xf]
        %v362 = vunpack.c.l.b16 %v346
        %v363 = vunpack.c.l.b16 %v347
        %v364 = vunpack.c.l.b16 %v348
        %v365 = vunpack.c.l.b16 %v349
        %v366 = vunpack.c.l.b16 %v350
        %v367 = vunpack.c.l.b16 %v351
        %v368 = vunpack.c.l.b16 %v352
        %v369 = vunpack.c.l.b16 %v353
        %v370 = vpack.c.b16 %v363, %v362
        %v371 = vpack.c.b16 %v365, %v364
        %v372 = vpack.c.b16 %v367, %v366
        %v373 = vpack.c.b16 %v369, %v368
        %vm378 = vcmask 523264
        %v380 = vsel %vm378, %v345, 0
        %382 = vmatpush.bf16.msra.mxu0 0
        %383 = vmatpush.bf16.msra.mxu0 0
        %384 = vmatpush.bf16.msra.mxu0 0
        %385 = vmatpush.bf16.msra.mxu0 0
        %386 = vmatpush.bf16.msra.mxu0 %v373
        %387 = vmatpush.bf16.msra.mxu0 %v372
        %388 = vmatpush.bf16.msra.mxu0 %v371
        %389 = vmatpush.bf16.msra.mxu0 %v370
        %390 = vmatmul.bf16.gmra.mxu0 %v380
        %v391 = vpop.f32.mrf.mxu0
        %v392 = vadd.f32 0.0, %v391
        %v393 = vpop.f32.mrf.mxu0
        %394 = vdwg.mxu0
        %v395 = vadd.f32 %v305, %v392
        %v396 = vld [vmem:[%s4] sm:$0x1]
        %v398 = vperm.slane %v396, 0
        %v400 = vadd.f32 %v395, %v398
        %v401 = vld [vmem:[#allocation2] sm:$0x1]
        %v402 = vld [vmem:[#allocation4] sm:$0x1]
        %v403 = vsel %vm327, %v400, 0.0
        %404 = vadd.xlane.f32.xlu0 %v403
        %v405 = vpop.xlane.xlu0 %404
        %v406 = vrcp.pop 32.0
        %v407 = vmul.f32 32.0, %v406
        %v408 = vsub.f32 1.0, %v407
        %v409 = vmul.f32 %v406, %v408
        %v410 = vadd.f32 %v406, %v409
        %vm411 = vweird.f32 %v406
        %v412 = vsel %vm411, %v406, %v410
        %v413 = vmul.f32 %v405, %v412
        %v414 = vsub.f32 %v400, %v413
        %v415 = vmul.f32 %v414, %v414
        %v416 = vsel %vm327, %v415, 0.0
        %417 = vadd.xlane.f32.xlu0 %v416
        %v418 = vpop.xlane.xlu0 %417
        %v419 = vmul.f32 %v418, %v412
        %v420 = vadd.f32 %v419, 1e-05
        %v421 = vrsqrt.pop %v420
        %v422 = vmul.f32 %v421, %v420
        %v423 = vmul.f32 %v422, %v421
        %v424 = vmul.f32 0.5, %v423
        %v425 = vsub.f32 1.5, %v424
        %v426 = vmul.f32 %v421, %v425
        %vm427 = vweird.f32 %v420
        %vm428 = vweird.f32 %v421
        %vm429 = vmor %vm427, %vm428
        %v430 = vsel %vm429, %v421, %v426
        %v431 = vmul.f32 %v414, %v430
        %v433 = vperm.slane %v401, 0
        %v435 = vmul.f32 %v431, %v433
        %v437 = vperm.slane %v402, 0
        %v439 = vadd.f32 %v435, %v437
        %440 = vst.msk [vmem:[%s303] sm:$0xff] %vm327, %v439
        %p441 = scmp.lt.s32.totalorder %s20, 1
        %s442 = scalar_select %p441, %s20, 1
        %s443 = smul.addr %s442, 8
        %s444 = scalar_lea.vmem %s7, %s443
        // Predicated region
        $region57: #{vanila_transformer_forward.17} parent=47 // pred_check
          %p445 = pneg %p190
        $region58: #{vanila_transformer_forward.17} parent=47 // pred_check_branch
          %447 = sbr.rel (%p445) target = $region60
        $region59: #{vanila_transformer_forward.17} parent=47 // pred_region
          _
        $region60: #{vanila_transformer_forward.17} parent=47 // pred_fallthru
          _
      $region48: #{vanila_transformer_forward.17} parent=5 // pred_fallthru
        _
      %p448 = scmp.le.s32.totalorder 2, %s15
      // Predicated region
      $region61: #{vanila_transformer_forward.17} parent=5 // pred_check
        %p449 = pneg %p448
      $region62: #{vanila_transformer_forward.17} parent=5 // pred_check_branch
        %451 = sbr.rel (%p449) target = $region64
      $region63: #{vanila_transformer_forward.17} parent=5 // pred_region
        %s452 = ssub.s32 %s15, 2
        // Predicated region
        $region65: #{vanila_transformer_forward.17} parent=63 // pred_check
          %p453 = pneg %p196
        $region66: #{vanila_transformer_forward.17} parent=63 // pred_check_branch
          %455 = sbr.rel (%p453) target = $region68
        $region67: #{vanila_transformer_forward.17} parent=63 // pred_region
          %p456 = scmp.lt.s32.totalorder %s21, 1
          %s457 = scalar_select %p456, %s21, 1
          %s458 = smul.addr %s457, 8
          %s459 = scalar_lea.vmem %s7, %s458
        $region68: #{vanila_transformer_forward.17} parent=63 // pred_fallthru
          _
      $region64: #{vanila_transformer_forward.17} parent=5 // pred_fallthru
        _
    $region6: #{vanila_transformer_forward.17} parent=1 // loop_footer
      %s19 = sadd.s32 1, %s15
    $region7: #{vanila_transformer_forward.17} parent=1 // loop_footer_branch
      %14 = sbr.rel target = $region3
    $region8: #{vanila_transformer_forward.17} parent=1 // loop_exit
      _
    %460 = vsyncpa [#allocation3], 1
    %s461 = scalar_lea.sflag [#allocation3], 1
    %462 = vsyncpa %s461, 1
    %463 = vsyncpa [#allocation5], 1

// kernel: vanila_transformer_forward.16
$region0: #{vanila_transformer_forward.16}
  #allocation0 [shape = 'u32[]', space=smem, size = 0x4, offset = 0x4, fixed_abs, tag = 'smem constant byte address 0x4 - core index']
  #allocation1 [shape = 'u32[72,128]{1,0:T(1,128)}', space=vmem, size = 0x9000, scoped, tag = 'internal scratch']
  %s0 = inlined_call_operand.vmem [shape: f32[2,8,32], index: 0, kind: input, shape index: {}]
  %s1 = inlined_call_operand.vmem [shape: f32[2,8,32], index: 1, kind: input, shape index: {}]
  %s2 = inlined_call_operand.vmem [shape: bf16[32,96], index: 2, kind: input, shape index: {}]
  %s3 = inlined_call_operand.vmem [shape: f32[1,96], index: 3, kind: input, shape index: {}]
  %s4 = inlined_call_operand.vmem [shape: bf16[32,32], index: 4, kind: input, shape index: {}]
  %s5 = inlined_call_operand.vmem [shape: f32[1,32], index: 5, kind: input, shape index: {}]
  %s6 = inlined_call_operand.vmem [shape: f32[8,8], index: 6, kind: input, shape index: {}]
  %s7 = inlined_call_operand.vmem [shape: f32[2,1,8], index: 7, kind: input, shape index: {}]
  %s8 = inlined_call_operand.hbm [shape: f32[1,32], index: 8, kind: input, shape index: {}]
  %s9 = inlined_call_operand.hbm [shape: f32[1,32], index: 9, kind: input, shape index: {}]
  %s10 = inlined_call_operand.vmem [shape: f32[2,8,32], index: 10, kind: output, shape index: {}]
  %s11 = sld [smem:[#allocation0]]
  $region81: #{vanila_transformer_forward.16} parent=0
    _
  %s13 = ssub.s32 1, %s11
  %s14 = scalar_select 0, %s13, %s11
  $region1: #{vanila_transformer_forward.16} parent=0
    #allocation2 [shape = 'u8[512]{0}', space=vmem, size = 0x400, scoped, tag = 'input window, operand 8, single buffered']
    #allocation3 [shape = 's32[2]{0}', space=sflag, size = 0x8, scoped, tag = 'scoped memory for vanila_transformer_forward.16']
    #allocation4 [shape = 'u8[512]{0}', space=vmem, size = 0x400, scoped, tag = 'input window, operand 9, single buffered']
    #allocation5 [shape = 's32[1]{0}', space=sflag, size = 0x4, scoped, tag = 'scoped memory for vanila_transformer_forward.16']
    %15 = vsyncpa [#allocation3], 0
    %16 = vsyncpa [#allocation5], 0
    loop: start=0, step=1, limit=4
    $region2: #{vanila_transformer_forward.16} parent=1 // loop_pre_header
      _
    $region3: #{vanila_transformer_forward.16} parent=1 // loop_header
      %s18 = sphi 0, %s22
      %p19 = scmp.ge.s32.totalorder %s18, 4
      %s28 = sphi 0, %s30
      %s31 = sphi 0, %s28
      %s32 = sphi 0, %s31
      %s48 = sphi 0, %s32
      %s54 = sphi 0, %s56
      %s57 = sphi 0, %s54
      %s58 = sphi 0, %s57
      %s74 = sphi 0, %s58
      %s78 = sphi 0, %s78
      %s80 = sphi 0, %s78
      %s81 = sphi 0, %s80
      %s95 = sphi 0, %s81
      %s99 = sphi 0, %s99
      %s101 = sphi 0, %s99
      %s102 = sphi 0, %s101
      %s116 = sphi 0, %s102
      %s120 = sphi 0, %s120
      %s122 = sphi 0, %s120
      %s123 = sphi 0, %s122
      %s137 = sphi 0, %s123
      %s141 = sphi 0, %s141
      %s143 = sphi 0, %s141
      %s144 = sphi 0, %s143
      %s158 = sphi 0, %s144
      %s162 = sphi 0, %s162
      %s164 = sphi 0, %s162
      %s165 = sphi 0, %s164
      %s179 = sphi 0, %s165
      %s185 = sphi 0, %s187
      %s188 = sphi 0, %s185
      %s189 = sphi 0, %s188
      %s205 = sphi 0, %s189
      %s209 = sphi 0, %s209
      %s211 = sphi 0, %s209
      %s212 = sphi 0, %s211
      %s226 = sphi 0, %s212
      %s230 = sphi 0, %s230
      %s232 = sphi 0, %s230
      %s233 = sphi 0, %s232
      %s247 = sphi 0, %s233
      %s253 = sphi 0, %s255
      %s256 = sphi 0, %s253
      %s257 = sphi 0, %s256
      %s273 = sphi 0, %s257
    $region4: #{vanila_transformer_forward.16} parent=1 // loop_header_branch
      %21 = sbr.rel (%p19) target = $region8
    $region5: #{vanila_transformer_forward.16} parent=1 // loop_body
      %s23 = ssub.s32 %s18, 1
      %s24 = ssub.s32 %s18, 2
      %s25 = sadd.s32 %s18, 1
      %s26 = ssub.s32 %s18, %s25
      %p27 = scmp.eq.s32.totalorder %s26, 0
      %s29 = sadd.s32 %s28, 1
      %s30 = scalar_select %p27, %s28, %s29
      %p33 = pneg %p27
      %p34 = scmp.eq.s32.totalorder %s18, 1
      %p35 = por %p33, %p34
      %p36 = scmp.ne.s32.totalorder %s28, %s31
      %p37 = scmp.eq.s32.totalorder %s18, 0
      %p38 = por %p36, %p37
      %p39 = scmp.ne.s32.totalorder %s28, %s31
      %p40 = scmp.eq.s32.totalorder %s23, 1
      %p41 = por %p39, %p40
      %p42 = scmp.ne.s32.totalorder %s31, %s32
      %p43 = scmp.eq.s32.totalorder %s23, 0
      %p44 = por %p42, %p43
      %p45 = scmp.ne.s32.totalorder %s31, %s32
      %p46 = scmp.eq.s32.totalorder %s24, 1
      %p47 = por %p45, %p46
      %p49 = scmp.ne.s32.totalorder %s32, %s48
      %p50 = scmp.eq.s32.totalorder %s24, 0
      %p51 = por %p49, %p50
      %s52 = ssub.s32 %s18, %s25
      %p53 = scmp.eq.s32.totalorder %s52, 0
      %s55 = sadd.s32 %s54, 1
      %s56 = scalar_select %p53, %s54, %s55
      %p59 = pneg %p53
      %p60 = scmp.eq.s32.totalorder %s18, 1
      %p61 = por %p59, %p60
      %p62 = scmp.ne.s32.totalorder %s54, %s57
      %p63 = scmp.eq.s32.totalorder %s18, 0
      %p64 = por %p62, %p63
      %p65 = scmp.ne.s32.totalorder %s54, %s57
      %p66 = scmp.eq.s32.totalorder %s23, 1
      %p67 = por %p65, %p66
      %p68 = scmp.ne.s32.totalorder %s57, %s58
      %p69 = scmp.eq.s32.totalorder %s23, 0
      %p70 = por %p68, %p69
      %p71 = scmp.ne.s32.totalorder %s57, %s58
      %p72 = scmp.eq.s32.totalorder %s24, 1
      %p73 = por %p71, %p72
      %p75 = scmp.ne.s32.totalorder %s58, %s74
      %p76 = scmp.eq.s32.totalorder %s24, 0
      %p77 = por %p75, %p76
      %s79 = sadd.s32 %s78, 1
      %p82 = scmp.eq.s32.totalorder %s18, 1
      %p83 = scmp.ne.s32.totalorder %s78, %s80
      %p84 = scmp.eq.s32.totalorder %s18, 0
      %p85 = por %p83, %p84
      %p86 = scmp.ne.s32.totalorder %s78, %s80
      %p87 = scmp.eq.s32.totalorder %s23, 1
      %p88 = por %p86, %p87
      %p89 = scmp.ne.s32.totalorder %s80, %s81
      %p90 = scmp.eq.s32.totalorder %s23, 0
      %p91 = por %p89, %p90
      %p92 = scmp.ne.s32.totalorder %s80, %s81
      %p93 = scmp.eq.s32.totalorder %s24, 1
      %p94 = por %p92, %p93
      %p96 = scmp.ne.s32.totalorder %s81, %s95
      %p97 = scmp.eq.s32.totalorder %s24, 0
      %p98 = por %p96, %p97
      %s100 = sadd.s32 %s99, 1
      %p103 = scmp.eq.s32.totalorder %s18, 1
      %p104 = scmp.ne.s32.totalorder %s99, %s101
      %p105 = scmp.eq.s32.totalorder %s18, 0
      %p106 = por %p104, %p105
      %p107 = scmp.ne.s32.totalorder %s99, %s101
      %p108 = scmp.eq.s32.totalorder %s23, 1
      %p109 = por %p107, %p108
      %p110 = scmp.ne.s32.totalorder %s101, %s102
      %p111 = scmp.eq.s32.totalorder %s23, 0
      %p112 = por %p110, %p111
      %p113 = scmp.ne.s32.totalorder %s101, %s102
      %p114 = scmp.eq.s32.totalorder %s24, 1
      %p115 = por %p113, %p114
      %p117 = scmp.ne.s32.totalorder %s102, %s116
      %p118 = scmp.eq.s32.totalorder %s24, 0
      %p119 = por %p117, %p118
      %s121 = sadd.s32 %s120, 1
      %p124 = scmp.eq.s32.totalorder %s18, 1
      %p125 = scmp.ne.s32.totalorder %s120, %s122
      %p126 = scmp.eq.s32.totalorder %s18, 0
      %p127 = por %p125, %p126
      %p128 = scmp.ne.s32.totalorder %s120, %s122
      %p129 = scmp.eq.s32.totalorder %s23, 1
      %p130 = por %p128, %p129
      %p131 = scmp.ne.s32.totalorder %s122, %s123
      %p132 = scmp.eq.s32.totalorder %s23, 0
      %p133 = por %p131, %p132
      %p134 = scmp.ne.s32.totalorder %s122, %s123
      %p135 = scmp.eq.s32.totalorder %s24, 1
      %p136 = por %p134, %p135
      %p138 = scmp.ne.s32.totalorder %s123, %s137
      %p139 = scmp.eq.s32.totalorder %s24, 0
      %p140 = por %p138, %p139
      %s142 = sadd.s32 %s141, 1
      %p145 = scmp.eq.s32.totalorder %s18, 1
      %p146 = scmp.ne.s32.totalorder %s141, %s143
      %p147 = scmp.eq.s32.totalorder %s18, 0
      %p148 = por %p146, %p147
      %p149 = scmp.ne.s32.totalorder %s141, %s143
      %p150 = scmp.eq.s32.totalorder %s23, 1
      %p151 = por %p149, %p150
      %p152 = scmp.ne.s32.totalorder %s143, %s144
      %p153 = scmp.eq.s32.totalorder %s23, 0
      %p154 = por %p152, %p153
      %p155 = scmp.ne.s32.totalorder %s143, %s144
      %p156 = scmp.eq.s32.totalorder %s24, 1
      %p157 = por %p155, %p156
      %p159 = scmp.ne.s32.totalorder %s144, %s158
      %p160 = scmp.eq.s32.totalorder %s24, 0
      %p161 = por %p159, %p160
      %s163 = sadd.s32 %s162, 1
      %p166 = scmp.eq.s32.totalorder %s18, 1
      %p167 = scmp.ne.s32.totalorder %s162, %s164
      %p168 = scmp.eq.s32.totalorder %s18, 0
      %p169 = por %p167, %p168
      %p170 = scmp.ne.s32.totalorder %s162, %s164
      %p171 = scmp.eq.s32.totalorder %s23, 1
      %p172 = por %p170, %p171
      %p173 = scmp.ne.s32.totalorder %s164, %s165
      %p174 = scmp.eq.s32.totalorder %s23, 0
      %p175 = por %p173, %p174
      %p176 = scmp.ne.s32.totalorder %s164, %s165
      %p177 = scmp.eq.s32.totalorder %s24, 1
      %p178 = por %p176, %p177
      %p180 = scmp.ne.s32.totalorder %s165, %s179
      %p181 = scmp.eq.s32.totalorder %s24, 0
      %p182 = por %p180, %p181
      %s183 = ssub.s32 %s18, %s25
      %p184 = scmp.eq.s32.totalorder %s183, 0
      %s186 = sadd.s32 %s185, 1
      %s187 = scalar_select %p184, %s185, %s186
      %p190 = pneg %p184
      %p191 = scmp.eq.s32.totalorder %s18, 1
      %p192 = por %p190, %p191
      %p193 = scmp.ne.s32.totalorder %s185, %s188
      %p194 = scmp.eq.s32.totalorder %s18, 0
      %p195 = por %p193, %p194
      %p196 = scmp.ne.s32.totalorder %s185, %s188
      %p197 = scmp.eq.s32.totalorder %s23, 1
      %p198 = por %p196, %p197
      %p199 = scmp.ne.s32.totalorder %s188, %s189
      %p200 = scmp.eq.s32.totalorder %s23, 0
      %p201 = por %p199, %p200
      %p202 = scmp.ne.s32.totalorder %s188, %s189
      %p203 = scmp.eq.s32.totalorder %s24, 1
      %p204 = por %p202, %p203
      %p206 = scmp.ne.s32.totalorder %s189, %s205
      %p207 = scmp.eq.s32.totalorder %s24, 0
      %p208 = por %p206, %p207
      %s210 = sadd.s32 %s209, 1
      %p213 = scmp.eq.s32.totalorder %s18, 1
      %p214 = scmp.ne.s32.totalorder %s209, %s211
      %p215 = scmp.eq.s32.totalorder %s18, 0
      %p216 = por %p214, %p215
      %p217 = scmp.ne.s32.totalorder %s209, %s211
      %p218 = scmp.eq.s32.totalorder %s23, 1
      %p219 = por %p217, %p218
      %p220 = scmp.ne.s32.totalorder %s211, %s212
      %p221 = scmp.eq.s32.totalorder %s23, 0
      %p222 = por %p220, %p221
      %p223 = scmp.ne.s32.totalorder %s211, %s212
      %p224 = scmp.eq.s32.totalorder %s24, 1
      %p225 = por %p223, %p224
      %p227 = scmp.ne.s32.totalorder %s212, %s226
      %p228 = scmp.eq.s32.totalorder %s24, 0
      %p229 = por %p227, %p228
      %s231 = sadd.s32 %s230, 1
      %p234 = scmp.eq.s32.totalorder %s18, 1
      %p235 = scmp.ne.s32.totalorder %s230, %s232
      %p236 = scmp.eq.s32.totalorder %s18, 0
      %p237 = por %p235, %p236
      %p238 = scmp.ne.s32.totalorder %s230, %s232
      %p239 = scmp.eq.s32.totalorder %s23, 1
      %p240 = por %p238, %p239
      %p241 = scmp.ne.s32.totalorder %s232, %s233
      %p242 = scmp.eq.s32.totalorder %s23, 0
      %p243 = por %p241, %p242
      %p244 = scmp.ne.s32.totalorder %s232, %s233
      %p245 = scmp.eq.s32.totalorder %s24, 1
      %p246 = por %p244, %p245
      %p248 = scmp.ne.s32.totalorder %s233, %s247
      %p249 = scmp.eq.s32.totalorder %s24, 0
      %p250 = por %p248, %p249
      %s251 = ssub.s32 %s18, %s25
      %p252 = scmp.eq.s32.totalorder %s251, 0
      %s254 = sadd.s32 %s253, 1
      %s255 = scalar_select %p252, %s253, %s254
      %p258 = pneg %p252
      %p259 = scmp.eq.s32.totalorder %s18, 1
      %p260 = por %p258, %p259
      %p261 = scmp.ne.s32.totalorder %s253, %s256
      %p262 = scmp.eq.s32.totalorder %s18, 0
      %p263 = por %p261, %p262
      %p264 = scmp.ne.s32.totalorder %s253, %s256
      %p265 = scmp.eq.s32.totalorder %s23, 1
      %p266 = por %p264, %p265
      %p267 = scmp.ne.s32.totalorder %s256, %s257
      %p268 = scmp.eq.s32.totalorder %s23, 0
      %p269 = por %p267, %p268
      %p270 = scmp.ne.s32.totalorder %s256, %s257
      %p271 = scmp.eq.s32.totalorder %s24, 1
      %p272 = por %p270, %p271
      %p274 = scmp.ne.s32.totalorder %s257, %s273
      %p275 = scmp.eq.s32.totalorder %s24, 0
      %p276 = por %p274, %p275
      %p277 = scmp.le.s32.totalorder 1, %s18
      %p278 = scmp.lt.s32.totalorder %s18, 3
      %p279 = pnand %p277, %p278
      %p280 = pneg %p279
      // Predicated region
      $region9: #{vanila_transformer_forward.16} parent=5 // pred_check
        _
      $region10: #{vanila_transformer_forward.16} parent=5 // pred_check_branch
        %282 = sbr.rel (%p279) target = $region12
      $region11: #{vanila_transformer_forward.16} parent=5 // pred_region
        %s283 = ssub.s32 %s18, 1
        // Predicated region
        $region13: #{vanila_transformer_forward.16} parent=11 // pred_check
          %p284 = pneg %p91
        $region14: #{vanila_transformer_forward.16} parent=11 // pred_check_branch
          %286 = sbr.rel (%p284) target = $region16
        $region15: #{vanila_transformer_forward.16} parent=11 // pred_region
          _
        $region16: #{vanila_transformer_forward.16} parent=11 // pred_fallthru
          _
        // Predicated region
        $region17: #{vanila_transformer_forward.16} parent=11 // pred_check
          %p287 = pneg %p112
        $region18: #{vanila_transformer_forward.16} parent=11 // pred_check_branch
          %289 = sbr.rel (%p287) target = $region20
        $region19: #{vanila_transformer_forward.16} parent=11 // pred_region
          _
        $region20: #{vanila_transformer_forward.16} parent=11 // pred_fallthru
          _
        // Predicated region
        $region21: #{vanila_transformer_forward.16} parent=11 // pred_check
          %p290 = pneg %p133
        $region22: #{vanila_transformer_forward.16} parent=11 // pred_check_branch
          %292 = sbr.rel (%p290) target = $region24
        $region23: #{vanila_transformer_forward.16} parent=11 // pred_region
          _
        $region24: #{vanila_transformer_forward.16} parent=11 // pred_fallthru
          _
        // Predicated region
        $region25: #{vanila_transformer_forward.16} parent=11 // pred_check
          %p293 = pneg %p154
        $region26: #{vanila_transformer_forward.16} parent=11 // pred_check_branch
          %295 = sbr.rel (%p293) target = $region28
        $region27: #{vanila_transformer_forward.16} parent=11 // pred_region
          _
        $region28: #{vanila_transformer_forward.16} parent=11 // pred_fallthru
          _
        // Predicated region
        $region29: #{vanila_transformer_forward.16} parent=11 // pred_check
          %p296 = pneg %p175
        $region30: #{vanila_transformer_forward.16} parent=11 // pred_check_branch
          %298 = sbr.rel (%p296) target = $region32
        $region31: #{vanila_transformer_forward.16} parent=11 // pred_region
          _
        $region32: #{vanila_transformer_forward.16} parent=11 // pred_fallthru
          _
        // Predicated region
        $region33: #{vanila_transformer_forward.16} parent=11 // pred_check
          %p299 = pneg %p222
        $region34: #{vanila_transformer_forward.16} parent=11 // pred_check_branch
          %301 = sbr.rel (%p299) target = $region36
        $region35: #{vanila_transformer_forward.16} parent=11 // pred_region
          %303 = vsyncadd [#allocation3], 0
          %s305 = sshll.u32 %s8, 4
          %s306 = int_to_ptr.hbm [resolvable:$true] %s305
          %s307 = sshll.u32 [#allocation2], 4
          %s308 = int_to_ptr.vmem [resolvable:$true] %s307
          %310 = dma.hbm_to_vmem [thread:$0]  %s306, 16, %s308, [#allocation3]
        $region36: #{vanila_transformer_forward.16} parent=11 // pred_fallthru
          _
        // Predicated region
        $region37: #{vanila_transformer_forward.16} parent=11 // pred_check
          %p311 = pneg %p243
        $region38: #{vanila_transformer_forward.16} parent=11 // pred_check_branch
          %313 = sbr.rel (%p311) target = $region40
        $region39: #{vanila_transformer_forward.16} parent=11 // pred_region
          %315 = vsyncadd [#allocation5], 0
          %s317 = sshll.u32 %s9, 4
          %s318 = int_to_ptr.hbm [resolvable:$true] %s317
          %s319 = sshll.u32 [#allocation4], 4
          %s320 = int_to_ptr.vmem [resolvable:$true] %s319
          %322 = dma.hbm_to_vmem [thread:$0]  %s318, 16, %s320, [#allocation5]
        $region40: #{vanila_transformer_forward.16} parent=11 // pred_fallthru
          _
      $region12: #{vanila_transformer_forward.16} parent=5 // pred_fallthru
        _
      %p323 = scmp.lt.s32.totalorder %s18, 2
      // Predicated region
      $region41: #{vanila_transformer_forward.16} parent=5 // pred_check
        %p324 = pneg %p323
      $region42: #{vanila_transformer_forward.16} parent=5 // pred_check_branch
        %326 = sbr.rel (%p324) target = $region44
      $region43: #{vanila_transformer_forward.16} parent=5 // pred_region
        // Predicated region
        $region45: #{vanila_transformer_forward.16} parent=43 // pred_check
          %p327 = pneg %p38
        $region46: #{vanila_transformer_forward.16} parent=43 // pred_check_branch
          %329 = sbr.rel (%p327) target = $region48
        $region47: #{vanila_transformer_forward.16} parent=43 // pred_region
          %p330 = scmp.lt.s32.totalorder %s18, 1
          %s331 = scalar_select %p330, %s18, 1
          %s332 = smul.addr %s331, 8
          %s333 = scalar_lea.vmem %s0, %s332
        $region48: #{vanila_transformer_forward.16} parent=43 // pred_fallthru
          _
        // Predicated region
        $region49: #{vanila_transformer_forward.16} parent=43 // pred_check
          %p334 = pneg %p64
        $region50: #{vanila_transformer_forward.16} parent=43 // pred_check_branch
          %336 = sbr.rel (%p334) target = $region52
        $region51: #{vanila_transformer_forward.16} parent=43 // pred_region
          %p337 = scmp.lt.s32.totalorder %s18, 1
          %s338 = scalar_select %p337, %s18, 1
          %s339 = smul.addr %s338, 8
          %s340 = scalar_lea.vmem %s1, %s339
        $region52: #{vanila_transformer_forward.16} parent=43 // pred_fallthru
          _
        // Predicated region
        $region53: #{vanila_transformer_forward.16} parent=43 // pred_check
          %p341 = pneg %p195
        $region54: #{vanila_transformer_forward.16} parent=43 // pred_check_branch
          %343 = sbr.rel (%p341) target = $region56
        $region55: #{vanila_transformer_forward.16} parent=43 // pred_region
          %p344 = scmp.lt.s32.totalorder %s18, 1
          %s345 = scalar_select %p344, %s18, 1
          %s346 = scalar_lea.vmem %s7, %s345
        $region56: #{vanila_transformer_forward.16} parent=43 // pred_fallthru
          _
      $region44: #{vanila_transformer_forward.16} parent=5 // pred_fallthru
        _
      %p347 = scmp.le.s32.totalorder 1, %s18
      %p348 = scmp.lt.s32.totalorder %s18, 3
      %p349 = pnand %p347, %p348
      %p350 = pneg %p349
      // Predicated region
      $region57: #{vanila_transformer_forward.16} parent=5 // pred_check
        _
      $region58: #{vanila_transformer_forward.16} parent=5 // pred_check_branch
        %352 = sbr.rel (%p349) target = $region60
      $region59: #{vanila_transformer_forward.16} parent=5 // pred_region
        %s353 = ssub.s32 %s18, 1
        // Predicated region
        $region61: #{vanila_transformer_forward.16} parent=59 // pred_check
          %p354 = pneg %p222
        $region62: #{vanila_transformer_forward.16} parent=59 // pred_check_branch
          %356 = sbr.rel (%p354) target = $region64
        $region63: #{vanila_transformer_forward.16} parent=59 // pred_region
          %358 = dma.done [#allocation3], 16
        $region64: #{vanila_transformer_forward.16} parent=59 // pred_fallthru
          _
        // Predicated region
        $region65: #{vanila_transformer_forward.16} parent=59 // pred_check
          %p359 = pneg %p243
        $region66: #{vanila_transformer_forward.16} parent=59 // pred_check_branch
          %361 = sbr.rel (%p359) target = $region68
        $region67: #{vanila_transformer_forward.16} parent=59 // pred_region
          %363 = dma.done [#allocation5], 16
        $region68: #{vanila_transformer_forward.16} parent=59 // pred_fallthru
          _
        %p364 = scmp.lt.s32.totalorder %s23, 1
        %s365 = scalar_select %p364, %s23, 1
        %s366 = smul.addr %s365, 8
        %s367 = scalar_lea.vmem %s0, %s366
        %p368 = pneg %p44
        %p369 = pneg %p41
        %p370 = scmp.lt.s32.totalorder %s23, 1
        %s371 = scalar_select %p370, %s23, 1
        %s372 = smul.addr %s371, 8
        %s373 = scalar_lea.vmem %s1, %s372
        %p374 = pneg %p70
        %p375 = pneg %p67
        %p376 = pneg %p91
        %p377 = pneg %p88
        %p378 = pneg %p112
        %p379 = pneg %p109
        %p380 = pneg %p133
        %p381 = pneg %p130
        %p382 = pneg %p154
        %p383 = pneg %p151
        %p384 = pneg %p175
        %p385 = pneg %p172
        %p386 = scmp.lt.s32.totalorder %s23, 1
        %s387 = scalar_select %p386, %s23, 1
        %s388 = scalar_lea.vmem %s7, %s387
        %p389 = pneg %p201
        %p390 = pneg %p198
        %p391 = pneg %p222
        %p392 = pneg %p219
        %p393 = pneg %p243
        %p394 = pneg %p240
        %p395 = pneg %p269
        %p396 = pneg %p266
        %p397 = scmp.lt.s32.totalorder %s23, 1
        %s398 = scalar_select %p397, %s23, 1
        %s399 = smul.addr %s398, 8
        %s400 = scalar_lea.vmem %s10, %s399
        %p401 = scmp.lt.s32.totalorder %s23, 1
        %s402 = scalar_select %p401, %s23, 1
        %s403 = smul.addr %s402, 8
        %s404 = scalar_lea.vmem %s0, %s403
        %p405 = scmp.lt.s32.totalorder %s23, 1
        %s406 = scalar_select %p405, %s23, 1
        %s407 = smul.addr %s406, 8
        %s408 = scalar_lea.vmem %s1, %s407
        %p409 = scmp.lt.s32.totalorder %s23, 1
        %s410 = scalar_select %p409, %s23, 1
        %s411 = scalar_lea.vmem %s7, %s410
        %p412 = scmp.lt.s32.totalorder %s23, 1
        %s413 = scalar_select %p412, %s23, 1
        %s414 = smul.addr %s413, 8
        %s415 = scalar_lea.vmem %s10, %s414
        %v417 = vld [vmem:[%s404] sm:$0xff]
        %v418 = vld [vmem:[%s2] sm:$0xf]
        %v419 = vld [vmem:[%s2 + $0x4] sm:$0xf]
        %v420 = vld [vmem:[%s2 + $0x8] sm:$0xf]
        %v421 = vld [vmem:[%s2 + $0xc] sm:$0xf]
        %v422 = vld [vmem:[%s3] sm:$0x1]
        %v423 = vpack.c.bf16 %v417, %v417
        %v424 = vld [vmem:[%s408] sm:$0xff]
        %v425 = vpack.c.bf16 %v424, %v424
        %v427 = vperm.slane %v422, 0
        %v433 = vunpack.c.l.b16 %v418
        %v434 = vunpack.c.l.b16 %v419
        %v435 = vunpack.c.l.b16 %v420
        %v436 = vunpack.c.l.b16 %v421
        %v437 = vpack.c.b16 %v434, %v433
        %v438 = vpack.c.b16 %v436, %v435
        %vm441 = vcmask 261120
        %v443 = vsel %vm441, %v423, 0
        %445 = vmatpush.bf16.msra.mxu0 0
        %446 = vmatpush.bf16.msra.mxu0 0
        %447 = vmatpush.bf16.msra.mxu0 0
        %448 = vmatpush.bf16.msra.mxu0 0
        %449 = vmatpush.bf16.msra.mxu0 0
        %450 = vmatpush.bf16.msra.mxu0 0
        %451 = vmatpush.bf16.msra.mxu0 %v438
        %452 = vmatpush.bf16.msra.mxu0 %v437
        %453 = vmatmul.bf16.gmra.mxu0 %v443
        %v454 = vpop.f32.mrf.mxu0
        %v455 = vadd.f32 %v427, %v454
        %v456 = vpop.f32.mrf.mxu0
        %457 = vdwg.mxu0
        %458 = vrot.lane.b32.xlu0 %v437, 96
        %v459 = vpop.permute.xlu0 %458
        %460 = vrot.lane.b32.xlu0 %v438, 96
        %v461 = vpop.permute.xlu0 %460
        %464 = vrot.lane.b32.xlu0 %v427, 96
        %v465 = vpop.permute.xlu0 %464
        %v468 = vsel %vm441, %v425, 0
        %470 = vmatpush.bf16.msra.mxu0 0
        %471 = vmatpush.bf16.msra.mxu0 0
        %472 = vmatpush.bf16.msra.mxu0 0
        %473 = vmatpush.bf16.msra.mxu0 0
        %474 = vmatpush.bf16.msra.mxu0 0
        %475 = vmatpush.bf16.msra.mxu0 0
        %476 = vmatpush.bf16.msra.mxu0 %v461
        %477 = vmatpush.bf16.msra.mxu0 %v459
        %478 = vmatmul.bf16.gmra.mxu0 %v468
        %v479 = vpop.f32.mrf.mxu0
        %v480 = vadd.f32 %v465, %v479
        %v481 = vpop.f32.mrf.mxu0
        %482 = vdwg.mxu0
        %v483 = vld [vmem:[%s6] sm:$0xff]
        %v484 = vld [vmem:[%s411] sm:$0x1]
        %v486 = vperm.slane %v484, 0
        %v488 = vadd.f32 %v483, %v486
        %v489 = vld [vmem:[%s4] sm:$0xf]
        %v490 = vld [vmem:[%s4 + $0x4] sm:$0xf]
        %v491 = vld [vmem:[%s4 + $0x8] sm:$0xf]
        %v492 = vld [vmem:[%s4 + $0xc] sm:$0xf]
        %v493 = vpack.c.bf16 %v455, %v455
        %v494 = vpack.c.bf16 %v480, %v480
        %vm495 = vcmask 64512
        %v497 = vsel %vm495, %v493, 0
        %v500 = vsel %vm495, %v494, 0
        %502 = vmatpush.bf16.xpose.msra.mxu0 0
        %503 = vmatpush.bf16.xpose.msra.mxu0 0
        %504 = vmatpush.bf16.xpose.msra.mxu0 0
        %505 = vmatpush.bf16.xpose.msra.mxu0 0
        %506 = vmatpush.bf16.xpose.msra.mxu0 0
        %507 = vmatpush.bf16.xpose.msra.mxu0 0
        %508 = vmatpush.bf16.xpose.msra.mxu0 0
        %509 = vmatpush.bf16.xpose.msra.mxu0 %v500
        %510 = vmatmul.bf16.gmra.mxu0 %v497
        %v511 = vpop.f32.mrf.mxu0
        %v512 = vadd.f32 0.0, %v511
        %v513 = vpop.f32.mrf.mxu0
        %514 = vdwg.mxu0
        %v515 = vmul.f32 %v512, 0.35355338
        %v516 = vadd.f32 %v515, %v488
        %v517 = vsel %vm495, %v516, -inf
        %518 = vmax.xlane.f32.xlu0 %v517
        %v519 = vpop.xlane.xlu0 %518
        %v520 = vsub.f32 %v516, %v519
        %v521 = vmul.f32 %v520, 1.442695
        %v522 = vpow.pop %v521
        %v523 = vsel %vm495, %v522, 0.0
        %524 = vadd.xlane.f32.xlu0 %v523
        %v525 = vpop.xlane.xlu0 %524
        %v526 = vrcp.pop %v525
        %v527 = vmul.f32 %v522, %v526
        %v528 = vpack.c.bf16 %v527, %v527
        %530 = vrot.lane.b32.xlu0 %v494, 96
        %v531 = vpop.permute.xlu0 %530
        %v533 = vsel %vm495, %v528, 0
        %vm535 = vcmask 1043456
        %v537 = vsel %vm535, %v531, 0
        %539 = vmatpush.bf16.msra.mxu0 0
        %540 = vmatpush.bf16.msra.mxu0 0
        %541 = vmatpush.bf16.msra.mxu0 0
        %542 = vmatpush.bf16.msra.mxu0 0
        %543 = vmatpush.bf16.msra.mxu0 0
        %544 = vmatpush.bf16.msra.mxu0 0
        %545 = vmatpush.bf16.msra.mxu0 0
        %546 = vmatpush.bf16.msra.mxu0 %v537
        %547 = vmatmul.bf16.gmra.mxu0 %v533
        %v548 = vpop.f32.mrf.mxu0
        %v549 = vadd.f32 0.0, %v548
        %v550 = vpop.f32.mrf.mxu0
        %551 = vdwg.mxu0
        %v552 = vpack.c.bf16 %v549, %v549
        %554 = vrot.lane.b32.xlu0 %v493, 120
        %v555 = vpop.permute.xlu0 %554
        %556 = vrot.lane.b32.xlu0 %v494, 120
        %v557 = vpop.permute.xlu0 %556
        %v559 = vsel %vm495, %v555, 0
        %v562 = vsel %vm495, %v557, 0
        %564 = vmatpush.bf16.xpose.msra.mxu0 0
        %565 = vmatpush.bf16.xpose.msra.mxu0 0
        %566 = vmatpush.bf16.xpose.msra.mxu0 0
        %567 = vmatpush.bf16.xpose.msra.mxu0 0
        %568 = vmatpush.bf16.xpose.msra.mxu0 0
        %569 = vmatpush.bf16.xpose.msra.mxu0 0
        %570 = vmatpush.bf16.xpose.msra.mxu0 0
        %571 = vmatpush.bf16.xpose.msra.mxu0 %v562
        %572 = vmatmul.bf16.gmra.mxu0 %v559
        %v573 = vpop.f32.mrf.mxu0
        %v574 = vadd.f32 0.0, %v573
        %v575 = vpop.f32.mrf.mxu0
        %576 = vdwg.mxu0
        %v577 = vmul.f32 %v574, 0.35355338
        %v578 = vadd.f32 %v577, %v488
        %v579 = vsel %vm495, %v578, -inf
        %580 = vmax.xlane.f32.xlu0 %v579
        %v581 = vpop.xlane.xlu0 %580
        %v582 = vsub.f32 %v578, %v581
        %v583 = vmul.f32 %v582, 1.442695
        %v584 = vpow.pop %v583
        %v585 = vsel %vm495, %v584, 0.0
        %586 = vadd.xlane.f32.xlu0 %v585
        %v587 = vpop.xlane.xlu0 %586
        %v588 = vrcp.pop %v587
        %v589 = vmul.f32 %v584, %v588
        %v590 = vpack.c.bf16 %v589, %v589
        %591 = vrot.lane.b32.xlu0 %v494, 88
        %v592 = vpop.permute.xlu0 %591
        %v594 = vsel %vm495, %v590, 0
        %v597 = vsel %vm535, %v592, 0
        %599 = vmatpush.bf16.msra.mxu0 0
        %600 = vmatpush.bf16.msra.mxu0 0
        %601 = vmatpush.bf16.msra.mxu0 0
        %602 = vmatpush.bf16.msra.mxu0 0
        %603 = vmatpush.bf16.msra.mxu0 0
        %604 = vmatpush.bf16.msra.mxu0 0
        %605 = vmatpush.bf16.msra.mxu0 0
        %606 = vmatpush.bf16.msra.mxu0 %v597
        %607 = vmatmul.bf16.gmra.mxu0 %v594
        %v608 = vpop.f32.mrf.mxu0
        %v609 = vadd.f32 0.0, %v608
        %v610 = vpop.f32.mrf.mxu0
        %611 = vdwg.mxu0
        %v612 = vpack.c.bf16 %v609, %v609
        %v614 = vsel %vm495, %v612, 0
        %v617 = vsel %vm535, %v490, 0
        %619 = vmatpush.bf16.msra.mxu0 0
        %620 = vmatpush.bf16.msra.mxu0 0
        %621 = vmatpush.bf16.msra.mxu0 0
        %622 = vmatpush.bf16.msra.mxu0 0
        %623 = vmatpush.bf16.msra.mxu0 0
        %624 = vmatpush.bf16.msra.mxu0 0
        %625 = vmatpush.bf16.msra.mxu0 0
        %626 = vmatpush.bf16.msra.mxu0 %v617
        %627 = vmatmul.bf16.gmra.mxu0 %v614
        %v628 = vpop.f32.mrf.mxu0
        %v629 = vadd.f32 0.0, %v628
        %v630 = vpop.f32.mrf.mxu0
        %631 = vdwg.mxu0
        %v633 = vsel %vm495, %v552, 0
        %v636 = vsel %vm535, %v489, 0
        %638 = vmatpush.bf16.msra.mxu0 0
        %639 = vmatpush.bf16.msra.mxu0 0
        %640 = vmatpush.bf16.msra.mxu0 0
        %641 = vmatpush.bf16.msra.mxu0 0
        %642 = vmatpush.bf16.msra.mxu0 0
        %643 = vmatpush.bf16.msra.mxu0 0
        %644 = vmatpush.bf16.msra.mxu0 0
        %645 = vmatpush.bf16.msra.mxu0 %v636
        %646 = vmatmul.bf16.gmra.mxu0 %v633
        %v647 = vpop.f32.mrf.mxu0
        %v648 = vadd.f32 %v629, %v647
        %v649 = vpop.f32.mrf.mxu0
        %650 = vdwg.mxu0
        %651 = vrot.lane.b32.xlu0 %v493, 112
        %v652 = vpop.permute.xlu0 %651
        %653 = vrot.lane.b32.xlu0 %v494, 112
        %v654 = vpop.permute.xlu0 %653
        %v656 = vsel %vm495, %v652, 0
        %v659 = vsel %vm495, %v654, 0
        %661 = vmatpush.bf16.xpose.msra.mxu0 0
        %662 = vmatpush.bf16.xpose.msra.mxu0 0
        %663 = vmatpush.bf16.xpose.msra.mxu0 0
        %664 = vmatpush.bf16.xpose.msra.mxu0 0
        %665 = vmatpush.bf16.xpose.msra.mxu0 0
        %666 = vmatpush.bf16.xpose.msra.mxu0 0
        %667 = vmatpush.bf16.xpose.msra.mxu0 0
        %668 = vmatpush.bf16.xpose.msra.mxu0 %v659
        %669 = vmatmul.bf16.gmra.mxu0 %v656
        %v670 = vpop.f32.mrf.mxu0
        %v671 = vadd.f32 0.0, %v670
        %v672 = vpop.f32.mrf.mxu0
        %673 = vdwg.mxu0
        %v674 = vmul.f32 %v671, 0.35355338
        %v675 = vadd.f32 %v674, %v488
        %v676 = vsel %vm495, %v675, -inf
        %677 = vmax.xlane.f32.xlu0 %v676
        %v678 = vpop.xlane.xlu0 %677
        %v679 = vsub.f32 %v675, %v678
        %v680 = vmul.f32 %v679, 1.442695
        %v681 = vpow.pop %v680
        %v682 = vsel %vm495, %v681, 0.0
        %683 = vadd.xlane.f32.xlu0 %v682
        %v684 = vpop.xlane.xlu0 %683
        %v685 = vrcp.pop %v684
        %v686 = vmul.f32 %v681, %v685
        %v687 = vpack.c.bf16 %v686, %v686
        %688 = vrot.lane.b32.xlu0 %v494, 80
        %v689 = vpop.permute.xlu0 %688
        %v691 = vsel %vm495, %v687, 0
        %v694 = vsel %vm535, %v689, 0
        %696 = vmatpush.bf16.msra.mxu0 0
        %697 = vmatpush.bf16.msra.mxu0 0
        %698 = vmatpush.bf16.msra.mxu0 0
        %699 = vmatpush.bf16.msra.mxu0 0
        %700 = vmatpush.bf16.msra.mxu0 0
        %701 = vmatpush.bf16.msra.mxu0 0
        %702 = vmatpush.bf16.msra.mxu0 0
        %703 = vmatpush.bf16.msra.mxu0 %v694
        %704 = vmatmul.bf16.gmra.mxu0 %v691
        %v705 = vpop.f32.mrf.mxu0
        %v706 = vadd.f32 0.0, %v705
        %v707 = vpop.f32.mrf.mxu0
        %708 = vdwg.mxu0
        %v709 = vpack.c.bf16 %v706, %v706
        %v711 = vsel %vm495, %v709, 0
        %v714 = vsel %vm535, %v491, 0
        %716 = vmatpush.bf16.msra.mxu0 0
        %717 = vmatpush.bf16.msra.mxu0 0
        %718 = vmatpush.bf16.msra.mxu0 0
        %719 = vmatpush.bf16.msra.mxu0 0
        %720 = vmatpush.bf16.msra.mxu0 0
        %721 = vmatpush.bf16.msra.mxu0 0
        %722 = vmatpush.bf16.msra.mxu0 0
        %723 = vmatpush.bf16.msra.mxu0 %v714
        %724 = vmatmul.bf16.gmra.mxu0 %v711
        %v725 = vpop.f32.mrf.mxu0
        %v726 = vadd.f32 0.0, %v725
        %v727 = vpop.f32.mrf.mxu0
        %728 = vdwg.mxu0
        %v729 = vadd.f32 %v648, %v726
        %730 = vrot.lane.b32.xlu0 %v493, 104
        %v731 = vpop.permute.xlu0 %730
        %732 = vrot.lane.b32.xlu0 %v494, 104
        %v733 = vpop.permute.xlu0 %732
        %v735 = vsel %vm495, %v731, 0
        %v738 = vsel %vm495, %v733, 0
        %740 = vmatpush.bf16.xpose.msra.mxu0 0
        %741 = vmatpush.bf16.xpose.msra.mxu0 0
        %742 = vmatpush.bf16.xpose.msra.mxu0 0
        %743 = vmatpush.bf16.xpose.msra.mxu0 0
        %744 = vmatpush.bf16.xpose.msra.mxu0 0
        %745 = vmatpush.bf16.xpose.msra.mxu0 0
        %746 = vmatpush.bf16.xpose.msra.mxu0 0
        %747 = vmatpush.bf16.xpose.msra.mxu0 %v738
        %748 = vmatmul.bf16.gmra.mxu0 %v735
        %v749 = vpop.f32.mrf.mxu0
        %v750 = vadd.f32 0.0, %v749
        %v751 = vpop.f32.mrf.mxu0
        %752 = vdwg.mxu0
        %v753 = vmul.f32 %v750, 0.35355338
        %v754 = vadd.f32 %v753, %v488
        %v755 = vsel %vm495, %v754, -inf
        %756 = vmax.xlane.f32.xlu0 %v755
        %v757 = vpop.xlane.xlu0 %756
        %v758 = vsub.f32 %v754, %v757
        %v759 = vmul.f32 %v758, 1.442695
        %v760 = vpow.pop %v759
        %v761 = vsel %vm495, %v760, 0.0
        %762 = vadd.xlane.f32.xlu0 %v761
        %v763 = vpop.xlane.xlu0 %762
        %v764 = vrcp.pop %v763
        %v765 = vmul.f32 %v760, %v764
        %v766 = vpack.c.bf16 %v765, %v765
        %767 = vrot.lane.b32.xlu0 %v494, 72
        %v768 = vpop.permute.xlu0 %767
        %v770 = vsel %vm495, %v766, 0
        %v773 = vsel %vm535, %v768, 0
        %775 = vmatpush.bf16.msra.mxu0 0
        %776 = vmatpush.bf16.msra.mxu0 0
        %777 = vmatpush.bf16.msra.mxu0 0
        %778 = vmatpush.bf16.msra.mxu0 0
        %779 = vmatpush.bf16.msra.mxu0 0
        %780 = vmatpush.bf16.msra.mxu0 0
        %781 = vmatpush.bf16.msra.mxu0 0
        %782 = vmatpush.bf16.msra.mxu0 %v773
        %783 = vmatmul.bf16.gmra.mxu0 %v770
        %v784 = vpop.f32.mrf.mxu0
        %v785 = vadd.f32 0.0, %v784
        %v786 = vpop.f32.mrf.mxu0
        %787 = vdwg.mxu0
        %v788 = vpack.c.bf16 %v785, %v785
        %v790 = vsel %vm495, %v788, 0
        %v793 = vsel %vm535, %v492, 0
        %795 = vmatpush.bf16.msra.mxu0 0
        %796 = vmatpush.bf16.msra.mxu0 0
        %797 = vmatpush.bf16.msra.mxu0 0
        %798 = vmatpush.bf16.msra.mxu0 0
        %799 = vmatpush.bf16.msra.mxu0 0
        %800 = vmatpush.bf16.msra.mxu0 0
        %801 = vmatpush.bf16.msra.mxu0 0
        %802 = vmatpush.bf16.msra.mxu0 %v793
        %803 = vmatmul.bf16.gmra.mxu0 %v790
        %v804 = vpop.f32.mrf.mxu0
        %v805 = vadd.f32 0.0, %v804
        %v806 = vpop.f32.mrf.mxu0
        %807 = vdwg.mxu0
        %v808 = vadd.f32 %v729, %v805
        %v809 = vld [vmem:[%s5] sm:$0x1]
        %v811 = vperm.slane %v809, 0
        %v813 = vadd.f32 %v808, %v811
        %v814 = vadd.f32 %v417, %v813
        %v815 = vsel %vm441, %v814, 0.0
        %816 = vadd.xlane.f32.xlu0 %v815
        %v817 = vpop.xlane.xlu0 %816
        %v818 = vrcp.pop 32.0
        %v819 = vmul.f32 32.0, %v818
        %v820 = vsub.f32 1.0, %v819
        %v821 = vmul.f32 %v818, %v820
        %v822 = vadd.f32 %v818, %v821
        %vm823 = vweird.f32 %v818
        %v824 = vsel %vm823, %v818, %v822
        %v825 = vmul.f32 %v817, %v824
        %v826 = vsub.f32 %v814, %v825
        %v827 = vmul.f32 %v826, %v826
        %v828 = vsel %vm441, %v827, 0.0
        %829 = vadd.xlane.f32.xlu0 %v828
        %v830 = vpop.xlane.xlu0 %829
        %v831 = vmul.f32 %v830, %v824
        %v832 = vadd.f32 %v831, 1e-05
        %v833 = vrsqrt.pop %v832
        %v834 = vmul.f32 %v833, %v832
        %v835 = vmul.f32 %v834, %v833
        %v836 = vmul.f32 0.5, %v835
        %v837 = vsub.f32 1.5, %v836
        %v838 = vmul.f32 %v833, %v837
        %vm839 = vweird.f32 %v832
        %vm840 = vweird.f32 %v833
        %vm841 = vmor %vm839, %vm840
        %v842 = vsel %vm841, %v833, %v838
        %v843 = vmul.f32 %v826, %v842
        %v844 = vld [vmem:[#allocation2] sm:$0x1]
        %v846 = vperm.slane %v844, 0
        %v848 = vmul.f32 %v843, %v846
        %v849 = vld [vmem:[#allocation4] sm:$0x1]
        %v851 = vperm.slane %v849, 0
        %v853 = vadd.f32 %v848, %v851
        %854 = vst.msk [vmem:[%s415] sm:$0xff] %vm441, %v853
        %p855 = scmp.lt.s32.totalorder %s23, 1
        %s856 = scalar_select %p855, %s23, 1
        %s857 = smul.addr %s856, 8
        %s858 = scalar_lea.vmem %s10, %s857
        // Predicated region
        $region69: #{vanila_transformer_forward.16} parent=59 // pred_check
          %p859 = pneg %p266
        $region70: #{vanila_transformer_forward.16} parent=59 // pred_check_branch
          %861 = sbr.rel (%p859) target = $region72
        $region71: #{vanila_transformer_forward.16} parent=59 // pred_region
          _
        $region72: #{vanila_transformer_forward.16} parent=59 // pred_fallthru
          _
      $region60: #{vanila_transformer_forward.16} parent=5 // pred_fallthru
        _
      %p862 = scmp.le.s32.totalorder 2, %s18
      // Predicated region
      $region73: #{vanila_transformer_forward.16} parent=5 // pred_check
        %p863 = pneg %p862
      $region74: #{vanila_transformer_forward.16} parent=5 // pred_check_branch
        %865 = sbr.rel (%p863) target = $region76
      $region75: #{vanila_transformer_forward.16} parent=5 // pred_region
        %s866 = ssub.s32 %s18, 2
        // Predicated region
        $region77: #{vanila_transformer_forward.16} parent=75 // pred_check
          %p867 = pneg %p272
        $region78: #{vanila_transformer_forward.16} parent=75 // pred_check_branch
          %869 = sbr.rel (%p867) target = $region80
        $region79: #{vanila_transformer_forward.16} parent=75 // pred_region
          %p870 = scmp.lt.s32.totalorder %s24, 1
          %s871 = scalar_select %p870, %s24, 1
          %s872 = smul.addr %s871, 8
          %s873 = scalar_lea.vmem %s10, %s872
        $region80: #{vanila_transformer_forward.16} parent=75 // pred_fallthru
          _
      $region76: #{vanila_transformer_forward.16} parent=5 // pred_fallthru
        _
    $region6: #{vanila_transformer_forward.16} parent=1 // loop_footer
      %s22 = sadd.s32 1, %s18
    $region7: #{vanila_transformer_forward.16} parent=1 // loop_footer_branch
      %17 = sbr.rel target = $region3
    $region8: #{vanila_transformer_forward.16} parent=1 // loop_exit
      _
    %874 = vsyncpa [#allocation3], 1
    %s875 = scalar_lea.sflag [#allocation3], 1
    %876 = vsyncpa %s875, 1
    %877 = vsyncpa [#allocation5], 1

// kernel: vanila_transformer_forward.18
$region0: #{vanila_transformer_forward.18}
  #allocation0 [shape = 'u32[]', space=smem, size = 0x4, offset = 0x4, fixed_abs, tag = 'smem constant byte address 0x4 - core index']
  #allocation1 [shape = 'u32[72,128]{1,0:T(1,128)}', space=vmem, size = 0x9000, scoped, tag = 'internal scratch']
  %s0 = inlined_call_operand.vmem [shape: f32[2,8,32], index: 0, kind: input, shape index: {}]
  %s1 = inlined_call_operand.vmem [shape: bf16[32,96], index: 1, kind: input, shape index: {}]
  %s2 = inlined_call_operand.hbm [shape: f32[1,96], index: 2, kind: input, shape index: {}]
  %s3 = inlined_call_operand.vmem [shape: bf16[32,32], index: 3, kind: input, shape index: {}]
  %s4 = inlined_call_operand.hbm [shape: f32[1,32], index: 4, kind: input, shape index: {}]
  %s5 = inlined_call_operand.vmem [shape: f32[8,8], index: 5, kind: input, shape index: {}]
  %s6 = inlined_call_operand.vmem [shape: f32[2,1,8], index: 6, kind: input, shape index: {}]
  %s7 = inlined_call_operand.hbm [shape: f32[1,32], index: 7, kind: input, shape index: {}]
  %s8 = inlined_call_operand.hbm [shape: f32[1,32], index: 8, kind: input, shape index: {}]
  %s9 = inlined_call_operand.vmem [shape: f32[2,8,32], index: 9, kind: output, shape index: {}]
  %s10 = sld [smem:[#allocation0]]
  $region85: #{vanila_transformer_forward.18} parent=0
    _
  %s12 = ssub.s32 1, %s10
  %s13 = scalar_select 0, %s12, %s10
  $region1: #{vanila_transformer_forward.18} parent=0
    #allocation2 [shape = 'u8[512]{0}', space=vmem, size = 0x400, scoped, tag = 'input window, operand 2, single buffered']
    #allocation3 [shape = 's32[2]{0}', space=sflag, size = 0x8, scoped, tag = 'scoped memory for vanila_transformer_forward.18']
    #allocation4 [shape = 'u8[512]{0}', space=vmem, size = 0x400, scoped, tag = 'input window, operand 4, single buffered']
    #allocation5 [shape = 's32[1]{0}', space=sflag, size = 0x4, scoped, tag = 'scoped memory for vanila_transformer_forward.18']
    #allocation6 [shape = 'u8[512]{0}', space=vmem, size = 0x400, scoped, tag = 'input window, operand 7, single buffered']
    #allocation7 [shape = 'u8[512]{0}', space=vmem, size = 0x400, scoped, tag = 'input window, operand 8, single buffered']
    #allocation8 [shape = 's32[1]{0}', space=sflag, size = 0x4, scoped, tag = 'scoped memory for vanila_transformer_forward.18']
    %14 = vsyncpa [#allocation3], 0
    %15 = vsyncpa [#allocation5], 0
    %16 = vsyncpa [#allocation8], 0
    loop: start=0, step=1, limit=4
    $region2: #{vanila_transformer_forward.18} parent=1 // loop_pre_header
      _
    $region3: #{vanila_transformer_forward.18} parent=1 // loop_header
      %s18 = sphi 0, %s22
      %p19 = scmp.ge.s32.totalorder %s18, 4
      %s28 = sphi 0, %s30
      %s31 = sphi 0, %s28
      %s32 = sphi 0, %s31
      %s48 = sphi 0, %s32
      %s52 = sphi 0, %s52
      %s54 = sphi 0, %s52
      %s55 = sphi 0, %s54
      %s69 = sphi 0, %s55
      %s73 = sphi 0, %s73
      %s75 = sphi 0, %s73
      %s76 = sphi 0, %s75
      %s90 = sphi 0, %s76
      %s94 = sphi 0, %s94
      %s96 = sphi 0, %s94
      %s97 = sphi 0, %s96
      %s111 = sphi 0, %s97
      %s115 = sphi 0, %s115
      %s117 = sphi 0, %s115
      %s118 = sphi 0, %s117
      %s132 = sphi 0, %s118
      %s136 = sphi 0, %s136
      %s138 = sphi 0, %s136
      %s139 = sphi 0, %s138
      %s153 = sphi 0, %s139
      %s159 = sphi 0, %s161
      %s162 = sphi 0, %s159
      %s163 = sphi 0, %s162
      %s179 = sphi 0, %s163
      %s183 = sphi 0, %s183
      %s185 = sphi 0, %s183
      %s186 = sphi 0, %s185
      %s200 = sphi 0, %s186
      %s204 = sphi 0, %s204
      %s206 = sphi 0, %s204
      %s207 = sphi 0, %s206
      %s221 = sphi 0, %s207
      %s227 = sphi 0, %s229
      %s230 = sphi 0, %s227
      %s231 = sphi 0, %s230
      %s247 = sphi 0, %s231
    $region4: #{vanila_transformer_forward.18} parent=1 // loop_header_branch
      %21 = sbr.rel (%p19) target = $region8
    $region5: #{vanila_transformer_forward.18} parent=1 // loop_body
      %s23 = ssub.s32 %s18, 1
      %s24 = ssub.s32 %s18, 2
      %s25 = sadd.s32 %s18, 1
      %s26 = ssub.s32 %s18, %s25
      %p27 = scmp.eq.s32.totalorder %s26, 0
      %s29 = sadd.s32 %s28, 1
      %s30 = scalar_select %p27, %s28, %s29
      %p33 = pneg %p27
      %p34 = scmp.eq.s32.totalorder %s18, 1
      %p35 = por %p33, %p34
      %p36 = scmp.ne.s32.totalorder %s28, %s31
      %p37 = scmp.eq.s32.totalorder %s18, 0
      %p38 = por %p36, %p37
      %p39 = scmp.ne.s32.totalorder %s28, %s31
      %p40 = scmp.eq.s32.totalorder %s23, 1
      %p41 = por %p39, %p40
      %p42 = scmp.ne.s32.totalorder %s31, %s32
      %p43 = scmp.eq.s32.totalorder %s23, 0
      %p44 = por %p42, %p43
      %p45 = scmp.ne.s32.totalorder %s31, %s32
      %p46 = scmp.eq.s32.totalorder %s24, 1
      %p47 = por %p45, %p46
      %p49 = scmp.ne.s32.totalorder %s32, %s48
      %p50 = scmp.eq.s32.totalorder %s24, 0
      %p51 = por %p49, %p50
      %s53 = sadd.s32 %s52, 1
      %p56 = scmp.eq.s32.totalorder %s18, 1
      %p57 = scmp.ne.s32.totalorder %s52, %s54
      %p58 = scmp.eq.s32.totalorder %s18, 0
      %p59 = por %p57, %p58
      %p60 = scmp.ne.s32.totalorder %s52, %s54
      %p61 = scmp.eq.s32.totalorder %s23, 1
      %p62 = por %p60, %p61
      %p63 = scmp.ne.s32.totalorder %s54, %s55
      %p64 = scmp.eq.s32.totalorder %s23, 0
      %p65 = por %p63, %p64
      %p66 = scmp.ne.s32.totalorder %s54, %s55
      %p67 = scmp.eq.s32.totalorder %s24, 1
      %p68 = por %p66, %p67
      %p70 = scmp.ne.s32.totalorder %s55, %s69
      %p71 = scmp.eq.s32.totalorder %s24, 0
      %p72 = por %p70, %p71
      %s74 = sadd.s32 %s73, 1
      %p77 = scmp.eq.s32.totalorder %s18, 1
      %p78 = scmp.ne.s32.totalorder %s73, %s75
      %p79 = scmp.eq.s32.totalorder %s18, 0
      %p80 = por %p78, %p79
      %p81 = scmp.ne.s32.totalorder %s73, %s75
      %p82 = scmp.eq.s32.totalorder %s23, 1
      %p83 = por %p81, %p82
      %p84 = scmp.ne.s32.totalorder %s75, %s76
      %p85 = scmp.eq.s32.totalorder %s23, 0
      %p86 = por %p84, %p85
      %p87 = scmp.ne.s32.totalorder %s75, %s76
      %p88 = scmp.eq.s32.totalorder %s24, 1
      %p89 = por %p87, %p88
      %p91 = scmp.ne.s32.totalorder %s76, %s90
      %p92 = scmp.eq.s32.totalorder %s24, 0
      %p93 = por %p91, %p92
      %s95 = sadd.s32 %s94, 1
      %p98 = scmp.eq.s32.totalorder %s18, 1
      %p99 = scmp.ne.s32.totalorder %s94, %s96
      %p100 = scmp.eq.s32.totalorder %s18, 0
      %p101 = por %p99, %p100
      %p102 = scmp.ne.s32.totalorder %s94, %s96
      %p103 = scmp.eq.s32.totalorder %s23, 1
      %p104 = por %p102, %p103
      %p105 = scmp.ne.s32.totalorder %s96, %s97
      %p106 = scmp.eq.s32.totalorder %s23, 0
      %p107 = por %p105, %p106
      %p108 = scmp.ne.s32.totalorder %s96, %s97
      %p109 = scmp.eq.s32.totalorder %s24, 1
      %p110 = por %p108, %p109
      %p112 = scmp.ne.s32.totalorder %s97, %s111
      %p113 = scmp.eq.s32.totalorder %s24, 0
      %p114 = por %p112, %p113
      %s116 = sadd.s32 %s115, 1
      %p119 = scmp.eq.s32.totalorder %s18, 1
      %p120 = scmp.ne.s32.totalorder %s115, %s117
      %p121 = scmp.eq.s32.totalorder %s18, 0
      %p122 = por %p120, %p121
      %p123 = scmp.ne.s32.totalorder %s115, %s117
      %p124 = scmp.eq.s32.totalorder %s23, 1
      %p125 = por %p123, %p124
      %p126 = scmp.ne.s32.totalorder %s117, %s118
      %p127 = scmp.eq.s32.totalorder %s23, 0
      %p128 = por %p126, %p127
      %p129 = scmp.ne.s32.totalorder %s117, %s118
      %p130 = scmp.eq.s32.totalorder %s24, 1
      %p131 = por %p129, %p130
      %p133 = scmp.ne.s32.totalorder %s118, %s132
      %p134 = scmp.eq.s32.totalorder %s24, 0
      %p135 = por %p133, %p134
      %s137 = sadd.s32 %s136, 1
      %p140 = scmp.eq.s32.totalorder %s18, 1
      %p141 = scmp.ne.s32.totalorder %s136, %s138
      %p142 = scmp.eq.s32.totalorder %s18, 0
      %p143 = por %p141, %p142
      %p144 = scmp.ne.s32.totalorder %s136, %s138
      %p145 = scmp.eq.s32.totalorder %s23, 1
      %p146 = por %p144, %p145
      %p147 = scmp.ne.s32.totalorder %s138, %s139
      %p148 = scmp.eq.s32.totalorder %s23, 0
      %p149 = por %p147, %p148
      %p150 = scmp.ne.s32.totalorder %s138, %s139
      %p151 = scmp.eq.s32.totalorder %s24, 1
      %p152 = por %p150, %p151
      %p154 = scmp.ne.s32.totalorder %s139, %s153
      %p155 = scmp.eq.s32.totalorder %s24, 0
      %p156 = por %p154, %p155
      %s157 = ssub.s32 %s18, %s25
      %p158 = scmp.eq.s32.totalorder %s157, 0
      %s160 = sadd.s32 %s159, 1
      %s161 = scalar_select %p158, %s159, %s160
      %p164 = pneg %p158
      %p165 = scmp.eq.s32.totalorder %s18, 1
      %p166 = por %p164, %p165
      %p167 = scmp.ne.s32.totalorder %s159, %s162
      %p168 = scmp.eq.s32.totalorder %s18, 0
      %p169 = por %p167, %p168
      %p170 = scmp.ne.s32.totalorder %s159, %s162
      %p171 = scmp.eq.s32.totalorder %s23, 1
      %p172 = por %p170, %p171
      %p173 = scmp.ne.s32.totalorder %s162, %s163
      %p174 = scmp.eq.s32.totalorder %s23, 0
      %p175 = por %p173, %p174
      %p176 = scmp.ne.s32.totalorder %s162, %s163
      %p177 = scmp.eq.s32.totalorder %s24, 1
      %p178 = por %p176, %p177
      %p180 = scmp.ne.s32.totalorder %s163, %s179
      %p181 = scmp.eq.s32.totalorder %s24, 0
      %p182 = por %p180, %p181
      %s184 = sadd.s32 %s183, 1
      %p187 = scmp.eq.s32.totalorder %s18, 1
      %p188 = scmp.ne.s32.totalorder %s183, %s185
      %p189 = scmp.eq.s32.totalorder %s18, 0
      %p190 = por %p188, %p189
      %p191 = scmp.ne.s32.totalorder %s183, %s185
      %p192 = scmp.eq.s32.totalorder %s23, 1
      %p193 = por %p191, %p192
      %p194 = scmp.ne.s32.totalorder %s185, %s186
      %p195 = scmp.eq.s32.totalorder %s23, 0
      %p196 = por %p194, %p195
      %p197 = scmp.ne.s32.totalorder %s185, %s186
      %p198 = scmp.eq.s32.totalorder %s24, 1
      %p199 = por %p197, %p198
      %p201 = scmp.ne.s32.totalorder %s186, %s200
      %p202 = scmp.eq.s32.totalorder %s24, 0
      %p203 = por %p201, %p202
      %s205 = sadd.s32 %s204, 1
      %p208 = scmp.eq.s32.totalorder %s18, 1
      %p209 = scmp.ne.s32.totalorder %s204, %s206
      %p210 = scmp.eq.s32.totalorder %s18, 0
      %p211 = por %p209, %p210
      %p212 = scmp.ne.s32.totalorder %s204, %s206
      %p213 = scmp.eq.s32.totalorder %s23, 1
      %p214 = por %p212, %p213
      %p215 = scmp.ne.s32.totalorder %s206, %s207
      %p216 = scmp.eq.s32.totalorder %s23, 0
      %p217 = por %p215, %p216
      %p218 = scmp.ne.s32.totalorder %s206, %s207
      %p219 = scmp.eq.s32.totalorder %s24, 1
      %p220 = por %p218, %p219
      %p222 = scmp.ne.s32.totalorder %s207, %s221
      %p223 = scmp.eq.s32.totalorder %s24, 0
      %p224 = por %p222, %p223
      %s225 = ssub.s32 %s18, %s25
      %p226 = scmp.eq.s32.totalorder %s225, 0
      %s228 = sadd.s32 %s227, 1
      %s229 = scalar_select %p226, %s227, %s228
      %p232 = pneg %p226
      %p233 = scmp.eq.s32.totalorder %s18, 1
      %p234 = por %p232, %p233
      %p235 = scmp.ne.s32.totalorder %s227, %s230
      %p236 = scmp.eq.s32.totalorder %s18, 0
      %p237 = por %p235, %p236
      %p238 = scmp.ne.s32.totalorder %s227, %s230
      %p239 = scmp.eq.s32.totalorder %s23, 1
      %p240 = por %p238, %p239
      %p241 = scmp.ne.s32.totalorder %s230, %s231
      %p242 = scmp.eq.s32.totalorder %s23, 0
      %p243 = por %p241, %p242
      %p244 = scmp.ne.s32.totalorder %s230, %s231
      %p245 = scmp.eq.s32.totalorder %s24, 1
      %p246 = por %p244, %p245
      %p248 = scmp.ne.s32.totalorder %s231, %s247
      %p249 = scmp.eq.s32.totalorder %s24, 0
      %p250 = por %p248, %p249
      %p251 = scmp.le.s32.totalorder 1, %s18
      %p252 = scmp.lt.s32.totalorder %s18, 3
      %p253 = pnand %p251, %p252
      %p254 = pneg %p253
      // Predicated region
      $region9: #{vanila_transformer_forward.18} parent=5 // pred_check
        _
      $region10: #{vanila_transformer_forward.18} parent=5 // pred_check_branch
        %256 = sbr.rel (%p253) target = $region12
      $region11: #{vanila_transformer_forward.18} parent=5 // pred_region
        %s257 = ssub.s32 %s18, 1
        // Predicated region
        $region13: #{vanila_transformer_forward.18} parent=11 // pred_check
          %p258 = pneg %p65
        $region14: #{vanila_transformer_forward.18} parent=11 // pred_check_branch
          %260 = sbr.rel (%p258) target = $region16
        $region15: #{vanila_transformer_forward.18} parent=11 // pred_region
          _
        $region16: #{vanila_transformer_forward.18} parent=11 // pred_fallthru
          _
        // Predicated region
        $region17: #{vanila_transformer_forward.18} parent=11 // pred_check
          %p261 = pneg %p86
        $region18: #{vanila_transformer_forward.18} parent=11 // pred_check_branch
          %263 = sbr.rel (%p261) target = $region20
        $region19: #{vanila_transformer_forward.18} parent=11 // pred_region
          %265 = vsyncadd [#allocation3], 0
          %s267 = sshll.u32 %s2, 4
          %s268 = int_to_ptr.hbm [resolvable:$true] %s267
          %s269 = sshll.u32 [#allocation2], 4
          %s270 = int_to_ptr.vmem [resolvable:$true] %s269
          %272 = dma.hbm_to_vmem [thread:$0]  %s268, 16, %s270, [#allocation3]
        $region20: #{vanila_transformer_forward.18} parent=11 // pred_fallthru
          _
        // Predicated region
        $region21: #{vanila_transformer_forward.18} parent=11 // pred_check
          %p273 = pneg %p107
        $region22: #{vanila_transformer_forward.18} parent=11 // pred_check_branch
          %275 = sbr.rel (%p273) target = $region24
        $region23: #{vanila_transformer_forward.18} parent=11 // pred_region
          _
        $region24: #{vanila_transformer_forward.18} parent=11 // pred_fallthru
          _
        // Predicated region
        $region25: #{vanila_transformer_forward.18} parent=11 // pred_check
          %p276 = pneg %p128
        $region26: #{vanila_transformer_forward.18} parent=11 // pred_check_branch
          %278 = sbr.rel (%p276) target = $region28
        $region27: #{vanila_transformer_forward.18} parent=11 // pred_region
          %280 = vsyncadd [#allocation5], 0
          %s282 = sshll.u32 %s4, 4
          %s283 = int_to_ptr.hbm [resolvable:$true] %s282
          %s284 = sshll.u32 [#allocation4], 4
          %s285 = int_to_ptr.vmem [resolvable:$true] %s284
          %287 = dma.hbm_to_vmem [thread:$0]  %s283, 16, %s285, [#allocation5]
        $region28: #{vanila_transformer_forward.18} parent=11 // pred_fallthru
          _
        // Predicated region
        $region29: #{vanila_transformer_forward.18} parent=11 // pred_check
          %p288 = pneg %p149
        $region30: #{vanila_transformer_forward.18} parent=11 // pred_check_branch
          %290 = sbr.rel (%p288) target = $region32
        $region31: #{vanila_transformer_forward.18} parent=11 // pred_region
          _
        $region32: #{vanila_transformer_forward.18} parent=11 // pred_fallthru
          _
        // Predicated region
        $region33: #{vanila_transformer_forward.18} parent=11 // pred_check
          %p291 = pneg %p196
        $region34: #{vanila_transformer_forward.18} parent=11 // pred_check_branch
          %293 = sbr.rel (%p291) target = $region36
        $region35: #{vanila_transformer_forward.18} parent=11 // pred_region
          %295 = vsyncadd [#allocation5], 0
          %s297 = sshll.u32 %s7, 4
          %s298 = int_to_ptr.hbm [resolvable:$true] %s297
          %s299 = sshll.u32 [#allocation6], 4
          %s300 = int_to_ptr.vmem [resolvable:$true] %s299
          %302 = dma.hbm_to_vmem [thread:$0]  %s298, 16, %s300, [#allocation5]
        $region36: #{vanila_transformer_forward.18} parent=11 // pred_fallthru
          _
        // Predicated region
        $region37: #{vanila_transformer_forward.18} parent=11 // pred_check
          %p303 = pneg %p217
        $region38: #{vanila_transformer_forward.18} parent=11 // pred_check_branch
          %305 = sbr.rel (%p303) target = $region40
        $region39: #{vanila_transformer_forward.18} parent=11 // pred_region
          %307 = vsyncadd [#allocation8], 0
          %s309 = sshll.u32 %s8, 4
          %s310 = int_to_ptr.hbm [resolvable:$true] %s309
          %s311 = sshll.u32 [#allocation7], 4
          %s312 = int_to_ptr.vmem [resolvable:$true] %s311
          %314 = dma.hbm_to_vmem [thread:$0]  %s310, 16, %s312, [#allocation8]
        $region40: #{vanila_transformer_forward.18} parent=11 // pred_fallthru
          _
      $region12: #{vanila_transformer_forward.18} parent=5 // pred_fallthru
        _
      %p315 = scmp.lt.s32.totalorder %s18, 2
      // Predicated region
      $region41: #{vanila_transformer_forward.18} parent=5 // pred_check
        %p316 = pneg %p315
      $region42: #{vanila_transformer_forward.18} parent=5 // pred_check_branch
        %318 = sbr.rel (%p316) target = $region44
      $region43: #{vanila_transformer_forward.18} parent=5 // pred_region
        // Predicated region
        $region45: #{vanila_transformer_forward.18} parent=43 // pred_check
          %p319 = pneg %p38
        $region46: #{vanila_transformer_forward.18} parent=43 // pred_check_branch
          %321 = sbr.rel (%p319) target = $region48
        $region47: #{vanila_transformer_forward.18} parent=43 // pred_region
          %p322 = scmp.lt.s32.totalorder %s18, 1
          %s323 = scalar_select %p322, %s18, 1
          %s324 = smul.addr %s323, 8
          %s325 = scalar_lea.vmem %s0, %s324
        $region48: #{vanila_transformer_forward.18} parent=43 // pred_fallthru
          _
        // Predicated region
        $region49: #{vanila_transformer_forward.18} parent=43 // pred_check
          %p326 = pneg %p169
        $region50: #{vanila_transformer_forward.18} parent=43 // pred_check_branch
          %328 = sbr.rel (%p326) target = $region52
        $region51: #{vanila_transformer_forward.18} parent=43 // pred_region
          %p329 = scmp.lt.s32.totalorder %s18, 1
          %s330 = scalar_select %p329, %s18, 1
          %s331 = scalar_lea.vmem %s6, %s330
        $region52: #{vanila_transformer_forward.18} parent=43 // pred_fallthru
          _
      $region44: #{vanila_transformer_forward.18} parent=5 // pred_fallthru
        _
      %p332 = scmp.le.s32.totalorder 1, %s18
      %p333 = scmp.lt.s32.totalorder %s18, 3
      %p334 = pnand %p332, %p333
      %p335 = pneg %p334
      // Predicated region
      $region53: #{vanila_transformer_forward.18} parent=5 // pred_check
        _
      $region54: #{vanila_transformer_forward.18} parent=5 // pred_check_branch
        %337 = sbr.rel (%p334) target = $region56
      $region55: #{vanila_transformer_forward.18} parent=5 // pred_region
        %s338 = ssub.s32 %s18, 1
        // Predicated region
        $region57: #{vanila_transformer_forward.18} parent=55 // pred_check
          %p339 = pneg %p86
        $region58: #{vanila_transformer_forward.18} parent=55 // pred_check_branch
          %341 = sbr.rel (%p339) target = $region60
        $region59: #{vanila_transformer_forward.18} parent=55 // pred_region
          %343 = dma.done [#allocation3], 16
        $region60: #{vanila_transformer_forward.18} parent=55 // pred_fallthru
          _
        // Predicated region
        $region61: #{vanila_transformer_forward.18} parent=55 // pred_check
          %p344 = pneg %p128
        $region62: #{vanila_transformer_forward.18} parent=55 // pred_check_branch
          %346 = sbr.rel (%p344) target = $region64
        $region63: #{vanila_transformer_forward.18} parent=55 // pred_region
          %348 = dma.done [#allocation5], 16
        $region64: #{vanila_transformer_forward.18} parent=55 // pred_fallthru
          _
        // Predicated region
        $region65: #{vanila_transformer_forward.18} parent=55 // pred_check
          %p349 = pneg %p196
        $region66: #{vanila_transformer_forward.18} parent=55 // pred_check_branch
          %351 = sbr.rel (%p349) target = $region68
        $region67: #{vanila_transformer_forward.18} parent=55 // pred_region
          %353 = dma.done [#allocation5], 16
        $region68: #{vanila_transformer_forward.18} parent=55 // pred_fallthru
          _
        // Predicated region
        $region69: #{vanila_transformer_forward.18} parent=55 // pred_check
          %p354 = pneg %p217
        $region70: #{vanila_transformer_forward.18} parent=55 // pred_check_branch
          %356 = sbr.rel (%p354) target = $region72
        $region71: #{vanila_transformer_forward.18} parent=55 // pred_region
          %358 = dma.done [#allocation8], 16
        $region72: #{vanila_transformer_forward.18} parent=55 // pred_fallthru
          _
        %p359 = scmp.lt.s32.totalorder %s23, 1
        %s360 = scalar_select %p359, %s23, 1
        %s361 = smul.addr %s360, 8
        %s362 = scalar_lea.vmem %s0, %s361
        %p363 = pneg %p44
        %p364 = pneg %p41
        %p365 = pneg %p65
        %p366 = pneg %p62
        %p367 = pneg %p86
        %p368 = pneg %p83
        %p369 = pneg %p107
        %p370 = pneg %p104
        %p371 = pneg %p128
        %p372 = pneg %p125
        %p373 = pneg %p149
        %p374 = pneg %p146
        %p375 = scmp.lt.s32.totalorder %s23, 1
        %s376 = scalar_select %p375, %s23, 1
        %s377 = scalar_lea.vmem %s6, %s376
        %p378 = pneg %p175
        %p379 = pneg %p172
        %p380 = pneg %p196
        %p381 = pneg %p193
        %p382 = pneg %p217
        %p383 = pneg %p214
        %p384 = pneg %p243
        %p385 = pneg %p240
        %p386 = scmp.lt.s32.totalorder %s23, 1
        %s387 = scalar_select %p386, %s23, 1
        %s388 = smul.addr %s387, 8
        %s389 = scalar_lea.vmem %s9, %s388
        %p390 = scmp.lt.s32.totalorder %s23, 1
        %s391 = scalar_select %p390, %s23, 1
        %s392 = smul.addr %s391, 8
        %s393 = scalar_lea.vmem %s0, %s392
        %p394 = scmp.lt.s32.totalorder %s23, 1
        %s395 = scalar_select %p394, %s23, 1
        %s396 = scalar_lea.vmem %s6, %s395
        %p397 = scmp.lt.s32.totalorder %s23, 1
        %s398 = scalar_select %p397, %s23, 1
        %s399 = smul.addr %s398, 8
        %s400 = scalar_lea.vmem %s9, %s399
        %v402 = vld [vmem:[%s393] sm:$0xff]
        %v403 = vld [vmem:[%s1] sm:$0xf]
        %v404 = vld [vmem:[%s1 + $0x4] sm:$0xf]
        %v405 = vld [vmem:[%s1 + $0x8] sm:$0xf]
        %v406 = vld [vmem:[%s1 + $0xc] sm:$0xf]
        %v407 = vld [vmem:[#allocation2] sm:$0x1]
        %v408 = vpack.c.bf16 %v402, %v402
        %v410 = vperm.slane %v407, 0
        %v416 = vunpack.c.l.b16 %v403
        %v417 = vunpack.c.l.b16 %v404
        %v418 = vunpack.c.l.b16 %v405
        %v419 = vunpack.c.l.b16 %v406
        %v420 = vpack.c.b16 %v417, %v416
        %v421 = vpack.c.b16 %v419, %v418
        %vm424 = vcmask 261120
        %v426 = vsel %vm424, %v408, 0
        %428 = vmatpush.bf16.msra.mxu0 0
        %429 = vmatpush.bf16.msra.mxu0 0
        %430 = vmatpush.bf16.msra.mxu0 0
        %431 = vmatpush.bf16.msra.mxu0 0
        %432 = vmatpush.bf16.msra.mxu0 0
        %433 = vmatpush.bf16.msra.mxu0 0
        %434 = vmatpush.bf16.msra.mxu0 %v421
        %435 = vmatpush.bf16.msra.mxu0 %v420
        %436 = vmatmul.bf16.gmra.mxu0 %v426
        %v437 = vpop.f32.mrf.mxu0
        %v438 = vadd.f32 %v410, %v437
        %v439 = vpop.f32.mrf.mxu0
        %440 = vdwg.mxu0
        %v441 = vld [vmem:[%s5] sm:$0xff]
        %v442 = vld [vmem:[%s396] sm:$0x1]
        %v444 = vperm.slane %v442, 0
        %v446 = vadd.f32 %v441, %v444
        %v447 = vld [vmem:[%s3] sm:$0xf]
        %v448 = vld [vmem:[%s3 + $0x4] sm:$0xf]
        %v449 = vld [vmem:[%s3 + $0x8] sm:$0xf]
        %v450 = vld [vmem:[%s3 + $0xc] sm:$0xf]
        %v451 = vpack.c.bf16 %v438, %v438
        %453 = vrot.lane.b32.xlu0 %v451, 96
        %v454 = vpop.permute.xlu0 %453
        %vm455 = vcmask 64512
        %v457 = vsel %vm455, %v451, 0
        %v460 = vsel %vm455, %v454, 0
        %462 = vmatpush.bf16.xpose.msra.mxu0 0
        %463 = vmatpush.bf16.xpose.msra.mxu0 0
        %464 = vmatpush.bf16.xpose.msra.mxu0 0
        %465 = vmatpush.bf16.xpose.msra.mxu0 0
        %466 = vmatpush.bf16.xpose.msra.mxu0 0
        %467 = vmatpush.bf16.xpose.msra.mxu0 0
        %468 = vmatpush.bf16.xpose.msra.mxu0 0
        %469 = vmatpush.bf16.xpose.msra.mxu0 %v460
        %470 = vmatmul.bf16.gmra.mxu0 %v457
        %v471 = vpop.f32.mrf.mxu0
        %v472 = vadd.f32 0.0, %v471
        %v473 = vpop.f32.mrf.mxu0
        %474 = vdwg.mxu0
        %v475 = vmul.f32 %v472, 0.35355338
        %v476 = vadd.f32 %v475, %v446
        %v477 = vsel %vm455, %v476, -inf
        %478 = vmax.xlane.f32.xlu0 %v477
        %v479 = vpop.xlane.xlu0 %478
        %v480 = vsub.f32 %v476, %v479
        %v481 = vmul.f32 %v480, 1.442695
        %v482 = vpow.pop %v481
        %v483 = vsel %vm455, %v482, 0.0
        %484 = vadd.xlane.f32.xlu0 %v483
        %v485 = vpop.xlane.xlu0 %484
        %v486 = vrcp.pop %v485
        %v487 = vmul.f32 %v482, %v486
        %v488 = vpack.c.bf16 %v487, %v487
        %489 = vrot.lane.b32.xlu0 %v451, 64
        %v490 = vpop.permute.xlu0 %489
        %v492 = vsel %vm455, %v488, 0
        %vm494 = vcmask 1043456
        %v496 = vsel %vm494, %v490, 0
        %498 = vmatpush.bf16.msra.mxu0 0
        %499 = vmatpush.bf16.msra.mxu0 0
        %500 = vmatpush.bf16.msra.mxu0 0
        %501 = vmatpush.bf16.msra.mxu0 0
        %502 = vmatpush.bf16.msra.mxu0 0
        %503 = vmatpush.bf16.msra.mxu0 0
        %504 = vmatpush.bf16.msra.mxu0 0
        %505 = vmatpush.bf16.msra.mxu0 %v496
        %506 = vmatmul.bf16.gmra.mxu0 %v492
        %v507 = vpop.f32.mrf.mxu0
        %v508 = vadd.f32 0.0, %v507
        %v509 = vpop.f32.mrf.mxu0
        %510 = vdwg.mxu0
        %v511 = vpack.c.bf16 %v508, %v508
        %512 = vrot.lane.b32.xlu0 %v451, 120
        %v513 = vpop.permute.xlu0 %512
        %514 = vrot.lane.b32.xlu0 %v451, 88
        %v515 = vpop.permute.xlu0 %514
        %v517 = vsel %vm455, %v513, 0
        %v520 = vsel %vm455, %v515, 0
        %522 = vmatpush.bf16.xpose.msra.mxu0 0
        %523 = vmatpush.bf16.xpose.msra.mxu0 0
        %524 = vmatpush.bf16.xpose.msra.mxu0 0
        %525 = vmatpush.bf16.xpose.msra.mxu0 0
        %526 = vmatpush.bf16.xpose.msra.mxu0 0
        %527 = vmatpush.bf16.xpose.msra.mxu0 0
        %528 = vmatpush.bf16.xpose.msra.mxu0 0
        %529 = vmatpush.bf16.xpose.msra.mxu0 %v520
        %530 = vmatmul.bf16.gmra.mxu0 %v517
        %v531 = vpop.f32.mrf.mxu0
        %v532 = vadd.f32 0.0, %v531
        %v533 = vpop.f32.mrf.mxu0
        %534 = vdwg.mxu0
        %v535 = vmul.f32 %v532, 0.35355338
        %v536 = vadd.f32 %v535, %v446
        %v537 = vsel %vm455, %v536, -inf
        %538 = vmax.xlane.f32.xlu0 %v537
        %v539 = vpop.xlane.xlu0 %538
        %v540 = vsub.f32 %v536, %v539
        %v541 = vmul.f32 %v540, 1.442695
        %v542 = vpow.pop %v541
        %v543 = vsel %vm455, %v542, 0.0
        %544 = vadd.xlane.f32.xlu0 %v543
        %v545 = vpop.xlane.xlu0 %544
        %v546 = vrcp.pop %v545
        %v547 = vmul.f32 %v542, %v546
        %v548 = vpack.c.bf16 %v547, %v547
        %549 = vrot.lane.b32.xlu0 %v451, 56
        %v550 = vpop.permute.xlu0 %549
        %v552 = vsel %vm455, %v548, 0
        %v555 = vsel %vm494, %v550, 0
        %557 = vmatpush.bf16.msra.mxu0 0
        %558 = vmatpush.bf16.msra.mxu0 0
        %559 = vmatpush.bf16.msra.mxu0 0
        %560 = vmatpush.bf16.msra.mxu0 0
        %561 = vmatpush.bf16.msra.mxu0 0
        %562 = vmatpush.bf16.msra.mxu0 0
        %563 = vmatpush.bf16.msra.mxu0 0
        %564 = vmatpush.bf16.msra.mxu0 %v555
        %565 = vmatmul.bf16.gmra.mxu0 %v552
        %v566 = vpop.f32.mrf.mxu0
        %v567 = vadd.f32 0.0, %v566
        %v568 = vpop.f32.mrf.mxu0
        %569 = vdwg.mxu0
        %v570 = vpack.c.bf16 %v567, %v567
        %v572 = vsel %vm455, %v570, 0
        %v575 = vsel %vm494, %v448, 0
        %577 = vmatpush.bf16.msra.mxu0 0
        %578 = vmatpush.bf16.msra.mxu0 0
        %579 = vmatpush.bf16.msra.mxu0 0
        %580 = vmatpush.bf16.msra.mxu0 0
        %581 = vmatpush.bf16.msra.mxu0 0
        %582 = vmatpush.bf16.msra.mxu0 0
        %583 = vmatpush.bf16.msra.mxu0 0
        %584 = vmatpush.bf16.msra.mxu0 %v575
        %585 = vmatmul.bf16.gmra.mxu0 %v572
        %v586 = vpop.f32.mrf.mxu0
        %v587 = vadd.f32 0.0, %v586
        %v588 = vpop.f32.mrf.mxu0
        %589 = vdwg.mxu0
        %v591 = vsel %vm455, %v511, 0
        %v594 = vsel %vm494, %v447, 0
        %596 = vmatpush.bf16.msra.mxu0 0
        %597 = vmatpush.bf16.msra.mxu0 0
        %598 = vmatpush.bf16.msra.mxu0 0
        %599 = vmatpush.bf16.msra.mxu0 0
        %600 = vmatpush.bf16.msra.mxu0 0
        %601 = vmatpush.bf16.msra.mxu0 0
        %602 = vmatpush.bf16.msra.mxu0 0
        %603 = vmatpush.bf16.msra.mxu0 %v594
        %604 = vmatmul.bf16.gmra.mxu0 %v591
        %v605 = vpop.f32.mrf.mxu0
        %v606 = vadd.f32 %v587, %v605
        %v607 = vpop.f32.mrf.mxu0
        %608 = vdwg.mxu0
        %609 = vrot.lane.b32.xlu0 %v451, 112
        %v610 = vpop.permute.xlu0 %609
        %611 = vrot.lane.b32.xlu0 %v451, 80
        %v612 = vpop.permute.xlu0 %611
        %v614 = vsel %vm455, %v610, 0
        %v617 = vsel %vm455, %v612, 0
        %619 = vmatpush.bf16.xpose.msra.mxu0 0
        %620 = vmatpush.bf16.xpose.msra.mxu0 0
        %621 = vmatpush.bf16.xpose.msra.mxu0 0
        %622 = vmatpush.bf16.xpose.msra.mxu0 0
        %623 = vmatpush.bf16.xpose.msra.mxu0 0
        %624 = vmatpush.bf16.xpose.msra.mxu0 0
        %625 = vmatpush.bf16.xpose.msra.mxu0 0
        %626 = vmatpush.bf16.xpose.msra.mxu0 %v617
        %627 = vmatmul.bf16.gmra.mxu0 %v614
        %v628 = vpop.f32.mrf.mxu0
        %v629 = vadd.f32 0.0, %v628
        %v630 = vpop.f32.mrf.mxu0
        %631 = vdwg.mxu0
        %v632 = vmul.f32 %v629, 0.35355338
        %v633 = vadd.f32 %v632, %v446
        %v634 = vsel %vm455, %v633, -inf
        %635 = vmax.xlane.f32.xlu0 %v634
        %v636 = vpop.xlane.xlu0 %635
        %v637 = vsub.f32 %v633, %v636
        %v638 = vmul.f32 %v637, 1.442695
        %v639 = vpow.pop %v638
        %v640 = vsel %vm455, %v639, 0.0
        %641 = vadd.xlane.f32.xlu0 %v640
        %v642 = vpop.xlane.xlu0 %641
        %v643 = vrcp.pop %v642
        %v644 = vmul.f32 %v639, %v643
        %v645 = vpack.c.bf16 %v644, %v644
        %646 = vrot.lane.b32.xlu0 %v451, 48
        %v647 = vpop.permute.xlu0 %646
        %v649 = vsel %vm455, %v645, 0
        %v652 = vsel %vm494, %v647, 0
        %654 = vmatpush.bf16.msra.mxu0 0
        %655 = vmatpush.bf16.msra.mxu0 0
        %656 = vmatpush.bf16.msra.mxu0 0
        %657 = vmatpush.bf16.msra.mxu0 0
        %658 = vmatpush.bf16.msra.mxu0 0
        %659 = vmatpush.bf16.msra.mxu0 0
        %660 = vmatpush.bf16.msra.mxu0 0
        %661 = vmatpush.bf16.msra.mxu0 %v652
        %662 = vmatmul.bf16.gmra.mxu0 %v649
        %v663 = vpop.f32.mrf.mxu0
        %v664 = vadd.f32 0.0, %v663
        %v665 = vpop.f32.mrf.mxu0
        %666 = vdwg.mxu0
        %v667 = vpack.c.bf16 %v664, %v664
        %v669 = vsel %vm455, %v667, 0
        %v672 = vsel %vm494, %v449, 0
        %674 = vmatpush.bf16.msra.mxu0 0
        %675 = vmatpush.bf16.msra.mxu0 0
        %676 = vmatpush.bf16.msra.mxu0 0
        %677 = vmatpush.bf16.msra.mxu0 0
        %678 = vmatpush.bf16.msra.mxu0 0
        %679 = vmatpush.bf16.msra.mxu0 0
        %680 = vmatpush.bf16.msra.mxu0 0
        %681 = vmatpush.bf16.msra.mxu0 %v672
        %682 = vmatmul.bf16.gmra.mxu0 %v669
        %v683 = vpop.f32.mrf.mxu0
        %v684 = vadd.f32 0.0, %v683
        %v685 = vpop.f32.mrf.mxu0
        %686 = vdwg.mxu0
        %v687 = vadd.f32 %v606, %v684
        %688 = vrot.lane.b32.xlu0 %v451, 104
        %v689 = vpop.permute.xlu0 %688
        %690 = vrot.lane.b32.xlu0 %v451, 72
        %v691 = vpop.permute.xlu0 %690
        %v693 = vsel %vm455, %v689, 0
        %v696 = vsel %vm455, %v691, 0
        %698 = vmatpush.bf16.xpose.msra.mxu0 0
        %699 = vmatpush.bf16.xpose.msra.mxu0 0
        %700 = vmatpush.bf16.xpose.msra.mxu0 0
        %701 = vmatpush.bf16.xpose.msra.mxu0 0
        %702 = vmatpush.bf16.xpose.msra.mxu0 0
        %703 = vmatpush.bf16.xpose.msra.mxu0 0
        %704 = vmatpush.bf16.xpose.msra.mxu0 0
        %705 = vmatpush.bf16.xpose.msra.mxu0 %v696
        %706 = vmatmul.bf16.gmra.mxu0 %v693
        %v707 = vpop.f32.mrf.mxu0
        %v708 = vadd.f32 0.0, %v707
        %v709 = vpop.f32.mrf.mxu0
        %710 = vdwg.mxu0
        %v711 = vmul.f32 %v708, 0.35355338
        %v712 = vadd.f32 %v711, %v446
        %v713 = vsel %vm455, %v712, -inf
        %714 = vmax.xlane.f32.xlu0 %v713
        %v715 = vpop.xlane.xlu0 %714
        %v716 = vsub.f32 %v712, %v715
        %v717 = vmul.f32 %v716, 1.442695
        %v718 = vpow.pop %v717
        %v719 = vsel %vm455, %v718, 0.0
        %720 = vadd.xlane.f32.xlu0 %v719
        %v721 = vpop.xlane.xlu0 %720
        %v722 = vrcp.pop %v721
        %v723 = vmul.f32 %v718, %v722
        %v724 = vpack.c.bf16 %v723, %v723
        %725 = vrot.lane.b32.xlu0 %v451, 40
        %v726 = vpop.permute.xlu0 %725
        %v728 = vsel %vm455, %v724, 0
        %v731 = vsel %vm494, %v726, 0
        %733 = vmatpush.bf16.msra.mxu0 0
        %734 = vmatpush.bf16.msra.mxu0 0
        %735 = vmatpush.bf16.msra.mxu0 0
        %736 = vmatpush.bf16.msra.mxu0 0
        %737 = vmatpush.bf16.msra.mxu0 0
        %738 = vmatpush.bf16.msra.mxu0 0
        %739 = vmatpush.bf16.msra.mxu0 0
        %740 = vmatpush.bf16.msra.mxu0 %v731
        %741 = vmatmul.bf16.gmra.mxu0 %v728
        %v742 = vpop.f32.mrf.mxu0
        %v743 = vadd.f32 0.0, %v742
        %v744 = vpop.f32.mrf.mxu0
        %745 = vdwg.mxu0
        %v746 = vpack.c.bf16 %v743, %v743
        %v748 = vsel %vm455, %v746, 0
        %v751 = vsel %vm494, %v450, 0
        %753 = vmatpush.bf16.msra.mxu0 0
        %754 = vmatpush.bf16.msra.mxu0 0
        %755 = vmatpush.bf16.msra.mxu0 0
        %756 = vmatpush.bf16.msra.mxu0 0
        %757 = vmatpush.bf16.msra.mxu0 0
        %758 = vmatpush.bf16.msra.mxu0 0
        %759 = vmatpush.bf16.msra.mxu0 0
        %760 = vmatpush.bf16.msra.mxu0 %v751
        %761 = vmatmul.bf16.gmra.mxu0 %v748
        %v762 = vpop.f32.mrf.mxu0
        %v763 = vadd.f32 0.0, %v762
        %v764 = vpop.f32.mrf.mxu0
        %765 = vdwg.mxu0
        %v766 = vadd.f32 %v687, %v763
        %v767 = vld [vmem:[#allocation4] sm:$0x1]
        %v769 = vperm.slane %v767, 0
        %v771 = vadd.f32 %v766, %v769
        %v772 = vadd.f32 %v402, %v771
        %v773 = vsel %vm424, %v772, 0.0
        %774 = vadd.xlane.f32.xlu0 %v773
        %v775 = vpop.xlane.xlu0 %774
        %v776 = vrcp.pop 32.0
        %v777 = vmul.f32 32.0, %v776
        %v778 = vsub.f32 1.0, %v777
        %v779 = vmul.f32 %v776, %v778
        %v780 = vadd.f32 %v776, %v779
        %vm781 = vweird.f32 %v776
        %v782 = vsel %vm781, %v776, %v780
        %v783 = vmul.f32 %v775, %v782
        %v784 = vsub.f32 %v772, %v783
        %v785 = vmul.f32 %v784, %v784
        %v786 = vsel %vm424, %v785, 0.0
        %787 = vadd.xlane.f32.xlu0 %v786
        %v788 = vpop.xlane.xlu0 %787
        %v789 = vmul.f32 %v788, %v782
        %v790 = vadd.f32 %v789, 1e-05
        %v791 = vrsqrt.pop %v790
        %v792 = vmul.f32 %v791, %v790
        %v793 = vmul.f32 %v792, %v791
        %v794 = vmul.f32 0.5, %v793
        %v795 = vsub.f32 1.5, %v794
        %v796 = vmul.f32 %v791, %v795
        %vm797 = vweird.f32 %v790
        %vm798 = vweird.f32 %v791
        %vm799 = vmor %vm797, %vm798
        %v800 = vsel %vm799, %v791, %v796
        %v801 = vmul.f32 %v784, %v800
        %v802 = vld [vmem:[#allocation6] sm:$0x1]
        %v804 = vperm.slane %v802, 0
        %v806 = vmul.f32 %v801, %v804
        %v807 = vld [vmem:[#allocation7] sm:$0x1]
        %v809 = vperm.slane %v807, 0
        %v811 = vadd.f32 %v806, %v809
        %812 = vst.msk [vmem:[%s400] sm:$0xff] %vm424, %v811
        %p813 = scmp.lt.s32.totalorder %s23, 1
        %s814 = scalar_select %p813, %s23, 1
        %s815 = smul.addr %s814, 8
        %s816 = scalar_lea.vmem %s9, %s815
        // Predicated region
        $region73: #{vanila_transformer_forward.18} parent=55 // pred_check
          %p817 = pneg %p240
        $region74: #{vanila_transformer_forward.18} parent=55 // pred_check_branch
          %819 = sbr.rel (%p817) target = $region76
        $region75: #{vanila_transformer_forward.18} parent=55 // pred_region
          _
        $region76: #{vanila_transformer_forward.18} parent=55 // pred_fallthru
          _
      $region56: #{vanila_transformer_forward.18} parent=5 // pred_fallthru
        _
      %p820 = scmp.le.s32.totalorder 2, %s18
      // Predicated region
      $region77: #{vanila_transformer_forward.18} parent=5 // pred_check
        %p821 = pneg %p820
      $region78: #{vanila_transformer_forward.18} parent=5 // pred_check_branch
        %823 = sbr.rel (%p821) target = $region80
      $region79: #{vanila_transformer_forward.18} parent=5 // pred_region
        %s824 = ssub.s32 %s18, 2
        // Predicated region
        $region81: #{vanila_transformer_forward.18} parent=79 // pred_check
          %p825 = pneg %p246
        $region82: #{vanila_transformer_forward.18} parent=79 // pred_check_branch
          %827 = sbr.rel (%p825) target = $region84
        $region83: #{vanila_transformer_forward.18} parent=79 // pred_region
          %p828 = scmp.lt.s32.totalorder %s24, 1
          %s829 = scalar_select %p828, %s24, 1
          %s830 = smul.addr %s829, 8
          %s831 = scalar_lea.vmem %s9, %s830
        $region84: #{vanila_transformer_forward.18} parent=79 // pred_fallthru
          _
      $region80: #{vanila_transformer_forward.18} parent=5 // pred_fallthru
        _
    $region6: #{vanila_transformer_forward.18} parent=1 // loop_footer
      %s22 = sadd.s32 1, %s18
    $region7: #{vanila_transformer_forward.18} parent=1 // loop_footer_branch
      %17 = sbr.rel target = $region3
    $region8: #{vanila_transformer_forward.18} parent=1 // loop_exit
      _
    %832 = vsyncpa [#allocation3], 1
    %s833 = scalar_lea.sflag [#allocation3], 1
    %834 = vsyncpa %s833, 1
    %835 = vsyncpa [#allocation5], 1
    %836 = vsyncpa [#allocation8], 1

// kernel: vanila_transformer_forward.19
$region0: #{vanila_transformer_forward.19}
  #allocation0 [shape = 'u32[]', space=smem, size = 0x4, offset = 0x4, fixed_abs, tag = 'smem constant byte address 0x4 - core index']
  #allocation1 [shape = 'u32[72,128]{1,0:T(1,128)}', space=vmem, size = 0x9000, scoped, tag = 'internal scratch']
  %s0 = inlined_call_operand.vmem [shape: f32[2,8,32], index: 0, kind: input, shape index: {}]
  %s1 = inlined_call_operand.vmem [shape: f32[2,8,32], index: 1, kind: input, shape index: {}]
  %s2 = inlined_call_operand.vmem [shape: bf16[32,96], index: 2, kind: input, shape index: {}]
  %s3 = inlined_call_operand.hbm [shape: f32[1,96], index: 3, kind: input, shape index: {}]
  %s4 = inlined_call_operand.vmem [shape: bf16[32,32], index: 4, kind: input, shape index: {}]
  %s5 = inlined_call_operand.hbm [shape: f32[1,32], index: 5, kind: input, shape index: {}]
  %s6 = inlined_call_operand.vmem [shape: f32[8,8], index: 6, kind: input, shape index: {}]
  %s7 = inlined_call_operand.vmem [shape: f32[2,1,8], index: 7, kind: input, shape index: {}]
  %s8 = inlined_call_operand.hbm [shape: f32[1,32], index: 8, kind: input, shape index: {}]
  %s9 = inlined_call_operand.hbm [shape: f32[1,32], index: 9, kind: input, shape index: {}]
  %s10 = inlined_call_operand.vmem [shape: f32[2,8,32], index: 10, kind: output, shape index: {}]
  %s11 = sld [smem:[#allocation0]]
  $region89: #{vanila_transformer_forward.19} parent=0
    _
  %s13 = ssub.s32 1, %s11
  %s14 = scalar_select 0, %s13, %s11
  $region1: #{vanila_transformer_forward.19} parent=0
    #allocation2 [shape = 'u8[512]{0}', space=vmem, size = 0x400, scoped, tag = 'input window, operand 3, single buffered']
    #allocation3 [shape = 's32[2]{0}', space=sflag, size = 0x8, scoped, tag = 'scoped memory for vanila_transformer_forward.19']
    #allocation4 [shape = 'u8[512]{0}', space=vmem, size = 0x400, scoped, tag = 'input window, operand 5, single buffered']
    #allocation5 [shape = 's32[1]{0}', space=sflag, size = 0x4, scoped, tag = 'scoped memory for vanila_transformer_forward.19']
    #allocation6 [shape = 'u8[512]{0}', space=vmem, size = 0x400, scoped, tag = 'input window, operand 8, single buffered']
    #allocation7 [shape = 'u8[512]{0}', space=vmem, size = 0x400, scoped, tag = 'input window, operand 9, single buffered']
    #allocation8 [shape = 's32[1]{0}', space=sflag, size = 0x4, scoped, tag = 'scoped memory for vanila_transformer_forward.19']
    %15 = vsyncpa [#allocation3], 0
    %16 = vsyncpa [#allocation5], 0
    %17 = vsyncpa [#allocation8], 0
    loop: start=0, step=1, limit=4
    $region2: #{vanila_transformer_forward.19} parent=1 // loop_pre_header
      _
    $region3: #{vanila_transformer_forward.19} parent=1 // loop_header
      %s19 = sphi 0, %s23
      %p20 = scmp.ge.s32.totalorder %s19, 4
      %s29 = sphi 0, %s31
      %s32 = sphi 0, %s29
      %s33 = sphi 0, %s32
      %s49 = sphi 0, %s33
      %s55 = sphi 0, %s57
      %s58 = sphi 0, %s55
      %s59 = sphi 0, %s58
      %s75 = sphi 0, %s59
      %s79 = sphi 0, %s79
      %s81 = sphi 0, %s79
      %s82 = sphi 0, %s81
      %s96 = sphi 0, %s82
      %s100 = sphi 0, %s100
      %s102 = sphi 0, %s100
      %s103 = sphi 0, %s102
      %s117 = sphi 0, %s103
      %s121 = sphi 0, %s121
      %s123 = sphi 0, %s121
      %s124 = sphi 0, %s123
      %s138 = sphi 0, %s124
      %s142 = sphi 0, %s142
      %s144 = sphi 0, %s142
      %s145 = sphi 0, %s144
      %s159 = sphi 0, %s145
      %s163 = sphi 0, %s163
      %s165 = sphi 0, %s163
      %s166 = sphi 0, %s165
      %s180 = sphi 0, %s166
      %s186 = sphi 0, %s188
      %s189 = sphi 0, %s186
      %s190 = sphi 0, %s189
      %s206 = sphi 0, %s190
      %s210 = sphi 0, %s210
      %s212 = sphi 0, %s210
      %s213 = sphi 0, %s212
      %s227 = sphi 0, %s213
      %s231 = sphi 0, %s231
      %s233 = sphi 0, %s231
      %s234 = sphi 0, %s233
      %s248 = sphi 0, %s234
      %s254 = sphi 0, %s256
      %s257 = sphi 0, %s254
      %s258 = sphi 0, %s257
      %s274 = sphi 0, %s258
    $region4: #{vanila_transformer_forward.19} parent=1 // loop_header_branch
      %22 = sbr.rel (%p20) target = $region8
    $region5: #{vanila_transformer_forward.19} parent=1 // loop_body
      %s24 = ssub.s32 %s19, 1
      %s25 = ssub.s32 %s19, 2
      %s26 = sadd.s32 %s19, 1
      %s27 = ssub.s32 %s19, %s26
      %p28 = scmp.eq.s32.totalorder %s27, 0
      %s30 = sadd.s32 %s29, 1
      %s31 = scalar_select %p28, %s29, %s30
      %p34 = pneg %p28
      %p35 = scmp.eq.s32.totalorder %s19, 1
      %p36 = por %p34, %p35
      %p37 = scmp.ne.s32.totalorder %s29, %s32
      %p38 = scmp.eq.s32.totalorder %s19, 0
      %p39 = por %p37, %p38
      %p40 = scmp.ne.s32.totalorder %s29, %s32
      %p41 = scmp.eq.s32.totalorder %s24, 1
      %p42 = por %p40, %p41
      %p43 = scmp.ne.s32.totalorder %s32, %s33
      %p44 = scmp.eq.s32.totalorder %s24, 0
      %p45 = por %p43, %p44
      %p46 = scmp.ne.s32.totalorder %s32, %s33
      %p47 = scmp.eq.s32.totalorder %s25, 1
      %p48 = por %p46, %p47
      %p50 = scmp.ne.s32.totalorder %s33, %s49
      %p51 = scmp.eq.s32.totalorder %s25, 0
      %p52 = por %p50, %p51
      %s53 = ssub.s32 %s19, %s26
      %p54 = scmp.eq.s32.totalorder %s53, 0
      %s56 = sadd.s32 %s55, 1
      %s57 = scalar_select %p54, %s55, %s56
      %p60 = pneg %p54
      %p61 = scmp.eq.s32.totalorder %s19, 1
      %p62 = por %p60, %p61
      %p63 = scmp.ne.s32.totalorder %s55, %s58
      %p64 = scmp.eq.s32.totalorder %s19, 0
      %p65 = por %p63, %p64
      %p66 = scmp.ne.s32.totalorder %s55, %s58
      %p67 = scmp.eq.s32.totalorder %s24, 1
      %p68 = por %p66, %p67
      %p69 = scmp.ne.s32.totalorder %s58, %s59
      %p70 = scmp.eq.s32.totalorder %s24, 0
      %p71 = por %p69, %p70
      %p72 = scmp.ne.s32.totalorder %s58, %s59
      %p73 = scmp.eq.s32.totalorder %s25, 1
      %p74 = por %p72, %p73
      %p76 = scmp.ne.s32.totalorder %s59, %s75
      %p77 = scmp.eq.s32.totalorder %s25, 0
      %p78 = por %p76, %p77
      %s80 = sadd.s32 %s79, 1
      %p83 = scmp.eq.s32.totalorder %s19, 1
      %p84 = scmp.ne.s32.totalorder %s79, %s81
      %p85 = scmp.eq.s32.totalorder %s19, 0
      %p86 = por %p84, %p85
      %p87 = scmp.ne.s32.totalorder %s79, %s81
      %p88 = scmp.eq.s32.totalorder %s24, 1
      %p89 = por %p87, %p88
      %p90 = scmp.ne.s32.totalorder %s81, %s82
      %p91 = scmp.eq.s32.totalorder %s24, 0
      %p92 = por %p90, %p91
      %p93 = scmp.ne.s32.totalorder %s81, %s82
      %p94 = scmp.eq.s32.totalorder %s25, 1
      %p95 = por %p93, %p94
      %p97 = scmp.ne.s32.totalorder %s82, %s96
      %p98 = scmp.eq.s32.totalorder %s25, 0
      %p99 = por %p97, %p98
      %s101 = sadd.s32 %s100, 1
      %p104 = scmp.eq.s32.totalorder %s19, 1
      %p105 = scmp.ne.s32.totalorder %s100, %s102
      %p106 = scmp.eq.s32.totalorder %s19, 0
      %p107 = por %p105, %p106
      %p108 = scmp.ne.s32.totalorder %s100, %s102
      %p109 = scmp.eq.s32.totalorder %s24, 1
      %p110 = por %p108, %p109
      %p111 = scmp.ne.s32.totalorder %s102, %s103
      %p112 = scmp.eq.s32.totalorder %s24, 0
      %p113 = por %p111, %p112
      %p114 = scmp.ne.s32.totalorder %s102, %s103
      %p115 = scmp.eq.s32.totalorder %s25, 1
      %p116 = por %p114, %p115
      %p118 = scmp.ne.s32.totalorder %s103, %s117
      %p119 = scmp.eq.s32.totalorder %s25, 0
      %p120 = por %p118, %p119
      %s122 = sadd.s32 %s121, 1
      %p125 = scmp.eq.s32.totalorder %s19, 1
      %p126 = scmp.ne.s32.totalorder %s121, %s123
      %p127 = scmp.eq.s32.totalorder %s19, 0
      %p128 = por %p126, %p127
      %p129 = scmp.ne.s32.totalorder %s121, %s123
      %p130 = scmp.eq.s32.totalorder %s24, 1
      %p131 = por %p129, %p130
      %p132 = scmp.ne.s32.totalorder %s123, %s124
      %p133 = scmp.eq.s32.totalorder %s24, 0
      %p134 = por %p132, %p133
      %p135 = scmp.ne.s32.totalorder %s123, %s124
      %p136 = scmp.eq.s32.totalorder %s25, 1
      %p137 = por %p135, %p136
      %p139 = scmp.ne.s32.totalorder %s124, %s138
      %p140 = scmp.eq.s32.totalorder %s25, 0
      %p141 = por %p139, %p140
      %s143 = sadd.s32 %s142, 1
      %p146 = scmp.eq.s32.totalorder %s19, 1
      %p147 = scmp.ne.s32.totalorder %s142, %s144
      %p148 = scmp.eq.s32.totalorder %s19, 0
      %p149 = por %p147, %p148
      %p150 = scmp.ne.s32.totalorder %s142, %s144
      %p151 = scmp.eq.s32.totalorder %s24, 1
      %p152 = por %p150, %p151
      %p153 = scmp.ne.s32.totalorder %s144, %s145
      %p154 = scmp.eq.s32.totalorder %s24, 0
      %p155 = por %p153, %p154
      %p156 = scmp.ne.s32.totalorder %s144, %s145
      %p157 = scmp.eq.s32.totalorder %s25, 1
      %p158 = por %p156, %p157
      %p160 = scmp.ne.s32.totalorder %s145, %s159
      %p161 = scmp.eq.s32.totalorder %s25, 0
      %p162 = por %p160, %p161
      %s164 = sadd.s32 %s163, 1
      %p167 = scmp.eq.s32.totalorder %s19, 1
      %p168 = scmp.ne.s32.totalorder %s163, %s165
      %p169 = scmp.eq.s32.totalorder %s19, 0
      %p170 = por %p168, %p169
      %p171 = scmp.ne.s32.totalorder %s163, %s165
      %p172 = scmp.eq.s32.totalorder %s24, 1
      %p173 = por %p171, %p172
      %p174 = scmp.ne.s32.totalorder %s165, %s166
      %p175 = scmp.eq.s32.totalorder %s24, 0
      %p176 = por %p174, %p175
      %p177 = scmp.ne.s32.totalorder %s165, %s166
      %p178 = scmp.eq.s32.totalorder %s25, 1
      %p179 = por %p177, %p178
      %p181 = scmp.ne.s32.totalorder %s166, %s180
      %p182 = scmp.eq.s32.totalorder %s25, 0
      %p183 = por %p181, %p182
      %s184 = ssub.s32 %s19, %s26
      %p185 = scmp.eq.s32.totalorder %s184, 0
      %s187 = sadd.s32 %s186, 1
      %s188 = scalar_select %p185, %s186, %s187
      %p191 = pneg %p185
      %p192 = scmp.eq.s32.totalorder %s19, 1
      %p193 = por %p191, %p192
      %p194 = scmp.ne.s32.totalorder %s186, %s189
      %p195 = scmp.eq.s32.totalorder %s19, 0
      %p196 = por %p194, %p195
      %p197 = scmp.ne.s32.totalorder %s186, %s189
      %p198 = scmp.eq.s32.totalorder %s24, 1
      %p199 = por %p197, %p198
      %p200 = scmp.ne.s32.totalorder %s189, %s190
      %p201 = scmp.eq.s32.totalorder %s24, 0
      %p202 = por %p200, %p201
      %p203 = scmp.ne.s32.totalorder %s189, %s190
      %p204 = scmp.eq.s32.totalorder %s25, 1
      %p205 = por %p203, %p204
      %p207 = scmp.ne.s32.totalorder %s190, %s206
      %p208 = scmp.eq.s32.totalorder %s25, 0
      %p209 = por %p207, %p208
      %s211 = sadd.s32 %s210, 1
      %p214 = scmp.eq.s32.totalorder %s19, 1
      %p215 = scmp.ne.s32.totalorder %s210, %s212
      %p216 = scmp.eq.s32.totalorder %s19, 0
      %p217 = por %p215, %p216
      %p218 = scmp.ne.s32.totalorder %s210, %s212
      %p219 = scmp.eq.s32.totalorder %s24, 1
      %p220 = por %p218, %p219
      %p221 = scmp.ne.s32.totalorder %s212, %s213
      %p222 = scmp.eq.s32.totalorder %s24, 0
      %p223 = por %p221, %p222
      %p224 = scmp.ne.s32.totalorder %s212, %s213
      %p225 = scmp.eq.s32.totalorder %s25, 1
      %p226 = por %p224, %p225
      %p228 = scmp.ne.s32.totalorder %s213, %s227
      %p229 = scmp.eq.s32.totalorder %s25, 0
      %p230 = por %p228, %p229
      %s232 = sadd.s32 %s231, 1
      %p235 = scmp.eq.s32.totalorder %s19, 1
      %p236 = scmp.ne.s32.totalorder %s231, %s233
      %p237 = scmp.eq.s32.totalorder %s19, 0
      %p238 = por %p236, %p237
      %p239 = scmp.ne.s32.totalorder %s231, %s233
      %p240 = scmp.eq.s32.totalorder %s24, 1
      %p241 = por %p239, %p240
      %p242 = scmp.ne.s32.totalorder %s233, %s234
      %p243 = scmp.eq.s32.totalorder %s24, 0
      %p244 = por %p242, %p243
      %p245 = scmp.ne.s32.totalorder %s233, %s234
      %p246 = scmp.eq.s32.totalorder %s25, 1
      %p247 = por %p245, %p246
      %p249 = scmp.ne.s32.totalorder %s234, %s248
      %p250 = scmp.eq.s32.totalorder %s25, 0
      %p251 = por %p249, %p250
      %s252 = ssub.s32 %s19, %s26
      %p253 = scmp.eq.s32.totalorder %s252, 0
      %s255 = sadd.s32 %s254, 1
      %s256 = scalar_select %p253, %s254, %s255
      %p259 = pneg %p253
      %p260 = scmp.eq.s32.totalorder %s19, 1
      %p261 = por %p259, %p260
      %p262 = scmp.ne.s32.totalorder %s254, %s257
      %p263 = scmp.eq.s32.totalorder %s19, 0
      %p264 = por %p262, %p263
      %p265 = scmp.ne.s32.totalorder %s254, %s257
      %p266 = scmp.eq.s32.totalorder %s24, 1
      %p267 = por %p265, %p266
      %p268 = scmp.ne.s32.totalorder %s257, %s258
      %p269 = scmp.eq.s32.totalorder %s24, 0
      %p270 = por %p268, %p269
      %p271 = scmp.ne.s32.totalorder %s257, %s258
      %p272 = scmp.eq.s32.totalorder %s25, 1
      %p273 = por %p271, %p272
      %p275 = scmp.ne.s32.totalorder %s258, %s274
      %p276 = scmp.eq.s32.totalorder %s25, 0
      %p277 = por %p275, %p276
      %p278 = scmp.le.s32.totalorder 1, %s19
      %p279 = scmp.lt.s32.totalorder %s19, 3
      %p280 = pnand %p278, %p279
      %p281 = pneg %p280
      // Predicated region
      $region9: #{vanila_transformer_forward.19} parent=5 // pred_check
        _
      $region10: #{vanila_transformer_forward.19} parent=5 // pred_check_branch
        %283 = sbr.rel (%p280) target = $region12
      $region11: #{vanila_transformer_forward.19} parent=5 // pred_region
        %s284 = ssub.s32 %s19, 1
        // Predicated region
        $region13: #{vanila_transformer_forward.19} parent=11 // pred_check
          %p285 = pneg %p92
        $region14: #{vanila_transformer_forward.19} parent=11 // pred_check_branch
          %287 = sbr.rel (%p285) target = $region16
        $region15: #{vanila_transformer_forward.19} parent=11 // pred_region
          _
        $region16: #{vanila_transformer_forward.19} parent=11 // pred_fallthru
          _
        // Predicated region
        $region17: #{vanila_transformer_forward.19} parent=11 // pred_check
          %p288 = pneg %p113
        $region18: #{vanila_transformer_forward.19} parent=11 // pred_check_branch
          %290 = sbr.rel (%p288) target = $region20
        $region19: #{vanila_transformer_forward.19} parent=11 // pred_region
          %292 = vsyncadd [#allocation3], 0
          %s294 = sshll.u32 %s3, 4
          %s295 = int_to_ptr.hbm [resolvable:$true] %s294
          %s296 = sshll.u32 [#allocation2], 4
          %s297 = int_to_ptr.vmem [resolvable:$true] %s296
          %299 = dma.hbm_to_vmem [thread:$0]  %s295, 16, %s297, [#allocation3]
        $region20: #{vanila_transformer_forward.19} parent=11 // pred_fallthru
          _
        // Predicated region
        $region21: #{vanila_transformer_forward.19} parent=11 // pred_check
          %p300 = pneg %p134
        $region22: #{vanila_transformer_forward.19} parent=11 // pred_check_branch
          %302 = sbr.rel (%p300) target = $region24
        $region23: #{vanila_transformer_forward.19} parent=11 // pred_region
          _
        $region24: #{vanila_transformer_forward.19} parent=11 // pred_fallthru
          _
        // Predicated region
        $region25: #{vanila_transformer_forward.19} parent=11 // pred_check
          %p303 = pneg %p155
        $region26: #{vanila_transformer_forward.19} parent=11 // pred_check_branch
          %305 = sbr.rel (%p303) target = $region28
        $region27: #{vanila_transformer_forward.19} parent=11 // pred_region
          %307 = vsyncadd [#allocation5], 0
          %s309 = sshll.u32 %s5, 4
          %s310 = int_to_ptr.hbm [resolvable:$true] %s309
          %s311 = sshll.u32 [#allocation4], 4
          %s312 = int_to_ptr.vmem [resolvable:$true] %s311
          %314 = dma.hbm_to_vmem [thread:$0]  %s310, 16, %s312, [#allocation5]
        $region28: #{vanila_transformer_forward.19} parent=11 // pred_fallthru
          _
        // Predicated region
        $region29: #{vanila_transformer_forward.19} parent=11 // pred_check
          %p315 = pneg %p176
        $region30: #{vanila_transformer_forward.19} parent=11 // pred_check_branch
          %317 = sbr.rel (%p315) target = $region32
        $region31: #{vanila_transformer_forward.19} parent=11 // pred_region
          _
        $region32: #{vanila_transformer_forward.19} parent=11 // pred_fallthru
          _
        // Predicated region
        $region33: #{vanila_transformer_forward.19} parent=11 // pred_check
          %p318 = pneg %p223
        $region34: #{vanila_transformer_forward.19} parent=11 // pred_check_branch
          %320 = sbr.rel (%p318) target = $region36
        $region35: #{vanila_transformer_forward.19} parent=11 // pred_region
          %322 = vsyncadd [#allocation5], 0
          %s324 = sshll.u32 %s8, 4
          %s325 = int_to_ptr.hbm [resolvable:$true] %s324
          %s326 = sshll.u32 [#allocation6], 4
          %s327 = int_to_ptr.vmem [resolvable:$true] %s326
          %329 = dma.hbm_to_vmem [thread:$0]  %s325, 16, %s327, [#allocation5]
        $region36: #{vanila_transformer_forward.19} parent=11 // pred_fallthru
          _
        // Predicated region
        $region37: #{vanila_transformer_forward.19} parent=11 // pred_check
          %p330 = pneg %p244
        $region38: #{vanila_transformer_forward.19} parent=11 // pred_check_branch
          %332 = sbr.rel (%p330) target = $region40
        $region39: #{vanila_transformer_forward.19} parent=11 // pred_region
          %334 = vsyncadd [#allocation8], 0
          %s336 = sshll.u32 %s9, 4
          %s337 = int_to_ptr.hbm [resolvable:$true] %s336
          %s338 = sshll.u32 [#allocation7], 4
          %s339 = int_to_ptr.vmem [resolvable:$true] %s338
          %341 = dma.hbm_to_vmem [thread:$0]  %s337, 16, %s339, [#allocation8]
        $region40: #{vanila_transformer_forward.19} parent=11 // pred_fallthru
          _
      $region12: #{vanila_transformer_forward.19} parent=5 // pred_fallthru
        _
      %p342 = scmp.lt.s32.totalorder %s19, 2
      // Predicated region
      $region41: #{vanila_transformer_forward.19} parent=5 // pred_check
        %p343 = pneg %p342
      $region42: #{vanila_transformer_forward.19} parent=5 // pred_check_branch
        %345 = sbr.rel (%p343) target = $region44
      $region43: #{vanila_transformer_forward.19} parent=5 // pred_region
        // Predicated region
        $region45: #{vanila_transformer_forward.19} parent=43 // pred_check
          %p346 = pneg %p39
        $region46: #{vanila_transformer_forward.19} parent=43 // pred_check_branch
          %348 = sbr.rel (%p346) target = $region48
        $region47: #{vanila_transformer_forward.19} parent=43 // pred_region
          %p349 = scmp.lt.s32.totalorder %s19, 1
          %s350 = scalar_select %p349, %s19, 1
          %s351 = smul.addr %s350, 8
          %s352 = scalar_lea.vmem %s0, %s351
        $region48: #{vanila_transformer_forward.19} parent=43 // pred_fallthru
          _
        // Predicated region
        $region49: #{vanila_transformer_forward.19} parent=43 // pred_check
          %p353 = pneg %p65
        $region50: #{vanila_transformer_forward.19} parent=43 // pred_check_branch
          %355 = sbr.rel (%p353) target = $region52
        $region51: #{vanila_transformer_forward.19} parent=43 // pred_region
          %p356 = scmp.lt.s32.totalorder %s19, 1
          %s357 = scalar_select %p356, %s19, 1
          %s358 = smul.addr %s357, 8
          %s359 = scalar_lea.vmem %s1, %s358
        $region52: #{vanila_transformer_forward.19} parent=43 // pred_fallthru
          _
        // Predicated region
        $region53: #{vanila_transformer_forward.19} parent=43 // pred_check
          %p360 = pneg %p196
        $region54: #{vanila_transformer_forward.19} parent=43 // pred_check_branch
          %362 = sbr.rel (%p360) target = $region56
        $region55: #{vanila_transformer_forward.19} parent=43 // pred_region
          %p363 = scmp.lt.s32.totalorder %s19, 1
          %s364 = scalar_select %p363, %s19, 1
          %s365 = scalar_lea.vmem %s7, %s364
        $region56: #{vanila_transformer_forward.19} parent=43 // pred_fallthru
          _
      $region44: #{vanila_transformer_forward.19} parent=5 // pred_fallthru
        _
      %p366 = scmp.le.s32.totalorder 1, %s19
      %p367 = scmp.lt.s32.totalorder %s19, 3
      %p368 = pnand %p366, %p367
      %p369 = pneg %p368
      // Predicated region
      $region57: #{vanila_transformer_forward.19} parent=5 // pred_check
        _
      $region58: #{vanila_transformer_forward.19} parent=5 // pred_check_branch
        %371 = sbr.rel (%p368) target = $region60
      $region59: #{vanila_transformer_forward.19} parent=5 // pred_region
        %s372 = ssub.s32 %s19, 1
        // Predicated region
        $region61: #{vanila_transformer_forward.19} parent=59 // pred_check
          %p373 = pneg %p113
        $region62: #{vanila_transformer_forward.19} parent=59 // pred_check_branch
          %375 = sbr.rel (%p373) target = $region64
        $region63: #{vanila_transformer_forward.19} parent=59 // pred_region
          %377 = dma.done [#allocation3], 16
        $region64: #{vanila_transformer_forward.19} parent=59 // pred_fallthru
          _
        // Predicated region
        $region65: #{vanila_transformer_forward.19} parent=59 // pred_check
          %p378 = pneg %p155
        $region66: #{vanila_transformer_forward.19} parent=59 // pred_check_branch
          %380 = sbr.rel (%p378) target = $region68
        $region67: #{vanila_transformer_forward.19} parent=59 // pred_region
          %382 = dma.done [#allocation5], 16
        $region68: #{vanila_transformer_forward.19} parent=59 // pred_fallthru
          _
        // Predicated region
        $region69: #{vanila_transformer_forward.19} parent=59 // pred_check
          %p383 = pneg %p223
        $region70: #{vanila_transformer_forward.19} parent=59 // pred_check_branch
          %385 = sbr.rel (%p383) target = $region72
        $region71: #{vanila_transformer_forward.19} parent=59 // pred_region
          %387 = dma.done [#allocation5], 16
        $region72: #{vanila_transformer_forward.19} parent=59 // pred_fallthru
          _
        // Predicated region
        $region73: #{vanila_transformer_forward.19} parent=59 // pred_check
          %p388 = pneg %p244
        $region74: #{vanila_transformer_forward.19} parent=59 // pred_check_branch
          %390 = sbr.rel (%p388) target = $region76
        $region75: #{vanila_transformer_forward.19} parent=59 // pred_region
          %392 = dma.done [#allocation8], 16
        $region76: #{vanila_transformer_forward.19} parent=59 // pred_fallthru
          _
        %p393 = scmp.lt.s32.totalorder %s24, 1
        %s394 = scalar_select %p393, %s24, 1
        %s395 = smul.addr %s394, 8
        %s396 = scalar_lea.vmem %s0, %s395
        %p397 = pneg %p45
        %p398 = pneg %p42
        %p399 = scmp.lt.s32.totalorder %s24, 1
        %s400 = scalar_select %p399, %s24, 1
        %s401 = smul.addr %s400, 8
        %s402 = scalar_lea.vmem %s1, %s401
        %p403 = pneg %p71
        %p404 = pneg %p68
        %p405 = pneg %p92
        %p406 = pneg %p89
        %p407 = pneg %p113
        %p408 = pneg %p110
        %p409 = pneg %p134
        %p410 = pneg %p131
        %p411 = pneg %p155
        %p412 = pneg %p152
        %p413 = pneg %p176
        %p414 = pneg %p173
        %p415 = scmp.lt.s32.totalorder %s24, 1
        %s416 = scalar_select %p415, %s24, 1
        %s417 = scalar_lea.vmem %s7, %s416
        %p418 = pneg %p202
        %p419 = pneg %p199
        %p420 = pneg %p223
        %p421 = pneg %p220
        %p422 = pneg %p244
        %p423 = pneg %p241
        %p424 = pneg %p270
        %p425 = pneg %p267
        %p426 = scmp.lt.s32.totalorder %s24, 1
        %s427 = scalar_select %p426, %s24, 1
        %s428 = smul.addr %s427, 8
        %s429 = scalar_lea.vmem %s10, %s428
        %p430 = scmp.lt.s32.totalorder %s24, 1
        %s431 = scalar_select %p430, %s24, 1
        %s432 = smul.addr %s431, 8
        %s433 = scalar_lea.vmem %s0, %s432
        %p434 = scmp.lt.s32.totalorder %s24, 1
        %s435 = scalar_select %p434, %s24, 1
        %s436 = smul.addr %s435, 8
        %s437 = scalar_lea.vmem %s1, %s436
        %p438 = scmp.lt.s32.totalorder %s24, 1
        %s439 = scalar_select %p438, %s24, 1
        %s440 = scalar_lea.vmem %s7, %s439
        %p441 = scmp.lt.s32.totalorder %s24, 1
        %s442 = scalar_select %p441, %s24, 1
        %s443 = smul.addr %s442, 8
        %s444 = scalar_lea.vmem %s10, %s443
        %v446 = vld [vmem:[%s433] sm:$0xff]
        %v447 = vld [vmem:[%s2] sm:$0xf]
        %v448 = vld [vmem:[%s2 + $0x4] sm:$0xf]
        %v449 = vld [vmem:[%s2 + $0x8] sm:$0xf]
        %v450 = vld [vmem:[%s2 + $0xc] sm:$0xf]
        %v451 = vld [vmem:[#allocation2] sm:$0x1]
        %v452 = vpack.c.bf16 %v446, %v446
        %v453 = vld [vmem:[%s437] sm:$0xff]
        %v454 = vpack.c.bf16 %v453, %v453
        %v456 = vperm.slane %v451, 0
        %v462 = vunpack.c.l.b16 %v447
        %v463 = vunpack.c.l.b16 %v448
        %v464 = vunpack.c.l.b16 %v449
        %v465 = vunpack.c.l.b16 %v450
        %v466 = vpack.c.b16 %v463, %v462
        %v467 = vpack.c.b16 %v465, %v464
        %vm470 = vcmask 261120
        %v472 = vsel %vm470, %v452, 0
        %474 = vmatpush.bf16.msra.mxu0 0
        %475 = vmatpush.bf16.msra.mxu0 0
        %476 = vmatpush.bf16.msra.mxu0 0
        %477 = vmatpush.bf16.msra.mxu0 0
        %478 = vmatpush.bf16.msra.mxu0 0
        %479 = vmatpush.bf16.msra.mxu0 0
        %480 = vmatpush.bf16.msra.mxu0 %v467
        %481 = vmatpush.bf16.msra.mxu0 %v466
        %482 = vmatmul.bf16.gmra.mxu0 %v472
        %v483 = vpop.f32.mrf.mxu0
        %v484 = vadd.f32 %v456, %v483
        %v485 = vpop.f32.mrf.mxu0
        %486 = vdwg.mxu0
        %487 = vrot.lane.b32.xlu0 %v466, 96
        %v488 = vpop.permute.xlu0 %487
        %489 = vrot.lane.b32.xlu0 %v467, 96
        %v490 = vpop.permute.xlu0 %489
        %493 = vrot.lane.b32.xlu0 %v456, 96
        %v494 = vpop.permute.xlu0 %493
        %v497 = vsel %vm470, %v454, 0
        %499 = vmatpush.bf16.msra.mxu0 0
        %500 = vmatpush.bf16.msra.mxu0 0
        %501 = vmatpush.bf16.msra.mxu0 0
        %502 = vmatpush.bf16.msra.mxu0 0
        %503 = vmatpush.bf16.msra.mxu0 0
        %504 = vmatpush.bf16.msra.mxu0 0
        %505 = vmatpush.bf16.msra.mxu0 %v490
        %506 = vmatpush.bf16.msra.mxu0 %v488
        %507 = vmatmul.bf16.gmra.mxu0 %v497
        %v508 = vpop.f32.mrf.mxu0
        %v509 = vadd.f32 %v494, %v508
        %v510 = vpop.f32.mrf.mxu0
        %511 = vdwg.mxu0
        %v512 = vld [vmem:[%s6] sm:$0xff]
        %v513 = vld [vmem:[%s440] sm:$0x1]
        %v515 = vperm.slane %v513, 0
        %v517 = vadd.f32 %v512, %v515
        %v518 = vld [vmem:[%s4] sm:$0xf]
        %v519 = vld [vmem:[%s4 + $0x4] sm:$0xf]
        %v520 = vld [vmem:[%s4 + $0x8] sm:$0xf]
        %v521 = vld [vmem:[%s4 + $0xc] sm:$0xf]
        %v522 = vpack.c.bf16 %v484, %v484
        %v523 = vpack.c.bf16 %v509, %v509
        %vm524 = vcmask 64512
        %v526 = vsel %vm524, %v522, 0
        %v529 = vsel %vm524, %v523, 0
        %531 = vmatpush.bf16.xpose.msra.mxu0 0
        %532 = vmatpush.bf16.xpose.msra.mxu0 0
        %533 = vmatpush.bf16.xpose.msra.mxu0 0
        %534 = vmatpush.bf16.xpose.msra.mxu0 0
        %535 = vmatpush.bf16.xpose.msra.mxu0 0
        %536 = vmatpush.bf16.xpose.msra.mxu0 0
        %537 = vmatpush.bf16.xpose.msra.mxu0 0
        %538 = vmatpush.bf16.xpose.msra.mxu0 %v529
        %539 = vmatmul.bf16.gmra.mxu0 %v526
        %v540 = vpop.f32.mrf.mxu0
        %v541 = vadd.f32 0.0, %v540
        %v542 = vpop.f32.mrf.mxu0
        %543 = vdwg.mxu0
        %v544 = vmul.f32 %v541, 0.35355338
        %v545 = vadd.f32 %v544, %v517
        %v546 = vsel %vm524, %v545, -inf
        %547 = vmax.xlane.f32.xlu0 %v546
        %v548 = vpop.xlane.xlu0 %547
        %v549 = vsub.f32 %v545, %v548
        %v550 = vmul.f32 %v549, 1.442695
        %v551 = vpow.pop %v550
        %v552 = vsel %vm524, %v551, 0.0
        %553 = vadd.xlane.f32.xlu0 %v552
        %v554 = vpop.xlane.xlu0 %553
        %v555 = vrcp.pop %v554
        %v556 = vmul.f32 %v551, %v555
        %v557 = vpack.c.bf16 %v556, %v556
        %559 = vrot.lane.b32.xlu0 %v523, 96
        %v560 = vpop.permute.xlu0 %559
        %v562 = vsel %vm524, %v557, 0
        %vm564 = vcmask 1043456
        %v566 = vsel %vm564, %v560, 0
        %568 = vmatpush.bf16.msra.mxu0 0
        %569 = vmatpush.bf16.msra.mxu0 0
        %570 = vmatpush.bf16.msra.mxu0 0
        %571 = vmatpush.bf16.msra.mxu0 0
        %572 = vmatpush.bf16.msra.mxu0 0
        %573 = vmatpush.bf16.msra.mxu0 0
        %574 = vmatpush.bf16.msra.mxu0 0
        %575 = vmatpush.bf16.msra.mxu0 %v566
        %576 = vmatmul.bf16.gmra.mxu0 %v562
        %v577 = vpop.f32.mrf.mxu0
        %v578 = vadd.f32 0.0, %v577
        %v579 = vpop.f32.mrf.mxu0
        %580 = vdwg.mxu0
        %v581 = vpack.c.bf16 %v578, %v578
        %583 = vrot.lane.b32.xlu0 %v522, 120
        %v584 = vpop.permute.xlu0 %583
        %585 = vrot.lane.b32.xlu0 %v523, 120
        %v586 = vpop.permute.xlu0 %585
        %v588 = vsel %vm524, %v584, 0
        %v591 = vsel %vm524, %v586, 0
        %593 = vmatpush.bf16.xpose.msra.mxu0 0
        %594 = vmatpush.bf16.xpose.msra.mxu0 0
        %595 = vmatpush.bf16.xpose.msra.mxu0 0
        %596 = vmatpush.bf16.xpose.msra.mxu0 0
        %597 = vmatpush.bf16.xpose.msra.mxu0 0
        %598 = vmatpush.bf16.xpose.msra.mxu0 0
        %599 = vmatpush.bf16.xpose.msra.mxu0 0
        %600 = vmatpush.bf16.xpose.msra.mxu0 %v591
        %601 = vmatmul.bf16.gmra.mxu0 %v588
        %v602 = vpop.f32.mrf.mxu0
        %v603 = vadd.f32 0.0, %v602
        %v604 = vpop.f32.mrf.mxu0
        %605 = vdwg.mxu0
        %v606 = vmul.f32 %v603, 0.35355338
        %v607 = vadd.f32 %v606, %v517
        %v608 = vsel %vm524, %v607, -inf
        %609 = vmax.xlane.f32.xlu0 %v608
        %v610 = vpop.xlane.xlu0 %609
        %v611 = vsub.f32 %v607, %v610
        %v612 = vmul.f32 %v611, 1.442695
        %v613 = vpow.pop %v612
        %v614 = vsel %vm524, %v613, 0.0
        %615 = vadd.xlane.f32.xlu0 %v614
        %v616 = vpop.xlane.xlu0 %615
        %v617 = vrcp.pop %v616
        %v618 = vmul.f32 %v613, %v617
        %v619 = vpack.c.bf16 %v618, %v618
        %620 = vrot.lane.b32.xlu0 %v523, 88
        %v621 = vpop.permute.xlu0 %620
        %v623 = vsel %vm524, %v619, 0
        %v626 = vsel %vm564, %v621, 0
        %628 = vmatpush.bf16.msra.mxu0 0
        %629 = vmatpush.bf16.msra.mxu0 0
        %630 = vmatpush.bf16.msra.mxu0 0
        %631 = vmatpush.bf16.msra.mxu0 0
        %632 = vmatpush.bf16.msra.mxu0 0
        %633 = vmatpush.bf16.msra.mxu0 0
        %634 = vmatpush.bf16.msra.mxu0 0
        %635 = vmatpush.bf16.msra.mxu0 %v626
        %636 = vmatmul.bf16.gmra.mxu0 %v623
        %v637 = vpop.f32.mrf.mxu0
        %v638 = vadd.f32 0.0, %v637
        %v639 = vpop.f32.mrf.mxu0
        %640 = vdwg.mxu0
        %v641 = vpack.c.bf16 %v638, %v638
        %v643 = vsel %vm524, %v641, 0
        %v646 = vsel %vm564, %v519, 0
        %648 = vmatpush.bf16.msra.mxu0 0
        %649 = vmatpush.bf16.msra.mxu0 0
        %650 = vmatpush.bf16.msra.mxu0 0
        %651 = vmatpush.bf16.msra.mxu0 0
        %652 = vmatpush.bf16.msra.mxu0 0
        %653 = vmatpush.bf16.msra.mxu0 0
        %654 = vmatpush.bf16.msra.mxu0 0
        %655 = vmatpush.bf16.msra.mxu0 %v646
        %656 = vmatmul.bf16.gmra.mxu0 %v643
        %v657 = vpop.f32.mrf.mxu0
        %v658 = vadd.f32 0.0, %v657
        %v659 = vpop.f32.mrf.mxu0
        %660 = vdwg.mxu0
        %v662 = vsel %vm524, %v581, 0
        %v665 = vsel %vm564, %v518, 0
        %667 = vmatpush.bf16.msra.mxu0 0
        %668 = vmatpush.bf16.msra.mxu0 0
        %669 = vmatpush.bf16.msra.mxu0 0
        %670 = vmatpush.bf16.msra.mxu0 0
        %671 = vmatpush.bf16.msra.mxu0 0
        %672 = vmatpush.bf16.msra.mxu0 0
        %673 = vmatpush.bf16.msra.mxu0 0
        %674 = vmatpush.bf16.msra.mxu0 %v665
        %675 = vmatmul.bf16.gmra.mxu0 %v662
        %v676 = vpop.f32.mrf.mxu0
        %v677 = vadd.f32 %v658, %v676
        %v678 = vpop.f32.mrf.mxu0
        %679 = vdwg.mxu0
        %680 = vrot.lane.b32.xlu0 %v522, 112
        %v681 = vpop.permute.xlu0 %680
        %682 = vrot.lane.b32.xlu0 %v523, 112
        %v683 = vpop.permute.xlu0 %682
        %v685 = vsel %vm524, %v681, 0
        %v688 = vsel %vm524, %v683, 0
        %690 = vmatpush.bf16.xpose.msra.mxu0 0
        %691 = vmatpush.bf16.xpose.msra.mxu0 0
        %692 = vmatpush.bf16.xpose.msra.mxu0 0
        %693 = vmatpush.bf16.xpose.msra.mxu0 0
        %694 = vmatpush.bf16.xpose.msra.mxu0 0
        %695 = vmatpush.bf16.xpose.msra.mxu0 0
        %696 = vmatpush.bf16.xpose.msra.mxu0 0
        %697 = vmatpush.bf16.xpose.msra.mxu0 %v688
        %698 = vmatmul.bf16.gmra.mxu0 %v685
        %v699 = vpop.f32.mrf.mxu0
        %v700 = vadd.f32 0.0, %v699
        %v701 = vpop.f32.mrf.mxu0
        %702 = vdwg.mxu0
        %v703 = vmul.f32 %v700, 0.35355338
        %v704 = vadd.f32 %v703, %v517
        %v705 = vsel %vm524, %v704, -inf
        %706 = vmax.xlane.f32.xlu0 %v705
        %v707 = vpop.xlane.xlu0 %706
        %v708 = vsub.f32 %v704, %v707
        %v709 = vmul.f32 %v708, 1.442695
        %v710 = vpow.pop %v709
        %v711 = vsel %vm524, %v710, 0.0
        %712 = vadd.xlane.f32.xlu0 %v711
        %v713 = vpop.xlane.xlu0 %712
        %v714 = vrcp.pop %v713
        %v715 = vmul.f32 %v710, %v714
        %v716 = vpack.c.bf16 %v715, %v715
        %717 = vrot.lane.b32.xlu0 %v523, 80
        %v718 = vpop.permute.xlu0 %717
        %v720 = vsel %vm524, %v716, 0
        %v723 = vsel %vm564, %v718, 0
        %725 = vmatpush.bf16.msra.mxu0 0
        %726 = vmatpush.bf16.msra.mxu0 0
        %727 = vmatpush.bf16.msra.mxu0 0
        %728 = vmatpush.bf16.msra.mxu0 0
        %729 = vmatpush.bf16.msra.mxu0 0
        %730 = vmatpush.bf16.msra.mxu0 0
        %731 = vmatpush.bf16.msra.mxu0 0
        %732 = vmatpush.bf16.msra.mxu0 %v723
        %733 = vmatmul.bf16.gmra.mxu0 %v720
        %v734 = vpop.f32.mrf.mxu0
        %v735 = vadd.f32 0.0, %v734
        %v736 = vpop.f32.mrf.mxu0
        %737 = vdwg.mxu0
        %v738 = vpack.c.bf16 %v735, %v735
        %v740 = vsel %vm524, %v738, 0
        %v743 = vsel %vm564, %v520, 0
        %745 = vmatpush.bf16.msra.mxu0 0
        %746 = vmatpush.bf16.msra.mxu0 0
        %747 = vmatpush.bf16.msra.mxu0 0
        %748 = vmatpush.bf16.msra.mxu0 0
        %749 = vmatpush.bf16.msra.mxu0 0
        %750 = vmatpush.bf16.msra.mxu0 0
        %751 = vmatpush.bf16.msra.mxu0 0
        %752 = vmatpush.bf16.msra.mxu0 %v743
        %753 = vmatmul.bf16.gmra.mxu0 %v740
        %v754 = vpop.f32.mrf.mxu0
        %v755 = vadd.f32 0.0, %v754
        %v756 = vpop.f32.mrf.mxu0
        %757 = vdwg.mxu0
        %v758 = vadd.f32 %v677, %v755
        %759 = vrot.lane.b32.xlu0 %v522, 104
        %v760 = vpop.permute.xlu0 %759
        %761 = vrot.lane.b32.xlu0 %v523, 104
        %v762 = vpop.permute.xlu0 %761
        %v764 = vsel %vm524, %v760, 0
        %v767 = vsel %vm524, %v762, 0
        %769 = vmatpush.bf16.xpose.msra.mxu0 0
        %770 = vmatpush.bf16.xpose.msra.mxu0 0
        %771 = vmatpush.bf16.xpose.msra.mxu0 0
        %772 = vmatpush.bf16.xpose.msra.mxu0 0
        %773 = vmatpush.bf16.xpose.msra.mxu0 0
        %774 = vmatpush.bf16.xpose.msra.mxu0 0
        %775 = vmatpush.bf16.xpose.msra.mxu0 0
        %776 = vmatpush.bf16.xpose.msra.mxu0 %v767
        %777 = vmatmul.bf16.gmra.mxu0 %v764
        %v778 = vpop.f32.mrf.mxu0
        %v779 = vadd.f32 0.0, %v778
        %v780 = vpop.f32.mrf.mxu0
        %781 = vdwg.mxu0
        %v782 = vmul.f32 %v779, 0.35355338
        %v783 = vadd.f32 %v782, %v517
        %v784 = vsel %vm524, %v783, -inf
        %785 = vmax.xlane.f32.xlu0 %v784
        %v786 = vpop.xlane.xlu0 %785
        %v787 = vsub.f32 %v783, %v786
        %v788 = vmul.f32 %v787, 1.442695
        %v789 = vpow.pop %v788
        %v790 = vsel %vm524, %v789, 0.0
        %791 = vadd.xlane.f32.xlu0 %v790
        %v792 = vpop.xlane.xlu0 %791
        %v793 = vrcp.pop %v792
        %v794 = vmul.f32 %v789, %v793
        %v795 = vpack.c.bf16 %v794, %v794
        %796 = vrot.lane.b32.xlu0 %v523, 72
        %v797 = vpop.permute.xlu0 %796
        %v799 = vsel %vm524, %v795, 0
        %v802 = vsel %vm564, %v797, 0
        %804 = vmatpush.bf16.msra.mxu0 0
        %805 = vmatpush.bf16.msra.mxu0 0
        %806 = vmatpush.bf16.msra.mxu0 0
        %807 = vmatpush.bf16.msra.mxu0 0
        %808 = vmatpush.bf16.msra.mxu0 0
        %809 = vmatpush.bf16.msra.mxu0 0
        %810 = vmatpush.bf16.msra.mxu0 0
        %811 = vmatpush.bf16.msra.mxu0 %v802
        %812 = vmatmul.bf16.gmra.mxu0 %v799
        %v813 = vpop.f32.mrf.mxu0
        %v814 = vadd.f32 0.0, %v813
        %v815 = vpop.f32.mrf.mxu0
        %816 = vdwg.mxu0
        %v817 = vpack.c.bf16 %v814, %v814
        %v819 = vsel %vm524, %v817, 0
        %v822 = vsel %vm564, %v521, 0
        %824 = vmatpush.bf16.msra.mxu0 0
        %825 = vmatpush.bf16.msra.mxu0 0
        %826 = vmatpush.bf16.msra.mxu0 0
        %827 = vmatpush.bf16.msra.mxu0 0
        %828 = vmatpush.bf16.msra.mxu0 0
        %829 = vmatpush.bf16.msra.mxu0 0
        %830 = vmatpush.bf16.msra.mxu0 0
        %831 = vmatpush.bf16.msra.mxu0 %v822
        %832 = vmatmul.bf16.gmra.mxu0 %v819
        %v833 = vpop.f32.mrf.mxu0
        %v834 = vadd.f32 0.0, %v833
        %v835 = vpop.f32.mrf.mxu0
        %836 = vdwg.mxu0
        %v837 = vadd.f32 %v758, %v834
        %v838 = vld [vmem:[#allocation4] sm:$0x1]
        %v840 = vperm.slane %v838, 0
        %v842 = vadd.f32 %v837, %v840
        %v843 = vadd.f32 %v446, %v842
        %v844 = vsel %vm470, %v843, 0.0
        %845 = vadd.xlane.f32.xlu0 %v844
        %v846 = vpop.xlane.xlu0 %845
        %v847 = vrcp.pop 32.0
        %v848 = vmul.f32 32.0, %v847
        %v849 = vsub.f32 1.0, %v848
        %v850 = vmul.f32 %v847, %v849
        %v851 = vadd.f32 %v847, %v850
        %vm852 = vweird.f32 %v847
        %v853 = vsel %vm852, %v847, %v851
        %v854 = vmul.f32 %v846, %v853
        %v855 = vsub.f32 %v843, %v854
        %v856 = vmul.f32 %v855, %v855
        %v857 = vsel %vm470, %v856, 0.0
        %858 = vadd.xlane.f32.xlu0 %v857
        %v859 = vpop.xlane.xlu0 %858
        %v860 = vmul.f32 %v859, %v853
        %v861 = vadd.f32 %v860, 1e-05
        %v862 = vrsqrt.pop %v861
        %v863 = vmul.f32 %v862, %v861
        %v864 = vmul.f32 %v863, %v862
        %v865 = vmul.f32 0.5, %v864
        %v866 = vsub.f32 1.5, %v865
        %v867 = vmul.f32 %v862, %v866
        %vm868 = vweird.f32 %v861
        %vm869 = vweird.f32 %v862
        %vm870 = vmor %vm868, %vm869
        %v871 = vsel %vm870, %v862, %v867
        %v872 = vmul.f32 %v855, %v871
        %v873 = vld [vmem:[#allocation6] sm:$0x1]
        %v875 = vperm.slane %v873, 0
        %v877 = vmul.f32 %v872, %v875
        %v878 = vld [vmem:[#allocation7] sm:$0x1]
        %v880 = vperm.slane %v878, 0
        %v882 = vadd.f32 %v877, %v880
        %883 = vst.msk [vmem:[%s444] sm:$0xff] %vm470, %v882
        %p884 = scmp.lt.s32.totalorder %s24, 1
        %s885 = scalar_select %p884, %s24, 1
        %s886 = smul.addr %s885, 8
        %s887 = scalar_lea.vmem %s10, %s886
        // Predicated region
        $region77: #{vanila_transformer_forward.19} parent=59 // pred_check
          %p888 = pneg %p267
        $region78: #{vanila_transformer_forward.19} parent=59 // pred_check_branch
          %890 = sbr.rel (%p888) target = $region80
        $region79: #{vanila_transformer_forward.19} parent=59 // pred_region
          _
        $region80: #{vanila_transformer_forward.19} parent=59 // pred_fallthru
          _
      $region60: #{vanila_transformer_forward.19} parent=5 // pred_fallthru
        _
      %p891 = scmp.le.s32.totalorder 2, %s19
      // Predicated region
      $region81: #{vanila_transformer_forward.19} parent=5 // pred_check
        %p892 = pneg %p891
      $region82: #{vanila_transformer_forward.19} parent=5 // pred_check_branch
        %894 = sbr.rel (%p892) target = $region84
      $region83: #{vanila_transformer_forward.19} parent=5 // pred_region
        %s895 = ssub.s32 %s19, 2
        // Predicated region
        $region85: #{vanila_transformer_forward.19} parent=83 // pred_check
          %p896 = pneg %p273
        $region86: #{vanila_transformer_forward.19} parent=83 // pred_check_branch
          %898 = sbr.rel (%p896) target = $region88
        $region87: #{vanila_transformer_forward.19} parent=83 // pred_region
          %p899 = scmp.lt.s32.totalorder %s25, 1
          %s900 = scalar_select %p899, %s25, 1
          %s901 = smul.addr %s900, 8
          %s902 = scalar_lea.vmem %s10, %s901
        $region88: #{vanila_transformer_forward.19} parent=83 // pred_fallthru
          _
      $region84: #{vanila_transformer_forward.19} parent=5 // pred_fallthru
        _
    $region6: #{vanila_transformer_forward.19} parent=1 // loop_footer
      %s23 = sadd.s32 1, %s19
    $region7: #{vanila_transformer_forward.19} parent=1 // loop_footer_branch
      %18 = sbr.rel target = $region3
    $region8: #{vanila_transformer_forward.19} parent=1 // loop_exit
      _
    %903 = vsyncpa [#allocation3], 1
    %s904 = scalar_lea.sflag [#allocation3], 1
    %905 = vsyncpa %s904, 1
    %906 = vsyncpa [#allocation5], 1
    %907 = vsyncpa [#allocation8], 1

// kernel: vanila_transformer_forward.21
$region0: #{vanila_transformer_forward.21}
  #allocation0 [shape = 'u32[]', space=smem, size = 0x4, offset = 0x4, fixed_abs, tag = 'smem constant byte address 0x4 - core index']
  #allocation1 [shape = 'u32[72,128]{1,0:T(1,128)}', space=vmem, size = 0x9000, scoped, tag = 'internal scratch']
  %s0 = inlined_call_operand.vmem [shape: f32[16,32], index: 0, kind: input, shape index: {}]
  %s1 = inlined_call_operand.vmem [shape: bf16[32,60], index: 1, kind: input, shape index: {}]
  %s2 = inlined_call_operand.vmem [shape: f32[1,60], index: 2, kind: input, shape index: {}]
  %s3 = inlined_call_operand.hbm [shape: f32[16,60], index: 3, kind: output, shape index: {}]
  %s4 = sld [smem:[#allocation0]]
  $region45: #{vanila_transformer_forward.21} parent=0
    _
  %s6 = ssub.s32 1, %s4
  %s7 = scalar_select 0, %s6, %s4
  $region1: #{vanila_transformer_forward.21} parent=0
    #allocation2 [shape = 'u8[8192]{0}', space=vmem, size = 0x2000, scoped, tag = 'output window, operand 0']
    #allocation3 [shape = 's32[2]{0}', space=sflag, size = 0x8, scoped, tag = 'scoped memory for vanila_transformer_forward.21']
    %8 = vsyncpa [#allocation3], 0
    %s9 = scalar_lea.sflag [#allocation3], 1
    %10 = vsyncpa %s9, 0
    loop: start=0, step=1, limit=4
    $region2: #{vanila_transformer_forward.21} parent=1 // loop_pre_header
      _
    $region3: #{vanila_transformer_forward.21} parent=1 // loop_header
      %s12 = sphi 0, %s16
      %p13 = scmp.ge.s32.totalorder %s12, 4
      %s19 = sphi 0, %s31
      %s20 = sphi 0, %s27
      %s21 = sphi 0, %s19
      %s22 = sphi 0, %s20
      %s23 = sphi 0, %s21
      %s24 = sphi 0, %s22
      %s34 = sphi 0, %s36
      %s37 = sphi 0, %s34
      %s38 = sphi 0, %s37
      %s54 = sphi 0, %s38
      %s60 = sphi 0, %s62
      %s63 = sphi 0, %s60
      %s64 = sphi 0, %s63
      %s80 = sphi 0, %s64
      %s86 = sphi 0, %s88
      %s89 = sphi 0, %s86
      %s90 = sphi 0, %s89
      %s106 = sphi 0, %s90
      %s114 = sphi 0, %s116
      %s117 = sphi 0, %s114
      %s118 = sphi 0, %s117
      %s134 = sphi 0, %s118
    $region4: #{vanila_transformer_forward.21} parent=1 // loop_header_branch
      %15 = sbr.rel (%p13) target = $region8
    $region5: #{vanila_transformer_forward.21} parent=1 // loop_body
      %s17 = ssub.s32 %s12, 1
      %s18 = ssub.s32 %s12, 2
      %s25 = sadd.s32 1, %s20
      %p26 = scmp.ge.s32.totalorder %s25, 1
      %s27 = scalar_select %p26, 0, %s25
      %s28 = sadd.s32 1, %s19
      %s29 = scalar_select %p26, %s28, %s19
      %p30 = scmp.ge.s32.totalorder %s29, 2
      %s31 = scalar_select %p30, 0, %s29
      %s32 = ssub.s32 %s19, %s31
      %p33 = scmp.eq.s32.totalorder %s32, 0
      %s35 = sadd.s32 %s34, 1
      %s36 = scalar_select %p33, %s34, %s35
      %p39 = pneg %p33
      %p40 = scmp.eq.s32.totalorder %s12, 1
      %p41 = por %p39, %p40
      %p42 = scmp.ne.s32.totalorder %s34, %s37
      %p43 = scmp.eq.s32.totalorder %s12, 0
      %p44 = por %p42, %p43
      %p45 = scmp.ne.s32.totalorder %s34, %s37
      %p46 = scmp.eq.s32.totalorder %s17, 1
      %p47 = por %p45, %p46
      %p48 = scmp.ne.s32.totalorder %s37, %s38
      %p49 = scmp.eq.s32.totalorder %s17, 0
      %p50 = por %p48, %p49
      %p51 = scmp.ne.s32.totalorder %s37, %s38
      %p52 = scmp.eq.s32.totalorder %s18, 1
      %p53 = por %p51, %p52
      %p55 = scmp.ne.s32.totalorder %s38, %s54
      %p56 = scmp.eq.s32.totalorder %s18, 0
      %p57 = por %p55, %p56
      %s58 = ssub.s32 %s20, %s27
      %p59 = scmp.eq.s32.totalorder %s58, 0
      %s61 = sadd.s32 %s60, 1
      %s62 = scalar_select %p59, %s60, %s61
      %p65 = pneg %p59
      %p66 = scmp.eq.s32.totalorder %s12, 1
      %p67 = por %p65, %p66
      %p68 = scmp.ne.s32.totalorder %s60, %s63
      %p69 = scmp.eq.s32.totalorder %s12, 0
      %p70 = por %p68, %p69
      %p71 = scmp.ne.s32.totalorder %s60, %s63
      %p72 = scmp.eq.s32.totalorder %s17, 1
      %p73 = por %p71, %p72
      %p74 = scmp.ne.s32.totalorder %s63, %s64
      %p75 = scmp.eq.s32.totalorder %s17, 0
      %p76 = por %p74, %p75
      %p77 = scmp.ne.s32.totalorder %s63, %s64
      %p78 = scmp.eq.s32.totalorder %s18, 1
      %p79 = por %p77, %p78
      %p81 = scmp.ne.s32.totalorder %s64, %s80
      %p82 = scmp.eq.s32.totalorder %s18, 0
      %p83 = por %p81, %p82
      %s84 = ssub.s32 %s20, %s27
      %p85 = scmp.eq.s32.totalorder %s84, 0
      %s87 = sadd.s32 %s86, 1
      %s88 = scalar_select %p85, %s86, %s87
      %p91 = pneg %p85
      %p92 = scmp.eq.s32.totalorder %s12, 1
      %p93 = por %p91, %p92
      %p94 = scmp.ne.s32.totalorder %s86, %s89
      %p95 = scmp.eq.s32.totalorder %s12, 0
      %p96 = por %p94, %p95
      %p97 = scmp.ne.s32.totalorder %s86, %s89
      %p98 = scmp.eq.s32.totalorder %s17, 1
      %p99 = por %p97, %p98
      %p100 = scmp.ne.s32.totalorder %s89, %s90
      %p101 = scmp.eq.s32.totalorder %s17, 0
      %p102 = por %p100, %p101
      %p103 = scmp.ne.s32.totalorder %s89, %s90
      %p104 = scmp.eq.s32.totalorder %s18, 1
      %p105 = por %p103, %p104
      %p107 = scmp.ne.s32.totalorder %s90, %s106
      %p108 = scmp.eq.s32.totalorder %s18, 0
      %p109 = por %p107, %p108
      %s110 = ssub.s32 %s19, %s31
      %s111 = ssub.s32 %s20, %s27
      %s112 = sor.u32 %s110, %s111
      %p113 = scmp.eq.s32.totalorder %s112, 0
      %s115 = sadd.s32 %s114, 1
      %s116 = scalar_select %p113, %s114, %s115
      %p119 = pneg %p113
      %p120 = scmp.eq.s32.totalorder %s12, 1
      %p121 = por %p119, %p120
      %p122 = scmp.ne.s32.totalorder %s114, %s117
      %p123 = scmp.eq.s32.totalorder %s12, 0
      %p124 = por %p122, %p123
      %p125 = scmp.ne.s32.totalorder %s114, %s117
      %p126 = scmp.eq.s32.totalorder %s17, 1
      %p127 = por %p125, %p126
      %p128 = scmp.ne.s32.totalorder %s117, %s118
      %p129 = scmp.eq.s32.totalorder %s17, 0
      %p130 = por %p128, %p129
      %p131 = scmp.ne.s32.totalorder %s117, %s118
      %p132 = scmp.eq.s32.totalorder %s18, 1
      %p133 = por %p131, %p132
      %p135 = scmp.ne.s32.totalorder %s118, %s134
      %p136 = scmp.eq.s32.totalorder %s18, 0
      %p137 = por %p135, %p136
      %p138 = scmp.le.s32.totalorder 1, %s12
      %p139 = scmp.lt.s32.totalorder %s12, 3
      %p140 = pnand %p138, %p139
      %p141 = pneg %p140
      // Predicated region
      $region9: #{vanila_transformer_forward.21} parent=5 // pred_check
        _
      $region10: #{vanila_transformer_forward.21} parent=5 // pred_check_branch
        %143 = sbr.rel (%p140) target = $region12
      $region11: #{vanila_transformer_forward.21} parent=5 // pred_region
        %s144 = ssub.s32 %s12, 1
        // Predicated region
        $region13: #{vanila_transformer_forward.21} parent=11 // pred_check
          %p145 = pneg %p76
        $region14: #{vanila_transformer_forward.21} parent=11 // pred_check_branch
          %147 = sbr.rel (%p145) target = $region16
        $region15: #{vanila_transformer_forward.21} parent=11 // pred_region
          %p148 = scmp.lt.s32.totalorder %s22, 0
          %s149 = scalar_select %p148, %s22, 0
          %s150 = smul.addr %s149, 4
          %s151 = scalar_lea.vmem %s1, %s150
        $region16: #{vanila_transformer_forward.21} parent=11 // pred_fallthru
          _
        // Predicated region
        $region17: #{vanila_transformer_forward.21} parent=11 // pred_check
          %p152 = pneg %p102
        $region18: #{vanila_transformer_forward.21} parent=11 // pred_check_branch
          %154 = sbr.rel (%p152) target = $region20
        $region19: #{vanila_transformer_forward.21} parent=11 // pred_region
          %p155 = scmp.lt.s32.totalorder %s22, 0
          %s156 = scalar_select %p155, %s22, 0
          %s157 = scalar_lea.vmem %s2, %s156
        $region20: #{vanila_transformer_forward.21} parent=11 // pred_fallthru
          _
      $region12: #{vanila_transformer_forward.21} parent=5 // pred_fallthru
        _
      %p158 = scmp.lt.s32.totalorder %s12, 2
      // Predicated region
      $region21: #{vanila_transformer_forward.21} parent=5 // pred_check
        %p159 = pneg %p158
      $region22: #{vanila_transformer_forward.21} parent=5 // pred_check_branch
        %161 = sbr.rel (%p159) target = $region24
      $region23: #{vanila_transformer_forward.21} parent=5 // pred_region
        // Predicated region
        $region25: #{vanila_transformer_forward.21} parent=23 // pred_check
          %p162 = pneg %p44
        $region26: #{vanila_transformer_forward.21} parent=23 // pred_check_branch
          %164 = sbr.rel (%p162) target = $region28
        $region27: #{vanila_transformer_forward.21} parent=23 // pred_region
          %p165 = scmp.lt.s32.totalorder %s19, 1
          %s166 = scalar_select %p165, %s19, 1
          %s167 = smul.addr %s166, 8
          %s168 = scalar_lea.vmem %s0, %s167
        $region28: #{vanila_transformer_forward.21} parent=23 // pred_fallthru
          _
      $region24: #{vanila_transformer_forward.21} parent=5 // pred_fallthru
        _
      %p169 = scmp.le.s32.totalorder 1, %s12
      %p170 = scmp.lt.s32.totalorder %s12, 3
      %p171 = pnand %p169, %p170
      %p172 = pneg %p171
      // Predicated region
      $region29: #{vanila_transformer_forward.21} parent=5 // pred_check
        _
      $region30: #{vanila_transformer_forward.21} parent=5 // pred_check_branch
        %174 = sbr.rel (%p171) target = $region32
      $region31: #{vanila_transformer_forward.21} parent=5 // pred_region
        %s175 = ssub.s32 %s12, 1
        %p176 = scmp.lt.s32.totalorder %s21, 1
        %s177 = scalar_select %p176, %s21, 1
        %s178 = smul.addr %s177, 8
        %s179 = scalar_lea.vmem %s0, %s178
        %p180 = pneg %p50
        %p181 = pneg %p47
        %p182 = scmp.lt.s32.totalorder %s22, 0
        %s183 = scalar_select %p182, %s22, 0
        %s184 = smul.addr %s183, 4
        %s185 = scalar_lea.vmem %s1, %s184
        %p186 = pneg %p76
        %p187 = pneg %p73
        %p188 = scmp.lt.s32.totalorder %s22, 0
        %s189 = scalar_select %p188, %s22, 0
        %s190 = scalar_lea.vmem %s2, %s189
        %p191 = pneg %p102
        %p192 = pneg %p99
        %p193 = pneg %p130
        %p194 = pneg %p127
        %s195 = sand.u32 %s117, 1
        %s196 = scalar_lea.sflag [#allocation3], %s195
        %s197 = sand.u32 %s117, 1
        %s198 = smul.addr %s197, 8
        %s199 = scalar_lea.vmem [#allocation2], %s198
        %p200 = scmp.lt.s32.totalorder %s21, 1
        %s201 = scalar_select %p200, %s21, 1
        %s202 = smul.addr %s201, 8
        %s203 = scalar_lea.vmem %s0, %s202
        %p204 = scmp.lt.s32.totalorder %s22, 0
        %s205 = scalar_select %p204, %s22, 0
        %s206 = smul.addr %s205, 4
        %s207 = scalar_lea.vmem %s1, %s206
        %p208 = scmp.lt.s32.totalorder %s22, 0
        %s209 = scalar_select %p208, %s22, 0
        %s210 = scalar_lea.vmem %s2, %s209
        %v212 = vld [vmem:[%s203] sm:$0xff]
        %v213 = vpack.c.bf16 %v212, %v212
        %v214 = vld [vmem:[%s207] sm:$0xf]
        %v215 = vld [vmem:[%s207 + $0x4] sm:$0xf]
        %v216 = vld [vmem:[%s207 + $0x8] sm:$0xf]
        %v217 = vld [vmem:[%s207 + $0xc] sm:$0xf]
        %v218 = vld [vmem:[%s210] sm:$0x1]
        %v220 = vperm.slane %v218, 0
        %v226 = vunpack.c.l.b16 %v214
        %v227 = vunpack.c.l.b16 %v215
        %v228 = vunpack.c.l.b16 %v216
        %v229 = vunpack.c.l.b16 %v217
        %v230 = vpack.c.b16 %v227, %v226
        %v231 = vpack.c.b16 %v229, %v228
        %vm234 = vcmask 261120
        %v236 = vsel %vm234, %v213, 0
        %238 = vmatpush.bf16.msra.mxu0 0
        %239 = vmatpush.bf16.msra.mxu0 0
        %240 = vmatpush.bf16.msra.mxu0 0
        %241 = vmatpush.bf16.msra.mxu0 0
        %242 = vmatpush.bf16.msra.mxu0 0
        %243 = vmatpush.bf16.msra.mxu0 0
        %244 = vmatpush.bf16.msra.mxu0 %v231
        %245 = vmatpush.bf16.msra.mxu0 %v230
        %246 = vmatmul.bf16.gmra.mxu0 %v236
        %v247 = vpop.f32.mrf.mxu0
        %v248 = vadd.f32 %v220, %v247
        %v249 = vpop.f32.mrf.mxu0
        %250 = vdwg.mxu0
        %vm251 = vcmask 490496
        %252 = vst.msk [vmem:[%s199] sm:$0xff] %vm251, %v248
        %s253 = sand.u32 %s117, 1
        %s254 = scalar_lea.sflag [#allocation3], %s253
        %s255 = sand.u32 %s117, 1
        %s256 = smul.addr %s255, 8
        %s257 = scalar_lea.vmem [#allocation2], %s256
        // Predicated region
        $region33: #{vanila_transformer_forward.21} parent=31 // pred_check
          %p258 = pneg %p127
        $region34: #{vanila_transformer_forward.21} parent=31 // pred_check_branch
          %260 = sbr.rel (%p258) target = $region36
        $region35: #{vanila_transformer_forward.21} parent=31 // pred_region
          %262 = vsyncadd %s254, 0
          %s263 = sadd.s32 %s22, %s21
          %s264 = smul.addr %s263, 8
          %s265 = scalar_lea.hbm %s3, %s264
          %s267 = sshll.u32 %s257, 4
          %s268 = int_to_ptr.vmem [resolvable:$true] %s267
          %s269 = sshll.u32 %s265, 4
          %s270 = int_to_ptr.hbm [resolvable:$true] %s269
          %272 = dma.vmem_to_hbm [thread:$0]  %s268, 128, %s270, %s254
        $region36: #{vanila_transformer_forward.21} parent=31 // pred_fallthru
          _
      $region32: #{vanila_transformer_forward.21} parent=5 // pred_fallthru
        _
      %p273 = scmp.le.s32.totalorder 2, %s12
      // Predicated region
      $region37: #{vanila_transformer_forward.21} parent=5 // pred_check
        %p274 = pneg %p273
      $region38: #{vanila_transformer_forward.21} parent=5 // pred_check_branch
        %276 = sbr.rel (%p274) target = $region40
      $region39: #{vanila_transformer_forward.21} parent=5 // pred_region
        %s277 = ssub.s32 %s12, 2
        // Predicated region
        $region41: #{vanila_transformer_forward.21} parent=39 // pred_check
          %p278 = pneg %p133
        $region42: #{vanila_transformer_forward.21} parent=39 // pred_check_branch
          %280 = sbr.rel (%p278) target = $region44
        $region43: #{vanila_transformer_forward.21} parent=39 // pred_region
          %s281 = sand.u32 %s118, 1
          %s282 = scalar_lea.sflag [#allocation3], %s281
          %s283 = sand.u32 %s118, 1
          %s284 = smul.addr %s283, 8
          %s285 = scalar_lea.vmem [#allocation2], %s284
          %287 = dma.done %s282, 128
        $region44: #{vanila_transformer_forward.21} parent=39 // pred_fallthru
          _
      $region40: #{vanila_transformer_forward.21} parent=5 // pred_fallthru
        _
    $region6: #{vanila_transformer_forward.21} parent=1 // loop_footer
      %s16 = sadd.s32 1, %s12
    $region7: #{vanila_transformer_forward.21} parent=1 // loop_footer_branch
      %11 = sbr.rel target = $region3
    $region8: #{vanila_transformer_forward.21} parent=1 // loop_exit
      _
    %288 = vsyncpa [#allocation3], 1
    %s289 = scalar_lea.sflag [#allocation3], 1
    %290 = vsyncpa %s289, 1

</llo_original>
